<compile_context>
chip_gen: v7x
topology: tpu7x:2x2x1
jax: 0.10.0
libtpu: 0.0.40
codegen_flags: <defaults>
</compile_context>

<pallas_src>
import functools

import jax
import jax.numpy as jnp
from jax.experimental import pallas as pl
from jax.experimental.pallas import tpu as pltpu


# ----------------------------------------------------------------------------
# helpers
# ----------------------------------------------------------------------------
def _round_up(x, m):
    return ((x + m - 1) // m) * m


def _pick_tile_h(h2, rs, cin_p, cout_p, pool, batch):
    """Largest row tile whose in-kernel intermediates fit a VMEM budget."""
    budget = 24 * 1024 * 1024          # intermediates target; 48 MiB scoped limit
    cand = [t for t in range(min(h2, 64), 0, -1)
            if h2 % t == 0 and (not pool or t % 2 == 0)]
    if not cand:
        raise ValueError(f"no valid row tile for H={h2} (pool={pool})")

    def vmem_est(t):
        m = t * rs
        taps = (12 if pool else 9) * cin_p * m * 2        # bf16 tap views
        patches = (2 if pool else 1) * 9 * cin_p * m * 2  # bf16 im2col matrices
        accs = (3 if pool else 1) * cout_p * m * 4        # f32 GEMM outs (+scratch)
        blocks = 2 * cin_p * (t + 3) * rs * 2 + 2 * cout_p * m * 4
        return taps + patches + accs + blocks

    ok = [t for t in cand if vmem_est(t) <= budget]
    if not ok:
        return cand[-1]
    for t in ok:                       # largest first; keep grid >= 2 for megacore
        if batch * (h2 // t) >= 2:
            return t
    return ok[0]


# ----------------------------------------------------------------------------
# fused conv3x3 (+bias+ReLU [+maxpool2x2]) Pallas kernel
# ----------------------------------------------------------------------------
def _conv3x3_kernel(x_ref, w_ref, b_ref, o_ref, *scratch,
                    rs, whp, th, wo, pool):
    """x_ref: (1,1,Cin_p,Lp) bf16 channel-major flattened halo row tile
       w_ref: (Cout_p, 9*Cin_p) bf16     b_ref: (Cout_p, 1) f32
       o_ref: (1,1,Cout_p,m_out)         scratch (pool only): (Cout_p, m) f32
    Flat spatial layout inside a tile: row r occupies lanes [r*rs, (r+1)*rs).
    For pooled layers the row is parity-split: [even padded cols | odd cols].
    """
    m = th * rs

    def tap(dy, off):                                      # (Cin_p, m) bf16
        return x_ref[0, 0, :, pl.ds(dy * rs + off, m)]

    if not pool:
        patches = jnp.concatenate(
            [tap(dy, dx) for dy in range(3) for dx in range(3)], axis=0)
        acc = jnp.dot(w_ref[...], patches, preferred_element_type=jnp.float32)
        o_ref[0, 0, :, :] = jnp.maximum(acc + b_ref[...], 0.0).astype(o_ref.dtype)
        return

    ym_ref, = scratch
    taps = {(dy, off): tap(dy, off)
            for dy in range(3) for off in (0, 1, whp, whp + 1)}
    # even output columns use padded cols (2q, 2q+1, 2q+2) = (E_q, O_q, E_{q+1})
    pe = jnp.concatenate(
        [taps[(dy, o)] for dy in range(3) for o in (0, whp, 1)], axis=0)
    # odd output columns use (2q+1, 2q+2, 2q+3) = (O_q, E_{q+1}, O_{q+1})
    po = jnp.concatenate(
        [taps[(dy, o)] for dy in range(3) for o in (whp, 1, whp + 1)], axis=0)
    ye = jnp.dot(w_ref[...], pe, preferred_element_type=jnp.float32)
    yo = jnp.dot(w_ref[...], po, preferred_element_type=jnp.float32)
    ym_ref[...] = jnp.maximum(ye, yo)                      # W-direction pool (VPU)

    rows = []
    for p in range(th // 2):                               # H-direction pool + pack
        a = ym_ref[:, pl.ds((2 * p) * rs, wo)]
        b = ym_ref[:, pl.ds((2 * p + 1) * rs, wo)]
        rows.append(jnp.maximum(a, b))
    pooled = jnp.concatenate(rows, axis=-1)                # (Cout_p, (th//2)*wo)
    o_ref[0, 0, :, :] = jnp.maximum(pooled + b_ref[...], 0.0).astype(o_ref.dtype)


def conv3x3_block(x, wgt, bias, *, pool=False, upsample=False,
                  out_dtype=jnp.bfloat16):
    """NCHW:  y = [maxpool2x2] relu(conv3x3([upsample2x] x) + b)."""
    n, cin, h, w = x.shape
    cout = wgt.shape[-1]
    cin_p, cout_p = _round_up(cin, 8), _round_up(cout, 8)

    x = x.astype(jnp.bfloat16)
    if cin_p != cin:
        x = jnp.pad(x, ((0, 0), (0, cin_p - cin), (0, 0), (0, 0)))
    w_p = jnp.pad(wgt, ((0, 0), (0, 0), (0, cin_p - cin), (0, cout_p - cout)))
    w_mat = jnp.transpose(w_p, (3, 0, 1, 2)).reshape(cout_p, 9 * cin_p)
    w_mat = w_mat.astype(jnp.bfloat16)
    b_p = jnp.pad(bias, ((0, cout_p - cout),)).reshape(cout_p, 1).astype(jnp.float32)

    # zero pad (pad=1), optionally after a 2x nearest upsample (index gather)
    xp = jnp.pad(x, ((0, 0), (0, 0), (1, 1), (1, 1)))
    if upsample:
        h2, w2 = 2 * h, 2 * w
        ri = (jnp.arange(h2 + 2) - 1) // 2 + 1
        ci = (jnp.arange(w2 + 2) - 1) // 2 + 1
        xp = xp[:, :, ri][:, :, :, ci]
    else:
        h2, w2 = h, w

    if pool:
        assert h2 % 2 == 0 and w2 % 2 == 0, "pooled layer needs even spatial dims"
        wo = w2 // 2
        whp = _round_up(wo + 1, 4)
        rs = 2 * whp
        # de-interleave columns: [even padded cols | odd padded cols] per row
        xp = jnp.pad(xp, ((0, 0), (0, 0), (0, 0), (0, 1)))   # dummy zero col
        q = jnp.arange(whp)
        ev = jnp.where(q < wo + 1, 2 * q, w2 + 2)
        od = jnp.where(q < wo + 1, 2 * q + 1, w2 + 2)
        xcols = jnp.take(xp, jnp.concatenate([ev, od]), axis=3)
        m_out_cols = wo
    else:
        wo, whp = 0, 0
        rs = _round_up(w2 + 2, 8)
        xcols = jnp.pad(xp, ((0, 0), (0, 0), (0, 0), (0, rs - (w2 + 2))))
        m_out_cols = rs

    th = _pick_tile_h(h2, rs, cin_p, cout_p, pool, n)
    n_t = h2 // th
    lp = (th + 3) * rs

    # overlapping (tile_h+2)-row halo windows (+1 slack row), flattened per tile
    row_idx = jnp.clip(jnp.arange(n_t)[:, None] * th + jnp.arange(th + 3)[None, :],
                       0, h2 + 1).reshape(-1)
    xt = jnp.take(xcols, row_idx, axis=2)
    xt = xt.reshape(n, cin_p, n_t, th + 3, rs)
    xt = xt.transpose(0, 2, 1, 3, 4).reshape(n, n_t, cin_p, lp)

    th_out = th // 2 if pool else th
    m_out = th_out * m_out_cols
    h_out = h2 // 2 if pool else h2
    w_out = wo if pool else w2
    m = th * rs

    kernel = functools.partial(_conv3x3_kernel, rs=rs, whp=whp, th=th, wo=wo,
                               pool=pool)
    out = pl.pallas_call(
        kernel,
        out_shape=jax.ShapeDtypeStruct((n, n_t, cout_p, m_out), out_dtype),
        grid=(n, n_t),
        in_specs=[
            pl.BlockSpec((1, 1, cin_p, lp), lambda i, t: (i, t, 0, 0)),
            pl.BlockSpec((cout_p, 9 * cin_p), lambda i, t: (0, 0)),   # resident
            pl.BlockSpec((cout_p, 1), lambda i, t: (0, 0)),           # resident
        ],
        out_specs=pl.BlockSpec((1, 1, cout_p, m_out), lambda i, t: (i, t, 0, 0)),
        scratch_shapes=([pltpu.VMEM((cout_p, m), jnp.float32)] if pool else ()),
        compiler_params=pltpu.CompilerParams(
            dimension_semantics=("parallel", "parallel"),
            vmem_limit_bytes=48 * 1024 * 1024),
    )(xt, w_mat, b_p)

    # (N, n_t, C, th_out, cols) -> (N, C, H_out, cols); strip junk cols / chans.
    y = out.reshape(n, n_t, cout_p, th_out, m_out_cols)
    y = y.transpose(0, 2, 1, 3, 4).reshape(n, cout_p, h_out, m_out_cols)
    return y[:, :cout, :, :w_out]


# ----------------------------------------------------------------------------
# Model: deterministic parameter init + forward (NCHW end to end)
# ----------------------------------------------------------------------------
_LAYER_CHANNELS = [
    ("enc1", 3, 64), ("enc2", 64, 32), ("enc3", 32, 16), ("enc4", 16, 16),
    ("dec1", 16, 32), ("dec2", 32, 64), ("dec3", 64, 3),
]


def init_params(key):
    params = {}
    for name, cin, cout in _LAYER_CHANNELS:
        key, kw, kb = jax.random.split(key, 3)
        fan_in = 9 * cin
        w = jax.random.normal(kw, (3, 3, cin, cout), jnp.float32) * jnp.sqrt(2.0 / fan_in)
        b = jax.random.uniform(kb, (cout,), jnp.float32, -0.1, 0.1)
        params[name] = (w, b)
    return params


def cnn_model_forward(x_nchw, params):
    x = conv3x3_block(x_nchw, *params["enc1"], pool=True)
    x = conv3x3_block(x, *params["enc2"], pool=True)
    x = conv3x3_block(x, *params["enc3"], pool=True)
    x = conv3x3_block(x, *params["enc4"])
    x = conv3x3_block(x, *params["dec1"], upsample=True)
    x = conv3x3_block(x, *params["dec2"], upsample=True)
    x = conv3x3_block(x, *params["dec3"], upsample=True, out_dtype=jnp.float32)
    return x


# ----------------------------------------------------------------------------
# Pure-JAX reference (same bf16 quantization points) for a correctness check
# ----------------------------------------------------------------------------
def reference_forward(x_nchw, params):
    def q(t):  # bf16 round-trip, matching what the Pallas path stores per layer
        return t.astype(jnp.bfloat16).astype(jnp.float32)

    def conv(x, wgt, bias):
        w_oihw = jnp.transpose(q(wgt), (3, 2, 0, 1))
        y = jax.lax.conv_general_dilated(
            x, w_oihw, window_strides=(1, 1), padding=((1, 1), (1, 1)),
            dimension_numbers=("NCHW", "OIHW", "NCHW"),
            precision=jax.lax.Precision.HIGHEST)
        return jax.nn.relu(y + bias[None, :, None, None])

    def pool(x):
        return jax.lax.reduce_window(x, -jnp.inf, jax.lax.max,
                                     (1, 1, 2, 2), (1, 1, 2, 2), "VALID")

    def up(x):
        return jnp.repeat(jnp.repeat(x, 2, axis=2), 2, axis=3)

    x = q(x_nchw)
    x = q(pool(conv(x, *params["enc1"])))
    x = q(pool(conv(x, *params["enc2"])))
    x = q(pool(conv(x, *params["enc3"])))
    x = q(conv(x, *params["enc4"]))
    x = q(conv(up(x), *params["dec1"]))
    x = q(conv(up(x), *params["dec2"]))
    x = conv(up(x), *params["dec3"])
    return x


if __name__ == "__main__":
    key = jax.random.PRNGKey(0)
    kx, kp = jax.random.split(key)
    # Small shapes: batch=2, channels=3 (module requires 3), spatial=16
    # (spatial must be divisible by 8 for the three 2x pools; 224 in the real model).
    x = jax.random.normal(kx, (2, 3, 16, 16), jnp.float32)
    params = init_params(kp)

    fwd = jax.jit(lambda xx: cnn_model_forward(xx, params))
    out = jax.block_until_ready(fwd(x))
    assert out.shape == (2, 3, 16, 16), out.shape

    ref = jax.block_until_ready(reference_forward(x, params))
    max_err = float(jnp.max(jnp.abs(out - ref)))
    assert jnp.allclose(out, ref, atol=3e-2, rtol=3e-2), max_err

    print("KERNEL_OK")
</pallas_src>

<mosaic_0001>
module attributes {stable_mosaic.version = 11 : i64} {
  func.func @_conv3x3_kernel(%arg0: i32, %arg1: i32, %arg2: memref<1x1x8x456xbf16, #tpu.memory_space<vmem>>, %arg3: memref<64x72xbf16, #tpu.memory_space<vmem>>, %arg4: memref<64x1xf32, #tpu.memory_space<vmem>>, %arg5: memref<1x1x64x64xbf16, #tpu.memory_space<vmem>>, %arg6: memref<64x384xf32, #tpu.memory_space<vmem>>) attributes {dimension_semantics = [#tpu.dimension_semantics<parallel>, #tpu.dimension_semantics<parallel>], iteration_bounds = array<i64: 2, 1>, scalar_prefetch = 0 : i64, scratch_operands = 1 : i64, tpu.core_type = #tpu.core_type<tc>, window_params = [{transform_indices = @transform_0, window_bounds = array<i64: 1, 1, 8, 456>}, {pipeline_mode = #tpu.pipeline_mode<synchronous>, transform_indices = @transform_1, window_bounds = array<i64: 64, 72>}, {pipeline_mode = #tpu.pipeline_mode<synchronous>, transform_indices = @transform_2, window_bounds = array<i64: 64, 1>}, {transform_indices = @transform_3, window_bounds = array<i64: 1, 1, 64, 64>}]} {
    %c0 = arith.constant 0 : index
    %c0_0 = arith.constant 0 : index
    %c0_1 = arith.constant 0 : index
    %c0_2 = arith.constant 0 : index
    %0 = vector.load %arg2[%c0, %c0_0, %c0_1, %c0_2] : memref<1x1x8x456xbf16, #tpu.memory_space<vmem>>, vector<1x1x8x384xbf16>
    %1 = vector.shape_cast %0 : vector<1x1x8x384xbf16> to vector<8x384xbf16>
    %c0_3 = arith.constant 0 : index
    %c0_4 = arith.constant 0 : index
    %c0_5 = arith.constant 0 : index
    %c1 = arith.constant 1 : index
    %2 = vector.load %arg2[%c0_3, %c0_4, %c0_5, %c1] : memref<1x1x8x456xbf16, #tpu.memory_space<vmem>>, vector<1x1x8x384xbf16>
    %3 = vector.shape_cast %2 : vector<1x1x8x384xbf16> to vector<8x384xbf16>
    %c0_6 = arith.constant 0 : index
    %c0_7 = arith.constant 0 : index
    %c0_8 = arith.constant 0 : index
    %c12 = arith.constant 12 : index
    %4 = vector.load %arg2[%c0_6, %c0_7, %c0_8, %c12] : memref<1x1x8x456xbf16, #tpu.memory_space<vmem>>, vector<1x1x8x384xbf16>
    %5 = vector.shape_cast %4 : vector<1x1x8x384xbf16> to vector<8x384xbf16>
    %c0_9 = arith.constant 0 : index
    %c0_10 = arith.constant 0 : index
    %c0_11 = arith.constant 0 : index
    %c13 = arith.constant 13 : index
    %6 = vector.load %arg2[%c0_9, %c0_10, %c0_11, %c13] : memref<1x1x8x456xbf16, #tpu.memory_space<vmem>>, vector<1x1x8x384xbf16>
    %7 = vector.shape_cast %6 : vector<1x1x8x384xbf16> to vector<8x384xbf16>
    %c0_12 = arith.constant 0 : index
    %c0_13 = arith.constant 0 : index
    %c0_14 = arith.constant 0 : index
    %c24 = arith.constant 24 : index
    %8 = vector.load %arg2[%c0_12, %c0_13, %c0_14, %c24] : memref<1x1x8x456xbf16, #tpu.memory_space<vmem>>, vector<1x1x8x384xbf16>
    %9 = vector.shape_cast %8 : vector<1x1x8x384xbf16> to vector<8x384xbf16>
    %c0_15 = arith.constant 0 : index
    %c0_16 = arith.constant 0 : index
    %c0_17 = arith.constant 0 : index
    %c25 = arith.constant 25 : index
    %10 = vector.load %arg2[%c0_15, %c0_16, %c0_17, %c25] : memref<1x1x8x456xbf16, #tpu.memory_space<vmem>>, vector<1x1x8x384xbf16>
    %11 = vector.shape_cast %10 : vector<1x1x8x384xbf16> to vector<8x384xbf16>
    %c0_18 = arith.constant 0 : index
    %c0_19 = arith.constant 0 : index
    %c0_20 = arith.constant 0 : index
    %c36 = arith.constant 36 : index
    %12 = vector.load %arg2[%c0_18, %c0_19, %c0_20, %c36] : memref<1x1x8x456xbf16, #tpu.memory_space<vmem>>, vector<1x1x8x384xbf16>
    %13 = vector.shape_cast %12 : vector<1x1x8x384xbf16> to vector<8x384xbf16>
    %c0_21 = arith.constant 0 : index
    %c0_22 = arith.constant 0 : index
    %c0_23 = arith.constant 0 : index
    %c37 = arith.constant 37 : index
    %14 = vector.load %arg2[%c0_21, %c0_22, %c0_23, %c37] : memref<1x1x8x456xbf16, #tpu.memory_space<vmem>>, vector<1x1x8x384xbf16>
    %15 = vector.shape_cast %14 : vector<1x1x8x384xbf16> to vector<8x384xbf16>
    %c0_24 = arith.constant 0 : index
    %c0_25 = arith.constant 0 : index
    %c0_26 = arith.constant 0 : index
    %c48 = arith.constant 48 : index
    %16 = vector.load %arg2[%c0_24, %c0_25, %c0_26, %c48] : memref<1x1x8x456xbf16, #tpu.memory_space<vmem>>, vector<1x1x8x384xbf16>
    %17 = vector.shape_cast %16 : vector<1x1x8x384xbf16> to vector<8x384xbf16>
    %c0_27 = arith.constant 0 : index
    %c0_28 = arith.constant 0 : index
    %c0_29 = arith.constant 0 : index
    %c49 = arith.constant 49 : index
    %18 = vector.load %arg2[%c0_27, %c0_28, %c0_29, %c49] : memref<1x1x8x456xbf16, #tpu.memory_space<vmem>>, vector<1x1x8x384xbf16>
    %19 = vector.shape_cast %18 : vector<1x1x8x384xbf16> to vector<8x384xbf16>
    %c0_30 = arith.constant 0 : index
    %c0_31 = arith.constant 0 : index
    %c0_32 = arith.constant 0 : index
    %c60 = arith.constant 60 : index
    %20 = vector.load %arg2[%c0_30, %c0_31, %c0_32, %c60] : memref<1x1x8x456xbf16, #tpu.memory_space<vmem>>, vector<1x1x8x384xbf16>
    %21 = vector.shape_cast %20 : vector<1x1x8x384xbf16> to vector<8x384xbf16>
    %c0_33 = arith.constant 0 : index
    %c0_34 = arith.constant 0 : index
    %c0_35 = arith.constant 0 : index
    %c61 = arith.constant 61 : index
    %22 = vector.load %arg2[%c0_33, %c0_34, %c0_35, %c61] : memref<1x1x8x456xbf16, #tpu.memory_space<vmem>>, vector<1x1x8x384xbf16>
    %23 = vector.shape_cast %22 : vector<1x1x8x384xbf16> to vector<8x384xbf16>
    %24 = tpu.concatenate %1, %5, %3, %9, %13, %11, %17, %21, %19 in 0 : vector<8x384xbf16>, vector<8x384xbf16>, vector<8x384xbf16>, vector<8x384xbf16>, vector<8x384xbf16>, vector<8x384xbf16>, vector<8x384xbf16>, vector<8x384xbf16>, vector<8x384xbf16> -> vector<72x384xbf16>
    %25 = tpu.concatenate %5, %3, %7, %13, %11, %15, %21, %19, %23 in 0 : vector<8x384xbf16>, vector<8x384xbf16>, vector<8x384xbf16>, vector<8x384xbf16>, vector<8x384xbf16>, vector<8x384xbf16>, vector<8x384xbf16>, vector<8x384xbf16>, vector<8x384xbf16> -> vector<72x384xbf16>
    %c0_36 = arith.constant 0 : index
    %c0_37 = arith.constant 0 : index
    %26 = vector.load %arg3[%c0_36, %c0_37] : memref<64x72xbf16, #tpu.memory_space<vmem>>, vector<64x72xbf16>
    %cst = arith.constant dense<0.000000e+00> : vector<64x384xf32>
    %27 = tpu.matmul %26, %24, %cst {dimension_numbers = #tpu.dot_dimension_numbers<[1], [0], [0], [1], [0, 0, 1, 1], [], []>} : vector<64x72xbf16>, vector<72x384xbf16>, vector<64x384xf32> -> vector<64x384xf32>
    %c0_38 = arith.constant 0 : index
    %c0_39 = arith.constant 0 : index
    %28 = vector.load %arg3[%c0_38, %c0_39] : memref<64x72xbf16, #tpu.memory_space<vmem>>, vector<64x72xbf16>
    %cst_40 = arith.constant dense<0.000000e+00> : vector<64x384xf32>
    %29 = tpu.matmul %28, %25, %cst_40 {dimension_numbers = #tpu.dot_dimension_numbers<[1], [0], [0], [1], [0, 0, 1, 1], [], []>} : vector<64x72xbf16>, vector<72x384xbf16>, vector<64x384xf32> -> vector<64x384xf32>
    %30 = arith.maximumf %27, %29 : vector<64x384xf32>
    %c0_41 = arith.constant 0 : index
    %c0_42 = arith.constant 0 : index
    %31 = vector.load %arg6[%c0_41, %c0_42] : memref<64x384xf32, #tpu.memory_space<vmem>>, vector<64x384xf32>
    tpu.vector_store %arg6[%c0_41, %c0_42], %30 {strides = array<i32>} : memref<64x384xf32, #tpu.memory_space<vmem>>, vector<64x384xf32>,
    %c0_43 = arith.constant 0 : index
    %c0_44 = arith.constant 0 : index
    %32 = vector.load %arg6[%c0_43, %c0_44] : memref<64x384xf32, #tpu.memory_space<vmem>>, vector<64x8xf32>
    %c0_45 = arith.constant 0 : index
    %c24_46 = arith.constant 24 : index
    %33 = vector.load %arg6[%c0_45, %c24_46] : memref<64x384xf32, #tpu.memory_space<vmem>>, vector<64x8xf32>
    %34 = arith.maximumf %32, %33 : vector<64x8xf32>
    %c0_47 = arith.constant 0 : index
    %c48_48 = arith.constant 48 : index
    %35 = vector.load %arg6[%c0_47, %c48_48] : memref<64x384xf32, #tpu.memory_space<vmem>>, vector<64x8xf32>
    %c0_49 = arith.constant 0 : index
    %c72 = arith.constant 72 : index
    %36 = vector.load %arg6[%c0_49, %c72] : memref<64x384xf32, #tpu.memory_space<vmem>>, vector<64x8xf32>
    %37 = arith.maximumf %35, %36 : vector<64x8xf32>
    %c0_50 = arith.constant 0 : index
    %c96 = arith.constant 96 : index
    %38 = vector.load %arg6[%c0_50, %c96] : memref<64x384xf32, #tpu.memory_space<vmem>>, vector<64x8xf32>
    %c0_51 = arith.constant 0 : index
    %c120 = arith.constant 120 : index
    %39 = vector.load %arg6[%c0_51, %c120] : memref<64x384xf32, #tpu.memory_space<vmem>>, vector<64x8xf32>
    %40 = arith.maximumf %38, %39 : vector<64x8xf32>
    %c0_52 = arith.constant 0 : index
    %c144 = arith.constant 144 : index
    %41 = vector.load %arg6[%c0_52, %c144] : memref<64x384xf32, #tpu.memory_space<vmem>>, vector<64x8xf32>
    %c0_53 = arith.constant 0 : index
    %c168 = arith.constant 168 : index
    %42 = vector.load %arg6[%c0_53, %c168] : memref<64x384xf32, #tpu.memory_space<vmem>>, vector<64x8xf32>
    %43 = arith.maximumf %41, %42 : vector<64x8xf32>
    %c0_54 = arith.constant 0 : index
    %c192 = arith.constant 192 : index
    %44 = vector.load %arg6[%c0_54, %c192] : memref<64x384xf32, #tpu.memory_space<vmem>>, vector<64x8xf32>
    %c0_55 = arith.constant 0 : index
    %c216 = arith.constant 216 : index
    %45 = vector.load %arg6[%c0_55, %c216] : memref<64x384xf32, #tpu.memory_space<vmem>>, vector<64x8xf32>
    %46 = arith.maximumf %44, %45 : vector<64x8xf32>
    %c0_56 = arith.constant 0 : index
    %c240 = arith.constant 240 : index
    %47 = vector.load %arg6[%c0_56, %c240] : memref<64x384xf32, #tpu.memory_space<vmem>>, vector<64x8xf32>
    %c0_57 = arith.constant 0 : index
    %c264 = arith.constant 264 : index
    %48 = vector.load %arg6[%c0_57, %c264] : memref<64x384xf32, #tpu.memory_space<vmem>>, vector<64x8xf32>
    %49 = arith.maximumf %47, %48 : vector<64x8xf32>
    %c0_58 = arith.constant 0 : index
    %c288 = arith.constant 288 : index
    %50 = vector.load %arg6[%c0_58, %c288] : memref<64x384xf32, #tpu.memory_space<vmem>>, vector<64x8xf32>
    %c0_59 = arith.constant 0 : index
    %c312 = arith.constant 312 : index
    %51 = vector.load %arg6[%c0_59, %c312] : memref<64x384xf32, #tpu.memory_space<vmem>>, vector<64x8xf32>
    %52 = arith.maximumf %50, %51 : vector<64x8xf32>
    %c0_60 = arith.constant 0 : index
    %c336 = arith.constant 336 : index
    %53 = vector.load %arg6[%c0_60, %c336] : memref<64x384xf32, #tpu.memory_space<vmem>>, vector<64x8xf32>
    %c0_61 = arith.constant 0 : index
    %c360 = arith.constant 360 : index
    %54 = vector.load %arg6[%c0_61, %c360] : memref<64x384xf32, #tpu.memory_space<vmem>>, vector<64x8xf32>
    %55 = arith.maximumf %53, %54 : vector<64x8xf32>
    %56 = tpu.concatenate %34, %37, %40, %43, %46, %49, %52, %55 in 1 : vector<64x8xf32>, vector<64x8xf32>, vector<64x8xf32>, vector<64x8xf32>, vector<64x8xf32>, vector<64x8xf32>, vector<64x8xf32>, vector<64x8xf32> -> vector<64x64xf32>
    %c0_62 = arith.constant 0 : index
    %c0_63 = arith.constant 0 : index
    %57 = vector.load %arg4[%c0_62, %c0_63] : memref<64x1xf32, #tpu.memory_space<vmem>>, vector<64x1xf32>
    %58 = vector.broadcast %57 : vector<64x1xf32> to vector<64x64xf32>
    %59 = arith.addf %56, %58 : vector<64x64xf32>
    %cst_64 = arith.constant 0.000000e+00 : f32
    %60 = vector.broadcast %cst_64 : f32 to vector<64x64xf32>
    %61 = arith.maximumf %59, %60 : vector<64x64xf32>
    %62 = arith.truncf %61 : vector<64x64xf32> to vector<64x64xbf16>
    %c0_65 = arith.constant 0 : index
    %c0_66 = arith.constant 0 : index
    %c0_67 = arith.constant 0 : index
    %c0_68 = arith.constant 0 : index
    %63 = vector.load %arg5[%c0_65, %c0_66, %c0_67, %c0_68] : memref<1x1x64x64xbf16, #tpu.memory_space<vmem>>, vector<1x1x64x64xbf16>
    %64 = vector.shape_cast %63 : vector<1x1x64x64xbf16> to vector<64x64xbf16>
    %65 = vector.shape_cast %62 : vector<64x64xbf16> to vector<1x1x64x64xbf16>
    tpu.vector_store %arg5[%c0_65, %c0_66, %c0_67, %c0_68], %65 {strides = array<i32>} : memref<1x1x64x64xbf16, #tpu.memory_space<vmem>>, vector<1x1x64x64xbf16>,
    return
  }
  func.func @transform_0(%arg0: i32, %arg1: i32) -> (i32, i32, i32, i32) {
    %c0_i32 = arith.constant 0 : i32
    %c0_i32_0 = arith.constant 0 : i32
    %c0_i32_1 = arith.constant 0 : i32
    return %arg0, %arg1, %c0_i32, %c0_i32_0 : i32, i32, i32, i32
  }
  func.func @transform_1(%arg0: i32, %arg1: i32) -> (i32, i32) {
    %c0_i32 = arith.constant 0 : i32
    %c0_i32_0 = arith.constant 0 : i32
    %c0_i32_1 = arith.constant 0 : i32
    return %c0_i32, %c0_i32_0 : i32, i32
  }
  func.func @transform_2(%arg0: i32, %arg1: i32) -> (i32, i32) {
    %c0_i32 = arith.constant 0 : i32
    %c0_i32_0 = arith.constant 0 : i32
    %c0_i32_1 = arith.constant 0 : i32
    return %c0_i32, %c0_i32_0 : i32, i32
  }
  func.func @transform_3(%arg0: i32, %arg1: i32) -> (i32, i32, i32, i32) {
    %c0_i32 = arith.constant 0 : i32
    %c0_i32_0 = arith.constant 0 : i32
    %c0_i32_1 = arith.constant 0 : i32
    return %arg0, %arg1, %c0_i32, %c0_i32_0 : i32, i32, i32, i32
  }
}

module attributes {stable_mosaic.version = 11 : i64} {
  func.func @_conv3x3_kernel(%arg0: i32, %arg1: i32, %arg2: memref<1x1x64x176xbf16, #tpu.memory_space<vmem>>, %arg3: memref<32x576xbf16, #tpu.memory_space<vmem>>, %arg4: memref<32x1xf32, #tpu.memory_space<vmem>>, %arg5: memref<1x1x32x16xbf16, #tpu.memory_space<vmem>>, %arg6: memref<32x128xf32, #tpu.memory_space<vmem>>) attributes {dimension_semantics = [#tpu.dimension_semantics<parallel>, #tpu.dimension_semantics<parallel>], iteration_bounds = array<i64: 2, 1>, scalar_prefetch = 0 : i64, scratch_operands = 1 : i64, tpu.core_type = #tpu.core_type<tc>, window_params = [{transform_indices = @transform_0, window_bounds = array<i64: 1, 1, 64, 176>}, {pipeline_mode = #tpu.pipeline_mode<synchronous>, transform_indices = @transform_1, window_bounds = array<i64: 32, 576>}, {pipeline_mode = #tpu.pipeline_mode<synchronous>, transform_indices = @transform_2, window_bounds = array<i64: 32, 1>}, {transform_indices = @transform_3, window_bounds = array<i64: 1, 1, 32, 16>}]} {
    %c0 = arith.constant 0 : index
    %c0_0 = arith.constant 0 : index
    %c0_1 = arith.constant 0 : index
    %c0_2 = arith.constant 0 : index
    %0 = vector.load %arg2[%c0, %c0_0, %c0_1, %c0_2] : memref<1x1x64x176xbf16, #tpu.memory_space<vmem>>, vector<1x1x64x128xbf16>
    %1 = vector.shape_cast %0 : vector<1x1x64x128xbf16> to vector<64x128xbf16>
    %c0_3 = arith.constant 0 : index
    %c0_4 = arith.constant 0 : index
    %c0_5 = arith.constant 0 : index
    %c1 = arith.constant 1 : index
    %2 = vector.load %arg2[%c0_3, %c0_4, %c0_5, %c1] : memref<1x1x64x176xbf16, #tpu.memory_space<vmem>>, vector<1x1x64x128xbf16>
    %3 = vector.shape_cast %2 : vector<1x1x64x128xbf16> to vector<64x128xbf16>
    %c0_6 = arith.constant 0 : index
    %c0_7 = arith.constant 0 : index
    %c0_8 = arith.constant 0 : index
    %c8 = arith.constant 8 : index
    %4 = vector.load %arg2[%c0_6, %c0_7, %c0_8, %c8] : memref<1x1x64x176xbf16, #tpu.memory_space<vmem>>, vector<1x1x64x128xbf16>
    %5 = vector.shape_cast %4 : vector<1x1x64x128xbf16> to vector<64x128xbf16>
    %c0_9 = arith.constant 0 : index
    %c0_10 = arith.constant 0 : index
    %c0_11 = arith.constant 0 : index
    %c9 = arith.constant 9 : index
    %6 = vector.load %arg2[%c0_9, %c0_10, %c0_11, %c9] : memref<1x1x64x176xbf16, #tpu.memory_space<vmem>>, vector<1x1x64x128xbf16>
    %7 = vector.shape_cast %6 : vector<1x1x64x128xbf16> to vector<64x128xbf16>
    %c0_12 = arith.constant 0 : index
    %c0_13 = arith.constant 0 : index
    %c0_14 = arith.constant 0 : index
    %c16 = arith.constant 16 : index
    %8 = vector.load %arg2[%c0_12, %c0_13, %c0_14, %c16] : memref<1x1x64x176xbf16, #tpu.memory_space<vmem>>, vector<1x1x64x128xbf16>
    %9 = vector.shape_cast %8 : vector<1x1x64x128xbf16> to vector<64x128xbf16>
    %c0_15 = arith.constant 0 : index
    %c0_16 = arith.constant 0 : index
    %c0_17 = arith.constant 0 : index
    %c17 = arith.constant 17 : index
    %10 = vector.load %arg2[%c0_15, %c0_16, %c0_17, %c17] : memref<1x1x64x176xbf16, #tpu.memory_space<vmem>>, vector<1x1x64x128xbf16>
    %11 = vector.shape_cast %10 : vector<1x1x64x128xbf16> to vector<64x128xbf16>
    %c0_18 = arith.constant 0 : index
    %c0_19 = arith.constant 0 : index
    %c0_20 = arith.constant 0 : index
    %c24 = arith.constant 24 : index
    %12 = vector.load %arg2[%c0_18, %c0_19, %c0_20, %c24] : memref<1x1x64x176xbf16, #tpu.memory_space<vmem>>, vector<1x1x64x128xbf16>
    %13 = vector.shape_cast %12 : vector<1x1x64x128xbf16> to vector<64x128xbf16>
    %c0_21 = arith.constant 0 : index
    %c0_22 = arith.constant 0 : index
    %c0_23 = arith.constant 0 : index
    %c25 = arith.constant 25 : index
    %14 = vector.load %arg2[%c0_21, %c0_22, %c0_23, %c25] : memref<1x1x64x176xbf16, #tpu.memory_space<vmem>>, vector<1x1x64x128xbf16>
    %15 = vector.shape_cast %14 : vector<1x1x64x128xbf16> to vector<64x128xbf16>
    %c0_24 = arith.constant 0 : index
    %c0_25 = arith.constant 0 : index
    %c0_26 = arith.constant 0 : index
    %c32 = arith.constant 32 : index
    %16 = vector.load %arg2[%c0_24, %c0_25, %c0_26, %c32] : memref<1x1x64x176xbf16, #tpu.memory_space<vmem>>, vector<1x1x64x128xbf16>
    %17 = vector.shape_cast %16 : vector<1x1x64x128xbf16> to vector<64x128xbf16>
    %c0_27 = arith.constant 0 : index
    %c0_28 = arith.constant 0 : index
    %c0_29 = arith.constant 0 : index
    %c33 = arith.constant 33 : index
    %18 = vector.load %arg2[%c0_27, %c0_28, %c0_29, %c33] : memref<1x1x64x176xbf16, #tpu.memory_space<vmem>>, vector<1x1x64x128xbf16>
    %19 = vector.shape_cast %18 : vector<1x1x64x128xbf16> to vector<64x128xbf16>
    %c0_30 = arith.constant 0 : index
    %c0_31 = arith.constant 0 : index
    %c0_32 = arith.constant 0 : index
    %c40 = arith.constant 40 : index
    %20 = vector.load %arg2[%c0_30, %c0_31, %c0_32, %c40] : memref<1x1x64x176xbf16, #tpu.memory_space<vmem>>, vector<1x1x64x128xbf16>
    %21 = vector.shape_cast %20 : vector<1x1x64x128xbf16> to vector<64x128xbf16>
    %c0_33 = arith.constant 0 : index
    %c0_34 = arith.constant 0 : index
    %c0_35 = arith.constant 0 : index
    %c41 = arith.constant 41 : index
    %22 = vector.load %arg2[%c0_33, %c0_34, %c0_35, %c41] : memref<1x1x64x176xbf16, #tpu.memory_space<vmem>>, vector<1x1x64x128xbf16>
    %23 = vector.shape_cast %22 : vector<1x1x64x128xbf16> to vector<64x128xbf16>
    %24 = tpu.concatenate %1, %5, %3, %9, %13, %11, %17, %21, %19 in 0 : vector<64x128xbf16>, vector<64x128xbf16>, vector<64x128xbf16>, vector<64x128xbf16>, vector<64x128xbf16>, vector<64x128xbf16>, vector<64x128xbf16>, vector<64x128xbf16>, vector<64x128xbf16> -> vector<576x128xbf16>
    %25 = tpu.concatenate %5, %3, %7, %13, %11, %15, %21, %19, %23 in 0 : vector<64x128xbf16>, vector<64x128xbf16>, vector<64x128xbf16>, vector<64x128xbf16>, vector<64x128xbf16>, vector<64x128xbf16>, vector<64x128xbf16>, vector<64x128xbf16>, vector<64x128xbf16> -> vector<576x128xbf16>
    %c0_36 = arith.constant 0 : index
    %c0_37 = arith.constant 0 : index
    %26 = vector.load %arg3[%c0_36, %c0_37] : memref<32x576xbf16, #tpu.memory_space<vmem>>, vector<32x576xbf16>
    %cst = arith.constant dense<0.000000e+00> : vector<32x128xf32>
    %27 = tpu.matmul %26, %24, %cst {dimension_numbers = #tpu.dot_dimension_numbers<[1], [0], [0], [1], [0, 0, 1, 1], [], []>} : vector<32x576xbf16>, vector<576x128xbf16>, vector<32x128xf32> -> vector<32x128xf32>
    %c0_38 = arith.constant 0 : index
    %c0_39 = arith.constant 0 : index
    %28 = vector.load %arg3[%c0_38, %c0_39] : memref<32x576xbf16, #tpu.memory_space<vmem>>, vector<32x576xbf16>
    %cst_40 = arith.constant dense<0.000000e+00> : vector<32x128xf32>
    %29 = tpu.matmul %28, %25, %cst_40 {dimension_numbers = #tpu.dot_dimension_numbers<[1], [0], [0], [1], [0, 0, 1, 1], [], []>} : vector<32x576xbf16>, vector<576x128xbf16>, vector<32x128xf32> -> vector<32x128xf32>
    %30 = arith.maximumf %27, %29 : vector<32x128xf32>
    %c0_41 = arith.constant 0 : index
    %c0_42 = arith.constant 0 : index
    %31 = vector.load %arg6[%c0_41, %c0_42] : memref<32x128xf32, #tpu.memory_space<vmem>>, vector<32x128xf32>
    tpu.vector_store %arg6[%c0_41, %c0_42], %30 {strides = array<i32>} : memref<32x128xf32, #tpu.memory_space<vmem>>, vector<32x128xf32>,
    %c0_43 = arith.constant 0 : index
    %c0_44 = arith.constant 0 : index
    %32 = vector.load %arg6[%c0_43, %c0_44] : memref<32x128xf32, #tpu.memory_space<vmem>>, vector<32x4xf32>
    %c0_45 = arith.constant 0 : index
    %c16_46 = arith.constant 16 : index
    %33 = vector.load %arg6[%c0_45, %c16_46] : memref<32x128xf32, #tpu.memory_space<vmem>>, vector<32x4xf32>
    %34 = arith.maximumf %32, %33 : vector<32x4xf32>
    %c0_47 = arith.constant 0 : index
    %c32_48 = arith.constant 32 : index
    %35 = vector.load %arg6[%c0_47, %c32_48] : memref<32x128xf32, #tpu.memory_space<vmem>>, vector<32x4xf32>
    %c0_49 = arith.constant 0 : index
    %c48 = arith.constant 48 : index
    %36 = vector.load %arg6[%c0_49, %c48] : memref<32x128xf32, #tpu.memory_space<vmem>>, vector<32x4xf32>
    %37 = arith.maximumf %35, %36 : vector<32x4xf32>
    %c0_50 = arith.constant 0 : index
    %c64 = arith.constant 64 : index
    %38 = vector.load %arg6[%c0_50, %c64] : memref<32x128xf32, #tpu.memory_space<vmem>>, vector<32x4xf32>
    %c0_51 = arith.constant 0 : index
    %c80 = arith.constant 80 : index
    %39 = vector.load %arg6[%c0_51, %c80] : memref<32x128xf32, #tpu.memory_space<vmem>>, vector<32x4xf32>
    %40 = arith.maximumf %38, %39 : vector<32x4xf32>
    %c0_52 = arith.constant 0 : index
    %c96 = arith.constant 96 : index
    %41 = vector.load %arg6[%c0_52, %c96] : memref<32x128xf32, #tpu.memory_space<vmem>>, vector<32x4xf32>
    %c0_53 = arith.constant 0 : index
    %c112 = arith.constant 112 : index
    %42 = vector.load %arg6[%c0_53, %c112] : memref<32x128xf32, #tpu.memory_space<vmem>>, vector<32x4xf32>
    %43 = arith.maximumf %41, %42 : vector<32x4xf32>
    %44 = tpu.concatenate %34, %37, %40, %43 in 1 : vector<32x4xf32>, vector<32x4xf32>, vector<32x4xf32>, vector<32x4xf32> -> vector<32x16xf32>
    %c0_54 = arith.constant 0 : index
    %c0_55 = arith.constant 0 : index
    %45 = vector.load %arg4[%c0_54, %c0_55] : memref<32x1xf32, #tpu.memory_space<vmem>>, vector<32x1xf32>
    %46 = vector.broadcast %45 : vector<32x1xf32> to vector<32x16xf32>
    %47 = arith.addf %44, %46 : vector<32x16xf32>
    %cst_56 = arith.constant 0.000000e+00 : f32
    %48 = vector.broadcast %cst_56 : f32 to vector<32x16xf32>
    %49 = arith.maximumf %47, %48 : vector<32x16xf32>
    %50 = arith.truncf %49 : vector<32x16xf32> to vector<32x16xbf16>
    %c0_57 = arith.constant 0 : index
    %c0_58 = arith.constant 0 : index
    %c0_59 = arith.constant 0 : index
    %c0_60 = arith.constant 0 : index
    %51 = vector.load %arg5[%c0_57, %c0_58, %c0_59, %c0_60] : memref<1x1x32x16xbf16, #tpu.memory_space<vmem>>, vector<1x1x32x16xbf16>
    %52 = vector.shape_cast %51 : vector<1x1x32x16xbf16> to vector<32x16xbf16>
    %53 = vector.shape_cast %50 : vector<32x16xbf16> to vector<1x1x32x16xbf16>
    tpu.vector_store %arg5[%c0_57, %c0_58, %c0_59, %c0_60], %53 {strides = array<i32>} : memref<1x1x32x16xbf16, #tpu.memory_space<vmem>>, vector<1x1x32x16xbf16>,
    return
  }
  func.func @transform_0(%arg0: i32, %arg1: i32) -> (i32, i32, i32, i32) {
    %c0_i32 = arith.constant 0 : i32
    %c0_i32_0 = arith.constant 0 : i32
    %c0_i32_1 = arith.constant 0 : i32
    return %arg0, %arg1, %c0_i32, %c0_i32_0 : i32, i32, i32, i32
  }
  func.func @transform_1(%arg0: i32, %arg1: i32) -> (i32, i32) {
    %c0_i32 = arith.constant 0 : i32
    %c0_i32_0 = arith.constant 0 : i32
    %c0_i32_1 = arith.constant 0 : i32
    return %c0_i32, %c0_i32_0 : i32, i32
  }
  func.func @transform_2(%arg0: i32, %arg1: i32) -> (i32, i32) {
    %c0_i32 = arith.constant 0 : i32
    %c0_i32_0 = arith.constant 0 : i32
    %c0_i32_1 = arith.constant 0 : i32
    return %c0_i32, %c0_i32_0 : i32, i32
  }
  func.func @transform_3(%arg0: i32, %arg1: i32) -> (i32, i32, i32, i32) {
    %c0_i32 = arith.constant 0 : i32
    %c0_i32_0 = arith.constant 0 : i32
    %c0_i32_1 = arith.constant 0 : i32
    return %arg0, %arg1, %c0_i32, %c0_i32_0 : i32, i32, i32, i32
  }
}

module attributes {stable_mosaic.version = 11 : i64} {
  func.func @_conv3x3_kernel(%arg0: i32, %arg1: i32, %arg2: memref<1x1x32x56xbf16, #tpu.memory_space<vmem>>, %arg3: memref<16x288xbf16, #tpu.memory_space<vmem>>, %arg4: memref<16x1xf32, #tpu.memory_space<vmem>>, %arg5: memref<1x1x16x4xbf16, #tpu.memory_space<vmem>>, %arg6: memref<16x32xf32, #tpu.memory_space<vmem>>) attributes {dimension_semantics = [#tpu.dimension_semantics<parallel>, #tpu.dimension_semantics<parallel>], iteration_bounds = array<i64: 2, 1>, scalar_prefetch = 0 : i64, scratch_operands = 1 : i64, tpu.core_type = #tpu.core_type<tc>, window_params = [{transform_indices = @transform_0, window_bounds = array<i64: 1, 1, 32, 56>}, {pipeline_mode = #tpu.pipeline_mode<synchronous>, transform_indices = @transform_1, window_bounds = array<i64: 16, 288>}, {pipeline_mode = #tpu.pipeline_mode<synchronous>, transform_indices = @transform_2, window_bounds = array<i64: 16, 1>}, {transform_indices = @transform_3, window_bounds = array<i64: 1, 1, 16, 4>}]} {
    %c0 = arith.constant 0 : index
    %c0_0 = arith.constant 0 : index
    %c0_1 = arith.constant 0 : index
    %c0_2 = arith.constant 0 : index
    %0 = vector.load %arg2[%c0, %c0_0, %c0_1, %c0_2] : memref<1x1x32x56xbf16, #tpu.memory_space<vmem>>, vector<1x1x32x32xbf16>
    %1 = vector.shape_cast %0 : vector<1x1x32x32xbf16> to vector<32x32xbf16>
    %c0_3 = arith.constant 0 : index
    %c0_4 = arith.constant 0 : index
    %c0_5 = arith.constant 0 : index
    %c1 = arith.constant 1 : index
    %2 = vector.load %arg2[%c0_3, %c0_4, %c0_5, %c1] : memref<1x1x32x56xbf16, #tpu.memory_space<vmem>>, vector<1x1x32x32xbf16>
    %3 = vector.shape_cast %2 : vector<1x1x32x32xbf16> to vector<32x32xbf16>
    %c0_6 = arith.constant 0 : index
    %c0_7 = arith.constant 0 : index
    %c0_8 = arith.constant 0 : index
    %c4 = arith.constant 4 : index
    %4 = vector.load %arg2[%c0_6, %c0_7, %c0_8, %c4] : memref<1x1x32x56xbf16, #tpu.memory_space<vmem>>, vector<1x1x32x32xbf16>
    %5 = vector.shape_cast %4 : vector<1x1x32x32xbf16> to vector<32x32xbf16>
    %c0_9 = arith.constant 0 : index
    %c0_10 = arith.constant 0 : index
    %c0_11 = arith.constant 0 : index
    %c5 = arith.constant 5 : index
    %6 = vector.load %arg2[%c0_9, %c0_10, %c0_11, %c5] : memref<1x1x32x56xbf16, #tpu.memory_space<vmem>>, vector<1x1x32x32xbf16>
    %7 = vector.shape_cast %6 : vector<1x1x32x32xbf16> to vector<32x32xbf16>
    %c0_12 = arith.constant 0 : index
    %c0_13 = arith.constant 0 : index
    %c0_14 = arith.constant 0 : index
    %c8 = arith.constant 8 : index
    %8 = vector.load %arg2[%c0_12, %c0_13, %c0_14, %c8] : memref<1x1x32x56xbf16, #tpu.memory_space<vmem>>, vector<1x1x32x32xbf16>
    %9 = vector.shape_cast %8 : vector<1x1x32x32xbf16> to vector<32x32xbf16>
    %c0_15 = arith.constant 0 : index
    %c0_16 = arith.constant 0 : index
    %c0_17 = arith.constant 0 : index
    %c9 = arith.constant 9 : index
    %10 = vector.load %arg2[%c0_15, %c0_16, %c0_17, %c9] : memref<1x1x32x56xbf16, #tpu.memory_space<vmem>>, vector<1x1x32x32xbf16>
    %11 = vector.shape_cast %10 : vector<1x1x32x32xbf16> to vector<32x32xbf16>
    %c0_18 = arith.constant 0 : index
    %c0_19 = arith.constant 0 : index
    %c0_20 = arith.constant 0 : index
    %c12 = arith.constant 12 : index
    %12 = vector.load %arg2[%c0_18, %c0_19, %c0_20, %c12] : memref<1x1x32x56xbf16, #tpu.memory_space<vmem>>, vector<1x1x32x32xbf16>
    %13 = vector.shape_cast %12 : vector<1x1x32x32xbf16> to vector<32x32xbf16>
    %c0_21 = arith.constant 0 : index
    %c0_22 = arith.constant 0 : index
    %c0_23 = arith.constant 0 : index
    %c13 = arith.constant 13 : index
    %14 = vector.load %arg2[%c0_21, %c0_22, %c0_23, %c13] : memref<1x1x32x56xbf16, #tpu.memory_space<vmem>>, vector<1x1x32x32xbf16>
    %15 = vector.shape_cast %14 : vector<1x1x32x32xbf16> to vector<32x32xbf16>
    %c0_24 = arith.constant 0 : index
    %c0_25 = arith.constant 0 : index
    %c0_26 = arith.constant 0 : index
    %c16 = arith.constant 16 : index
    %16 = vector.load %arg2[%c0_24, %c0_25, %c0_26, %c16] : memref<1x1x32x56xbf16, #tpu.memory_space<vmem>>, vector<1x1x32x32xbf16>
    %17 = vector.shape_cast %16 : vector<1x1x32x32xbf16> to vector<32x32xbf16>
    %c0_27 = arith.constant 0 : index
    %c0_28 = arith.constant 0 : index
    %c0_29 = arith.constant 0 : index
    %c17 = arith.constant 17 : index
    %18 = vector.load %arg2[%c0_27, %c0_28, %c0_29, %c17] : memref<1x1x32x56xbf16, #tpu.memory_space<vmem>>, vector<1x1x32x32xbf16>
    %19 = vector.shape_cast %18 : vector<1x1x32x32xbf16> to vector<32x32xbf16>
    %c0_30 = arith.constant 0 : index
    %c0_31 = arith.constant 0 : index
    %c0_32 = arith.constant 0 : index
    %c20 = arith.constant 20 : index
    %20 = vector.load %arg2[%c0_30, %c0_31, %c0_32, %c20] : memref<1x1x32x56xbf16, #tpu.memory_space<vmem>>, vector<1x1x32x32xbf16>
    %21 = vector.shape_cast %20 : vector<1x1x32x32xbf16> to vector<32x32xbf16>
    %c0_33 = arith.constant 0 : index
    %c0_34 = arith.constant 0 : index
    %c0_35 = arith.constant 0 : index
    %c21 = arith.constant 21 : index
    %22 = vector.load %arg2[%c0_33, %c0_34, %c0_35, %c21] : memref<1x1x32x56xbf16, #tpu.memory_space<vmem>>, vector<1x1x32x32xbf16>
    %23 = vector.shape_cast %22 : vector<1x1x32x32xbf16> to vector<32x32xbf16>
    %24 = tpu.concatenate %1, %5, %3, %9, %13, %11, %17, %21, %19 in 0 : vector<32x32xbf16>, vector<32x32xbf16>, vector<32x32xbf16>, vector<32x32xbf16>, vector<32x32xbf16>, vector<32x32xbf16>, vector<32x32xbf16>, vector<32x32xbf16>, vector<32x32xbf16> -> vector<288x32xbf16>
    %25 = tpu.concatenate %5, %3, %7, %13, %11, %15, %21, %19, %23 in 0 : vector<32x32xbf16>, vector<32x32xbf16>, vector<32x32xbf16>, vector<32x32xbf16>, vector<32x32xbf16>, vector<32x32xbf16>, vector<32x32xbf16>, vector<32x32xbf16>, vector<32x32xbf16> -> vector<288x32xbf16>
    %c0_36 = arith.constant 0 : index
    %c0_37 = arith.constant 0 : index
    %26 = vector.load %arg3[%c0_36, %c0_37] : memref<16x288xbf16, #tpu.memory_space<vmem>>, vector<16x288xbf16>
    %cst = arith.constant dense<0.000000e+00> : vector<16x32xf32>
    %27 = tpu.matmul %26, %24, %cst {dimension_numbers = #tpu.dot_dimension_numbers<[1], [0], [0], [1], [0, 0, 1, 1], [], []>} : vector<16x288xbf16>, vector<288x32xbf16>, vector<16x32xf32> -> vector<16x32xf32>
    %c0_38 = arith.constant 0 : index
    %c0_39 = arith.constant 0 : index
    %28 = vector.load %arg3[%c0_38, %c0_39] : memref<16x288xbf16, #tpu.memory_space<vmem>>, vector<16x288xbf16>
    %cst_40 = arith.constant dense<0.000000e+00> : vector<16x32xf32>
    %29 = tpu.matmul %28, %25, %cst_40 {dimension_numbers = #tpu.dot_dimension_numbers<[1], [0], [0], [1], [0, 0, 1, 1], [], []>} : vector<16x288xbf16>, vector<288x32xbf16>, vector<16x32xf32> -> vector<16x32xf32>
    %30 = arith.maximumf %27, %29 : vector<16x32xf32>
    %c0_41 = arith.constant 0 : index
    %c0_42 = arith.constant 0 : index
    %31 = vector.load %arg6[%c0_41, %c0_42] : memref<16x32xf32, #tpu.memory_space<vmem>>, vector<16x32xf32>
    tpu.vector_store %arg6[%c0_41, %c0_42], %30 {strides = array<i32>} : memref<16x32xf32, #tpu.memory_space<vmem>>, vector<16x32xf32>,
    %c0_43 = arith.constant 0 : index
    %c0_44 = arith.constant 0 : index
    %32 = vector.load %arg6[%c0_43, %c0_44] : memref<16x32xf32, #tpu.memory_space<vmem>>, vector<16x2xf32>
    %c0_45 = arith.constant 0 : index
    %c8_46 = arith.constant 8 : index
    %33 = vector.load %arg6[%c0_45, %c8_46] : memref<16x32xf32, #tpu.memory_space<vmem>>, vector<16x2xf32>
    %34 = arith.maximumf %32, %33 : vector<16x2xf32>
    %c0_47 = arith.constant 0 : index
    %c16_48 = arith.constant 16 : index
    %35 = vector.load %arg6[%c0_47, %c16_48] : memref<16x32xf32, #tpu.memory_space<vmem>>, vector<16x2xf32>
    %c0_49 = arith.constant 0 : index
    %c24 = arith.constant 24 : index
    %36 = vector.load %arg6[%c0_49, %c24] : memref<16x32xf32, #tpu.memory_space<vmem>>, vector<16x2xf32>
    %37 = arith.maximumf %35, %36 : vector<16x2xf32>
    %38 = tpu.concatenate %34, %37 in 1 : vector<16x2xf32>, vector<16x2xf32> -> vector<16x4xf32>
    %c0_50 = arith.constant 0 : index
    %c0_51 = arith.constant 0 : index
    %39 = vector.load %arg4[%c0_50, %c0_51] : memref<16x1xf32, #tpu.memory_space<vmem>>, vector<16x1xf32>
    %40 = vector.broadcast %39 : vector<16x1xf32> to vector<16x4xf32>
    %41 = arith.addf %38, %40 : vector<16x4xf32>
    %cst_52 = arith.constant 0.000000e+00 : f32
    %42 = vector.broadcast %cst_52 : f32 to vector<16x4xf32>
    %43 = arith.maximumf %41, %42 : vector<16x4xf32>
    %44 = arith.truncf %43 : vector<16x4xf32> to vector<16x4xbf16>
    %c0_53 = arith.constant 0 : index
    %c0_54 = arith.constant 0 : index
    %c0_55 = arith.constant 0 : index
    %c0_56 = arith.constant 0 : index
    %45 = vector.load %arg5[%c0_53, %c0_54, %c0_55, %c0_56] : memref<1x1x16x4xbf16, #tpu.memory_space<vmem>>, vector<1x1x16x4xbf16>
    %46 = vector.shape_cast %45 : vector<1x1x16x4xbf16> to vector<16x4xbf16>
    %47 = vector.shape_cast %44 : vector<16x4xbf16> to vector<1x1x16x4xbf16>
    tpu.vector_store %arg5[%c0_53, %c0_54, %c0_55, %c0_56], %47 {strides = array<i32>} : memref<1x1x16x4xbf16, #tpu.memory_space<vmem>>, vector<1x1x16x4xbf16>,
    return
  }
  func.func @transform_0(%arg0: i32, %arg1: i32) -> (i32, i32, i32, i32) {
    %c0_i32 = arith.constant 0 : i32
    %c0_i32_0 = arith.constant 0 : i32
    %c0_i32_1 = arith.constant 0 : i32
    return %arg0, %arg1, %c0_i32, %c0_i32_0 : i32, i32, i32, i32
  }
  func.func @transform_1(%arg0: i32, %arg1: i32) -> (i32, i32) {
    %c0_i32 = arith.constant 0 : i32
    %c0_i32_0 = arith.constant 0 : i32
    %c0_i32_1 = arith.constant 0 : i32
    return %c0_i32, %c0_i32_0 : i32, i32
  }
  func.func @transform_2(%arg0: i32, %arg1: i32) -> (i32, i32) {
    %c0_i32 = arith.constant 0 : i32
    %c0_i32_0 = arith.constant 0 : i32
    %c0_i32_1 = arith.constant 0 : i32
    return %c0_i32, %c0_i32_0 : i32, i32
  }
  func.func @transform_3(%arg0: i32, %arg1: i32) -> (i32, i32, i32, i32) {
    %c0_i32 = arith.constant 0 : i32
    %c0_i32_0 = arith.constant 0 : i32
    %c0_i32_1 = arith.constant 0 : i32
    return %arg0, %arg1, %c0_i32, %c0_i32_0 : i32, i32, i32, i32
  }
}

module attributes {stable_mosaic.version = 11 : i64} {
  func.func @_conv3x3_kernel(%arg0: i32, %arg1: i32, %arg2: memref<1x1x16x40xbf16, #tpu.memory_space<vmem>>, %arg3: memref<16x144xbf16, #tpu.memory_space<vmem>>, %arg4: memref<16x1xf32, #tpu.memory_space<vmem>>, %arg5: memref<1x1x16x16xbf16, #tpu.memory_space<vmem>>) attributes {dimension_semantics = [#tpu.dimension_semantics<parallel>, #tpu.dimension_semantics<parallel>], iteration_bounds = array<i64: 2, 1>, scalar_prefetch = 0 : i64, scratch_operands = 0 : i64, tpu.core_type = #tpu.core_type<tc>, window_params = [{transform_indices = @transform_0, window_bounds = array<i64: 1, 1, 16, 40>}, {pipeline_mode = #tpu.pipeline_mode<synchronous>, transform_indices = @transform_1, window_bounds = array<i64: 16, 144>}, {pipeline_mode = #tpu.pipeline_mode<synchronous>, transform_indices = @transform_2, window_bounds = array<i64: 16, 1>}, {transform_indices = @transform_3, window_bounds = array<i64: 1, 1, 16, 16>}]} {
    %c0 = arith.constant 0 : index
    %c0_0 = arith.constant 0 : index
    %c0_1 = arith.constant 0 : index
    %c0_2 = arith.constant 0 : index
    %0 = vector.load %arg2[%c0, %c0_0, %c0_1, %c0_2] : memref<1x1x16x40xbf16, #tpu.memory_space<vmem>>, vector<1x1x16x16xbf16>
    %1 = vector.shape_cast %0 : vector<1x1x16x16xbf16> to vector<16x16xbf16>
    %c0_3 = arith.constant 0 : index
    %c0_4 = arith.constant 0 : index
    %c0_5 = arith.constant 0 : index
    %c1 = arith.constant 1 : index
    %2 = vector.load %arg2[%c0_3, %c0_4, %c0_5, %c1] : memref<1x1x16x40xbf16, #tpu.memory_space<vmem>>, vector<1x1x16x16xbf16>
    %3 = vector.shape_cast %2 : vector<1x1x16x16xbf16> to vector<16x16xbf16>
    %c0_6 = arith.constant 0 : index
    %c0_7 = arith.constant 0 : index
    %c0_8 = arith.constant 0 : index
    %c2 = arith.constant 2 : index
    %4 = vector.load %arg2[%c0_6, %c0_7, %c0_8, %c2] : memref<1x1x16x40xbf16, #tpu.memory_space<vmem>>, vector<1x1x16x16xbf16>
    %5 = vector.shape_cast %4 : vector<1x1x16x16xbf16> to vector<16x16xbf16>
    %c0_9 = arith.constant 0 : index
    %c0_10 = arith.constant 0 : index
    %c0_11 = arith.constant 0 : index
    %c8 = arith.constant 8 : index
    %6 = vector.load %arg2[%c0_9, %c0_10, %c0_11, %c8] : memref<1x1x16x40xbf16, #tpu.memory_space<vmem>>, vector<1x1x16x16xbf16>
    %7 = vector.shape_cast %6 : vector<1x1x16x16xbf16> to vector<16x16xbf16>
    %c0_12 = arith.constant 0 : index
    %c0_13 = arith.constant 0 : index
    %c0_14 = arith.constant 0 : index
    %c9 = arith.constant 9 : index
    %8 = vector.load %arg2[%c0_12, %c0_13, %c0_14, %c9] : memref<1x1x16x40xbf16, #tpu.memory_space<vmem>>, vector<1x1x16x16xbf16>
    %9 = vector.shape_cast %8 : vector<1x1x16x16xbf16> to vector<16x16xbf16>
    %c0_15 = arith.constant 0 : index
    %c0_16 = arith.constant 0 : index
    %c0_17 = arith.constant 0 : index
    %c10 = arith.constant 10 : index
    %10 = vector.load %arg2[%c0_15, %c0_16, %c0_17, %c10] : memref<1x1x16x40xbf16, #tpu.memory_space<vmem>>, vector<1x1x16x16xbf16>
    %11 = vector.shape_cast %10 : vector<1x1x16x16xbf16> to vector<16x16xbf16>
    %c0_18 = arith.constant 0 : index
    %c0_19 = arith.constant 0 : index
    %c0_20 = arith.constant 0 : index
    %c16 = arith.constant 16 : index
    %12 = vector.load %arg2[%c0_18, %c0_19, %c0_20, %c16] : memref<1x1x16x40xbf16, #tpu.memory_space<vmem>>, vector<1x1x16x16xbf16>
    %13 = vector.shape_cast %12 : vector<1x1x16x16xbf16> to vector<16x16xbf16>
    %c0_21 = arith.constant 0 : index
    %c0_22 = arith.constant 0 : index
    %c0_23 = arith.constant 0 : index
    %c17 = arith.constant 17 : index
    %14 = vector.load %arg2[%c0_21, %c0_22, %c0_23, %c17] : memref<1x1x16x40xbf16, #tpu.memory_space<vmem>>, vector<1x1x16x16xbf16>
    %15 = vector.shape_cast %14 : vector<1x1x16x16xbf16> to vector<16x16xbf16>
    %c0_24 = arith.constant 0 : index
    %c0_25 = arith.constant 0 : index
    %c0_26 = arith.constant 0 : index
    %c18 = arith.constant 18 : index
    %16 = vector.load %arg2[%c0_24, %c0_25, %c0_26, %c18] : memref<1x1x16x40xbf16, #tpu.memory_space<vmem>>, vector<1x1x16x16xbf16>
    %17 = vector.shape_cast %16 : vector<1x1x16x16xbf16> to vector<16x16xbf16>
    %18 = tpu.concatenate %1, %3, %5, %7, %9, %11, %13, %15, %17 in 0 : vector<16x16xbf16>, vector<16x16xbf16>, vector<16x16xbf16>, vector<16x16xbf16>, vector<16x16xbf16>, vector<16x16xbf16>, vector<16x16xbf16>, vector<16x16xbf16>, vector<16x16xbf16> -> vector<144x16xbf16>
    %c0_27 = arith.constant 0 : index
    %c0_28 = arith.constant 0 : index
    %19 = vector.load %arg3[%c0_27, %c0_28] : memref<16x144xbf16, #tpu.memory_space<vmem>>, vector<16x144xbf16>
    %cst = arith.constant dense<0.000000e+00> : vector<16x16xf32>
    %20 = tpu.matmul %19, %18, %cst {dimension_numbers = #tpu.dot_dimension_numbers<[1], [0], [0], [1], [0, 0, 1, 1], [], []>} : vector<16x144xbf16>, vector<144x16xbf16>, vector<16x16xf32> -> vector<16x16xf32>
    %c0_29 = arith.constant 0 : index
    %c0_30 = arith.constant 0 : index
    %21 = vector.load %arg4[%c0_29, %c0_30] : memref<16x1xf32, #tpu.memory_space<vmem>>, vector<16x1xf32>
    %22 = vector.broadcast %21 : vector<16x1xf32> to vector<16x16xf32>
    %23 = arith.addf %20, %22 : vector<16x16xf32>
    %cst_31 = arith.constant 0.000000e+00 : f32
    %24 = vector.broadcast %cst_31 : f32 to vector<16x16xf32>
    %25 = arith.maximumf %23, %24 : vector<16x16xf32>
    %26 = arith.truncf %25 : vector<16x16xf32> to vector<16x16xbf16>
    %c0_32 = arith.constant 0 : index
    %c0_33 = arith.constant 0 : index
    %c0_34 = arith.constant 0 : index
    %c0_35 = arith.constant 0 : index
    %27 = vector.load %arg5[%c0_32, %c0_33, %c0_34, %c0_35] : memref<1x1x16x16xbf16, #tpu.memory_space<vmem>>, vector<1x1x16x16xbf16>
    %28 = vector.shape_cast %27 : vector<1x1x16x16xbf16> to vector<16x16xbf16>
    %29 = vector.shape_cast %26 : vector<16x16xbf16> to vector<1x1x16x16xbf16>
    tpu.vector_store %arg5[%c0_32, %c0_33, %c0_34, %c0_35], %29 {strides = array<i32>} : memref<1x1x16x16xbf16, #tpu.memory_space<vmem>>, vector<1x1x16x16xbf16>,
    return
  }
  func.func @transform_0(%arg0: i32, %arg1: i32) -> (i32, i32, i32, i32) {
    %c0_i32 = arith.constant 0 : i32
    %c0_i32_0 = arith.constant 0 : i32
    %c0_i32_1 = arith.constant 0 : i32
    return %arg0, %arg1, %c0_i32, %c0_i32_0 : i32, i32, i32, i32
  }
  func.func @transform_1(%arg0: i32, %arg1: i32) -> (i32, i32) {
    %c0_i32 = arith.constant 0 : i32
    %c0_i32_0 = arith.constant 0 : i32
    %c0_i32_1 = arith.constant 0 : i32
    return %c0_i32, %c0_i32_0 : i32, i32
  }
  func.func @transform_2(%arg0: i32, %arg1: i32) -> (i32, i32) {
    %c0_i32 = arith.constant 0 : i32
    %c0_i32_0 = arith.constant 0 : i32
    %c0_i32_1 = arith.constant 0 : i32
    return %c0_i32, %c0_i32_0 : i32, i32
  }
  func.func @transform_3(%arg0: i32, %arg1: i32) -> (i32, i32, i32, i32) {
    %c0_i32 = arith.constant 0 : i32
    %c0_i32_0 = arith.constant 0 : i32
    %c0_i32_1 = arith.constant 0 : i32
    return %arg0, %arg1, %c0_i32, %c0_i32_0 : i32, i32, i32, i32
  }
}

module attributes {stable_mosaic.version = 11 : i64} {
  func.func @_conv3x3_kernel(%arg0: i32, %arg1: i32, %arg2: memref<1x1x16x56xbf16, #tpu.memory_space<vmem>>, %arg3: memref<32x144xbf16, #tpu.memory_space<vmem>>, %arg4: memref<32x1xf32, #tpu.memory_space<vmem>>, %arg5: memref<1x1x32x32xbf16, #tpu.memory_space<vmem>>) attributes {dimension_semantics = [#tpu.dimension_semantics<parallel>, #tpu.dimension_semantics<parallel>], iteration_bounds = array<i64: 2, 1>, scalar_prefetch = 0 : i64, scratch_operands = 0 : i64, tpu.core_type = #tpu.core_type<tc>, window_params = [{transform_indices = @transform_0, window_bounds = array<i64: 1, 1, 16, 56>}, {pipeline_mode = #tpu.pipeline_mode<synchronous>, transform_indices = @transform_1, window_bounds = array<i64: 32, 144>}, {pipeline_mode = #tpu.pipeline_mode<synchronous>, transform_indices = @transform_2, window_bounds = array<i64: 32, 1>}, {transform_indices = @transform_3, window_bounds = array<i64: 1, 1, 32, 32>}]} {
    %c0 = arith.constant 0 : index
    %c0_0 = arith.constant 0 : index
    %c0_1 = arith.constant 0 : index
    %c0_2 = arith.constant 0 : index
    %0 = vector.load %arg2[%c0, %c0_0, %c0_1, %c0_2] : memref<1x1x16x56xbf16, #tpu.memory_space<vmem>>, vector<1x1x16x32xbf16>
    %1 = vector.shape_cast %0 : vector<1x1x16x32xbf16> to vector<16x32xbf16>
    %c0_3 = arith.constant 0 : index
    %c0_4 = arith.constant 0 : index
    %c0_5 = arith.constant 0 : index
    %c1 = arith.constant 1 : index
    %2 = vector.load %arg2[%c0_3, %c0_4, %c0_5, %c1] : memref<1x1x16x56xbf16, #tpu.memory_space<vmem>>, vector<1x1x16x32xbf16>
    %3 = vector.shape_cast %2 : vector<1x1x16x32xbf16> to vector<16x32xbf16>
    %c0_6 = arith.constant 0 : index
    %c0_7 = arith.constant 0 : index
    %c0_8 = arith.constant 0 : index
    %c2 = arith.constant 2 : index
    %4 = vector.load %arg2[%c0_6, %c0_7, %c0_8, %c2] : memref<1x1x16x56xbf16, #tpu.memory_space<vmem>>, vector<1x1x16x32xbf16>
    %5 = vector.shape_cast %4 : vector<1x1x16x32xbf16> to vector<16x32xbf16>
    %c0_9 = arith.constant 0 : index
    %c0_10 = arith.constant 0 : index
    %c0_11 = arith.constant 0 : index
    %c8 = arith.constant 8 : index
    %6 = vector.load %arg2[%c0_9, %c0_10, %c0_11, %c8] : memref<1x1x16x56xbf16, #tpu.memory_space<vmem>>, vector<1x1x16x32xbf16>
    %7 = vector.shape_cast %6 : vector<1x1x16x32xbf16> to vector<16x32xbf16>
    %c0_12 = arith.constant 0 : index
    %c0_13 = arith.constant 0 : index
    %c0_14 = arith.constant 0 : index
    %c9 = arith.constant 9 : index
    %8 = vector.load %arg2[%c0_12, %c0_13, %c0_14, %c9] : memref<1x1x16x56xbf16, #tpu.memory_space<vmem>>, vector<1x1x16x32xbf16>
    %9 = vector.shape_cast %8 : vector<1x1x16x32xbf16> to vector<16x32xbf16>
    %c0_15 = arith.constant 0 : index
    %c0_16 = arith.constant 0 : index
    %c0_17 = arith.constant 0 : index
    %c10 = arith.constant 10 : index
    %10 = vector.load %arg2[%c0_15, %c0_16, %c0_17, %c10] : memref<1x1x16x56xbf16, #tpu.memory_space<vmem>>, vector<1x1x16x32xbf16>
    %11 = vector.shape_cast %10 : vector<1x1x16x32xbf16> to vector<16x32xbf16>
    %c0_18 = arith.constant 0 : index
    %c0_19 = arith.constant 0 : index
    %c0_20 = arith.constant 0 : index
    %c16 = arith.constant 16 : index
    %12 = vector.load %arg2[%c0_18, %c0_19, %c0_20, %c16] : memref<1x1x16x56xbf16, #tpu.memory_space<vmem>>, vector<1x1x16x32xbf16>
    %13 = vector.shape_cast %12 : vector<1x1x16x32xbf16> to vector<16x32xbf16>
    %c0_21 = arith.constant 0 : index
    %c0_22 = arith.constant 0 : index
    %c0_23 = arith.constant 0 : index
    %c17 = arith.constant 17 : index
    %14 = vector.load %arg2[%c0_21, %c0_22, %c0_23, %c17] : memref<1x1x16x56xbf16, #tpu.memory_space<vmem>>, vector<1x1x16x32xbf16>
    %15 = vector.shape_cast %14 : vector<1x1x16x32xbf16> to vector<16x32xbf16>
    %c0_24 = arith.constant 0 : index
    %c0_25 = arith.constant 0 : index
    %c0_26 = arith.constant 0 : index
    %c18 = arith.constant 18 : index
    %16 = vector.load %arg2[%c0_24, %c0_25, %c0_26, %c18] : memref<1x1x16x56xbf16, #tpu.memory_space<vmem>>, vector<1x1x16x32xbf16>
    %17 = vector.shape_cast %16 : vector<1x1x16x32xbf16> to vector<16x32xbf16>
    %18 = tpu.concatenate %1, %3, %5, %7, %9, %11, %13, %15, %17 in 0 : vector<16x32xbf16>, vector<16x32xbf16>, vector<16x32xbf16>, vector<16x32xbf16>, vector<16x32xbf16>, vector<16x32xbf16>, vector<16x32xbf16>, vector<16x32xbf16>, vector<16x32xbf16> -> vector<144x32xbf16>
    %c0_27 = arith.constant 0 : index
    %c0_28 = arith.constant 0 : index
    %19 = vector.load %arg3[%c0_27, %c0_28] : memref<32x144xbf16, #tpu.memory_space<vmem>>, vector<32x144xbf16>
    %cst = arith.constant dense<0.000000e+00> : vector<32x32xf32>
    %20 = tpu.matmul %19, %18, %cst {dimension_numbers = #tpu.dot_dimension_numbers<[1], [0], [0], [1], [0, 0, 1, 1], [], []>} : vector<32x144xbf16>, vector<144x32xbf16>, vector<32x32xf32> -> vector<32x32xf32>
    %c0_29 = arith.constant 0 : index
    %c0_30 = arith.constant 0 : index
    %21 = vector.load %arg4[%c0_29, %c0_30] : memref<32x1xf32, #tpu.memory_space<vmem>>, vector<32x1xf32>
    %22 = vector.broadcast %21 : vector<32x1xf32> to vector<32x32xf32>
    %23 = arith.addf %20, %22 : vector<32x32xf32>
    %cst_31 = arith.constant 0.000000e+00 : f32
    %24 = vector.broadcast %cst_31 : f32 to vector<32x32xf32>
    %25 = arith.maximumf %23, %24 : vector<32x32xf32>
    %26 = arith.truncf %25 : vector<32x32xf32> to vector<32x32xbf16>
    %c0_32 = arith.constant 0 : index
    %c0_33 = arith.constant 0 : index
    %c0_34 = arith.constant 0 : index
    %c0_35 = arith.constant 0 : index
    %27 = vector.load %arg5[%c0_32, %c0_33, %c0_34, %c0_35] : memref<1x1x32x32xbf16, #tpu.memory_space<vmem>>, vector<1x1x32x32xbf16>
    %28 = vector.shape_cast %27 : vector<1x1x32x32xbf16> to vector<32x32xbf16>
    %29 = vector.shape_cast %26 : vector<32x32xbf16> to vector<1x1x32x32xbf16>
    tpu.vector_store %arg5[%c0_32, %c0_33, %c0_34, %c0_35], %29 {strides = array<i32>} : memref<1x1x32x32xbf16, #tpu.memory_space<vmem>>, vector<1x1x32x32xbf16>,
    return
  }
  func.func @transform_0(%arg0: i32, %arg1: i32) -> (i32, i32, i32, i32) {
    %c0_i32 = arith.constant 0 : i32
    %c0_i32_0 = arith.constant 0 : i32
    %c0_i32_1 = arith.constant 0 : i32
    return %arg0, %arg1, %c0_i32, %c0_i32_0 : i32, i32, i32, i32
  }
  func.func @transform_1(%arg0: i32, %arg1: i32) -> (i32, i32) {
    %c0_i32 = arith.constant 0 : i32
    %c0_i32_0 = arith.constant 0 : i32
    %c0_i32_1 = arith.constant 0 : i32
    return %c0_i32, %c0_i32_0 : i32, i32
  }
  func.func @transform_2(%arg0: i32, %arg1: i32) -> (i32, i32) {
    %c0_i32 = arith.constant 0 : i32
    %c0_i32_0 = arith.constant 0 : i32
    %c0_i32_1 = arith.constant 0 : i32
    return %c0_i32, %c0_i32_0 : i32, i32
  }
  func.func @transform_3(%arg0: i32, %arg1: i32) -> (i32, i32, i32, i32) {
    %c0_i32 = arith.constant 0 : i32
    %c0_i32_0 = arith.constant 0 : i32
    %c0_i32_1 = arith.constant 0 : i32
    return %arg0, %arg1, %c0_i32, %c0_i32_0 : i32, i32, i32, i32
  }
}

module attributes {stable_mosaic.version = 11 : i64} {
  func.func @_conv3x3_kernel(%arg0: i32, %arg1: i32, %arg2: memref<1x1x32x176xbf16, #tpu.memory_space<vmem>>, %arg3: memref<64x288xbf16, #tpu.memory_space<vmem>>, %arg4: memref<64x1xf32, #tpu.memory_space<vmem>>, %arg5: memref<1x1x64x128xbf16, #tpu.memory_space<vmem>>) attributes {dimension_semantics = [#tpu.dimension_semantics<parallel>, #tpu.dimension_semantics<parallel>], iteration_bounds = array<i64: 2, 1>, scalar_prefetch = 0 : i64, scratch_operands = 0 : i64, tpu.core_type = #tpu.core_type<tc>, window_params = [{transform_indices = @transform_0, window_bounds = array<i64: 1, 1, 32, 176>}, {pipeline_mode = #tpu.pipeline_mode<synchronous>, transform_indices = @transform_1, window_bounds = array<i64: 64, 288>}, {pipeline_mode = #tpu.pipeline_mode<synchronous>, transform_indices = @transform_2, window_bounds = array<i64: 64, 1>}, {transform_indices = @transform_3, window_bounds = array<i64: 1, 1, 64, 128>}]} {
    %c0 = arith.constant 0 : index
    %c0_0 = arith.constant 0 : index
    %c0_1 = arith.constant 0 : index
    %c0_2 = arith.constant 0 : index
    %0 = vector.load %arg2[%c0, %c0_0, %c0_1, %c0_2] : memref<1x1x32x176xbf16, #tpu.memory_space<vmem>>, vector<1x1x32x128xbf16>
    %1 = vector.shape_cast %0 : vector<1x1x32x128xbf16> to vector<32x128xbf16>
    %c0_3 = arith.constant 0 : index
    %c0_4 = arith.constant 0 : index
    %c0_5 = arith.constant 0 : index
    %c1 = arith.constant 1 : index
    %2 = vector.load %arg2[%c0_3, %c0_4, %c0_5, %c1] : memref<1x1x32x176xbf16, #tpu.memory_space<vmem>>, vector<1x1x32x128xbf16>
    %3 = vector.shape_cast %2 : vector<1x1x32x128xbf16> to vector<32x128xbf16>
    %c0_6 = arith.constant 0 : index
    %c0_7 = arith.constant 0 : index
    %c0_8 = arith.constant 0 : index
    %c2 = arith.constant 2 : index
    %4 = vector.load %arg2[%c0_6, %c0_7, %c0_8, %c2] : memref<1x1x32x176xbf16, #tpu.memory_space<vmem>>, vector<1x1x32x128xbf16>
    %5 = vector.shape_cast %4 : vector<1x1x32x128xbf16> to vector<32x128xbf16>
    %c0_9 = arith.constant 0 : index
    %c0_10 = arith.constant 0 : index
    %c0_11 = arith.constant 0 : index
    %c16 = arith.constant 16 : index
    %6 = vector.load %arg2[%c0_9, %c0_10, %c0_11, %c16] : memref<1x1x32x176xbf16, #tpu.memory_space<vmem>>, vector<1x1x32x128xbf16>
    %7 = vector.shape_cast %6 : vector<1x1x32x128xbf16> to vector<32x128xbf16>
    %c0_12 = arith.constant 0 : index
    %c0_13 = arith.constant 0 : index
    %c0_14 = arith.constant 0 : index
    %c17 = arith.constant 17 : index
    %8 = vector.load %arg2[%c0_12, %c0_13, %c0_14, %c17] : memref<1x1x32x176xbf16, #tpu.memory_space<vmem>>, vector<1x1x32x128xbf16>
    %9 = vector.shape_cast %8 : vector<1x1x32x128xbf16> to vector<32x128xbf16>
    %c0_15 = arith.constant 0 : index
    %c0_16 = arith.constant 0 : index
    %c0_17 = arith.constant 0 : index
    %c18 = arith.constant 18 : index
    %10 = vector.load %arg2[%c0_15, %c0_16, %c0_17, %c18] : memref<1x1x32x176xbf16, #tpu.memory_space<vmem>>, vector<1x1x32x128xbf16>
    %11 = vector.shape_cast %10 : vector<1x1x32x128xbf16> to vector<32x128xbf16>
    %c0_18 = arith.constant 0 : index
    %c0_19 = arith.constant 0 : index
    %c0_20 = arith.constant 0 : index
    %c32 = arith.constant 32 : index
    %12 = vector.load %arg2[%c0_18, %c0_19, %c0_20, %c32] : memref<1x1x32x176xbf16, #tpu.memory_space<vmem>>, vector<1x1x32x128xbf16>
    %13 = vector.shape_cast %12 : vector<1x1x32x128xbf16> to vector<32x128xbf16>
    %c0_21 = arith.constant 0 : index
    %c0_22 = arith.constant 0 : index
    %c0_23 = arith.constant 0 : index
    %c33 = arith.constant 33 : index
    %14 = vector.load %arg2[%c0_21, %c0_22, %c0_23, %c33] : memref<1x1x32x176xbf16, #tpu.memory_space<vmem>>, vector<1x1x32x128xbf16>
    %15 = vector.shape_cast %14 : vector<1x1x32x128xbf16> to vector<32x128xbf16>
    %c0_24 = arith.constant 0 : index
    %c0_25 = arith.constant 0 : index
    %c0_26 = arith.constant 0 : index
    %c34 = arith.constant 34 : index
    %16 = vector.load %arg2[%c0_24, %c0_25, %c0_26, %c34] : memref<1x1x32x176xbf16, #tpu.memory_space<vmem>>, vector<1x1x32x128xbf16>
    %17 = vector.shape_cast %16 : vector<1x1x32x128xbf16> to vector<32x128xbf16>
    %18 = tpu.concatenate %1, %3, %5, %7, %9, %11, %13, %15, %17 in 0 : vector<32x128xbf16>, vector<32x128xbf16>, vector<32x128xbf16>, vector<32x128xbf16>, vector<32x128xbf16>, vector<32x128xbf16>, vector<32x128xbf16>, vector<32x128xbf16>, vector<32x128xbf16> -> vector<288x128xbf16>
    %c0_27 = arith.constant 0 : index
    %c0_28 = arith.constant 0 : index
    %19 = vector.load %arg3[%c0_27, %c0_28] : memref<64x288xbf16, #tpu.memory_space<vmem>>, vector<64x288xbf16>
    %cst = arith.constant dense<0.000000e+00> : vector<64x128xf32>
    %20 = tpu.matmul %19, %18, %cst {dimension_numbers = #tpu.dot_dimension_numbers<[1], [0], [0], [1], [0, 0, 1, 1], [], []>} : vector<64x288xbf16>, vector<288x128xbf16>, vector<64x128xf32> -> vector<64x128xf32>
    %c0_29 = arith.constant 0 : index
    %c0_30 = arith.constant 0 : index
    %21 = vector.load %arg4[%c0_29, %c0_30] : memref<64x1xf32, #tpu.memory_space<vmem>>, vector<64x1xf32>
    %22 = vector.broadcast %21 : vector<64x1xf32> to vector<64x128xf32>
    %23 = arith.addf %20, %22 : vector<64x128xf32>
    %cst_31 = arith.constant 0.000000e+00 : f32
    %24 = vector.broadcast %cst_31 : f32 to vector<64x128xf32>
    %25 = arith.maximumf %23, %24 : vector<64x128xf32>
    %26 = arith.truncf %25 : vector<64x128xf32> to vector<64x128xbf16>
    %c0_32 = arith.constant 0 : index
    %c0_33 = arith.constant 0 : index
    %c0_34 = arith.constant 0 : index
    %c0_35 = arith.constant 0 : index
    %27 = vector.load %arg5[%c0_32, %c0_33, %c0_34, %c0_35] : memref<1x1x64x128xbf16, #tpu.memory_space<vmem>>, vector<1x1x64x128xbf16>
    %28 = vector.shape_cast %27 : vector<1x1x64x128xbf16> to vector<64x128xbf16>
    %29 = vector.shape_cast %26 : vector<64x128xbf16> to vector<1x1x64x128xbf16>
    tpu.vector_store %arg5[%c0_32, %c0_33, %c0_34, %c0_35], %29 {strides = array<i32>} : memref<1x1x64x128xbf16, #tpu.memory_space<vmem>>, vector<1x1x64x128xbf16>,
    return
  }
  func.func @transform_0(%arg0: i32, %arg1: i32) -> (i32, i32, i32, i32) {
    %c0_i32 = arith.constant 0 : i32
    %c0_i32_0 = arith.constant 0 : i32
    %c0_i32_1 = arith.constant 0 : i32
    return %arg0, %arg1, %c0_i32, %c0_i32_0 : i32, i32, i32, i32
  }
  func.func @transform_1(%arg0: i32, %arg1: i32) -> (i32, i32) {
    %c0_i32 = arith.constant 0 : i32
    %c0_i32_0 = arith.constant 0 : i32
    %c0_i32_1 = arith.constant 0 : i32
    return %c0_i32, %c0_i32_0 : i32, i32
  }
  func.func @transform_2(%arg0: i32, %arg1: i32) -> (i32, i32) {
    %c0_i32 = arith.constant 0 : i32
    %c0_i32_0 = arith.constant 0 : i32
    %c0_i32_1 = arith.constant 0 : i32
    return %c0_i32, %c0_i32_0 : i32, i32
  }
  func.func @transform_3(%arg0: i32, %arg1: i32) -> (i32, i32, i32, i32) {
    %c0_i32 = arith.constant 0 : i32
    %c0_i32_0 = arith.constant 0 : i32
    %c0_i32_1 = arith.constant 0 : i32
    return %arg0, %arg1, %c0_i32, %c0_i32_0 : i32, i32, i32, i32
  }
}

module attributes {stable_mosaic.version = 11 : i64} {
  func.func @_conv3x3_kernel(%arg0: i32, %arg1: i32, %arg2: memref<1x1x64x456xbf16, #tpu.memory_space<vmem>>, %arg3: memref<8x576xbf16, #tpu.memory_space<vmem>>, %arg4: memref<8x1xf32, #tpu.memory_space<vmem>>, %arg5: memref<1x1x8x384xf32, #tpu.memory_space<vmem>>) attributes {dimension_semantics = [#tpu.dimension_semantics<parallel>, #tpu.dimension_semantics<parallel>], iteration_bounds = array<i64: 2, 1>, scalar_prefetch = 0 : i64, scratch_operands = 0 : i64, tpu.core_type = #tpu.core_type<tc>, window_params = [{transform_indices = @transform_0, window_bounds = array<i64: 1, 1, 64, 456>}, {pipeline_mode = #tpu.pipeline_mode<synchronous>, transform_indices = @transform_1, window_bounds = array<i64: 8, 576>}, {pipeline_mode = #tpu.pipeline_mode<synchronous>, transform_indices = @transform_2, window_bounds = array<i64: 8, 1>}, {transform_indices = @transform_3, window_bounds = array<i64: 1, 1, 8, 384>}]} {
    %c0 = arith.constant 0 : index
    %c0_0 = arith.constant 0 : index
    %c0_1 = arith.constant 0 : index
    %c0_2 = arith.constant 0 : index
    %0 = vector.load %arg2[%c0, %c0_0, %c0_1, %c0_2] : memref<1x1x64x456xbf16, #tpu.memory_space<vmem>>, vector<1x1x64x384xbf16>
    %1 = vector.shape_cast %0 : vector<1x1x64x384xbf16> to vector<64x384xbf16>
    %c0_3 = arith.constant 0 : index
    %c0_4 = arith.constant 0 : index
    %c0_5 = arith.constant 0 : index
    %c1 = arith.constant 1 : index
    %2 = vector.load %arg2[%c0_3, %c0_4, %c0_5, %c1] : memref<1x1x64x456xbf16, #tpu.memory_space<vmem>>, vector<1x1x64x384xbf16>
    %3 = vector.shape_cast %2 : vector<1x1x64x384xbf16> to vector<64x384xbf16>
    %c0_6 = arith.constant 0 : index
    %c0_7 = arith.constant 0 : index
    %c0_8 = arith.constant 0 : index
    %c2 = arith.constant 2 : index
    %4 = vector.load %arg2[%c0_6, %c0_7, %c0_8, %c2] : memref<1x1x64x456xbf16, #tpu.memory_space<vmem>>, vector<1x1x64x384xbf16>
    %5 = vector.shape_cast %4 : vector<1x1x64x384xbf16> to vector<64x384xbf16>
    %c0_9 = arith.constant 0 : index
    %c0_10 = arith.constant 0 : index
    %c0_11 = arith.constant 0 : index
    %c24 = arith.constant 24 : index
    %6 = vector.load %arg2[%c0_9, %c0_10, %c0_11, %c24] : memref<1x1x64x456xbf16, #tpu.memory_space<vmem>>, vector<1x1x64x384xbf16>
    %7 = vector.shape_cast %6 : vector<1x1x64x384xbf16> to vector<64x384xbf16>
    %c0_12 = arith.constant 0 : index
    %c0_13 = arith.constant 0 : index
    %c0_14 = arith.constant 0 : index
    %c25 = arith.constant 25 : index
    %8 = vector.load %arg2[%c0_12, %c0_13, %c0_14, %c25] : memref<1x1x64x456xbf16, #tpu.memory_space<vmem>>, vector<1x1x64x384xbf16>
    %9 = vector.shape_cast %8 : vector<1x1x64x384xbf16> to vector<64x384xbf16>
    %c0_15 = arith.constant 0 : index
    %c0_16 = arith.constant 0 : index
    %c0_17 = arith.constant 0 : index
    %c26 = arith.constant 26 : index
    %10 = vector.load %arg2[%c0_15, %c0_16, %c0_17, %c26] : memref<1x1x64x456xbf16, #tpu.memory_space<vmem>>, vector<1x1x64x384xbf16>
    %11 = vector.shape_cast %10 : vector<1x1x64x384xbf16> to vector<64x384xbf16>
    %c0_18 = arith.constant 0 : index
    %c0_19 = arith.constant 0 : index
    %c0_20 = arith.constant 0 : index
    %c48 = arith.constant 48 : index
    %12 = vector.load %arg2[%c0_18, %c0_19, %c0_20, %c48] : memref<1x1x64x456xbf16, #tpu.memory_space<vmem>>, vector<1x1x64x384xbf16>
    %13 = vector.shape_cast %12 : vector<1x1x64x384xbf16> to vector<64x384xbf16>
    %c0_21 = arith.constant 0 : index
    %c0_22 = arith.constant 0 : index
    %c0_23 = arith.constant 0 : index
    %c49 = arith.constant 49 : index
    %14 = vector.load %arg2[%c0_21, %c0_22, %c0_23, %c49] : memref<1x1x64x456xbf16, #tpu.memory_space<vmem>>, vector<1x1x64x384xbf16>
    %15 = vector.shape_cast %14 : vector<1x1x64x384xbf16> to vector<64x384xbf16>
    %c0_24 = arith.constant 0 : index
    %c0_25 = arith.constant 0 : index
    %c0_26 = arith.constant 0 : index
    %c50 = arith.constant 50 : index
    %16 = vector.load %arg2[%c0_24, %c0_25, %c0_26, %c50] : memref<1x1x64x456xbf16, #tpu.memory_space<vmem>>, vector<1x1x64x384xbf16>
    %17 = vector.shape_cast %16 : vector<1x1x64x384xbf16> to vector<64x384xbf16>
    %18 = tpu.concatenate %1, %3, %5, %7, %9, %11, %13, %15, %17 in 0 : vector<64x384xbf16>, vector<64x384xbf16>, vector<64x384xbf16>, vector<64x384xbf16>, vector<64x384xbf16>, vector<64x384xbf16>, vector<64x384xbf16>, vector<64x384xbf16>, vector<64x384xbf16> -> vector<576x384xbf16>
    %c0_27 = arith.constant 0 : index
    %c0_28 = arith.constant 0 : index
    %19 = vector.load %arg3[%c0_27, %c0_28] : memref<8x576xbf16, #tpu.memory_space<vmem>>, vector<8x576xbf16>
    %cst = arith.constant dense<0.000000e+00> : vector<8x384xf32>
    %20 = tpu.matmul %19, %18, %cst {dimension_numbers = #tpu.dot_dimension_numbers<[1], [0], [0], [1], [0, 0, 1, 1], [], []>} : vector<8x576xbf16>, vector<576x384xbf16>, vector<8x384xf32> -> vector<8x384xf32>
    %c0_29 = arith.constant 0 : index
    %c0_30 = arith.constant 0 : index
    %21 = vector.load %arg4[%c0_29, %c0_30] : memref<8x1xf32, #tpu.memory_space<vmem>>, vector<8x1xf32>
    %22 = vector.broadcast %21 : vector<8x1xf32> to vector<8x384xf32>
    %23 = arith.addf %20, %22 : vector<8x384xf32>
    %cst_31 = arith.constant 0.000000e+00 : f32
    %24 = vector.broadcast %cst_31 : f32 to vector<8x384xf32>
    %25 = arith.maximumf %23, %24 : vector<8x384xf32>
    %c0_32 = arith.constant 0 : index
    %c0_33 = arith.constant 0 : index
    %c0_34 = arith.constant 0 : index
    %c0_35 = arith.constant 0 : index
    %26 = vector.load %arg5[%c0_32, %c0_33, %c0_34, %c0_35] : memref<1x1x8x384xf32, #tpu.memory_space<vmem>>, vector<1x1x8x384xf32>
    %27 = vector.shape_cast %26 : vector<1x1x8x384xf32> to vector<8x384xf32>
    %28 = vector.shape_cast %25 : vector<8x384xf32> to vector<1x1x8x384xf32>
    tpu.vector_store %arg5[%c0_32, %c0_33, %c0_34, %c0_35], %28 {strides = array<i32>} : memref<1x1x8x384xf32, #tpu.memory_space<vmem>>, vector<1x1x8x384xf32>,
    return
  }
  func.func @transform_0(%arg0: i32, %arg1: i32) -> (i32, i32, i32, i32) {
    %c0_i32 = arith.constant 0 : i32
    %c0_i32_0 = arith.constant 0 : i32
    %c0_i32_1 = arith.constant 0 : i32
    return %arg0, %arg1, %c0_i32, %c0_i32_0 : i32, i32, i32, i32
  }
  func.func @transform_1(%arg0: i32, %arg1: i32) -> (i32, i32) {
    %c0_i32 = arith.constant 0 : i32
    %c0_i32_0 = arith.constant 0 : i32
    %c0_i32_1 = arith.constant 0 : i32
    return %c0_i32, %c0_i32_0 : i32, i32
  }
  func.func @transform_2(%arg0: i32, %arg1: i32) -> (i32, i32) {
    %c0_i32 = arith.constant 0 : i32
    %c0_i32_0 = arith.constant 0 : i32
    %c0_i32_1 = arith.constant 0 : i32
    return %c0_i32, %c0_i32_0 : i32, i32
  }
  func.func @transform_3(%arg0: i32, %arg1: i32) -> (i32, i32, i32, i32) {
    %c0_i32 = arith.constant 0 : i32
    %c0_i32_0 = arith.constant 0 : i32
    %c0_i32_1 = arith.constant 0 : i32
    return %arg0, %arg1, %c0_i32, %c0_i32_0 : i32, i32, i32, i32
  }
}

</mosaic_0001>

<llo_original>
// kernel: _lambda_.7
$region0: #{_lambda_.7}
  #allocation0 [shape = 'u32[]', space=smem, size = 0x4, offset = 0x4, fixed_abs, tag = 'smem constant byte address 0x4 - core index']
  #allocation1 [shape = 'u32[144,128]{1,0:T(1,128)}', space=vmem, size = 0x12000, scoped, tag = 'internal scratch']
  #allocation2 [shape = 'f32[64,384]{1,0:T(8,128)}', space=vmem, size = 0x18000, scoped, tag = 'scratch operand']
  %s0 = inlined_call_operand.vmem [shape: bf16[2,1,8,456], index: 0, kind: input, shape index: {}]
  %s1 = inlined_call_operand.vmem [shape: bf16[64,72], index: 1, kind: input, shape index: {}]
  %s2 = inlined_call_operand.vmem [shape: f32[64,1], index: 2, kind: input, shape index: {}]
  %s3 = inlined_call_operand.vmem [shape: bf16[2,1,64,64], index: 3, kind: output, shape index: {}]
  %s4 = sld [smem:[#allocation0]]
  $region45: #{_lambda_.7} parent=0
    _
  %s6 = ssub.s32 1, %s4
  %s7 = scalar_select 0, %s6, %s4
  loop: start=0, step=1, limit=4
  $region2: #{_lambda_.7} parent=0 // loop_pre_header
    _
  $region3: #{_lambda_.7} parent=0 // loop_header
    %s9 = sphi 0, %s13
    %p10 = scmp.ge.s32.totalorder %s9, 4
    %s16 = sphi 0, %s28
    %s17 = sphi 0, %s24
    %s18 = sphi 0, %s16
    %s19 = sphi 0, %s17
    %s20 = sphi 0, %s18
    %s21 = sphi 0, %s19
    %s33 = sphi 0, %s35
    %s36 = sphi 0, %s33
    %s37 = sphi 0, %s36
    %s53 = sphi 0, %s37
    %s57 = sphi 0, %s57
    %s59 = sphi 0, %s57
    %s60 = sphi 0, %s59
    %s74 = sphi 0, %s60
    %s78 = sphi 0, %s78
    %s80 = sphi 0, %s78
    %s81 = sphi 0, %s80
    %s95 = sphi 0, %s81
    %s103 = sphi 0, %s105
    %s106 = sphi 0, %s103
    %s107 = sphi 0, %s106
    %s123 = sphi 0, %s107
  $region4: #{_lambda_.7} parent=0 // loop_header_branch
    %12 = sbr.rel (%p10) target = $region8
  $region5: #{_lambda_.7} parent=0 // loop_body
    %s14 = ssub.s32 %s9, 1
    %s15 = ssub.s32 %s9, 2
    %s22 = sadd.s32 1, %s17
    %p23 = scmp.ge.s32.totalorder %s22, 1
    %s24 = scalar_select %p23, 0, %s22
    %s25 = sadd.s32 1, %s16
    %s26 = scalar_select %p23, %s25, %s16
    %p27 = scmp.ge.s32.totalorder %s26, 2
    %s28 = scalar_select %p27, 0, %s26
    %s29 = ssub.s32 %s16, %s28
    %s30 = ssub.s32 %s17, %s24
    %s31 = sor.u32 %s29, %s30
    %p32 = scmp.eq.s32.totalorder %s31, 0
    %s34 = sadd.s32 %s33, 1
    %s35 = scalar_select %p32, %s33, %s34
    %p38 = pneg %p32
    %p39 = scmp.eq.s32.totalorder %s9, 1
    %p40 = por %p38, %p39
    %p41 = scmp.ne.s32.totalorder %s33, %s36
    %p42 = scmp.eq.s32.totalorder %s9, 0
    %p43 = por %p41, %p42
    %p44 = scmp.ne.s32.totalorder %s33, %s36
    %p45 = scmp.eq.s32.totalorder %s14, 1
    %p46 = por %p44, %p45
    %p47 = scmp.ne.s32.totalorder %s36, %s37
    %p48 = scmp.eq.s32.totalorder %s14, 0
    %p49 = por %p47, %p48
    %p50 = scmp.ne.s32.totalorder %s36, %s37
    %p51 = scmp.eq.s32.totalorder %s15, 1
    %p52 = por %p50, %p51
    %p54 = scmp.ne.s32.totalorder %s37, %s53
    %p55 = scmp.eq.s32.totalorder %s15, 0
    %p56 = por %p54, %p55
    %s58 = sadd.s32 %s57, 1
    %p61 = scmp.eq.s32.totalorder %s9, 1
    %p62 = scmp.ne.s32.totalorder %s57, %s59
    %p63 = scmp.eq.s32.totalorder %s9, 0
    %p64 = por %p62, %p63
    %p65 = scmp.ne.s32.totalorder %s57, %s59
    %p66 = scmp.eq.s32.totalorder %s14, 1
    %p67 = por %p65, %p66
    %p68 = scmp.ne.s32.totalorder %s59, %s60
    %p69 = scmp.eq.s32.totalorder %s14, 0
    %p70 = por %p68, %p69
    %p71 = scmp.ne.s32.totalorder %s59, %s60
    %p72 = scmp.eq.s32.totalorder %s15, 1
    %p73 = por %p71, %p72
    %p75 = scmp.ne.s32.totalorder %s60, %s74
    %p76 = scmp.eq.s32.totalorder %s15, 0
    %p77 = por %p75, %p76
    %s79 = sadd.s32 %s78, 1
    %p82 = scmp.eq.s32.totalorder %s9, 1
    %p83 = scmp.ne.s32.totalorder %s78, %s80
    %p84 = scmp.eq.s32.totalorder %s9, 0
    %p85 = por %p83, %p84
    %p86 = scmp.ne.s32.totalorder %s78, %s80
    %p87 = scmp.eq.s32.totalorder %s14, 1
    %p88 = por %p86, %p87
    %p89 = scmp.ne.s32.totalorder %s80, %s81
    %p90 = scmp.eq.s32.totalorder %s14, 0
    %p91 = por %p89, %p90
    %p92 = scmp.ne.s32.totalorder %s80, %s81
    %p93 = scmp.eq.s32.totalorder %s15, 1
    %p94 = por %p92, %p93
    %p96 = scmp.ne.s32.totalorder %s81, %s95
    %p97 = scmp.eq.s32.totalorder %s15, 0
    %p98 = por %p96, %p97
    %s99 = ssub.s32 %s16, %s28
    %s100 = ssub.s32 %s17, %s24
    %s101 = sor.u32 %s99, %s100
    %p102 = scmp.eq.s32.totalorder %s101, 0
    %s104 = sadd.s32 %s103, 1
    %s105 = scalar_select %p102, %s103, %s104
    %p108 = pneg %p102
    %p109 = scmp.eq.s32.totalorder %s9, 1
    %p110 = por %p108, %p109
    %p111 = scmp.ne.s32.totalorder %s103, %s106
    %p112 = scmp.eq.s32.totalorder %s9, 0
    %p113 = por %p111, %p112
    %p114 = scmp.ne.s32.totalorder %s103, %s106
    %p115 = scmp.eq.s32.totalorder %s14, 1
    %p116 = por %p114, %p115
    %p117 = scmp.ne.s32.totalorder %s106, %s107
    %p118 = scmp.eq.s32.totalorder %s14, 0
    %p119 = por %p117, %p118
    %p120 = scmp.ne.s32.totalorder %s106, %s107
    %p121 = scmp.eq.s32.totalorder %s15, 1
    %p122 = por %p120, %p121
    %p124 = scmp.ne.s32.totalorder %s107, %s123
    %p125 = scmp.eq.s32.totalorder %s15, 0
    %p126 = por %p124, %p125
    %p127 = scmp.le.s32.totalorder 1, %s9
    %p128 = scmp.lt.s32.totalorder %s9, 3
    %p129 = pnand %p127, %p128
    %p130 = pneg %p129
    // Predicated region
    $region9: #{_lambda_.7} parent=5 // pred_check
      _
    $region10: #{_lambda_.7} parent=5 // pred_check_branch
      %132 = sbr.rel (%p129) target = $region12
    $region11: #{_lambda_.7} parent=5 // pred_region
      %s133 = ssub.s32 %s9, 1
      // Predicated region
      $region13: #{_lambda_.7} parent=11 // pred_check
        %p134 = pneg %p70
      $region14: #{_lambda_.7} parent=11 // pred_check_branch
        %136 = sbr.rel (%p134) target = $region16
      $region15: #{_lambda_.7} parent=11 // pred_region
        _
      $region16: #{_lambda_.7} parent=11 // pred_fallthru
        _
      // Predicated region
      $region17: #{_lambda_.7} parent=11 // pred_check
        %p137 = pneg %p91
      $region18: #{_lambda_.7} parent=11 // pred_check_branch
        %139 = sbr.rel (%p137) target = $region20
      $region19: #{_lambda_.7} parent=11 // pred_region
        _
      $region20: #{_lambda_.7} parent=11 // pred_fallthru
        _
    $region12: #{_lambda_.7} parent=5 // pred_fallthru
      _
    %p140 = scmp.lt.s32.totalorder %s9, 2
    // Predicated region
    $region21: #{_lambda_.7} parent=5 // pred_check
      %p141 = pneg %p140
    $region22: #{_lambda_.7} parent=5 // pred_check_branch
      %143 = sbr.rel (%p141) target = $region24
    $region23: #{_lambda_.7} parent=5 // pred_region
      // Predicated region
      $region25: #{_lambda_.7} parent=23 // pred_check
        %p144 = pneg %p43
      $region26: #{_lambda_.7} parent=23 // pred_check_branch
        %146 = sbr.rel (%p144) target = $region28
      $region27: #{_lambda_.7} parent=23 // pred_region
        %p147 = scmp.lt.s32.totalorder %s16, 1
        %s148 = scalar_select %p147, %s16, 1
        %p149 = scmp.lt.s32.totalorder %s17, 0
        %s150 = scalar_select %p149, %s17, 0
        %s151 = smul.addr %s150, 4
        %s152 = smul.addr %s148, 4
        %s153 = sadd.s32 %s151, %s152
        %s154 = smul.addr %s153, 4
        %s155 = scalar_lea.vmem %s0, %s154
      $region28: #{_lambda_.7} parent=23 // pred_fallthru
        _
    $region24: #{_lambda_.7} parent=5 // pred_fallthru
      _
    %p156 = scmp.le.s32.totalorder 1, %s9
    %p157 = scmp.lt.s32.totalorder %s9, 3
    %p158 = pnand %p156, %p157
    %p159 = pneg %p158
    // Predicated region
    $region29: #{_lambda_.7} parent=5 // pred_check
      _
    $region30: #{_lambda_.7} parent=5 // pred_check_branch
      %161 = sbr.rel (%p158) target = $region32
    $region31: #{_lambda_.7} parent=5 // pred_region
      %s162 = ssub.s32 %s9, 1
      %p163 = scmp.lt.s32.totalorder %s18, 1
      %s164 = scalar_select %p163, %s18, 1
      %p165 = scmp.lt.s32.totalorder %s19, 0
      %s166 = scalar_select %p165, %s19, 0
      %s167 = smul.addr %s166, 4
      %s168 = smul.addr %s164, 4
      %s169 = sadd.s32 %s167, %s168
      %s170 = smul.addr %s169, 4
      %s171 = scalar_lea.vmem %s0, %s170
      %p172 = pneg %p49
      %p173 = pneg %p46
      %p174 = pneg %p70
      %p175 = pneg %p67
      %p176 = pneg %p91
      %p177 = pneg %p88
      %p178 = pneg %p119
      %p179 = pneg %p116
      %p180 = scmp.lt.s32.totalorder %s18, 1
      %s181 = scalar_select %p180, %s18, 1
      %p182 = scmp.lt.s32.totalorder %s19, 0
      %s183 = scalar_select %p182, %s19, 0
      %s184 = smul.addr %s183, 8
      %s185 = smul.addr %s181, 8
      %s186 = sadd.s32 %s184, %s185
      %s187 = smul.addr %s186, 4
      %s188 = scalar_lea.vmem %s3, %s187
      %p189 = scmp.lt.s32.totalorder %s18, 1
      %s190 = scalar_select %p189, %s18, 1
      %p191 = scmp.lt.s32.totalorder %s19, 0
      %s192 = scalar_select %p191, %s19, 0
      %s193 = smul.addr %s192, 4
      %s194 = smul.addr %s190, 4
      %s195 = sadd.s32 %s193, %s194
      %s196 = smul.addr %s195, 4
      %s197 = scalar_lea.vmem %s0, %s196
      %p198 = scmp.lt.s32.totalorder %s18, 1
      %s199 = scalar_select %p198, %s18, 1
      %p200 = scmp.lt.s32.totalorder %s19, 0
      %s201 = scalar_select %p200, %s19, 0
      %s202 = smul.addr %s201, 8
      %s203 = smul.addr %s199, 8
      %s204 = sadd.s32 %s202, %s203
      %s205 = smul.addr %s204, 4
      %s206 = scalar_lea.vmem %s3, %s205
      %v208 = vld [vmem:[%s197] sm:$0xff]
      %v209 = vld [vmem:[%s197 + $0x8] sm:$0xf]
      %v210 = vld [vmem:[%s197 + $0x8] sm:$0xff]
      %v213 = vunpack.c.l.b16 %v208
      %v214 = vunpack.c.h.b16 %v208
      %v215 = vunpack.c.l.b16 %v209
      %v216 = vpack.c.b16 %v213, %v213
      %v217 = vpack.c.b16 %v214, %v214
      %v218 = vpack.c.b16 %v215, %v215
      %v220 = vunpack.c.l.b16 %v210
      %v221 = vunpack.c.h.b16 %v210
      %v222 = vpack.c.b16 %v220, %v220
      %v223 = vpack.c.b16 %v221, %v221
      %224 = vrot.lane.b32.xlu0 %v216, 116
      %v225 = vpop.permute.xlu0 %224
      %226 = vrot.lane.b32.xlu0 %v217, 116
      %v227 = vpop.permute.xlu0 %226
      %228 = vrot.lane.b32.xlu0 %v222, 116
      %v229 = vpop.permute.xlu0 %228
      %230 = vrot.lane.b32.xlu0 %v223, 116
      %v231 = vpop.permute.xlu0 %230
      %vm232 = vcmask 949248
      %v233 = vsel %vm232, %v225, %v227
      %v234 = vsel %vm232, %v227, %v229
      %v235 = vsel %vm232, %v229, %v231
      %236 = vrot.lane.b32.xlu0 %v216, 127
      %v237 = vpop.permute.xlu0 %236
      %238 = vrot.lane.b32.xlu0 %v217, 127
      %v239 = vpop.permute.xlu0 %238
      %240 = vrot.lane.b32.xlu0 %v222, 127
      %v241 = vpop.permute.xlu0 %240
      %242 = vrot.lane.b32.xlu0 %v223, 127
      %v243 = vpop.permute.xlu0 %242
      %vm244 = vcmask 1039360
      %v245 = vsel %vm244, %v237, %v239
      %v246 = vsel %vm244, %v239, %v241
      %v247 = vsel %vm244, %v241, %v243
      %248 = vrot.lane.b32.xlu0 %v216, 104
      %v249 = vpop.permute.xlu0 %248
      %250 = vrot.lane.b32.xlu0 %v217, 104
      %v251 = vpop.permute.xlu0 %250
      %252 = vrot.lane.b32.xlu0 %v222, 104
      %v253 = vpop.permute.xlu0 %252
      %254 = vrot.lane.b32.xlu0 %v223, 104
      %v255 = vpop.permute.xlu0 %254
      %vm256 = vcmask 850944
      %v257 = vsel %vm256, %v249, %v251
      %v258 = vsel %vm256, %v251, %v253
      %v259 = vsel %vm256, %v253, %v255
      %260 = vrot.lane.b32.xlu0 %v216, 92
      %v261 = vpop.permute.xlu0 %260
      %262 = vrot.lane.b32.xlu0 %v217, 92
      %v263 = vpop.permute.xlu0 %262
      %264 = vrot.lane.b32.xlu0 %v222, 92
      %v265 = vpop.permute.xlu0 %264
      %266 = vrot.lane.b32.xlu0 %v223, 92
      %v267 = vpop.permute.xlu0 %266
      %vm268 = vcmask 752640
      %v269 = vsel %vm268, %v261, %v263
      %v270 = vsel %vm268, %v263, %v265
      %v271 = vsel %vm268, %v265, %v267
      %272 = vrot.lane.b32.xlu0 %v216, 103
      %v273 = vpop.permute.xlu0 %272
      %274 = vrot.lane.b32.xlu0 %v217, 103
      %v275 = vpop.permute.xlu0 %274
      %276 = vrot.lane.b32.xlu0 %v222, 103
      %v277 = vpop.permute.xlu0 %276
      %278 = vrot.lane.b32.xlu0 %v223, 103
      %v279 = vpop.permute.xlu0 %278
      %vm280 = vcmask 842752
      %v281 = vsel %vm280, %v273, %v275
      %v282 = vsel %vm280, %v275, %v277
      %v283 = vsel %vm280, %v277, %v279
      %284 = vrot.lane.b32.xlu0 %v216, 80
      %v285 = vpop.permute.xlu0 %284
      %286 = vrot.lane.b32.xlu0 %v217, 80
      %v287 = vpop.permute.xlu0 %286
      %288 = vrot.lane.b32.xlu0 %v222, 80
      %v289 = vpop.permute.xlu0 %288
      %290 = vrot.lane.b32.xlu0 %v223, 80
      %v291 = vpop.permute.xlu0 %290
      %vm292 = vcmask 654336
      %v293 = vsel %vm292, %v285, %v287
      %v294 = vsel %vm292, %v287, %v289
      %v295 = vsel %vm292, %v289, %v291
      %296 = vrot.lane.b32.xlu0 %v216, 68
      %v297 = vpop.permute.xlu0 %296
      %298 = vrot.lane.b32.xlu0 %v217, 68
      %v299 = vpop.permute.xlu0 %298
      %300 = vrot.lane.b32.xlu0 %v222, 68
      %v301 = vpop.permute.xlu0 %300
      %302 = vrot.lane.b32.xlu0 %v223, 68
      %v303 = vpop.permute.xlu0 %302
      %vm304 = vcmask 556032
      %v305 = vsel %vm304, %v297, %v299
      %v306 = vsel %vm304, %v299, %v301
      %v307 = vsel %vm304, %v301, %v303
      %308 = vrot.lane.b32.xlu0 %v216, 79
      %v309 = vpop.permute.xlu0 %308
      %310 = vrot.lane.b32.xlu0 %v217, 79
      %v311 = vpop.permute.xlu0 %310
      %312 = vrot.lane.b32.xlu0 %v222, 79
      %v313 = vpop.permute.xlu0 %312
      %314 = vrot.lane.b32.xlu0 %v223, 79
      %v315 = vpop.permute.xlu0 %314
      %vm316 = vcmask 646144
      %v317 = vsel %vm316, %v309, %v311
      %v318 = vsel %vm316, %v311, %v313
      %v319 = vsel %vm316, %v313, %v315
      %vm320 = vcmask 1043456
      %v323 = vsel %vm320, %v216, %v233
      %v327 = vsel %vm320, %v217, %v234
      %v331 = vsel %vm320, %v218, %v235
      %v335 = vsel %vm320, %v245, %v257
      %v339 = vsel %vm320, %v246, %v258
      %v343 = vsel %vm320, %v247, %v259
      %v347 = vsel %vm320, %v269, %v281
      %v351 = vsel %vm320, %v270, %v282
      %v355 = vsel %vm320, %v271, %v283
      %v359 = vsel %vm320, %v293, %v305
      %v363 = vsel %vm320, %v294, %v306
      %v367 = vsel %vm320, %v295, %v307
      %369 = vrot.lane.b32.xlu0 %v216, 11
      %v370 = vpop.permute.xlu0 %369
      %371 = vrot.lane.b32.xlu0 %v217, 11
      %v372 = vpop.permute.xlu0 %371
      %373 = vrot.lane.b32.xlu0 %v222, 11
      %v374 = vpop.permute.xlu0 %373
      %375 = vrot.lane.b32.xlu0 %v223, 11
      %v376 = vpop.permute.xlu0 %375
      %vm377 = vcmask 89088
      %v378 = vsel %vm377, %v370, %v372
      %v379 = vsel %vm377, %v372, %v374
      %v380 = vsel %vm377, %v374, %v376
      %381 = vrot.lane.b32.xlu0 %v216, 115
      %v382 = vpop.permute.xlu0 %381
      %383 = vrot.lane.b32.xlu0 %v217, 115
      %v384 = vpop.permute.xlu0 %383
      %385 = vrot.lane.b32.xlu0 %v222, 115
      %v386 = vpop.permute.xlu0 %385
      %387 = vrot.lane.b32.xlu0 %v223, 115
      %v388 = vpop.permute.xlu0 %387
      %vm389 = vcmask 941056
      %v390 = vsel %vm389, %v382, %v384
      %v391 = vsel %vm389, %v384, %v386
      %v392 = vsel %vm389, %v386, %v388
      %393 = vrot.lane.b32.xlu0 %v216, 91
      %v394 = vpop.permute.xlu0 %393
      %395 = vrot.lane.b32.xlu0 %v217, 91
      %v396 = vpop.permute.xlu0 %395
      %397 = vrot.lane.b32.xlu0 %v222, 91
      %v398 = vpop.permute.xlu0 %397
      %399 = vrot.lane.b32.xlu0 %v223, 91
      %v400 = vpop.permute.xlu0 %399
      %vm401 = vcmask 744448
      %v402 = vsel %vm401, %v394, %v396
      %v403 = vsel %vm401, %v396, %v398
      %v404 = vsel %vm401, %v398, %v400
      %v406 = vsel %vm320, %v216, %v370
      %v408 = vsel %vm320, %v217, %v378
      %v411 = vsel %vm320, %v222, %v379
      %v414 = vsel %vm320, %v223, %v380
      %v417 = vsel %vm320, %v243, %v255
      %v419 = vsel %vm320, %v390, %v281
      %v421 = vsel %vm320, %v391, %v282
      %v423 = vsel %vm320, %v392, %v283
      %v426 = vsel %vm320, %v388, %v279
      %v428 = vsel %vm320, %v293, %v402
      %v430 = vsel %vm320, %v294, %v403
      %v432 = vsel %vm320, %v295, %v404
      %v435 = vsel %vm320, %v291, %v400
      %v436 = vld [vmem:[%s1] sm:$0xf]
      %v437 = vld [vmem:[%s1 + $0x4] sm:$0xf]
      %v438 = vld [vmem:[%s1 + $0x8] sm:$0xf]
      %v439 = vld [vmem:[%s1 + $0xc] sm:$0xf]
      %v440 = vld [vmem:[%s1 + $0x10] sm:$0xf]
      %v441 = vld [vmem:[%s1 + $0x14] sm:$0xf]
      %v442 = vld [vmem:[%s1 + $0x18] sm:$0xf]
      %v443 = vld [vmem:[%s1 + $0x1c] sm:$0xf]
      %v452 = vunpack.c.l.b16 %v436
      %v453 = vunpack.c.l.b16 %v437
      %v454 = vunpack.c.l.b16 %v438
      %v455 = vunpack.c.l.b16 %v439
      %v456 = vunpack.c.l.b16 %v440
      %v457 = vunpack.c.l.b16 %v441
      %v458 = vunpack.c.l.b16 %v442
      %v459 = vunpack.c.l.b16 %v443
      %v460 = vpack.c.b16 %v453, %v452
      %v461 = vpack.c.b16 %v455, %v454
      %v462 = vpack.c.b16 %v457, %v456
      %v463 = vpack.c.b16 %v459, %v458
      %vm464 = vcmask 588800
      %v466 = vsel %vm464, %v460, 0
      %v469 = vsel %vm464, %v461, 0
      %v472 = vsel %vm464, %v462, 0
      %v475 = vsel %vm464, %v463, 0
      %v478 = vsel %vm320, %v317, 0
      %v481 = vsel %vm320, %v318, 0
      %v484 = vsel %vm320, %v319, 0
      %486 = vmatprep.subr.bf16.mxu0 %v327
      %487 = vmatpush1.bf16.msra.mxu0 %v323
      %488 = vmatprep.subr.bf16.mxu0 %v339
      %489 = vmatpush1.bf16.msra.mxu0 %v335
      %490 = vmatprep.subr.bf16.mxu0 %v351
      %491 = vmatpush1.bf16.msra.mxu0 %v347
      %492 = vmatprep.subr.bf16.mxu0 %v363
      %493 = vmatpush1.bf16.msra.mxu0 %v359
      %494 = vmatprep.subr.bf16.mxu0 %v481
      %495 = vmatpush1.bf16.msra.mxu0 %v478
      %496 = vmatprep.subr.bf16.mxu0 0
      %497 = vmatpush1.bf16.msra.mxu0 0
      %498 = vmatprep.subr.bf16.mxu0 0
      %499 = vmatpush1.bf16.msra.mxu0 0
      %500 = vmatprep.subr.bf16.mxu0 0
      %501 = vmatpush1.bf16.msra.mxu0 0
      %502 = vmatprep.subr.bf16.mxu0 0
      %503 = vmatpush1.bf16.msra.mxu0 0
      %504 = vmatprep.subr.bf16.mxu0 0
      %505 = vmatpush1.bf16.msra.mxu0 0
      %506 = vmatprep.subr.bf16.mxu0 0
      %507 = vmatpush1.bf16.msra.mxu0 0
      %508 = vmatprep.subr.bf16.mxu0 0
      %509 = vmatpush1.bf16.msra.mxu0 0
      %510 = vmatprep.subr.bf16.mxu0 0
      %511 = vmatpush1.bf16.msra.mxu0 0
      %512 = vmatprep.subr.bf16.mxu0 0
      %513 = vmatpush1.bf16.msra.mxu0 0
      %514 = vmatprep.subr.bf16.mxu0 0
      %515 = vmatpush1.bf16.msra.mxu0 0
      %516 = vmatprep.subr.bf16.mxu0 0
      %517 = vmatpush1.bf16.msra.mxu0 0
      %518 = vmatprep.mubr.bf16.mxu0 0
      %519 = vmatmul.mubr.bf16.gmra.mrb[0].mxu0 %v466
      %v520 = vpop.f32.mrb[0].mxu0
      %v521 = vadd.f32 0.0, %v520
      %v522 = vpop.f32.mrb[0].mxu0
      %v523 = vadd.f32 0.0, %v522
      %v524 = vpop.f32.mrb[0].mxu0
      %v525 = vadd.f32 0.0, %v524
      %v526 = vpop.f32.mrb[0].mxu0
      %v527 = vadd.f32 0.0, %v526
      %528 = vmatprep.mubr.bf16.mxu0 0
      %529 = vmatmul.mubr.bf16.gmra.mrb[0].mxu0 %v469
      %v530 = vpop.f32.mrb[0].mxu0
      %v531 = vadd.f32 0.0, %v530
      %v532 = vpop.f32.mrb[0].mxu0
      %v533 = vadd.f32 0.0, %v532
      %v534 = vpop.f32.mrb[0].mxu0
      %v535 = vadd.f32 0.0, %v534
      %v536 = vpop.f32.mrb[0].mxu0
      %v537 = vadd.f32 0.0, %v536
      %538 = vmatprep.mubr.bf16.mxu0 0
      %539 = vmatmul.mubr.bf16.gmra.mrb[0].mxu0 %v472
      %v540 = vpop.f32.mrb[0].mxu0
      %v541 = vadd.f32 0.0, %v540
      %v542 = vpop.f32.mrb[0].mxu0
      %v543 = vadd.f32 0.0, %v542
      %v544 = vpop.f32.mrb[0].mxu0
      %v545 = vadd.f32 0.0, %v544
      %v546 = vpop.f32.mrb[0].mxu0
      %v547 = vadd.f32 0.0, %v546
      %548 = vmatprep.mubr.bf16.mxu0 0
      %549 = vmatmul.mubr.bf16.gmra.mrb[0].mxu0 %v475
      %v550 = vpop.f32.mrb[0].mxu0
      %v551 = vadd.f32 0.0, %v550
      %v552 = vpop.f32.mrb[0].mxu0
      %v553 = vadd.f32 0.0, %v552
      %v554 = vpop.f32.mrb[0].mxu0
      %v555 = vadd.f32 0.0, %v554
      %v556 = vpop.f32.mrb[0].mxu0
      %v557 = vadd.f32 0.0, %v556
      %558 = vdwg.mxu0
      %559 = vmatprep.subr.bf16.mxu0 0
      %560 = vmatpush1.bf16.msra.mxu0 %v331
      %561 = vmatprep.subr.bf16.mxu0 0
      %562 = vmatpush1.bf16.msra.mxu0 %v343
      %563 = vmatprep.subr.bf16.mxu0 0
      %564 = vmatpush1.bf16.msra.mxu0 %v355
      %565 = vmatprep.subr.bf16.mxu0 0
      %566 = vmatpush1.bf16.msra.mxu0 %v367
      %567 = vmatprep.subr.bf16.mxu0 0
      %568 = vmatpush1.bf16.msra.mxu0 %v484
      %569 = vmatprep.subr.bf16.mxu0 0
      %570 = vmatpush1.bf16.msra.mxu0 0
      %571 = vmatprep.subr.bf16.mxu0 0
      %572 = vmatpush1.bf16.msra.mxu0 0
      %573 = vmatprep.subr.bf16.mxu0 0
      %574 = vmatpush1.bf16.msra.mxu0 0
      %575 = vmatprep.subr.bf16.mxu0 0
      %576 = vmatpush1.bf16.msra.mxu0 0
      %577 = vmatprep.subr.bf16.mxu0 0
      %578 = vmatpush1.bf16.msra.mxu0 0
      %579 = vmatprep.subr.bf16.mxu0 0
      %580 = vmatpush1.bf16.msra.mxu0 0
      %581 = vmatprep.subr.bf16.mxu0 0
      %582 = vmatpush1.bf16.msra.mxu0 0
      %583 = vmatprep.subr.bf16.mxu0 0
      %584 = vmatpush1.bf16.msra.mxu0 0
      %585 = vmatprep.subr.bf16.mxu0 0
      %586 = vmatpush1.bf16.msra.mxu0 0
      %587 = vmatprep.subr.bf16.mxu0 0
      %588 = vmatpush1.bf16.msra.mxu0 0
      %589 = vmatprep.subr.bf16.mxu0 0
      %590 = vmatpush1.bf16.msra.mxu0 0
      %591 = vmatprep.mubr.bf16.mxu0 0
      %592 = vmatmul.mubr.bf16.gmra.mrb[0].mxu0 %v466
      %v593 = vpop.f32.mrb[0].mxu0
      %v594 = vadd.f32 0.0, %v593
      %v595 = vpop.f32.mrb[0].mxu0
      %v596 = vpop.f32.mrb[0].mxu0
      %v597 = vadd.f32 0.0, %v596
      %v598 = vpop.f32.mrb[0].mxu0
      %599 = vmatprep.mubr.bf16.mxu0 0
      %600 = vmatmul.mubr.bf16.gmra.mrb[0].mxu0 %v469
      %v601 = vpop.f32.mrb[0].mxu0
      %v602 = vadd.f32 0.0, %v601
      %v603 = vpop.f32.mrb[0].mxu0
      %v604 = vpop.f32.mrb[0].mxu0
      %v605 = vadd.f32 0.0, %v604
      %v606 = vpop.f32.mrb[0].mxu0
      %607 = vmatprep.mubr.bf16.mxu0 0
      %608 = vmatmul.mubr.bf16.gmra.mrb[0].mxu0 %v472
      %v609 = vpop.f32.mrb[0].mxu0
      %v610 = vadd.f32 0.0, %v609
      %v611 = vpop.f32.mrb[0].mxu0
      %v612 = vpop.f32.mrb[0].mxu0
      %v613 = vadd.f32 0.0, %v612
      %v614 = vpop.f32.mrb[0].mxu0
      %615 = vmatprep.mubr.bf16.mxu0 0
      %616 = vmatmul.mubr.bf16.gmra.mrb[0].mxu0 %v475
      %v617 = vpop.f32.mrb[0].mxu0
      %v618 = vadd.f32 0.0, %v617
      %v619 = vpop.f32.mrb[0].mxu0
      %v620 = vpop.f32.mrb[0].mxu0
      %v621 = vadd.f32 0.0, %v620
      %v622 = vpop.f32.mrb[0].mxu0
      %623 = vdwg.mxu0
      %640 = vrot.lane.b32.xlu0 %v406, 116
      %v641 = vpop.permute.xlu0 %640
      %642 = vrot.lane.b32.xlu0 %v408, 116
      %v643 = vpop.permute.xlu0 %642
      %644 = vrot.lane.b32.xlu0 %v411, 116
      %v645 = vpop.permute.xlu0 %644
      %646 = vrot.lane.b32.xlu0 %v414, 116
      %v647 = vpop.permute.xlu0 %646
      %648 = vrot.lane.b32.xlu0 %v335, 116
      %v649 = vpop.permute.xlu0 %648
      %650 = vrot.lane.b32.xlu0 %v339, 116
      %v651 = vpop.permute.xlu0 %650
      %652 = vrot.lane.b32.xlu0 %v343, 116
      %v653 = vpop.permute.xlu0 %652
      %654 = vrot.lane.b32.xlu0 %v417, 116
      %v655 = vpop.permute.xlu0 %654
      %656 = vrot.lane.b32.xlu0 %v419, 116
      %v657 = vpop.permute.xlu0 %656
      %658 = vrot.lane.b32.xlu0 %v421, 116
      %v659 = vpop.permute.xlu0 %658
      %660 = vrot.lane.b32.xlu0 %v423, 116
      %v661 = vpop.permute.xlu0 %660
      %662 = vrot.lane.b32.xlu0 %v426, 116
      %v663 = vpop.permute.xlu0 %662
      %664 = vrot.lane.b32.xlu0 %v428, 116
      %v665 = vpop.permute.xlu0 %664
      %666 = vrot.lane.b32.xlu0 %v430, 116
      %v667 = vpop.permute.xlu0 %666
      %668 = vrot.lane.b32.xlu0 %v432, 116
      %v669 = vpop.permute.xlu0 %668
      %670 = vrot.lane.b32.xlu0 %v435, 116
      %v671 = vpop.permute.xlu0 %670
      %672 = vrot.lane.b32.xlu0 %v317, 116
      %v673 = vpop.permute.xlu0 %672
      %674 = vrot.lane.b32.xlu0 %v318, 116
      %v675 = vpop.permute.xlu0 %674
      %676 = vrot.lane.b32.xlu0 %v319, 116
      %v677 = vpop.permute.xlu0 %676
      %678 = vrot.lane.b32.xlu0 %v315, 116
      %v679 = vpop.permute.xlu0 %678
      %v680 = vsel %vm232, %v641, %v643
      %v681 = vsel %vm232, %v643, %v645
      %v682 = vsel %vm232, %v645, %v647
      %v683 = vsel %vm232, %v649, %v651
      %v684 = vsel %vm232, %v651, %v653
      %v685 = vsel %vm232, %v653, %v655
      %v686 = vsel %vm232, %v657, %v659
      %v687 = vsel %vm232, %v659, %v661
      %v688 = vsel %vm232, %v661, %v663
      %v689 = vsel %vm232, %v665, %v667
      %v690 = vsel %vm232, %v667, %v669
      %v691 = vsel %vm232, %v669, %v671
      %v692 = vsel %vm232, %v673, %v675
      %v693 = vsel %vm232, %v675, %v677
      %v694 = vsel %vm232, %v677, %v679
      %v708 = vsel %vm320, %v692, 0
      %v711 = vsel %vm320, %v693, 0
      %v714 = vsel %vm320, %v694, 0
      %716 = vmatprep.subr.bf16.mxu0 %v681
      %717 = vmatpush1.bf16.msra.mxu0 %v680
      %718 = vmatprep.subr.bf16.mxu0 %v684
      %719 = vmatpush1.bf16.msra.mxu0 %v683
      %720 = vmatprep.subr.bf16.mxu0 %v687
      %721 = vmatpush1.bf16.msra.mxu0 %v686
      %722 = vmatprep.subr.bf16.mxu0 %v690
      %723 = vmatpush1.bf16.msra.mxu0 %v689
      %724 = vmatprep.subr.bf16.mxu0 %v711
      %725 = vmatpush1.bf16.msra.mxu0 %v708
      %726 = vmatprep.subr.bf16.mxu0 0
      %727 = vmatpush1.bf16.msra.mxu0 0
      %728 = vmatprep.subr.bf16.mxu0 0
      %729 = vmatpush1.bf16.msra.mxu0 0
      %730 = vmatprep.subr.bf16.mxu0 0
      %731 = vmatpush1.bf16.msra.mxu0 0
      %732 = vmatprep.subr.bf16.mxu0 0
      %733 = vmatpush1.bf16.msra.mxu0 0
      %734 = vmatprep.subr.bf16.mxu0 0
      %735 = vmatpush1.bf16.msra.mxu0 0
      %736 = vmatprep.subr.bf16.mxu0 0
      %737 = vmatpush1.bf16.msra.mxu0 0
      %738 = vmatprep.subr.bf16.mxu0 0
      %739 = vmatpush1.bf16.msra.mxu0 0
      %740 = vmatprep.subr.bf16.mxu0 0
      %741 = vmatpush1.bf16.msra.mxu0 0
      %742 = vmatprep.subr.bf16.mxu0 0
      %743 = vmatpush1.bf16.msra.mxu0 0
      %744 = vmatprep.subr.bf16.mxu0 0
      %745 = vmatpush1.bf16.msra.mxu0 0
      %746 = vmatprep.subr.bf16.mxu0 0
      %747 = vmatpush1.bf16.msra.mxu0 0
      %748 = vmatprep.mubr.bf16.mxu0 0
      %749 = vmatmul.mubr.bf16.gmra.mrb[0].mxu0 %v466
      %v750 = vpop.f32.mrb[0].mxu0
      %v751 = vadd.f32 0.0, %v750
      %v752 = vpop.f32.mrb[0].mxu0
      %v753 = vadd.f32 0.0, %v752
      %v754 = vpop.f32.mrb[0].mxu0
      %v755 = vadd.f32 0.0, %v754
      %v756 = vpop.f32.mrb[0].mxu0
      %v757 = vadd.f32 0.0, %v756
      %758 = vmatprep.mubr.bf16.mxu0 0
      %759 = vmatmul.mubr.bf16.gmra.mrb[0].mxu0 %v469
      %v760 = vpop.f32.mrb[0].mxu0
      %v761 = vadd.f32 0.0, %v760
      %v762 = vpop.f32.mrb[0].mxu0
      %v763 = vadd.f32 0.0, %v762
      %v764 = vpop.f32.mrb[0].mxu0
      %v765 = vadd.f32 0.0, %v764
      %v766 = vpop.f32.mrb[0].mxu0
      %v767 = vadd.f32 0.0, %v766
      %768 = vmatprep.mubr.bf16.mxu0 0
      %769 = vmatmul.mubr.bf16.gmra.mrb[0].mxu0 %v472
      %v770 = vpop.f32.mrb[0].mxu0
      %v771 = vadd.f32 0.0, %v770
      %v772 = vpop.f32.mrb[0].mxu0
      %v773 = vadd.f32 0.0, %v772
      %v774 = vpop.f32.mrb[0].mxu0
      %v775 = vadd.f32 0.0, %v774
      %v776 = vpop.f32.mrb[0].mxu0
      %v777 = vadd.f32 0.0, %v776
      %778 = vmatprep.mubr.bf16.mxu0 0
      %779 = vmatmul.mubr.bf16.gmra.mrb[0].mxu0 %v475
      %v780 = vpop.f32.mrb[0].mxu0
      %v781 = vadd.f32 0.0, %v780
      %v782 = vpop.f32.mrb[0].mxu0
      %v783 = vadd.f32 0.0, %v782
      %v784 = vpop.f32.mrb[0].mxu0
      %v785 = vadd.f32 0.0, %v784
      %v786 = vpop.f32.mrb[0].mxu0
      %v787 = vadd.f32 0.0, %v786
      %788 = vdwg.mxu0
      %789 = vmatprep.subr.bf16.mxu0 0
      %790 = vmatpush1.bf16.msra.mxu0 %v682
      %791 = vmatprep.subr.bf16.mxu0 0
      %792 = vmatpush1.bf16.msra.mxu0 %v685
      %793 = vmatprep.subr.bf16.mxu0 0
      %794 = vmatpush1.bf16.msra.mxu0 %v688
      %795 = vmatprep.subr.bf16.mxu0 0
      %796 = vmatpush1.bf16.msra.mxu0 %v691
      %797 = vmatprep.subr.bf16.mxu0 0
      %798 = vmatpush1.bf16.msra.mxu0 %v714
      %799 = vmatprep.subr.bf16.mxu0 0
      %800 = vmatpush1.bf16.msra.mxu0 0
      %801 = vmatprep.subr.bf16.mxu0 0
      %802 = vmatpush1.bf16.msra.mxu0 0
      %803 = vmatprep.subr.bf16.mxu0 0
      %804 = vmatpush1.bf16.msra.mxu0 0
      %805 = vmatprep.subr.bf16.mxu0 0
      %806 = vmatpush1.bf16.msra.mxu0 0
      %807 = vmatprep.subr.bf16.mxu0 0
      %808 = vmatpush1.bf16.msra.mxu0 0
      %809 = vmatprep.subr.bf16.mxu0 0
      %810 = vmatpush1.bf16.msra.mxu0 0
      %811 = vmatprep.subr.bf16.mxu0 0
      %812 = vmatpush1.bf16.msra.mxu0 0
      %813 = vmatprep.subr.bf16.mxu0 0
      %814 = vmatpush1.bf16.msra.mxu0 0
      %815 = vmatprep.subr.bf16.mxu0 0
      %816 = vmatpush1.bf16.msra.mxu0 0
      %817 = vmatprep.subr.bf16.mxu0 0
      %818 = vmatpush1.bf16.msra.mxu0 0
      %819 = vmatprep.subr.bf16.mxu0 0
      %820 = vmatpush1.bf16.msra.mxu0 0
      %821 = vmatprep.mubr.bf16.mxu0 0
      %822 = vmatmul.mubr.bf16.gmra.mrb[0].mxu0 %v466
      %v823 = vpop.f32.mrb[0].mxu0
      %v824 = vadd.f32 0.0, %v823
      %v825 = vpop.f32.mrb[0].mxu0
      %v826 = vpop.f32.mrb[0].mxu0
      %v827 = vadd.f32 0.0, %v826
      %v828 = vpop.f32.mrb[0].mxu0
      %829 = vmatprep.mubr.bf16.mxu0 0
      %830 = vmatmul.mubr.bf16.gmra.mrb[0].mxu0 %v469
      %v831 = vpop.f32.mrb[0].mxu0
      %v832 = vadd.f32 0.0, %v831
      %v833 = vpop.f32.mrb[0].mxu0
      %v834 = vpop.f32.mrb[0].mxu0
      %v835 = vadd.f32 0.0, %v834
      %v836 = vpop.f32.mrb[0].mxu0
      %837 = vmatprep.mubr.bf16.mxu0 0
      %838 = vmatmul.mubr.bf16.gmra.mrb[0].mxu0 %v472
      %v839 = vpop.f32.mrb[0].mxu0
      %v840 = vadd.f32 0.0, %v839
      %v841 = vpop.f32.mrb[0].mxu0
      %v842 = vpop.f32.mrb[0].mxu0
      %v843 = vadd.f32 0.0, %v842
      %v844 = vpop.f32.mrb[0].mxu0
      %845 = vmatprep.mubr.bf16.mxu0 0
      %846 = vmatmul.mubr.bf16.gmra.mrb[0].mxu0 %v475
      %v847 = vpop.f32.mrb[0].mxu0
      %v848 = vadd.f32 0.0, %v847
      %v849 = vpop.f32.mrb[0].mxu0
      %v850 = vpop.f32.mrb[0].mxu0
      %v851 = vadd.f32 0.0, %v850
      %v852 = vpop.f32.mrb[0].mxu0
      %853 = vdwg.mxu0
      %v854 = vmax.f32 %v521, %v751
      %v855 = vmax.f32 %v523, %v753
      %v856 = vmax.f32 %v594, %v824
      %v857 = vmax.f32 %v525, %v755
      %v858 = vmax.f32 %v527, %v757
      %v859 = vmax.f32 %v597, %v827
      %v860 = vmax.f32 %v531, %v761
      %v861 = vmax.f32 %v533, %v763
      %v862 = vmax.f32 %v602, %v832
      %v863 = vmax.f32 %v535, %v765
      %v864 = vmax.f32 %v537, %v767
      %v865 = vmax.f32 %v605, %v835
      %v866 = vmax.f32 %v541, %v771
      %v867 = vmax.f32 %v543, %v773
      %v868 = vmax.f32 %v610, %v840
      %v869 = vmax.f32 %v545, %v775
      %v870 = vmax.f32 %v547, %v777
      %v871 = vmax.f32 %v613, %v843
      %v872 = vmax.f32 %v551, %v781
      %v873 = vmax.f32 %v553, %v783
      %v874 = vmax.f32 %v618, %v848
      %v875 = vmax.f32 %v555, %v785
      %v876 = vmax.f32 %v557, %v787
      %v877 = vmax.f32 %v621, %v851
      %878 = vst [vmem:[#allocation2] sm:$0xff] %v854
      %879 = vst [vmem:[#allocation2 + $0x8] sm:$0xff] %v855
      %880 = vst [vmem:[#allocation2 + $0x10] sm:$0xff] %v856
      %881 = vst [vmem:[#allocation2 + $0x18] sm:$0xff] %v857
      %882 = vst [vmem:[#allocation2 + $0x20] sm:$0xff] %v858
      %883 = vst [vmem:[#allocation2 + $0x28] sm:$0xff] %v859
      %884 = vst [vmem:[#allocation2 + $0x30] sm:$0xff] %v860
      %885 = vst [vmem:[#allocation2 + $0x38] sm:$0xff] %v861
      %886 = vst [vmem:[#allocation2 + $0x40] sm:$0xff] %v862
      %887 = vst [vmem:[#allocation2 + $0x48] sm:$0xff] %v863
      %888 = vst [vmem:[#allocation2 + $0x50] sm:$0xff] %v864
      %889 = vst [vmem:[#allocation2 + $0x58] sm:$0xff] %v865
      %890 = vst [vmem:[#allocation2 + $0x60] sm:$0xff] %v866
      %891 = vst [vmem:[#allocation2 + $0x68] sm:$0xff] %v867
      %892 = vst [vmem:[#allocation2 + $0x70] sm:$0xff] %v868
      %893 = vst [vmem:[#allocation2 + $0x78] sm:$0xff] %v869
      %894 = vst [vmem:[#allocation2 + $0x80] sm:$0xff] %v870
      %895 = vst [vmem:[#allocation2 + $0x88] sm:$0xff] %v871
      %896 = vst [vmem:[#allocation2 + $0x90] sm:$0xff] %v872
      %897 = vst [vmem:[#allocation2 + $0x98] sm:$0xff] %v873
      %898 = vst [vmem:[#allocation2 + $0xa0] sm:$0xff] %v874
      %899 = vst [vmem:[#allocation2 + $0xa8] sm:$0xff] %v875
      %900 = vst [vmem:[#allocation2 + $0xb0] sm:$0xff] %v876
      %901 = vst [vmem:[#allocation2 + $0xb8] sm:$0xff] %v877
      %v902 = vld [vmem:[#allocation2] sm:$0xff]
      %v903 = vld [vmem:[#allocation2 + $0x18] sm:$0xff]
      %v904 = vld [vmem:[#allocation2 + $0x30] sm:$0xff]
      %v905 = vld [vmem:[#allocation2 + $0x48] sm:$0xff]
      %v906 = vld [vmem:[#allocation2 + $0x60] sm:$0xff]
      %v907 = vld [vmem:[#allocation2 + $0x78] sm:$0xff]
      %v908 = vld [vmem:[#allocation2 + $0x90] sm:$0xff]
      %v909 = vld [vmem:[#allocation2 + $0xa8] sm:$0xff]
      %918 = vrot.lane.b32.xlu0 %v902, 104
      %v919 = vpop.permute.xlu0 %918
      %920 = vrot.lane.b32.xlu0 %v903, 104
      %v921 = vpop.permute.xlu0 %920
      %922 = vrot.lane.b32.xlu0 %v904, 104
      %v923 = vpop.permute.xlu0 %922
      %924 = vrot.lane.b32.xlu0 %v905, 104
      %v925 = vpop.permute.xlu0 %924
      %926 = vrot.lane.b32.xlu0 %v906, 104
      %v927 = vpop.permute.xlu0 %926
      %928 = vrot.lane.b32.xlu0 %v907, 104
      %v929 = vpop.permute.xlu0 %928
      %930 = vrot.lane.b32.xlu0 %v908, 104
      %v931 = vpop.permute.xlu0 %930
      %932 = vrot.lane.b32.xlu0 %v909, 104
      %v933 = vpop.permute.xlu0 %932
      %v942 = vmax.f32 %v902, %v919
      %v943 = vmax.f32 %v903, %v921
      %v944 = vmax.f32 %v904, %v923
      %v945 = vmax.f32 %v905, %v925
      %v946 = vmax.f32 %v906, %v927
      %v947 = vmax.f32 %v907, %v929
      %v948 = vmax.f32 %v908, %v931
      %v949 = vmax.f32 %v909, %v933
      %v950 = vld [vmem:[#allocation2 + $0x8] sm:$0xff]
      %v951 = vld [vmem:[#allocation2 + $0x20] sm:$0xff]
      %v952 = vld [vmem:[#allocation2 + $0x38] sm:$0xff]
      %v953 = vld [vmem:[#allocation2 + $0x50] sm:$0xff]
      %v954 = vld [vmem:[#allocation2 + $0x68] sm:$0xff]
      %v955 = vld [vmem:[#allocation2 + $0x80] sm:$0xff]
      %v956 = vld [vmem:[#allocation2 + $0x98] sm:$0xff]
      %v957 = vld [vmem:[#allocation2 + $0xb0] sm:$0xff]
      %966 = vrot.lane.b32.xlu0 %v950, 104
      %v967 = vpop.permute.xlu0 %966
      %968 = vrot.lane.b32.xlu0 %v951, 104
      %v969 = vpop.permute.xlu0 %968
      %970 = vrot.lane.b32.xlu0 %v952, 104
      %v971 = vpop.permute.xlu0 %970
      %972 = vrot.lane.b32.xlu0 %v953, 104
      %v973 = vpop.permute.xlu0 %972
      %974 = vrot.lane.b32.xlu0 %v954, 104
      %v975 = vpop.permute.xlu0 %974
      %976 = vrot.lane.b32.xlu0 %v955, 104
      %v977 = vpop.permute.xlu0 %976
      %978 = vrot.lane.b32.xlu0 %v956, 104
      %v979 = vpop.permute.xlu0 %978
      %980 = vrot.lane.b32.xlu0 %v957, 104
      %v981 = vpop.permute.xlu0 %980
      %v990 = vmax.f32 %v950, %v967
      %v991 = vmax.f32 %v951, %v969
      %v992 = vmax.f32 %v952, %v971
      %v993 = vmax.f32 %v953, %v973
      %v994 = vmax.f32 %v954, %v975
      %v995 = vmax.f32 %v955, %v977
      %v996 = vmax.f32 %v956, %v979
      %v997 = vmax.f32 %v957, %v981
      %v998 = vld [vmem:[#allocation2 + $0x10] sm:$0xff]
      %v999 = vld [vmem:[#allocation2 + $0x28] sm:$0xff]
      %v1000 = vld [vmem:[#allocation2 + $0x40] sm:$0xff]
      %v1001 = vld [vmem:[#allocation2 + $0x58] sm:$0xff]
      %v1002 = vld [vmem:[#allocation2 + $0x70] sm:$0xff]
      %v1003 = vld [vmem:[#allocation2 + $0x88] sm:$0xff]
      %v1004 = vld [vmem:[#allocation2 + $0xa0] sm:$0xff]
      %v1005 = vld [vmem:[#allocation2 + $0xb8] sm:$0xff]
      %1014 = vrot.lane.b32.xlu0 %v998, 104
      %v1015 = vpop.permute.xlu0 %1014
      %1016 = vrot.lane.b32.xlu0 %v999, 104
      %v1017 = vpop.permute.xlu0 %1016
      %1018 = vrot.lane.b32.xlu0 %v1000, 104
      %v1019 = vpop.permute.xlu0 %1018
      %1020 = vrot.lane.b32.xlu0 %v1001, 104
      %v1021 = vpop.permute.xlu0 %1020
      %1022 = vrot.lane.b32.xlu0 %v1002, 104
      %v1023 = vpop.permute.xlu0 %1022
      %1024 = vrot.lane.b32.xlu0 %v1003, 104
      %v1025 = vpop.permute.xlu0 %1024
      %1026 = vrot.lane.b32.xlu0 %v1004, 104
      %v1027 = vpop.permute.xlu0 %1026
      %1028 = vrot.lane.b32.xlu0 %v1005, 104
      %v1029 = vpop.permute.xlu0 %1028
      %v1038 = vmax.f32 %v950, %v1015
      %v1039 = vmax.f32 %v951, %v1017
      %v1040 = vmax.f32 %v952, %v1019
      %v1041 = vmax.f32 %v953, %v1021
      %v1042 = vmax.f32 %v954, %v1023
      %v1043 = vmax.f32 %v955, %v1025
      %v1044 = vmax.f32 %v956, %v1027
      %v1045 = vmax.f32 %v957, %v1029
      %v1046 = vmax.f32 %v998, %v1015
      %v1047 = vmax.f32 %v999, %v1017
      %v1048 = vmax.f32 %v1000, %v1019
      %v1049 = vmax.f32 %v1001, %v1021
      %v1050 = vmax.f32 %v1002, %v1023
      %v1051 = vmax.f32 %v1003, %v1025
      %v1052 = vmax.f32 %v1004, %v1027
      %v1053 = vmax.f32 %v1005, %v1029
      %1062 = vrot.lane.b32.xlu0 %v942, 88
      %v1063 = vpop.permute.xlu0 %1062
      %1064 = vrot.lane.b32.xlu0 %v943, 88
      %v1065 = vpop.permute.xlu0 %1064
      %1066 = vrot.lane.b32.xlu0 %v944, 88
      %v1067 = vpop.permute.xlu0 %1066
      %1068 = vrot.lane.b32.xlu0 %v945, 88
      %v1069 = vpop.permute.xlu0 %1068
      %1070 = vrot.lane.b32.xlu0 %v946, 88
      %v1071 = vpop.permute.xlu0 %1070
      %1072 = vrot.lane.b32.xlu0 %v947, 88
      %v1073 = vpop.permute.xlu0 %1072
      %1074 = vrot.lane.b32.xlu0 %v948, 88
      %v1075 = vpop.permute.xlu0 %1074
      %1076 = vrot.lane.b32.xlu0 %v949, 88
      %v1077 = vpop.permute.xlu0 %1076
      %1086 = vrot.lane.b32.xlu0 %v942, 48
      %v1087 = vpop.permute.xlu0 %1086
      %1088 = vrot.lane.b32.xlu0 %v943, 48
      %v1089 = vpop.permute.xlu0 %1088
      %1090 = vrot.lane.b32.xlu0 %v944, 48
      %v1091 = vpop.permute.xlu0 %1090
      %1092 = vrot.lane.b32.xlu0 %v945, 48
      %v1093 = vpop.permute.xlu0 %1092
      %1094 = vrot.lane.b32.xlu0 %v946, 48
      %v1095 = vpop.permute.xlu0 %1094
      %1096 = vrot.lane.b32.xlu0 %v947, 48
      %v1097 = vpop.permute.xlu0 %1096
      %1098 = vrot.lane.b32.xlu0 %v948, 48
      %v1099 = vpop.permute.xlu0 %1098
      %1100 = vrot.lane.b32.xlu0 %v949, 48
      %v1101 = vpop.permute.xlu0 %1100
      %1118 = vrot.lane.b32.xlu0 %v990, 8
      %v1119 = vpop.permute.xlu0 %1118
      %1120 = vrot.lane.b32.xlu0 %v991, 8
      %v1121 = vpop.permute.xlu0 %1120
      %1122 = vrot.lane.b32.xlu0 %v992, 8
      %v1123 = vpop.permute.xlu0 %1122
      %1124 = vrot.lane.b32.xlu0 %v993, 8
      %v1125 = vpop.permute.xlu0 %1124
      %1126 = vrot.lane.b32.xlu0 %v994, 8
      %v1127 = vpop.permute.xlu0 %1126
      %1128 = vrot.lane.b32.xlu0 %v995, 8
      %v1129 = vpop.permute.xlu0 %1128
      %1130 = vrot.lane.b32.xlu0 %v996, 8
      %v1131 = vpop.permute.xlu0 %1130
      %1132 = vrot.lane.b32.xlu0 %v997, 8
      %v1133 = vpop.permute.xlu0 %1132
      %1142 = vrot.lane.b32.xlu0 %v990, 96
      %v1143 = vpop.permute.xlu0 %1142
      %1144 = vrot.lane.b32.xlu0 %v991, 96
      %v1145 = vpop.permute.xlu0 %1144
      %1146 = vrot.lane.b32.xlu0 %v992, 96
      %v1147 = vpop.permute.xlu0 %1146
      %1148 = vrot.lane.b32.xlu0 %v993, 96
      %v1149 = vpop.permute.xlu0 %1148
      %1150 = vrot.lane.b32.xlu0 %v994, 96
      %v1151 = vpop.permute.xlu0 %1150
      %1152 = vrot.lane.b32.xlu0 %v995, 96
      %v1153 = vpop.permute.xlu0 %1152
      %1154 = vrot.lane.b32.xlu0 %v996, 96
      %v1155 = vpop.permute.xlu0 %1154
      %1156 = vrot.lane.b32.xlu0 %v997, 96
      %v1157 = vpop.permute.xlu0 %1156
      %1174 = vrot.lane.b32.xlu0 %v1038, 56
      %v1175 = vpop.permute.xlu0 %1174
      %1176 = vrot.lane.b32.xlu0 %v1039, 56
      %v1177 = vpop.permute.xlu0 %1176
      %1178 = vrot.lane.b32.xlu0 %v1040, 56
      %v1179 = vpop.permute.xlu0 %1178
      %1180 = vrot.lane.b32.xlu0 %v1041, 56
      %v1181 = vpop.permute.xlu0 %1180
      %1182 = vrot.lane.b32.xlu0 %v1042, 56
      %v1183 = vpop.permute.xlu0 %1182
      %1184 = vrot.lane.b32.xlu0 %v1043, 56
      %v1185 = vpop.permute.xlu0 %1184
      %1186 = vrot.lane.b32.xlu0 %v1044, 56
      %v1187 = vpop.permute.xlu0 %1186
      %1188 = vrot.lane.b32.xlu0 %v1045, 56
      %v1189 = vpop.permute.xlu0 %1188
      %1206 = vrot.lane.b32.xlu0 %v1046, 16
      %v1207 = vpop.permute.xlu0 %1206
      %1208 = vrot.lane.b32.xlu0 %v1047, 16
      %v1209 = vpop.permute.xlu0 %1208
      %1210 = vrot.lane.b32.xlu0 %v1048, 16
      %v1211 = vpop.permute.xlu0 %1210
      %1212 = vrot.lane.b32.xlu0 %v1049, 16
      %v1213 = vpop.permute.xlu0 %1212
      %1214 = vrot.lane.b32.xlu0 %v1050, 16
      %v1215 = vpop.permute.xlu0 %1214
      %1216 = vrot.lane.b32.xlu0 %v1051, 16
      %v1217 = vpop.permute.xlu0 %1216
      %1218 = vrot.lane.b32.xlu0 %v1052, 16
      %v1219 = vpop.permute.xlu0 %1218
      %1220 = vrot.lane.b32.xlu0 %v1053, 16
      %v1221 = vpop.permute.xlu0 %1220
      %1230 = vrot.lane.b32.xlu0 %v1046, 104
      %v1231 = vpop.permute.xlu0 %1230
      %1232 = vrot.lane.b32.xlu0 %v1047, 104
      %v1233 = vpop.permute.xlu0 %1232
      %1234 = vrot.lane.b32.xlu0 %v1048, 104
      %v1235 = vpop.permute.xlu0 %1234
      %1236 = vrot.lane.b32.xlu0 %v1049, 104
      %v1237 = vpop.permute.xlu0 %1236
      %1238 = vrot.lane.b32.xlu0 %v1050, 104
      %v1239 = vpop.permute.xlu0 %1238
      %1240 = vrot.lane.b32.xlu0 %v1051, 104
      %v1241 = vpop.permute.xlu0 %1240
      %1242 = vrot.lane.b32.xlu0 %v1052, 104
      %v1243 = vpop.permute.xlu0 %1242
      %1244 = vrot.lane.b32.xlu0 %v1053, 104
      %v1245 = vpop.permute.xlu0 %1244
      %vm1254 = vcmask 64512
      %v1255 = vsel %vm1254, %v942, %v1063
      %v1256 = vsel %vm1254, %v943, %v1065
      %v1257 = vsel %vm1254, %v944, %v1067
      %v1258 = vsel %vm1254, %v945, %v1069
      %v1259 = vsel %vm1254, %v946, %v1071
      %v1260 = vsel %vm1254, %v947, %v1073
      %v1261 = vsel %vm1254, %v948, %v1075
      %v1262 = vsel %vm1254, %v949, %v1077
      %vm1263 = vcmask 130048
      %v1264 = vsel %vm1263, %v1255, %v1087
      %v1265 = vsel %vm1263, %v1256, %v1089
      %v1266 = vsel %vm1263, %v1257, %v1091
      %v1267 = vsel %vm1263, %v1258, %v1093
      %v1268 = vsel %vm1263, %v1259, %v1095
      %v1269 = vsel %vm1263, %v1260, %v1097
      %v1270 = vsel %vm1263, %v1261, %v1099
      %v1271 = vsel %vm1263, %v1262, %v1101
      %vm1272 = vcmask 195584
      %v1273 = vsel %vm1272, %v1264, %v1119
      %v1274 = vsel %vm1272, %v1265, %v1121
      %v1275 = vsel %vm1272, %v1266, %v1123
      %v1276 = vsel %vm1272, %v1267, %v1125
      %v1277 = vsel %vm1272, %v1268, %v1127
      %v1278 = vsel %vm1272, %v1269, %v1129
      %v1279 = vsel %vm1272, %v1270, %v1131
      %v1280 = vsel %vm1272, %v1271, %v1133
      %vm1281 = vcmask 261120
      %v1282 = vsel %vm1281, %v1273, %v1143
      %v1283 = vsel %vm1281, %v1274, %v1145
      %v1284 = vsel %vm1281, %v1275, %v1147
      %v1285 = vsel %vm1281, %v1276, %v1149
      %v1286 = vsel %vm1281, %v1277, %v1151
      %v1287 = vsel %vm1281, %v1278, %v1153
      %v1288 = vsel %vm1281, %v1279, %v1155
      %v1289 = vsel %vm1281, %v1280, %v1157
      %vm1290 = vcmask 326656
      %v1291 = vsel %vm1290, %v1282, %v1175
      %v1292 = vsel %vm1290, %v1283, %v1177
      %v1293 = vsel %vm1290, %v1284, %v1179
      %v1294 = vsel %vm1290, %v1285, %v1181
      %v1295 = vsel %vm1290, %v1286, %v1183
      %v1296 = vsel %vm1290, %v1287, %v1185
      %v1297 = vsel %vm1290, %v1288, %v1187
      %v1298 = vsel %vm1290, %v1289, %v1189
      %vm1299 = vcmask 392192
      %v1300 = vsel %vm1299, %v1291, %v1207
      %v1301 = vsel %vm1299, %v1292, %v1209
      %v1302 = vsel %vm1299, %v1293, %v1211
      %v1303 = vsel %vm1299, %v1294, %v1213
      %v1304 = vsel %vm1299, %v1295, %v1215
      %v1305 = vsel %vm1299, %v1296, %v1217
      %v1306 = vsel %vm1299, %v1297, %v1219
      %v1307 = vsel %vm1299, %v1298, %v1221
      %vm1308 = vcmask 457728
      %v1309 = vsel %vm1308, %v1300, %v1231
      %v1310 = vsel %vm1308, %v1301, %v1233
      %v1311 = vsel %vm1308, %v1302, %v1235
      %v1312 = vsel %vm1308, %v1303, %v1237
      %v1313 = vsel %vm1308, %v1304, %v1239
      %v1314 = vsel %vm1308, %v1305, %v1241
      %v1315 = vsel %vm1308, %v1306, %v1243
      %v1316 = vsel %vm1308, %v1307, %v1245
      %v1317 = vld [vmem:[%s2] sm:$0xff]
      %v1318 = vld [vmem:[%s2 + $0x8] sm:$0xff]
      %v1319 = vld [vmem:[%s2 + $0x10] sm:$0xff]
      %v1320 = vld [vmem:[%s2 + $0x18] sm:$0xff]
      %v1321 = vld [vmem:[%s2 + $0x20] sm:$0xff]
      %v1322 = vld [vmem:[%s2 + $0x28] sm:$0xff]
      %v1323 = vld [vmem:[%s2 + $0x30] sm:$0xff]
      %v1324 = vld [vmem:[%s2 + $0x38] sm:$0xff]
      %1326 = vset.pattern.permute.xlu0 0
      %1327 = vperm.xlu0 %1326, %v1317
      %v1328 = vpop.permute.xlu0 %1327
      %1331 = vset.pattern.permute.xlu0 0
      %1332 = vperm.xlu0 %1331, %v1318
      %v1333 = vpop.permute.xlu0 %1332
      %1336 = vset.pattern.permute.xlu0 0
      %1337 = vperm.xlu0 %1336, %v1319
      %v1338 = vpop.permute.xlu0 %1337
      %1341 = vset.pattern.permute.xlu0 0
      %1342 = vperm.xlu0 %1341, %v1320
      %v1343 = vpop.permute.xlu0 %1342
      %1346 = vset.pattern.permute.xlu0 0
      %1347 = vperm.xlu0 %1346, %v1321
      %v1348 = vpop.permute.xlu0 %1347
      %1351 = vset.pattern.permute.xlu0 0
      %1352 = vperm.xlu0 %1351, %v1322
      %v1353 = vpop.permute.xlu0 %1352
      %1356 = vset.pattern.permute.xlu0 0
      %1357 = vperm.xlu0 %1356, %v1323
      %v1358 = vpop.permute.xlu0 %1357
      %1361 = vset.pattern.permute.xlu0 0
      %1362 = vperm.xlu0 %1361, %v1324
      %v1363 = vpop.permute.xlu0 %1362
      %v1365 = vadd.f32 %v1309, %v1328
      %v1366 = vadd.f32 %v1310, %v1333
      %v1367 = vadd.f32 %v1311, %v1338
      %v1368 = vadd.f32 %v1312, %v1343
      %v1369 = vadd.f32 %v1313, %v1348
      %v1370 = vadd.f32 %v1314, %v1353
      %v1371 = vadd.f32 %v1315, %v1358
      %v1372 = vadd.f32 %v1316, %v1363
      %v1373 = vmax.f32 %v1365, 0.0
      %v1374 = vmax.f32 %v1366, 0.0
      %v1375 = vmax.f32 %v1367, 0.0
      %v1376 = vmax.f32 %v1368, 0.0
      %v1377 = vmax.f32 %v1369, 0.0
      %v1378 = vmax.f32 %v1370, 0.0
      %v1379 = vmax.f32 %v1371, 0.0
      %v1380 = vmax.f32 %v1372, 0.0
      %v1381 = vpack.c.bf16 %v1374, %v1373
      %v1382 = vpack.c.bf16 %v1376, %v1375
      %v1383 = vpack.c.bf16 %v1378, %v1377
      %v1384 = vpack.c.bf16 %v1380, %v1379
      %v1389 = vunpack.c.l.b16 %v1381
      %v1390 = vunpack.c.h.b16 %v1381
      %v1391 = vunpack.c.l.b16 %v1382
      %v1392 = vunpack.c.h.b16 %v1382
      %v1393 = vunpack.c.l.b16 %v1383
      %v1394 = vunpack.c.h.b16 %v1383
      %v1395 = vunpack.c.l.b16 %v1384
      %v1396 = vunpack.c.h.b16 %v1384
      %v1397 = vpack.c.b16 %v1389, %v1389
      %v1398 = vpack.c.b16 %v1390, %v1390
      %v1399 = vpack.c.b16 %v1391, %v1391
      %v1400 = vpack.c.b16 %v1392, %v1392
      %v1401 = vpack.c.b16 %v1393, %v1393
      %v1402 = vpack.c.b16 %v1394, %v1394
      %v1403 = vpack.c.b16 %v1395, %v1395
      %v1404 = vpack.c.b16 %v1396, %v1396
      %vm1413 = vcmask 519168
      %1414 = vst.msk [vmem:[%s206] sm:$0xf] %vm1413, %v1397
      %1415 = vst.msk [vmem:[%s206 + $0x4] sm:$0xf] %vm1413, %v1398
      %1416 = vst.msk [vmem:[%s206 + $0x8] sm:$0xf] %vm1413, %v1399
      %1417 = vst.msk [vmem:[%s206 + $0xc] sm:$0xf] %vm1413, %v1400
      %1418 = vst.msk [vmem:[%s206 + $0x10] sm:$0xf] %vm1413, %v1401
      %1419 = vst.msk [vmem:[%s206 + $0x14] sm:$0xf] %vm1413, %v1402
      %1420 = vst.msk [vmem:[%s206 + $0x18] sm:$0xf] %vm1413, %v1403
      %1421 = vst.msk [vmem:[%s206 + $0x1c] sm:$0xf] %vm1413, %v1404
      %p1422 = scmp.lt.s32.totalorder %s18, 1
      %s1423 = scalar_select %p1422, %s18, 1
      %p1424 = scmp.lt.s32.totalorder %s19, 0
      %s1425 = scalar_select %p1424, %s19, 0
      %s1426 = smul.addr %s1425, 8
      %s1427 = smul.addr %s1423, 8
      %s1428 = sadd.s32 %s1426, %s1427
      %s1429 = smul.addr %s1428, 4
      %s1430 = scalar_lea.vmem %s3, %s1429
      // Predicated region
      $region33: #{_lambda_.7} parent=31 // pred_check
        %p1431 = pneg %p116
      $region34: #{_lambda_.7} parent=31 // pred_check_branch
        %1433 = sbr.rel (%p1431) target = $region36
      $region35: #{_lambda_.7} parent=31 // pred_region
        _
      $region36: #{_lambda_.7} parent=31 // pred_fallthru
        _
    $region32: #{_lambda_.7} parent=5 // pred_fallthru
      _
    %p1434 = scmp.le.s32.totalorder 2, %s9
    // Predicated region
    $region37: #{_lambda_.7} parent=5 // pred_check
      %p1435 = pneg %p1434
    $region38: #{_lambda_.7} parent=5 // pred_check_branch
      %1437 = sbr.rel (%p1435) target = $region40
    $region39: #{_lambda_.7} parent=5 // pred_region
      %s1438 = ssub.s32 %s9, 2
      // Predicated region
      $region41: #{_lambda_.7} parent=39 // pred_check
        %p1439 = pneg %p122
      $region42: #{_lambda_.7} parent=39 // pred_check_branch
        %1441 = sbr.rel (%p1439) target = $region44
      $region43: #{_lambda_.7} parent=39 // pred_region
        %p1442 = scmp.lt.s32.totalorder %s20, 1
        %s1443 = scalar_select %p1442, %s20, 1
        %p1444 = scmp.lt.s32.totalorder %s21, 0
        %s1445 = scalar_select %p1444, %s21, 0
        %s1446 = smul.addr %s1445, 8
        %s1447 = smul.addr %s1443, 8
        %s1448 = sadd.s32 %s1446, %s1447
        %s1449 = smul.addr %s1448, 4
        %s1450 = scalar_lea.vmem %s3, %s1449
      $region44: #{_lambda_.7} parent=39 // pred_fallthru
        _
    $region40: #{_lambda_.7} parent=5 // pred_fallthru
      _
  $region6: #{_lambda_.7} parent=0 // loop_footer
    %s13 = sadd.s32 1, %s9
  $region7: #{_lambda_.7} parent=0 // loop_footer_branch
    %8 = sbr.rel target = $region3
  $region8: #{_lambda_.7} parent=0 // loop_exit
    _

// kernel: _lambda_.8
$region0: #{_lambda_.8}
  #allocation0 [shape = 'u32[]', space=smem, size = 0x4, offset = 0x4, fixed_abs, tag = 'smem constant byte address 0x4 - core index']
  #allocation1 [shape = 'u32[144,128]{1,0:T(1,128)}', space=vmem, size = 0x12000, scoped, tag = 'internal scratch']
  #allocation2 [shape = 'f32[32,128]{1,0:T(8,128)}', space=vmem, size = 0x4000, scoped, tag = 'scratch operand']
  %s0 = inlined_call_operand.vmem [shape: bf16[2,1,64,176], index: 0, kind: input, shape index: {}]
  %s1 = inlined_call_operand.vmem [shape: bf16[32,576], index: 1, kind: input, shape index: {}]
  %s2 = inlined_call_operand.vmem [shape: f32[32,1], index: 2, kind: input, shape index: {}]
  %s3 = inlined_call_operand.vmem [shape: bf16[2,1,32,16], index: 3, kind: output, shape index: {}]
  %s4 = sld [smem:[#allocation0]]
  $region45: #{_lambda_.8} parent=0
    _
  %s6 = ssub.s32 1, %s4
  %s7 = scalar_select 0, %s6, %s4
  loop: start=0, step=1, limit=4
  $region2: #{_lambda_.8} parent=0 // loop_pre_header
    _
  $region3: #{_lambda_.8} parent=0 // loop_header
    %s9 = sphi 0, %s13
    %p10 = scmp.ge.s32.totalorder %s9, 4
    %s16 = sphi 0, %s28
    %s17 = sphi 0, %s24
    %s18 = sphi 0, %s16
    %s19 = sphi 0, %s17
    %s20 = sphi 0, %s18
    %s21 = sphi 0, %s19
    %s33 = sphi 0, %s35
    %s36 = sphi 0, %s33
    %s37 = sphi 0, %s36
    %s53 = sphi 0, %s37
    %s57 = sphi 0, %s57
    %s59 = sphi 0, %s57
    %s60 = sphi 0, %s59
    %s74 = sphi 0, %s60
    %s78 = sphi 0, %s78
    %s80 = sphi 0, %s78
    %s81 = sphi 0, %s80
    %s95 = sphi 0, %s81
    %s103 = sphi 0, %s105
    %s106 = sphi 0, %s103
    %s107 = sphi 0, %s106
    %s123 = sphi 0, %s107
  $region4: #{_lambda_.8} parent=0 // loop_header_branch
    %12 = sbr.rel (%p10) target = $region8
  $region5: #{_lambda_.8} parent=0 // loop_body
    %s14 = ssub.s32 %s9, 1
    %s15 = ssub.s32 %s9, 2
    %s22 = sadd.s32 1, %s17
    %p23 = scmp.ge.s32.totalorder %s22, 1
    %s24 = scalar_select %p23, 0, %s22
    %s25 = sadd.s32 1, %s16
    %s26 = scalar_select %p23, %s25, %s16
    %p27 = scmp.ge.s32.totalorder %s26, 2
    %s28 = scalar_select %p27, 0, %s26
    %s29 = ssub.s32 %s16, %s28
    %s30 = ssub.s32 %s17, %s24
    %s31 = sor.u32 %s29, %s30
    %p32 = scmp.eq.s32.totalorder %s31, 0
    %s34 = sadd.s32 %s33, 1
    %s35 = scalar_select %p32, %s33, %s34
    %p38 = pneg %p32
    %p39 = scmp.eq.s32.totalorder %s9, 1
    %p40 = por %p38, %p39
    %p41 = scmp.ne.s32.totalorder %s33, %s36
    %p42 = scmp.eq.s32.totalorder %s9, 0
    %p43 = por %p41, %p42
    %p44 = scmp.ne.s32.totalorder %s33, %s36
    %p45 = scmp.eq.s32.totalorder %s14, 1
    %p46 = por %p44, %p45
    %p47 = scmp.ne.s32.totalorder %s36, %s37
    %p48 = scmp.eq.s32.totalorder %s14, 0
    %p49 = por %p47, %p48
    %p50 = scmp.ne.s32.totalorder %s36, %s37
    %p51 = scmp.eq.s32.totalorder %s15, 1
    %p52 = por %p50, %p51
    %p54 = scmp.ne.s32.totalorder %s37, %s53
    %p55 = scmp.eq.s32.totalorder %s15, 0
    %p56 = por %p54, %p55
    %s58 = sadd.s32 %s57, 1
    %p61 = scmp.eq.s32.totalorder %s9, 1
    %p62 = scmp.ne.s32.totalorder %s57, %s59
    %p63 = scmp.eq.s32.totalorder %s9, 0
    %p64 = por %p62, %p63
    %p65 = scmp.ne.s32.totalorder %s57, %s59
    %p66 = scmp.eq.s32.totalorder %s14, 1
    %p67 = por %p65, %p66
    %p68 = scmp.ne.s32.totalorder %s59, %s60
    %p69 = scmp.eq.s32.totalorder %s14, 0
    %p70 = por %p68, %p69
    %p71 = scmp.ne.s32.totalorder %s59, %s60
    %p72 = scmp.eq.s32.totalorder %s15, 1
    %p73 = por %p71, %p72
    %p75 = scmp.ne.s32.totalorder %s60, %s74
    %p76 = scmp.eq.s32.totalorder %s15, 0
    %p77 = por %p75, %p76
    %s79 = sadd.s32 %s78, 1
    %p82 = scmp.eq.s32.totalorder %s9, 1
    %p83 = scmp.ne.s32.totalorder %s78, %s80
    %p84 = scmp.eq.s32.totalorder %s9, 0
    %p85 = por %p83, %p84
    %p86 = scmp.ne.s32.totalorder %s78, %s80
    %p87 = scmp.eq.s32.totalorder %s14, 1
    %p88 = por %p86, %p87
    %p89 = scmp.ne.s32.totalorder %s80, %s81
    %p90 = scmp.eq.s32.totalorder %s14, 0
    %p91 = por %p89, %p90
    %p92 = scmp.ne.s32.totalorder %s80, %s81
    %p93 = scmp.eq.s32.totalorder %s15, 1
    %p94 = por %p92, %p93
    %p96 = scmp.ne.s32.totalorder %s81, %s95
    %p97 = scmp.eq.s32.totalorder %s15, 0
    %p98 = por %p96, %p97
    %s99 = ssub.s32 %s16, %s28
    %s100 = ssub.s32 %s17, %s24
    %s101 = sor.u32 %s99, %s100
    %p102 = scmp.eq.s32.totalorder %s101, 0
    %s104 = sadd.s32 %s103, 1
    %s105 = scalar_select %p102, %s103, %s104
    %p108 = pneg %p102
    %p109 = scmp.eq.s32.totalorder %s9, 1
    %p110 = por %p108, %p109
    %p111 = scmp.ne.s32.totalorder %s103, %s106
    %p112 = scmp.eq.s32.totalorder %s9, 0
    %p113 = por %p111, %p112
    %p114 = scmp.ne.s32.totalorder %s103, %s106
    %p115 = scmp.eq.s32.totalorder %s14, 1
    %p116 = por %p114, %p115
    %p117 = scmp.ne.s32.totalorder %s106, %s107
    %p118 = scmp.eq.s32.totalorder %s14, 0
    %p119 = por %p117, %p118
    %p120 = scmp.ne.s32.totalorder %s106, %s107
    %p121 = scmp.eq.s32.totalorder %s15, 1
    %p122 = por %p120, %p121
    %p124 = scmp.ne.s32.totalorder %s107, %s123
    %p125 = scmp.eq.s32.totalorder %s15, 0
    %p126 = por %p124, %p125
    %p127 = scmp.le.s32.totalorder 1, %s9
    %p128 = scmp.lt.s32.totalorder %s9, 3
    %p129 = pnand %p127, %p128
    %p130 = pneg %p129
    // Predicated region
    $region9: #{_lambda_.8} parent=5 // pred_check
      _
    $region10: #{_lambda_.8} parent=5 // pred_check_branch
      %132 = sbr.rel (%p129) target = $region12
    $region11: #{_lambda_.8} parent=5 // pred_region
      %s133 = ssub.s32 %s9, 1
      // Predicated region
      $region13: #{_lambda_.8} parent=11 // pred_check
        %p134 = pneg %p70
      $region14: #{_lambda_.8} parent=11 // pred_check_branch
        %136 = sbr.rel (%p134) target = $region16
      $region15: #{_lambda_.8} parent=11 // pred_region
        _
      $region16: #{_lambda_.8} parent=11 // pred_fallthru
        _
      // Predicated region
      $region17: #{_lambda_.8} parent=11 // pred_check
        %p137 = pneg %p91
      $region18: #{_lambda_.8} parent=11 // pred_check_branch
        %139 = sbr.rel (%p137) target = $region20
      $region19: #{_lambda_.8} parent=11 // pred_region
        _
      $region20: #{_lambda_.8} parent=11 // pred_fallthru
        _
    $region12: #{_lambda_.8} parent=5 // pred_fallthru
      _
    %p140 = scmp.lt.s32.totalorder %s9, 2
    // Predicated region
    $region21: #{_lambda_.8} parent=5 // pred_check
      %p141 = pneg %p140
    $region22: #{_lambda_.8} parent=5 // pred_check_branch
      %143 = sbr.rel (%p141) target = $region24
    $region23: #{_lambda_.8} parent=5 // pred_region
      // Predicated region
      $region25: #{_lambda_.8} parent=23 // pred_check
        %p144 = pneg %p43
      $region26: #{_lambda_.8} parent=23 // pred_check_branch
        %146 = sbr.rel (%p144) target = $region28
      $region27: #{_lambda_.8} parent=23 // pred_region
        %p147 = scmp.lt.s32.totalorder %s16, 1
        %s148 = scalar_select %p147, %s16, 1
        %p149 = scmp.lt.s32.totalorder %s17, 0
        %s150 = scalar_select %p149, %s17, 0
        %s151 = smul.addr %s150, 16
        %s152 = smul.addr %s148, 16
        %s153 = sadd.s32 %s151, %s152
        %s154 = smul.addr %s153, 4
        %s155 = scalar_lea.vmem %s0, %s154
      $region28: #{_lambda_.8} parent=23 // pred_fallthru
        _
    $region24: #{_lambda_.8} parent=5 // pred_fallthru
      _
    %p156 = scmp.le.s32.totalorder 1, %s9
    %p157 = scmp.lt.s32.totalorder %s9, 3
    %p158 = pnand %p156, %p157
    %p159 = pneg %p158
    // Predicated region
    $region29: #{_lambda_.8} parent=5 // pred_check
      _
    $region30: #{_lambda_.8} parent=5 // pred_check_branch
      %161 = sbr.rel (%p158) target = $region32
    $region31: #{_lambda_.8} parent=5 // pred_region
      %s162 = ssub.s32 %s9, 1
      %p163 = scmp.lt.s32.totalorder %s18, 1
      %s164 = scalar_select %p163, %s18, 1
      %p165 = scmp.lt.s32.totalorder %s19, 0
      %s166 = scalar_select %p165, %s19, 0
      %s167 = smul.addr %s166, 16
      %s168 = smul.addr %s164, 16
      %s169 = sadd.s32 %s167, %s168
      %s170 = smul.addr %s169, 4
      %s171 = scalar_lea.vmem %s0, %s170
      %p172 = pneg %p49
      %p173 = pneg %p46
      %p174 = pneg %p70
      %p175 = pneg %p67
      %p176 = pneg %p91
      %p177 = pneg %p88
      %p178 = pneg %p119
      %p179 = pneg %p116
      %p180 = scmp.lt.s32.totalorder %s18, 1
      %s181 = scalar_select %p180, %s18, 1
      %p182 = scmp.lt.s32.totalorder %s19, 0
      %s183 = scalar_select %p182, %s19, 0
      %s184 = smul.addr %s183, 4
      %s185 = smul.addr %s181, 4
      %s186 = sadd.s32 %s184, %s185
      %s187 = smul.addr %s186, 4
      %s188 = scalar_lea.vmem %s3, %s187
      %p189 = scmp.lt.s32.totalorder %s18, 1
      %s190 = scalar_select %p189, %s18, 1
      %p191 = scmp.lt.s32.totalorder %s19, 0
      %s192 = scalar_select %p191, %s19, 0
      %s193 = smul.addr %s192, 16
      %s194 = smul.addr %s190, 16
      %s195 = sadd.s32 %s193, %s194
      %s196 = smul.addr %s195, 4
      %s197 = scalar_lea.vmem %s0, %s196
      %p198 = scmp.lt.s32.totalorder %s18, 1
      %s199 = scalar_select %p198, %s18, 1
      %p200 = scmp.lt.s32.totalorder %s19, 0
      %s201 = scalar_select %p200, %s19, 0
      %s202 = smul.addr %s201, 4
      %s203 = smul.addr %s199, 4
      %s204 = sadd.s32 %s202, %s203
      %s205 = smul.addr %s204, 4
      %s206 = scalar_lea.vmem %s3, %s205
      %v208 = vld [vmem:[%s197] sm:$0xf]
      %v209 = vld [vmem:[%s197 + $0x8] sm:$0xf]
      %v210 = vld [vmem:[%s197 + $0x10] sm:$0xf]
      %v211 = vld [vmem:[%s197 + $0x18] sm:$0xf]
      %v212 = vld [vmem:[%s197 + $0x20] sm:$0xf]
      %v213 = vld [vmem:[%s197 + $0x28] sm:$0xf]
      %v214 = vld [vmem:[%s197 + $0x30] sm:$0xf]
      %v215 = vld [vmem:[%s197 + $0x38] sm:$0xf]
      %v216 = vld [vmem:[%s197] sm:$0xff]
      %v217 = vld [vmem:[%s197 + $0x8] sm:$0xff]
      %v218 = vld [vmem:[%s197 + $0x10] sm:$0xff]
      %v219 = vld [vmem:[%s197 + $0x18] sm:$0xff]
      %v220 = vld [vmem:[%s197 + $0x20] sm:$0xff]
      %v221 = vld [vmem:[%s197 + $0x28] sm:$0xff]
      %v222 = vld [vmem:[%s197 + $0x30] sm:$0xff]
      %v223 = vld [vmem:[%s197 + $0x38] sm:$0xff]
      %v232 = vunpack.c.l.b16 %v208
      %v233 = vunpack.c.l.b16 %v209
      %v234 = vunpack.c.l.b16 %v210
      %v235 = vunpack.c.l.b16 %v211
      %v236 = vunpack.c.l.b16 %v212
      %v237 = vunpack.c.l.b16 %v213
      %v238 = vunpack.c.l.b16 %v214
      %v239 = vunpack.c.l.b16 %v215
      %v240 = vpack.c.b16 %v233, %v232
      %v241 = vpack.c.b16 %v235, %v234
      %v242 = vpack.c.b16 %v237, %v236
      %v243 = vpack.c.b16 %v239, %v238
      %v256 = vunpack.c.l.b16 %v216
      %v257 = vunpack.c.h.b16 %v216
      %v258 = vunpack.c.l.b16 %v217
      %v259 = vunpack.c.h.b16 %v217
      %v260 = vunpack.c.l.b16 %v218
      %v261 = vunpack.c.h.b16 %v218
      %v262 = vunpack.c.l.b16 %v219
      %v263 = vunpack.c.h.b16 %v219
      %v264 = vunpack.c.l.b16 %v220
      %v265 = vunpack.c.h.b16 %v220
      %v266 = vunpack.c.l.b16 %v221
      %v267 = vunpack.c.h.b16 %v221
      %v268 = vunpack.c.l.b16 %v222
      %v269 = vunpack.c.h.b16 %v222
      %v270 = vunpack.c.l.b16 %v223
      %v271 = vunpack.c.h.b16 %v223
      %v272 = vpack.c.b16 %v258, %v256
      %v273 = vpack.c.b16 %v259, %v257
      %v274 = vpack.c.b16 %v262, %v260
      %v275 = vpack.c.b16 %v263, %v261
      %v276 = vpack.c.b16 %v266, %v264
      %v277 = vpack.c.b16 %v267, %v265
      %v278 = vpack.c.b16 %v270, %v268
      %v279 = vpack.c.b16 %v271, %v269
      %280 = vrot.lane.b32.xlu0 %v272, 120
      %v281 = vpop.permute.xlu0 %280
      %282 = vrot.lane.b32.xlu0 %v273, 120
      %v283 = vpop.permute.xlu0 %282
      %284 = vrot.lane.b32.xlu0 %v274, 120
      %v285 = vpop.permute.xlu0 %284
      %286 = vrot.lane.b32.xlu0 %v275, 120
      %v287 = vpop.permute.xlu0 %286
      %288 = vrot.lane.b32.xlu0 %v276, 120
      %v289 = vpop.permute.xlu0 %288
      %290 = vrot.lane.b32.xlu0 %v277, 120
      %v291 = vpop.permute.xlu0 %290
      %292 = vrot.lane.b32.xlu0 %v278, 120
      %v293 = vpop.permute.xlu0 %292
      %294 = vrot.lane.b32.xlu0 %v279, 120
      %v295 = vpop.permute.xlu0 %294
      %vm296 = vcmask 982016
      %v297 = vsel %vm296, %v281, %v283
      %v298 = vsel %vm296, %v285, %v287
      %v299 = vsel %vm296, %v289, %v291
      %v300 = vsel %vm296, %v293, %v295
      %305 = vrot.lane.b32.xlu0 %v272, 127
      %v306 = vpop.permute.xlu0 %305
      %307 = vrot.lane.b32.xlu0 %v273, 127
      %v308 = vpop.permute.xlu0 %307
      %309 = vrot.lane.b32.xlu0 %v274, 127
      %v310 = vpop.permute.xlu0 %309
      %311 = vrot.lane.b32.xlu0 %v275, 127
      %v312 = vpop.permute.xlu0 %311
      %313 = vrot.lane.b32.xlu0 %v276, 127
      %v314 = vpop.permute.xlu0 %313
      %315 = vrot.lane.b32.xlu0 %v277, 127
      %v316 = vpop.permute.xlu0 %315
      %317 = vrot.lane.b32.xlu0 %v278, 127
      %v318 = vpop.permute.xlu0 %317
      %319 = vrot.lane.b32.xlu0 %v279, 127
      %v320 = vpop.permute.xlu0 %319
      %vm321 = vcmask 1039360
      %v322 = vsel %vm321, %v306, %v308
      %v323 = vsel %vm321, %v310, %v312
      %v324 = vsel %vm321, %v314, %v316
      %v325 = vsel %vm321, %v318, %v320
      %330 = vrot.lane.b32.xlu0 %v272, 112
      %v331 = vpop.permute.xlu0 %330
      %332 = vrot.lane.b32.xlu0 %v273, 112
      %v333 = vpop.permute.xlu0 %332
      %334 = vrot.lane.b32.xlu0 %v274, 112
      %v335 = vpop.permute.xlu0 %334
      %336 = vrot.lane.b32.xlu0 %v275, 112
      %v337 = vpop.permute.xlu0 %336
      %338 = vrot.lane.b32.xlu0 %v276, 112
      %v339 = vpop.permute.xlu0 %338
      %340 = vrot.lane.b32.xlu0 %v277, 112
      %v341 = vpop.permute.xlu0 %340
      %342 = vrot.lane.b32.xlu0 %v278, 112
      %v343 = vpop.permute.xlu0 %342
      %344 = vrot.lane.b32.xlu0 %v279, 112
      %v345 = vpop.permute.xlu0 %344
      %vm346 = vcmask 916480
      %v347 = vsel %vm346, %v331, %v333
      %v348 = vsel %vm346, %v335, %v337
      %v349 = vsel %vm346, %v339, %v341
      %v350 = vsel %vm346, %v343, %v345
      %355 = vrot.lane.b32.xlu0 %v272, 104
      %v356 = vpop.permute.xlu0 %355
      %357 = vrot.lane.b32.xlu0 %v273, 104
      %v358 = vpop.permute.xlu0 %357
      %359 = vrot.lane.b32.xlu0 %v274, 104
      %v360 = vpop.permute.xlu0 %359
      %361 = vrot.lane.b32.xlu0 %v275, 104
      %v362 = vpop.permute.xlu0 %361
      %363 = vrot.lane.b32.xlu0 %v276, 104
      %v364 = vpop.permute.xlu0 %363
      %365 = vrot.lane.b32.xlu0 %v277, 104
      %v366 = vpop.permute.xlu0 %365
      %367 = vrot.lane.b32.xlu0 %v278, 104
      %v368 = vpop.permute.xlu0 %367
      %369 = vrot.lane.b32.xlu0 %v279, 104
      %v370 = vpop.permute.xlu0 %369
      %vm371 = vcmask 850944
      %v372 = vsel %vm371, %v356, %v358
      %v373 = vsel %vm371, %v360, %v362
      %v374 = vsel %vm371, %v364, %v366
      %v375 = vsel %vm371, %v368, %v370
      %380 = vrot.lane.b32.xlu0 %v272, 111
      %v381 = vpop.permute.xlu0 %380
      %382 = vrot.lane.b32.xlu0 %v273, 111
      %v383 = vpop.permute.xlu0 %382
      %384 = vrot.lane.b32.xlu0 %v274, 111
      %v385 = vpop.permute.xlu0 %384
      %386 = vrot.lane.b32.xlu0 %v275, 111
      %v387 = vpop.permute.xlu0 %386
      %388 = vrot.lane.b32.xlu0 %v276, 111
      %v389 = vpop.permute.xlu0 %388
      %390 = vrot.lane.b32.xlu0 %v277, 111
      %v391 = vpop.permute.xlu0 %390
      %392 = vrot.lane.b32.xlu0 %v278, 111
      %v393 = vpop.permute.xlu0 %392
      %394 = vrot.lane.b32.xlu0 %v279, 111
      %v395 = vpop.permute.xlu0 %394
      %vm396 = vcmask 908288
      %v397 = vsel %vm396, %v381, %v383
      %v398 = vsel %vm396, %v385, %v387
      %v399 = vsel %vm396, %v389, %v391
      %v400 = vsel %vm396, %v393, %v395
      %405 = vrot.lane.b32.xlu0 %v272, 96
      %v406 = vpop.permute.xlu0 %405
      %407 = vrot.lane.b32.xlu0 %v273, 96
      %v408 = vpop.permute.xlu0 %407
      %409 = vrot.lane.b32.xlu0 %v274, 96
      %v410 = vpop.permute.xlu0 %409
      %411 = vrot.lane.b32.xlu0 %v275, 96
      %v412 = vpop.permute.xlu0 %411
      %413 = vrot.lane.b32.xlu0 %v276, 96
      %v414 = vpop.permute.xlu0 %413
      %415 = vrot.lane.b32.xlu0 %v277, 96
      %v416 = vpop.permute.xlu0 %415
      %417 = vrot.lane.b32.xlu0 %v278, 96
      %v418 = vpop.permute.xlu0 %417
      %419 = vrot.lane.b32.xlu0 %v279, 96
      %v420 = vpop.permute.xlu0 %419
      %vm421 = vcmask 785408
      %v422 = vsel %vm421, %v406, %v408
      %v423 = vsel %vm421, %v410, %v412
      %v424 = vsel %vm421, %v414, %v416
      %v425 = vsel %vm421, %v418, %v420
      %430 = vrot.lane.b32.xlu0 %v272, 88
      %v431 = vpop.permute.xlu0 %430
      %432 = vrot.lane.b32.xlu0 %v273, 88
      %v433 = vpop.permute.xlu0 %432
      %434 = vrot.lane.b32.xlu0 %v274, 88
      %v435 = vpop.permute.xlu0 %434
      %436 = vrot.lane.b32.xlu0 %v275, 88
      %v437 = vpop.permute.xlu0 %436
      %438 = vrot.lane.b32.xlu0 %v276, 88
      %v439 = vpop.permute.xlu0 %438
      %440 = vrot.lane.b32.xlu0 %v277, 88
      %v441 = vpop.permute.xlu0 %440
      %442 = vrot.lane.b32.xlu0 %v278, 88
      %v443 = vpop.permute.xlu0 %442
      %444 = vrot.lane.b32.xlu0 %v279, 88
      %v445 = vpop.permute.xlu0 %444
      %vm446 = vcmask 719872
      %v447 = vsel %vm446, %v431, %v433
      %v448 = vsel %vm446, %v435, %v437
      %v449 = vsel %vm446, %v439, %v441
      %v450 = vsel %vm446, %v443, %v445
      %455 = vrot.lane.b32.xlu0 %v272, 95
      %v456 = vpop.permute.xlu0 %455
      %457 = vrot.lane.b32.xlu0 %v273, 95
      %v458 = vpop.permute.xlu0 %457
      %459 = vrot.lane.b32.xlu0 %v274, 95
      %v460 = vpop.permute.xlu0 %459
      %461 = vrot.lane.b32.xlu0 %v275, 95
      %v462 = vpop.permute.xlu0 %461
      %463 = vrot.lane.b32.xlu0 %v276, 95
      %v464 = vpop.permute.xlu0 %463
      %465 = vrot.lane.b32.xlu0 %v277, 95
      %v466 = vpop.permute.xlu0 %465
      %467 = vrot.lane.b32.xlu0 %v278, 95
      %v468 = vpop.permute.xlu0 %467
      %469 = vrot.lane.b32.xlu0 %v279, 95
      %v470 = vpop.permute.xlu0 %469
      %vm471 = vcmask 777216
      %v472 = vsel %vm471, %v456, %v458
      %v473 = vsel %vm471, %v460, %v462
      %v474 = vsel %vm471, %v464, %v466
      %v475 = vsel %vm471, %v468, %v470
      %480 = vrot.lane.b32.xlu0 %v272, 7
      %v481 = vpop.permute.xlu0 %480
      %482 = vrot.lane.b32.xlu0 %v273, 7
      %v483 = vpop.permute.xlu0 %482
      %484 = vrot.lane.b32.xlu0 %v274, 7
      %v485 = vpop.permute.xlu0 %484
      %486 = vrot.lane.b32.xlu0 %v275, 7
      %v487 = vpop.permute.xlu0 %486
      %488 = vrot.lane.b32.xlu0 %v276, 7
      %v489 = vpop.permute.xlu0 %488
      %490 = vrot.lane.b32.xlu0 %v277, 7
      %v491 = vpop.permute.xlu0 %490
      %492 = vrot.lane.b32.xlu0 %v278, 7
      %v493 = vpop.permute.xlu0 %492
      %494 = vrot.lane.b32.xlu0 %v279, 7
      %v495 = vpop.permute.xlu0 %494
      %vm496 = vcmask 56320
      %v497 = vsel %vm496, %v481, %v483
      %v498 = vsel %vm496, %v485, %v487
      %v499 = vsel %vm496, %v489, %v491
      %v500 = vsel %vm496, %v493, %v495
      %501 = vrot.lane.b32.xlu0 %v272, 119
      %v502 = vpop.permute.xlu0 %501
      %503 = vrot.lane.b32.xlu0 %v273, 119
      %v504 = vpop.permute.xlu0 %503
      %505 = vrot.lane.b32.xlu0 %v274, 119
      %v506 = vpop.permute.xlu0 %505
      %507 = vrot.lane.b32.xlu0 %v275, 119
      %v508 = vpop.permute.xlu0 %507
      %509 = vrot.lane.b32.xlu0 %v276, 119
      %v510 = vpop.permute.xlu0 %509
      %511 = vrot.lane.b32.xlu0 %v277, 119
      %v512 = vpop.permute.xlu0 %511
      %513 = vrot.lane.b32.xlu0 %v278, 119
      %v514 = vpop.permute.xlu0 %513
      %515 = vrot.lane.b32.xlu0 %v279, 119
      %v516 = vpop.permute.xlu0 %515
      %vm517 = vcmask 973824
      %v518 = vsel %vm517, %v502, %v504
      %v519 = vsel %vm517, %v506, %v508
      %v520 = vsel %vm517, %v510, %v512
      %v521 = vsel %vm517, %v514, %v516
      %522 = vrot.lane.b32.xlu0 %v272, 103
      %v523 = vpop.permute.xlu0 %522
      %524 = vrot.lane.b32.xlu0 %v273, 103
      %v525 = vpop.permute.xlu0 %524
      %526 = vrot.lane.b32.xlu0 %v274, 103
      %v527 = vpop.permute.xlu0 %526
      %528 = vrot.lane.b32.xlu0 %v275, 103
      %v529 = vpop.permute.xlu0 %528
      %530 = vrot.lane.b32.xlu0 %v276, 103
      %v531 = vpop.permute.xlu0 %530
      %532 = vrot.lane.b32.xlu0 %v277, 103
      %v533 = vpop.permute.xlu0 %532
      %534 = vrot.lane.b32.xlu0 %v278, 103
      %v535 = vpop.permute.xlu0 %534
      %536 = vrot.lane.b32.xlu0 %v279, 103
      %v537 = vpop.permute.xlu0 %536
      %vm538 = vcmask 842752
      %v539 = vsel %vm538, %v523, %v525
      %v540 = vsel %vm538, %v527, %v529
      %v541 = vsel %vm538, %v531, %v533
      %v542 = vsel %vm538, %v535, %v537
      %v543 = vld [vmem:[%s1] sm:$0xff]
      %v544 = vld [vmem:[%s1 + $0x8] sm:$0xff]
      %v545 = vld [vmem:[%s1 + $0x10] sm:$0xf]
      %v546 = vld [vmem:[%s1 + $0x14] sm:$0xff]
      %v547 = vld [vmem:[%s1 + $0x1c] sm:$0xff]
      %v548 = vld [vmem:[%s1 + $0x24] sm:$0xf]
      %v549 = vld [vmem:[%s1 + $0x28] sm:$0xff]
      %v550 = vld [vmem:[%s1 + $0x30] sm:$0xff]
      %v551 = vld [vmem:[%s1 + $0x38] sm:$0xf]
      %v552 = vld [vmem:[%s1 + $0x3c] sm:$0xff]
      %v553 = vld [vmem:[%s1 + $0x44] sm:$0xff]
      %v554 = vld [vmem:[%s1 + $0x4c] sm:$0xf]
      %v567 = vunpack.c.l.b16 %v543
      %v568 = vunpack.c.h.b16 %v543
      %v569 = vunpack.c.l.b16 %v544
      %v570 = vunpack.c.h.b16 %v544
      %v571 = vunpack.c.l.b16 %v545
      %v572 = vunpack.c.l.b16 %v546
      %v573 = vunpack.c.h.b16 %v546
      %v574 = vunpack.c.l.b16 %v547
      %v575 = vunpack.c.h.b16 %v547
      %v576 = vunpack.c.l.b16 %v548
      %v577 = vunpack.c.l.b16 %v549
      %v578 = vunpack.c.h.b16 %v549
      %v579 = vunpack.c.l.b16 %v550
      %v580 = vunpack.c.h.b16 %v550
      %v581 = vunpack.c.l.b16 %v551
      %v582 = vunpack.c.l.b16 %v552
      %v583 = vunpack.c.h.b16 %v552
      %v584 = vunpack.c.l.b16 %v553
      %v585 = vunpack.c.h.b16 %v553
      %v586 = vunpack.c.l.b16 %v554
      %v587 = vpack.c.b16 %v572, %v567
      %v588 = vpack.c.b16 %v573, %v568
      %v589 = vpack.c.b16 %v574, %v569
      %v590 = vpack.c.b16 %v575, %v570
      %v591 = vpack.c.b16 %v576, %v571
      %v592 = vpack.c.b16 %v582, %v577
      %v593 = vpack.c.b16 %v583, %v578
      %v594 = vpack.c.b16 %v584, %v579
      %v595 = vpack.c.b16 %v585, %v580
      %v596 = vpack.c.b16 %v586, %v581
      %vm605 = vcmask 523264
      %v607 = vsel %vm605, %v591, 0
      %v610 = vsel %vm605, %v596, 0
      %612 = vmatprep.subr.bf16.mxu0 0
      %613 = vmatpush1.bf16.msra.mxu0 %v240
      %614 = vmatprep.subr.bf16.mxu0 0
      %615 = vmatpush1.bf16.msra.mxu0 %v241
      %616 = vmatprep.subr.bf16.mxu0 0
      %617 = vmatpush1.bf16.msra.mxu0 %v242
      %618 = vmatprep.subr.bf16.mxu0 0
      %619 = vmatpush1.bf16.msra.mxu0 %v243
      %620 = vmatprep.subr.bf16.mxu0 0
      %621 = vmatpush1.bf16.msra.mxu0 %v297
      %622 = vmatprep.subr.bf16.mxu0 0
      %623 = vmatpush1.bf16.msra.mxu0 %v298
      %624 = vmatprep.subr.bf16.mxu0 0
      %625 = vmatpush1.bf16.msra.mxu0 %v299
      %626 = vmatprep.subr.bf16.mxu0 0
      %627 = vmatpush1.bf16.msra.mxu0 %v300
      %628 = vmatprep.subr.bf16.mxu0 0
      %629 = vmatpush1.bf16.msra.mxu0 %v322
      %630 = vmatprep.subr.bf16.mxu0 0
      %631 = vmatpush1.bf16.msra.mxu0 %v323
      %632 = vmatprep.subr.bf16.mxu0 0
      %633 = vmatpush1.bf16.msra.mxu0 %v324
      %634 = vmatprep.subr.bf16.mxu0 0
      %635 = vmatpush1.bf16.msra.mxu0 %v325
      %636 = vmatprep.subr.bf16.mxu0 0
      %637 = vmatpush1.bf16.msra.mxu0 %v347
      %638 = vmatprep.subr.bf16.mxu0 0
      %639 = vmatpush1.bf16.msra.mxu0 %v348
      %640 = vmatprep.subr.bf16.mxu0 0
      %641 = vmatpush1.bf16.msra.mxu0 %v349
      %642 = vmatprep.subr.bf16.mxu0 0
      %643 = vmatpush1.bf16.msra.mxu0 %v350
      %644 = vmatprep.mubr.bf16.mxu0 %v588
      %645 = vmatmul.mubr.bf16.gmra.mrb[0].mxu0 %v587
      %v646 = vpop.f32.mrb[0].mxu0
      %v647 = vadd.f32 0.0, %v646
      %v648 = vpop.f32.mrb[0].mxu0
      %v649 = vpop.f32.mrb[0].mxu0
      %v650 = vadd.f32 0.0, %v649
      %v651 = vpop.f32.mrb[0].mxu0
      %652 = vmatprep.mubr.bf16.mxu0 %v593
      %653 = vmatmul.mubr.bf16.gmra.mrb[0].mxu0 %v592
      %v654 = vpop.f32.mrb[0].mxu0
      %v655 = vadd.f32 0.0, %v654
      %v656 = vpop.f32.mrb[0].mxu0
      %v657 = vpop.f32.mrb[0].mxu0
      %v658 = vadd.f32 0.0, %v657
      %v659 = vpop.f32.mrb[0].mxu0
      %660 = vdwg.mxu0
      %661 = vmatprep.subr.bf16.mxu0 0
      %662 = vmatpush1.bf16.msra.mxu0 %v372
      %663 = vmatprep.subr.bf16.mxu0 0
      %664 = vmatpush1.bf16.msra.mxu0 %v373
      %665 = vmatprep.subr.bf16.mxu0 0
      %666 = vmatpush1.bf16.msra.mxu0 %v374
      %667 = vmatprep.subr.bf16.mxu0 0
      %668 = vmatpush1.bf16.msra.mxu0 %v375
      %669 = vmatprep.subr.bf16.mxu0 0
      %670 = vmatpush1.bf16.msra.mxu0 %v397
      %671 = vmatprep.subr.bf16.mxu0 0
      %672 = vmatpush1.bf16.msra.mxu0 %v398
      %673 = vmatprep.subr.bf16.mxu0 0
      %674 = vmatpush1.bf16.msra.mxu0 %v399
      %675 = vmatprep.subr.bf16.mxu0 0
      %676 = vmatpush1.bf16.msra.mxu0 %v400
      %677 = vmatprep.subr.bf16.mxu0 0
      %678 = vmatpush1.bf16.msra.mxu0 %v422
      %679 = vmatprep.subr.bf16.mxu0 0
      %680 = vmatpush1.bf16.msra.mxu0 %v423
      %681 = vmatprep.subr.bf16.mxu0 0
      %682 = vmatpush1.bf16.msra.mxu0 %v424
      %683 = vmatprep.subr.bf16.mxu0 0
      %684 = vmatpush1.bf16.msra.mxu0 %v425
      %685 = vmatprep.subr.bf16.mxu0 0
      %686 = vmatpush1.bf16.msra.mxu0 %v447
      %687 = vmatprep.subr.bf16.mxu0 0
      %688 = vmatpush1.bf16.msra.mxu0 %v448
      %689 = vmatprep.subr.bf16.mxu0 0
      %690 = vmatpush1.bf16.msra.mxu0 %v449
      %691 = vmatprep.subr.bf16.mxu0 0
      %692 = vmatpush1.bf16.msra.mxu0 %v450
      %693 = vmatprep.mubr.bf16.mxu0 %v590
      %694 = vmatmul.mubr.bf16.gmra.mrb[0].mxu0 %v589
      %v695 = vpop.f32.mrb[0].mxu0
      %v696 = vadd.f32 %v647, %v695
      %v697 = vpop.f32.mrb[0].mxu0
      %v698 = vpop.f32.mrb[0].mxu0
      %v699 = vadd.f32 %v650, %v698
      %v700 = vpop.f32.mrb[0].mxu0
      %701 = vmatprep.mubr.bf16.mxu0 %v595
      %702 = vmatmul.mubr.bf16.gmra.mrb[0].mxu0 %v594
      %v703 = vpop.f32.mrb[0].mxu0
      %v704 = vadd.f32 %v655, %v703
      %v705 = vpop.f32.mrb[0].mxu0
      %v706 = vpop.f32.mrb[0].mxu0
      %v707 = vadd.f32 %v658, %v706
      %v708 = vpop.f32.mrb[0].mxu0
      %709 = vdwg.mxu0
      %710 = vmatprep.subr.bf16.mxu0 0
      %711 = vmatpush1.bf16.msra.mxu0 %v472
      %712 = vmatprep.subr.bf16.mxu0 0
      %713 = vmatpush1.bf16.msra.mxu0 %v473
      %714 = vmatprep.subr.bf16.mxu0 0
      %715 = vmatpush1.bf16.msra.mxu0 %v474
      %716 = vmatprep.subr.bf16.mxu0 0
      %717 = vmatpush1.bf16.msra.mxu0 %v475
      %718 = vmatprep.subr.bf16.mxu0 0
      %719 = vmatpush1.bf16.msra.mxu0 0
      %720 = vmatprep.subr.bf16.mxu0 0
      %721 = vmatpush1.bf16.msra.mxu0 0
      %722 = vmatprep.subr.bf16.mxu0 0
      %723 = vmatpush1.bf16.msra.mxu0 0
      %724 = vmatprep.subr.bf16.mxu0 0
      %725 = vmatpush1.bf16.msra.mxu0 0
      %726 = vmatprep.subr.bf16.mxu0 0
      %727 = vmatpush1.bf16.msra.mxu0 0
      %728 = vmatprep.subr.bf16.mxu0 0
      %729 = vmatpush1.bf16.msra.mxu0 0
      %730 = vmatprep.subr.bf16.mxu0 0
      %731 = vmatpush1.bf16.msra.mxu0 0
      %732 = vmatprep.subr.bf16.mxu0 0
      %733 = vmatpush1.bf16.msra.mxu0 0
      %734 = vmatprep.subr.bf16.mxu0 0
      %735 = vmatpush1.bf16.msra.mxu0 0
      %736 = vmatprep.subr.bf16.mxu0 0
      %737 = vmatpush1.bf16.msra.mxu0 0
      %738 = vmatprep.subr.bf16.mxu0 0
      %739 = vmatpush1.bf16.msra.mxu0 0
      %740 = vmatprep.subr.bf16.mxu0 0
      %741 = vmatpush1.bf16.msra.mxu0 0
      %742 = vmatprep.mubr.bf16.mxu0 0
      %743 = vmatmul.mubr.bf16.gmra.mrb[0].mxu0 %v607
      %v744 = vpop.f32.mrb[0].mxu0
      %v745 = vadd.f32 %v696, %v744
      %v746 = vpop.f32.mrb[0].mxu0
      %v747 = vpop.f32.mrb[0].mxu0
      %v748 = vadd.f32 %v699, %v747
      %v749 = vpop.f32.mrb[0].mxu0
      %750 = vmatprep.mubr.bf16.mxu0 0
      %751 = vmatmul.mubr.bf16.gmra.mrb[0].mxu0 %v610
      %v752 = vpop.f32.mrb[0].mxu0
      %v753 = vadd.f32 %v704, %v752
      %v754 = vpop.f32.mrb[0].mxu0
      %v755 = vpop.f32.mrb[0].mxu0
      %v756 = vadd.f32 %v707, %v755
      %v757 = vpop.f32.mrb[0].mxu0
      %758 = vdwg.mxu0
      %759 = vrot.lane.b32.xlu0 %v481, 120
      %v760 = vpop.permute.xlu0 %759
      %761 = vrot.lane.b32.xlu0 %v497, 120
      %v762 = vpop.permute.xlu0 %761
      %763 = vrot.lane.b32.xlu0 %v485, 120
      %v764 = vpop.permute.xlu0 %763
      %765 = vrot.lane.b32.xlu0 %v498, 120
      %v766 = vpop.permute.xlu0 %765
      %767 = vrot.lane.b32.xlu0 %v489, 120
      %v768 = vpop.permute.xlu0 %767
      %769 = vrot.lane.b32.xlu0 %v499, 120
      %v770 = vpop.permute.xlu0 %769
      %771 = vrot.lane.b32.xlu0 %v493, 120
      %v772 = vpop.permute.xlu0 %771
      %773 = vrot.lane.b32.xlu0 %v500, 120
      %v774 = vpop.permute.xlu0 %773
      %775 = vrot.lane.b32.xlu0 %v322, 120
      %v776 = vpop.permute.xlu0 %775
      %777 = vrot.lane.b32.xlu0 %v308, 120
      %v778 = vpop.permute.xlu0 %777
      %779 = vrot.lane.b32.xlu0 %v323, 120
      %v780 = vpop.permute.xlu0 %779
      %781 = vrot.lane.b32.xlu0 %v312, 120
      %v782 = vpop.permute.xlu0 %781
      %783 = vrot.lane.b32.xlu0 %v324, 120
      %v784 = vpop.permute.xlu0 %783
      %785 = vrot.lane.b32.xlu0 %v316, 120
      %v786 = vpop.permute.xlu0 %785
      %787 = vrot.lane.b32.xlu0 %v325, 120
      %v788 = vpop.permute.xlu0 %787
      %789 = vrot.lane.b32.xlu0 %v320, 120
      %v790 = vpop.permute.xlu0 %789
      %791 = vrot.lane.b32.xlu0 %v347, 120
      %v792 = vpop.permute.xlu0 %791
      %793 = vrot.lane.b32.xlu0 %v333, 120
      %v794 = vpop.permute.xlu0 %793
      %795 = vrot.lane.b32.xlu0 %v348, 120
      %v796 = vpop.permute.xlu0 %795
      %797 = vrot.lane.b32.xlu0 %v337, 120
      %v798 = vpop.permute.xlu0 %797
      %799 = vrot.lane.b32.xlu0 %v349, 120
      %v800 = vpop.permute.xlu0 %799
      %801 = vrot.lane.b32.xlu0 %v341, 120
      %v802 = vpop.permute.xlu0 %801
      %803 = vrot.lane.b32.xlu0 %v350, 120
      %v804 = vpop.permute.xlu0 %803
      %805 = vrot.lane.b32.xlu0 %v345, 120
      %v806 = vpop.permute.xlu0 %805
      %807 = vrot.lane.b32.xlu0 %v518, 120
      %v808 = vpop.permute.xlu0 %807
      %809 = vrot.lane.b32.xlu0 %v504, 120
      %v810 = vpop.permute.xlu0 %809
      %811 = vrot.lane.b32.xlu0 %v519, 120
      %v812 = vpop.permute.xlu0 %811
      %813 = vrot.lane.b32.xlu0 %v508, 120
      %v814 = vpop.permute.xlu0 %813
      %815 = vrot.lane.b32.xlu0 %v520, 120
      %v816 = vpop.permute.xlu0 %815
      %817 = vrot.lane.b32.xlu0 %v512, 120
      %v818 = vpop.permute.xlu0 %817
      %819 = vrot.lane.b32.xlu0 %v521, 120
      %v820 = vpop.permute.xlu0 %819
      %821 = vrot.lane.b32.xlu0 %v516, 120
      %v822 = vpop.permute.xlu0 %821
      %823 = vrot.lane.b32.xlu0 %v397, 120
      %v824 = vpop.permute.xlu0 %823
      %825 = vrot.lane.b32.xlu0 %v383, 120
      %v826 = vpop.permute.xlu0 %825
      %827 = vrot.lane.b32.xlu0 %v398, 120
      %v828 = vpop.permute.xlu0 %827
      %829 = vrot.lane.b32.xlu0 %v387, 120
      %v830 = vpop.permute.xlu0 %829
      %831 = vrot.lane.b32.xlu0 %v399, 120
      %v832 = vpop.permute.xlu0 %831
      %833 = vrot.lane.b32.xlu0 %v391, 120
      %v834 = vpop.permute.xlu0 %833
      %835 = vrot.lane.b32.xlu0 %v400, 120
      %v836 = vpop.permute.xlu0 %835
      %837 = vrot.lane.b32.xlu0 %v395, 120
      %v838 = vpop.permute.xlu0 %837
      %839 = vrot.lane.b32.xlu0 %v422, 120
      %v840 = vpop.permute.xlu0 %839
      %841 = vrot.lane.b32.xlu0 %v408, 120
      %v842 = vpop.permute.xlu0 %841
      %843 = vrot.lane.b32.xlu0 %v423, 120
      %v844 = vpop.permute.xlu0 %843
      %845 = vrot.lane.b32.xlu0 %v412, 120
      %v846 = vpop.permute.xlu0 %845
      %847 = vrot.lane.b32.xlu0 %v424, 120
      %v848 = vpop.permute.xlu0 %847
      %849 = vrot.lane.b32.xlu0 %v416, 120
      %v850 = vpop.permute.xlu0 %849
      %851 = vrot.lane.b32.xlu0 %v425, 120
      %v852 = vpop.permute.xlu0 %851
      %853 = vrot.lane.b32.xlu0 %v420, 120
      %v854 = vpop.permute.xlu0 %853
      %855 = vrot.lane.b32.xlu0 %v539, 120
      %v856 = vpop.permute.xlu0 %855
      %857 = vrot.lane.b32.xlu0 %v525, 120
      %v858 = vpop.permute.xlu0 %857
      %859 = vrot.lane.b32.xlu0 %v540, 120
      %v860 = vpop.permute.xlu0 %859
      %861 = vrot.lane.b32.xlu0 %v529, 120
      %v862 = vpop.permute.xlu0 %861
      %863 = vrot.lane.b32.xlu0 %v541, 120
      %v864 = vpop.permute.xlu0 %863
      %865 = vrot.lane.b32.xlu0 %v533, 120
      %v866 = vpop.permute.xlu0 %865
      %867 = vrot.lane.b32.xlu0 %v542, 120
      %v868 = vpop.permute.xlu0 %867
      %869 = vrot.lane.b32.xlu0 %v537, 120
      %v870 = vpop.permute.xlu0 %869
      %871 = vrot.lane.b32.xlu0 %v472, 120
      %v872 = vpop.permute.xlu0 %871
      %873 = vrot.lane.b32.xlu0 %v458, 120
      %v874 = vpop.permute.xlu0 %873
      %875 = vrot.lane.b32.xlu0 %v473, 120
      %v876 = vpop.permute.xlu0 %875
      %877 = vrot.lane.b32.xlu0 %v462, 120
      %v878 = vpop.permute.xlu0 %877
      %879 = vrot.lane.b32.xlu0 %v474, 120
      %v880 = vpop.permute.xlu0 %879
      %881 = vrot.lane.b32.xlu0 %v466, 120
      %v882 = vpop.permute.xlu0 %881
      %883 = vrot.lane.b32.xlu0 %v475, 120
      %v884 = vpop.permute.xlu0 %883
      %885 = vrot.lane.b32.xlu0 %v470, 120
      %v886 = vpop.permute.xlu0 %885
      %v887 = vsel %vm296, %v760, %v762
      %v888 = vsel %vm296, %v764, %v766
      %v889 = vsel %vm296, %v768, %v770
      %v890 = vsel %vm296, %v772, %v774
      %v891 = vsel %vm296, %v776, %v778
      %v892 = vsel %vm296, %v780, %v782
      %v893 = vsel %vm296, %v784, %v786
      %v894 = vsel %vm296, %v788, %v790
      %v895 = vsel %vm296, %v792, %v794
      %v896 = vsel %vm296, %v796, %v798
      %v897 = vsel %vm296, %v800, %v802
      %v898 = vsel %vm296, %v804, %v806
      %v899 = vsel %vm296, %v808, %v810
      %v900 = vsel %vm296, %v812, %v814
      %v901 = vsel %vm296, %v816, %v818
      %v902 = vsel %vm296, %v820, %v822
      %v903 = vsel %vm296, %v824, %v826
      %v904 = vsel %vm296, %v828, %v830
      %v905 = vsel %vm296, %v832, %v834
      %v906 = vsel %vm296, %v836, %v838
      %v907 = vsel %vm296, %v840, %v842
      %v908 = vsel %vm296, %v844, %v846
      %v909 = vsel %vm296, %v848, %v850
      %v910 = vsel %vm296, %v852, %v854
      %v911 = vsel %vm296, %v856, %v858
      %v912 = vsel %vm296, %v860, %v862
      %v913 = vsel %vm296, %v864, %v866
      %v914 = vsel %vm296, %v868, %v870
      %v915 = vsel %vm296, %v872, %v874
      %v916 = vsel %vm296, %v876, %v878
      %v917 = vsel %vm296, %v880, %v882
      %v918 = vsel %vm296, %v884, %v886
      %951 = vmatprep.subr.bf16.mxu0 0
      %952 = vmatpush1.bf16.msra.mxu0 %v297
      %953 = vmatprep.subr.bf16.mxu0 0
      %954 = vmatpush1.bf16.msra.mxu0 %v298
      %955 = vmatprep.subr.bf16.mxu0 0
      %956 = vmatpush1.bf16.msra.mxu0 %v299
      %957 = vmatprep.subr.bf16.mxu0 0
      %958 = vmatpush1.bf16.msra.mxu0 %v300
      %959 = vmatprep.subr.bf16.mxu0 0
      %960 = vmatpush1.bf16.msra.mxu0 %v887
      %961 = vmatprep.subr.bf16.mxu0 0
      %962 = vmatpush1.bf16.msra.mxu0 %v888
      %963 = vmatprep.subr.bf16.mxu0 0
      %964 = vmatpush1.bf16.msra.mxu0 %v889
      %965 = vmatprep.subr.bf16.mxu0 0
      %966 = vmatpush1.bf16.msra.mxu0 %v890
      %967 = vmatprep.subr.bf16.mxu0 0
      %968 = vmatpush1.bf16.msra.mxu0 %v891
      %969 = vmatprep.subr.bf16.mxu0 0
      %970 = vmatpush1.bf16.msra.mxu0 %v892
      %971 = vmatprep.subr.bf16.mxu0 0
      %972 = vmatpush1.bf16.msra.mxu0 %v893
      %973 = vmatprep.subr.bf16.mxu0 0
      %974 = vmatpush1.bf16.msra.mxu0 %v894
      %975 = vmatprep.subr.bf16.mxu0 0
      %976 = vmatpush1.bf16.msra.mxu0 %v895
      %977 = vmatprep.subr.bf16.mxu0 0
      %978 = vmatpush1.bf16.msra.mxu0 %v896
      %979 = vmatprep.subr.bf16.mxu0 0
      %980 = vmatpush1.bf16.msra.mxu0 %v897
      %981 = vmatprep.subr.bf16.mxu0 0
      %982 = vmatpush1.bf16.msra.mxu0 %v898
      %983 = vmatprep.mubr.bf16.mxu0 %v588
      %984 = vmatmul.mubr.bf16.gmra.mrb[0].mxu0 %v587
      %v985 = vpop.f32.mrb[0].mxu0
      %v986 = vadd.f32 0.0, %v985
      %v987 = vpop.f32.mrb[0].mxu0
      %v988 = vpop.f32.mrb[0].mxu0
      %v989 = vadd.f32 0.0, %v988
      %v990 = vpop.f32.mrb[0].mxu0
      %991 = vmatprep.mubr.bf16.mxu0 %v593
      %992 = vmatmul.mubr.bf16.gmra.mrb[0].mxu0 %v592
      %v993 = vpop.f32.mrb[0].mxu0
      %v994 = vadd.f32 0.0, %v993
      %v995 = vpop.f32.mrb[0].mxu0
      %v996 = vpop.f32.mrb[0].mxu0
      %v997 = vadd.f32 0.0, %v996
      %v998 = vpop.f32.mrb[0].mxu0
      %999 = vdwg.mxu0
      %1000 = vmatprep.subr.bf16.mxu0 0
      %1001 = vmatpush1.bf16.msra.mxu0 %v899
      %1002 = vmatprep.subr.bf16.mxu0 0
      %1003 = vmatpush1.bf16.msra.mxu0 %v900
      %1004 = vmatprep.subr.bf16.mxu0 0
      %1005 = vmatpush1.bf16.msra.mxu0 %v901
      %1006 = vmatprep.subr.bf16.mxu0 0
      %1007 = vmatpush1.bf16.msra.mxu0 %v902
      %1008 = vmatprep.subr.bf16.mxu0 0
      %1009 = vmatpush1.bf16.msra.mxu0 %v903
      %1010 = vmatprep.subr.bf16.mxu0 0
      %1011 = vmatpush1.bf16.msra.mxu0 %v904
      %1012 = vmatprep.subr.bf16.mxu0 0
      %1013 = vmatpush1.bf16.msra.mxu0 %v905
      %1014 = vmatprep.subr.bf16.mxu0 0
      %1015 = vmatpush1.bf16.msra.mxu0 %v906
      %1016 = vmatprep.subr.bf16.mxu0 0
      %1017 = vmatpush1.bf16.msra.mxu0 %v907
      %1018 = vmatprep.subr.bf16.mxu0 0
      %1019 = vmatpush1.bf16.msra.mxu0 %v908
      %1020 = vmatprep.subr.bf16.mxu0 0
      %1021 = vmatpush1.bf16.msra.mxu0 %v909
      %1022 = vmatprep.subr.bf16.mxu0 0
      %1023 = vmatpush1.bf16.msra.mxu0 %v910
      %1024 = vmatprep.subr.bf16.mxu0 0
      %1025 = vmatpush1.bf16.msra.mxu0 %v911
      %1026 = vmatprep.subr.bf16.mxu0 0
      %1027 = vmatpush1.bf16.msra.mxu0 %v912
      %1028 = vmatprep.subr.bf16.mxu0 0
      %1029 = vmatpush1.bf16.msra.mxu0 %v913
      %1030 = vmatprep.subr.bf16.mxu0 0
      %1031 = vmatpush1.bf16.msra.mxu0 %v914
      %1032 = vmatprep.mubr.bf16.mxu0 %v590
      %1033 = vmatmul.mubr.bf16.gmra.mrb[0].mxu0 %v589
      %v1034 = vpop.f32.mrb[0].mxu0
      %v1035 = vadd.f32 %v986, %v1034
      %v1036 = vpop.f32.mrb[0].mxu0
      %v1037 = vpop.f32.mrb[0].mxu0
      %v1038 = vadd.f32 %v989, %v1037
      %v1039 = vpop.f32.mrb[0].mxu0
      %1040 = vmatprep.mubr.bf16.mxu0 %v595
      %1041 = vmatmul.mubr.bf16.gmra.mrb[0].mxu0 %v594
      %v1042 = vpop.f32.mrb[0].mxu0
      %v1043 = vadd.f32 %v994, %v1042
      %v1044 = vpop.f32.mrb[0].mxu0
      %v1045 = vpop.f32.mrb[0].mxu0
      %v1046 = vadd.f32 %v997, %v1045
      %v1047 = vpop.f32.mrb[0].mxu0
      %1048 = vdwg.mxu0
      %1049 = vmatprep.subr.bf16.mxu0 0
      %1050 = vmatpush1.bf16.msra.mxu0 %v915
      %1051 = vmatprep.subr.bf16.mxu0 0
      %1052 = vmatpush1.bf16.msra.mxu0 %v916
      %1053 = vmatprep.subr.bf16.mxu0 0
      %1054 = vmatpush1.bf16.msra.mxu0 %v917
      %1055 = vmatprep.subr.bf16.mxu0 0
      %1056 = vmatpush1.bf16.msra.mxu0 %v918
      %1057 = vmatprep.subr.bf16.mxu0 0
      %1058 = vmatpush1.bf16.msra.mxu0 0
      %1059 = vmatprep.subr.bf16.mxu0 0
      %1060 = vmatpush1.bf16.msra.mxu0 0
      %1061 = vmatprep.subr.bf16.mxu0 0
      %1062 = vmatpush1.bf16.msra.mxu0 0
      %1063 = vmatprep.subr.bf16.mxu0 0
      %1064 = vmatpush1.bf16.msra.mxu0 0
      %1065 = vmatprep.subr.bf16.mxu0 0
      %1066 = vmatpush1.bf16.msra.mxu0 0
      %1067 = vmatprep.subr.bf16.mxu0 0
      %1068 = vmatpush1.bf16.msra.mxu0 0
      %1069 = vmatprep.subr.bf16.mxu0 0
      %1070 = vmatpush1.bf16.msra.mxu0 0
      %1071 = vmatprep.subr.bf16.mxu0 0
      %1072 = vmatpush1.bf16.msra.mxu0 0
      %1073 = vmatprep.subr.bf16.mxu0 0
      %1074 = vmatpush1.bf16.msra.mxu0 0
      %1075 = vmatprep.subr.bf16.mxu0 0
      %1076 = vmatpush1.bf16.msra.mxu0 0
      %1077 = vmatprep.subr.bf16.mxu0 0
      %1078 = vmatpush1.bf16.msra.mxu0 0
      %1079 = vmatprep.subr.bf16.mxu0 0
      %1080 = vmatpush1.bf16.msra.mxu0 0
      %1081 = vmatprep.mubr.bf16.mxu0 0
      %1082 = vmatmul.mubr.bf16.gmra.mrb[0].mxu0 %v607
      %v1083 = vpop.f32.mrb[0].mxu0
      %v1084 = vadd.f32 %v1035, %v1083
      %v1085 = vpop.f32.mrb[0].mxu0
      %v1086 = vpop.f32.mrb[0].mxu0
      %v1087 = vadd.f32 %v1038, %v1086
      %v1088 = vpop.f32.mrb[0].mxu0
      %1089 = vmatprep.mubr.bf16.mxu0 0
      %1090 = vmatmul.mubr.bf16.gmra.mrb[0].mxu0 %v610
      %v1091 = vpop.f32.mrb[0].mxu0
      %v1092 = vadd.f32 %v1043, %v1091
      %v1093 = vpop.f32.mrb[0].mxu0
      %v1094 = vpop.f32.mrb[0].mxu0
      %v1095 = vadd.f32 %v1046, %v1094
      %v1096 = vpop.f32.mrb[0].mxu0
      %1097 = vdwg.mxu0
      %v1098 = vmax.f32 %v745, %v1084
      %v1099 = vmax.f32 %v748, %v1087
      %v1100 = vmax.f32 %v753, %v1092
      %v1101 = vmax.f32 %v756, %v1095
      %1102 = vst [vmem:[#allocation2] sm:$0xff] %v1098
      %1103 = vst [vmem:[#allocation2 + $0x8] sm:$0xff] %v1099
      %1104 = vst [vmem:[#allocation2 + $0x10] sm:$0xff] %v1100
      %1105 = vst [vmem:[#allocation2 + $0x18] sm:$0xff] %v1101
      %v1106 = vld [vmem:[#allocation2] sm:$0xff]
      %v1107 = vld [vmem:[#allocation2 + $0x8] sm:$0xff]
      %v1108 = vld [vmem:[#allocation2 + $0x10] sm:$0xff]
      %v1109 = vld [vmem:[#allocation2 + $0x18] sm:$0xff]
      %1114 = vrot.lane.b32.xlu0 %v1106, 112
      %v1115 = vpop.permute.xlu0 %1114
      %1116 = vrot.lane.b32.xlu0 %v1107, 112
      %v1117 = vpop.permute.xlu0 %1116
      %1118 = vrot.lane.b32.xlu0 %v1108, 112
      %v1119 = vpop.permute.xlu0 %1118
      %1120 = vrot.lane.b32.xlu0 %v1109, 112
      %v1121 = vpop.permute.xlu0 %1120
      %v1126 = vmax.f32 %v1106, %v1115
      %v1127 = vmax.f32 %v1107, %v1117
      %v1128 = vmax.f32 %v1108, %v1119
      %v1129 = vmax.f32 %v1109, %v1121
      %1134 = vrot.lane.b32.xlu0 %v1126, 100
      %v1135 = vpop.permute.xlu0 %1134
      %1136 = vrot.lane.b32.xlu0 %v1127, 100
      %v1137 = vpop.permute.xlu0 %1136
      %1138 = vrot.lane.b32.xlu0 %v1128, 100
      %v1139 = vpop.permute.xlu0 %1138
      %1140 = vrot.lane.b32.xlu0 %v1129, 100
      %v1141 = vpop.permute.xlu0 %1140
      %1146 = vrot.lane.b32.xlu0 %v1126, 72
      %v1147 = vpop.permute.xlu0 %1146
      %1148 = vrot.lane.b32.xlu0 %v1127, 72
      %v1149 = vpop.permute.xlu0 %1148
      %1150 = vrot.lane.b32.xlu0 %v1128, 72
      %v1151 = vpop.permute.xlu0 %1150
      %1152 = vrot.lane.b32.xlu0 %v1129, 72
      %v1153 = vpop.permute.xlu0 %1152
      %1158 = vrot.lane.b32.xlu0 %v1126, 44
      %v1159 = vpop.permute.xlu0 %1158
      %1160 = vrot.lane.b32.xlu0 %v1127, 44
      %v1161 = vpop.permute.xlu0 %1160
      %1162 = vrot.lane.b32.xlu0 %v1128, 44
      %v1163 = vpop.permute.xlu0 %1162
      %1164 = vrot.lane.b32.xlu0 %v1129, 44
      %v1165 = vpop.permute.xlu0 %1164
      %vm1170 = vcmask 31744
      %v1171 = vsel %vm1170, %v1126, %v1135
      %v1172 = vsel %vm1170, %v1127, %v1137
      %v1173 = vsel %vm1170, %v1128, %v1139
      %v1174 = vsel %vm1170, %v1129, %v1141
      %vm1175 = vcmask 64512
      %v1176 = vsel %vm1175, %v1171, %v1147
      %v1177 = vsel %vm1175, %v1172, %v1149
      %v1178 = vsel %vm1175, %v1173, %v1151
      %v1179 = vsel %vm1175, %v1174, %v1153
      %vm1180 = vcmask 97280
      %v1181 = vsel %vm1180, %v1176, %v1159
      %v1182 = vsel %vm1180, %v1177, %v1161
      %v1183 = vsel %vm1180, %v1178, %v1163
      %v1184 = vsel %vm1180, %v1179, %v1165
      %v1185 = vld [vmem:[%s2] sm:$0xff]
      %v1186 = vld [vmem:[%s2 + $0x8] sm:$0xff]
      %v1187 = vld [vmem:[%s2 + $0x10] sm:$0xff]
      %v1188 = vld [vmem:[%s2 + $0x18] sm:$0xff]
      %1190 = vset.pattern.permute.xlu0 0
      %1191 = vperm.xlu0 %1190, %v1185
      %v1192 = vpop.permute.xlu0 %1191
      %1195 = vset.pattern.permute.xlu0 0
      %1196 = vperm.xlu0 %1195, %v1186
      %v1197 = vpop.permute.xlu0 %1196
      %1200 = vset.pattern.permute.xlu0 0
      %1201 = vperm.xlu0 %1200, %v1187
      %v1202 = vpop.permute.xlu0 %1201
      %1205 = vset.pattern.permute.xlu0 0
      %1206 = vperm.xlu0 %1205, %v1188
      %v1207 = vpop.permute.xlu0 %1206
      %v1209 = vadd.f32 %v1181, %v1192
      %v1210 = vadd.f32 %v1182, %v1197
      %v1211 = vadd.f32 %v1183, %v1202
      %v1212 = vadd.f32 %v1184, %v1207
      %v1213 = vmax.f32 %v1209, 0.0
      %v1214 = vmax.f32 %v1210, 0.0
      %v1215 = vmax.f32 %v1211, 0.0
      %v1216 = vmax.f32 %v1212, 0.0
      %v1217 = vpack.c.bf16 %v1214, %v1213
      %v1218 = vpack.c.bf16 %v1216, %v1215
      %v1221 = vunpack.c.l.b16 %v1217
      %v1222 = vunpack.c.h.b16 %v1217
      %v1223 = vunpack.c.l.b16 %v1218
      %v1224 = vunpack.c.h.b16 %v1218
      %v1225 = vpack.c.b16 %v1221, %v1221
      %v1226 = vpack.c.b16 %v1222, %v1222
      %v1227 = vpack.c.b16 %v1223, %v1223
      %v1228 = vpack.c.b16 %v1224, %v1224
      %vm1233 = vcmask 125952
      %1234 = vst.msk [vmem:[%s206] sm:$0xf] %vm1233, %v1225
      %1235 = vst.msk [vmem:[%s206 + $0x4] sm:$0xf] %vm1233, %v1226
      %1236 = vst.msk [vmem:[%s206 + $0x8] sm:$0xf] %vm1233, %v1227
      %1237 = vst.msk [vmem:[%s206 + $0xc] sm:$0xf] %vm1233, %v1228
      %p1238 = scmp.lt.s32.totalorder %s18, 1
      %s1239 = scalar_select %p1238, %s18, 1
      %p1240 = scmp.lt.s32.totalorder %s19, 0
      %s1241 = scalar_select %p1240, %s19, 0
      %s1242 = smul.addr %s1241, 4
      %s1243 = smul.addr %s1239, 4
      %s1244 = sadd.s32 %s1242, %s1243
      %s1245 = smul.addr %s1244, 4
      %s1246 = scalar_lea.vmem %s3, %s1245
      // Predicated region
      $region33: #{_lambda_.8} parent=31 // pred_check
        %p1247 = pneg %p116
      $region34: #{_lambda_.8} parent=31 // pred_check_branch
        %1249 = sbr.rel (%p1247) target = $region36
      $region35: #{_lambda_.8} parent=31 // pred_region
        _
      $region36: #{_lambda_.8} parent=31 // pred_fallthru
        _
    $region32: #{_lambda_.8} parent=5 // pred_fallthru
      _
    %p1250 = scmp.le.s32.totalorder 2, %s9
    // Predicated region
    $region37: #{_lambda_.8} parent=5 // pred_check
      %p1251 = pneg %p1250
    $region38: #{_lambda_.8} parent=5 // pred_check_branch
      %1253 = sbr.rel (%p1251) target = $region40
    $region39: #{_lambda_.8} parent=5 // pred_region
      %s1254 = ssub.s32 %s9, 2
      // Predicated region
      $region41: #{_lambda_.8} parent=39 // pred_check
        %p1255 = pneg %p122
      $region42: #{_lambda_.8} parent=39 // pred_check_branch
        %1257 = sbr.rel (%p1255) target = $region44
      $region43: #{_lambda_.8} parent=39 // pred_region
        %p1258 = scmp.lt.s32.totalorder %s20, 1
        %s1259 = scalar_select %p1258, %s20, 1
        %p1260 = scmp.lt.s32.totalorder %s21, 0
        %s1261 = scalar_select %p1260, %s21, 0
        %s1262 = smul.addr %s1261, 4
        %s1263 = smul.addr %s1259, 4
        %s1264 = sadd.s32 %s1262, %s1263
        %s1265 = smul.addr %s1264, 4
        %s1266 = scalar_lea.vmem %s3, %s1265
      $region44: #{_lambda_.8} parent=39 // pred_fallthru
        _
    $region40: #{_lambda_.8} parent=5 // pred_fallthru
      _
  $region6: #{_lambda_.8} parent=0 // loop_footer
    %s13 = sadd.s32 1, %s9
  $region7: #{_lambda_.8} parent=0 // loop_footer_branch
    %8 = sbr.rel target = $region3
  $region8: #{_lambda_.8} parent=0 // loop_exit
    _

// kernel: _lambda_.10
$region0: #{_lambda_.10}
  #allocation0 [shape = 'u32[]', space=smem, size = 0x4, offset = 0x4, fixed_abs, tag = 'smem constant byte address 0x4 - core index']
  #allocation1 [shape = 'u32[144,128]{1,0:T(1,128)}', space=vmem, size = 0x12000, scoped, tag = 'internal scratch']
  %s0 = inlined_call_operand.vmem [shape: bf16[2,1,16,40], index: 0, kind: input, shape index: {}]
  %s1 = inlined_call_operand.vmem [shape: bf16[16,144], index: 1, kind: input, shape index: {}]
  %s2 = inlined_call_operand.vmem [shape: f32[16,1], index: 2, kind: input, shape index: {}]
  %s3 = inlined_call_operand.vmem [shape: bf16[2,1,16,16], index: 3, kind: output, shape index: {}]
  %s4 = sld [smem:[#allocation0]]
  $region45: #{_lambda_.10} parent=0
    _
  %s6 = ssub.s32 1, %s4
  %s7 = scalar_select 0, %s6, %s4
  loop: start=0, step=1, limit=4
  $region2: #{_lambda_.10} parent=0 // loop_pre_header
    _
  $region3: #{_lambda_.10} parent=0 // loop_header
    %s9 = sphi 0, %s13
    %p10 = scmp.ge.s32.totalorder %s9, 4
    %s16 = sphi 0, %s28
    %s17 = sphi 0, %s24
    %s18 = sphi 0, %s16
    %s19 = sphi 0, %s17
    %s20 = sphi 0, %s18
    %s21 = sphi 0, %s19
    %s33 = sphi 0, %s35
    %s36 = sphi 0, %s33
    %s37 = sphi 0, %s36
    %s53 = sphi 0, %s37
    %s57 = sphi 0, %s57
    %s59 = sphi 0, %s57
    %s60 = sphi 0, %s59
    %s74 = sphi 0, %s60
    %s78 = sphi 0, %s78
    %s80 = sphi 0, %s78
    %s81 = sphi 0, %s80
    %s95 = sphi 0, %s81
    %s103 = sphi 0, %s105
    %s106 = sphi 0, %s103
    %s107 = sphi 0, %s106
    %s123 = sphi 0, %s107
  $region4: #{_lambda_.10} parent=0 // loop_header_branch
    %12 = sbr.rel (%p10) target = $region8
  $region5: #{_lambda_.10} parent=0 // loop_body
    %s14 = ssub.s32 %s9, 1
    %s15 = ssub.s32 %s9, 2
    %s22 = sadd.s32 1, %s17
    %p23 = scmp.ge.s32.totalorder %s22, 1
    %s24 = scalar_select %p23, 0, %s22
    %s25 = sadd.s32 1, %s16
    %s26 = scalar_select %p23, %s25, %s16
    %p27 = scmp.ge.s32.totalorder %s26, 2
    %s28 = scalar_select %p27, 0, %s26
    %s29 = ssub.s32 %s16, %s28
    %s30 = ssub.s32 %s17, %s24
    %s31 = sor.u32 %s29, %s30
    %p32 = scmp.eq.s32.totalorder %s31, 0
    %s34 = sadd.s32 %s33, 1
    %s35 = scalar_select %p32, %s33, %s34
    %p38 = pneg %p32
    %p39 = scmp.eq.s32.totalorder %s9, 1
    %p40 = por %p38, %p39
    %p41 = scmp.ne.s32.totalorder %s33, %s36
    %p42 = scmp.eq.s32.totalorder %s9, 0
    %p43 = por %p41, %p42
    %p44 = scmp.ne.s32.totalorder %s33, %s36
    %p45 = scmp.eq.s32.totalorder %s14, 1
    %p46 = por %p44, %p45
    %p47 = scmp.ne.s32.totalorder %s36, %s37
    %p48 = scmp.eq.s32.totalorder %s14, 0
    %p49 = por %p47, %p48
    %p50 = scmp.ne.s32.totalorder %s36, %s37
    %p51 = scmp.eq.s32.totalorder %s15, 1
    %p52 = por %p50, %p51
    %p54 = scmp.ne.s32.totalorder %s37, %s53
    %p55 = scmp.eq.s32.totalorder %s15, 0
    %p56 = por %p54, %p55
    %s58 = sadd.s32 %s57, 1
    %p61 = scmp.eq.s32.totalorder %s9, 1
    %p62 = scmp.ne.s32.totalorder %s57, %s59
    %p63 = scmp.eq.s32.totalorder %s9, 0
    %p64 = por %p62, %p63
    %p65 = scmp.ne.s32.totalorder %s57, %s59
    %p66 = scmp.eq.s32.totalorder %s14, 1
    %p67 = por %p65, %p66
    %p68 = scmp.ne.s32.totalorder %s59, %s60
    %p69 = scmp.eq.s32.totalorder %s14, 0
    %p70 = por %p68, %p69
    %p71 = scmp.ne.s32.totalorder %s59, %s60
    %p72 = scmp.eq.s32.totalorder %s15, 1
    %p73 = por %p71, %p72
    %p75 = scmp.ne.s32.totalorder %s60, %s74
    %p76 = scmp.eq.s32.totalorder %s15, 0
    %p77 = por %p75, %p76
    %s79 = sadd.s32 %s78, 1
    %p82 = scmp.eq.s32.totalorder %s9, 1
    %p83 = scmp.ne.s32.totalorder %s78, %s80
    %p84 = scmp.eq.s32.totalorder %s9, 0
    %p85 = por %p83, %p84
    %p86 = scmp.ne.s32.totalorder %s78, %s80
    %p87 = scmp.eq.s32.totalorder %s14, 1
    %p88 = por %p86, %p87
    %p89 = scmp.ne.s32.totalorder %s80, %s81
    %p90 = scmp.eq.s32.totalorder %s14, 0
    %p91 = por %p89, %p90
    %p92 = scmp.ne.s32.totalorder %s80, %s81
    %p93 = scmp.eq.s32.totalorder %s15, 1
    %p94 = por %p92, %p93
    %p96 = scmp.ne.s32.totalorder %s81, %s95
    %p97 = scmp.eq.s32.totalorder %s15, 0
    %p98 = por %p96, %p97
    %s99 = ssub.s32 %s16, %s28
    %s100 = ssub.s32 %s17, %s24
    %s101 = sor.u32 %s99, %s100
    %p102 = scmp.eq.s32.totalorder %s101, 0
    %s104 = sadd.s32 %s103, 1
    %s105 = scalar_select %p102, %s103, %s104
    %p108 = pneg %p102
    %p109 = scmp.eq.s32.totalorder %s9, 1
    %p110 = por %p108, %p109
    %p111 = scmp.ne.s32.totalorder %s103, %s106
    %p112 = scmp.eq.s32.totalorder %s9, 0
    %p113 = por %p111, %p112
    %p114 = scmp.ne.s32.totalorder %s103, %s106
    %p115 = scmp.eq.s32.totalorder %s14, 1
    %p116 = por %p114, %p115
    %p117 = scmp.ne.s32.totalorder %s106, %s107
    %p118 = scmp.eq.s32.totalorder %s14, 0
    %p119 = por %p117, %p118
    %p120 = scmp.ne.s32.totalorder %s106, %s107
    %p121 = scmp.eq.s32.totalorder %s15, 1
    %p122 = por %p120, %p121
    %p124 = scmp.ne.s32.totalorder %s107, %s123
    %p125 = scmp.eq.s32.totalorder %s15, 0
    %p126 = por %p124, %p125
    %p127 = scmp.le.s32.totalorder 1, %s9
    %p128 = scmp.lt.s32.totalorder %s9, 3
    %p129 = pnand %p127, %p128
    %p130 = pneg %p129
    // Predicated region
    $region9: #{_lambda_.10} parent=5 // pred_check
      _
    $region10: #{_lambda_.10} parent=5 // pred_check_branch
      %132 = sbr.rel (%p129) target = $region12
    $region11: #{_lambda_.10} parent=5 // pred_region
      %s133 = ssub.s32 %s9, 1
      // Predicated region
      $region13: #{_lambda_.10} parent=11 // pred_check
        %p134 = pneg %p70
      $region14: #{_lambda_.10} parent=11 // pred_check_branch
        %136 = sbr.rel (%p134) target = $region16
      $region15: #{_lambda_.10} parent=11 // pred_region
        _
      $region16: #{_lambda_.10} parent=11 // pred_fallthru
        _
      // Predicated region
      $region17: #{_lambda_.10} parent=11 // pred_check
        %p137 = pneg %p91
      $region18: #{_lambda_.10} parent=11 // pred_check_branch
        %139 = sbr.rel (%p137) target = $region20
      $region19: #{_lambda_.10} parent=11 // pred_region
        _
      $region20: #{_lambda_.10} parent=11 // pred_fallthru
        _
    $region12: #{_lambda_.10} parent=5 // pred_fallthru
      _
    %p140 = scmp.lt.s32.totalorder %s9, 2
    // Predicated region
    $region21: #{_lambda_.10} parent=5 // pred_check
      %p141 = pneg %p140
    $region22: #{_lambda_.10} parent=5 // pred_check_branch
      %143 = sbr.rel (%p141) target = $region24
    $region23: #{_lambda_.10} parent=5 // pred_region
      // Predicated region
      $region25: #{_lambda_.10} parent=23 // pred_check
        %p144 = pneg %p43
      $region26: #{_lambda_.10} parent=23 // pred_check_branch
        %146 = sbr.rel (%p144) target = $region28
      $region27: #{_lambda_.10} parent=23 // pred_region
        %p147 = scmp.lt.s32.totalorder %s16, 1
        %s148 = scalar_select %p147, %s16, 1
        %p149 = scmp.lt.s32.totalorder %s17, 0
        %s150 = scalar_select %p149, %s17, 0
        %s151 = smul.addr %s150, 2
        %s152 = smul.addr %s148, 2
        %s153 = sadd.s32 %s151, %s152
        %s154 = smul.addr %s153, 4
        %s155 = scalar_lea.vmem %s0, %s154
      $region28: #{_lambda_.10} parent=23 // pred_fallthru
        _
    $region24: #{_lambda_.10} parent=5 // pred_fallthru
      _
    %p156 = scmp.le.s32.totalorder 1, %s9
    %p157 = scmp.lt.s32.totalorder %s9, 3
    %p158 = pnand %p156, %p157
    %p159 = pneg %p158
    // Predicated region
    $region29: #{_lambda_.10} parent=5 // pred_check
      _
    $region30: #{_lambda_.10} parent=5 // pred_check_branch
      %161 = sbr.rel (%p158) target = $region32
    $region31: #{_lambda_.10} parent=5 // pred_region
      %s162 = ssub.s32 %s9, 1
      %p163 = scmp.lt.s32.totalorder %s18, 1
      %s164 = scalar_select %p163, %s18, 1
      %p165 = scmp.lt.s32.totalorder %s19, 0
      %s166 = scalar_select %p165, %s19, 0
      %s167 = smul.addr %s166, 2
      %s168 = smul.addr %s164, 2
      %s169 = sadd.s32 %s167, %s168
      %s170 = smul.addr %s169, 4
      %s171 = scalar_lea.vmem %s0, %s170
      %p172 = pneg %p49
      %p173 = pneg %p46
      %p174 = pneg %p70
      %p175 = pneg %p67
      %p176 = pneg %p91
      %p177 = pneg %p88
      %p178 = pneg %p119
      %p179 = pneg %p116
      %p180 = scmp.lt.s32.totalorder %s18, 1
      %s181 = scalar_select %p180, %s18, 1
      %p182 = scmp.lt.s32.totalorder %s19, 0
      %s183 = scalar_select %p182, %s19, 0
      %s184 = smul.addr %s183, 2
      %s185 = smul.addr %s181, 2
      %s186 = sadd.s32 %s184, %s185
      %s187 = smul.addr %s186, 4
      %s188 = scalar_lea.vmem %s3, %s187
      %p189 = scmp.lt.s32.totalorder %s18, 1
      %s190 = scalar_select %p189, %s18, 1
      %p191 = scmp.lt.s32.totalorder %s19, 0
      %s192 = scalar_select %p191, %s19, 0
      %s193 = smul.addr %s192, 2
      %s194 = smul.addr %s190, 2
      %s195 = sadd.s32 %s193, %s194
      %s196 = smul.addr %s195, 4
      %s197 = scalar_lea.vmem %s0, %s196
      %p198 = scmp.lt.s32.totalorder %s18, 1
      %s199 = scalar_select %p198, %s18, 1
      %p200 = scmp.lt.s32.totalorder %s19, 0
      %s201 = scalar_select %p200, %s19, 0
      %s202 = smul.addr %s201, 2
      %s203 = smul.addr %s199, 2
      %s204 = sadd.s32 %s202, %s203
      %s205 = smul.addr %s204, 4
      %s206 = scalar_lea.vmem %s3, %s205
      %v208 = vld [vmem:[%s197] sm:$0xf]
      %v209 = vld [vmem:[%s197 + $0x4] sm:$0xf]
      %v212 = vunpack.c.l.b16 %v208
      %v213 = vunpack.c.l.b16 %v209
      %v214 = vpack.c.b16 %v213, %v212
      %216 = vrot.lane.b32.xlu0 %v214, 127
      %v217 = vpop.permute.xlu0 %216
      %219 = vrot.lane.b32.xlu0 %v214, 126
      %v220 = vpop.permute.xlu0 %219
      %222 = vrot.lane.b32.xlu0 %v214, 120
      %v223 = vpop.permute.xlu0 %222
      %225 = vrot.lane.b32.xlu0 %v214, 119
      %v226 = vpop.permute.xlu0 %225
      %228 = vrot.lane.b32.xlu0 %v214, 118
      %v229 = vpop.permute.xlu0 %228
      %231 = vrot.lane.b32.xlu0 %v214, 112
      %v232 = vpop.permute.xlu0 %231
      %234 = vrot.lane.b32.xlu0 %v214, 111
      %v235 = vpop.permute.xlu0 %234
      %237 = vrot.lane.b32.xlu0 %v214, 110
      %v238 = vpop.permute.xlu0 %237
      %v240 = vld [vmem:[%s1] sm:$0xff]
      %v241 = vld [vmem:[%s1 + $0x8] sm:$0xff]
      %v242 = vld [vmem:[%s2] sm:$0xff]
      %v243 = vld [vmem:[%s2 + $0x8] sm:$0xff]
      %245 = vset.pattern.permute.xlu0 0
      %246 = vperm.xlu0 %245, %v242
      %v247 = vpop.permute.xlu0 %246
      %250 = vset.pattern.permute.xlu0 0
      %251 = vperm.xlu0 %250, %v243
      %v252 = vpop.permute.xlu0 %251
      %v256 = vunpack.c.l.b16 %v240
      %v257 = vunpack.c.h.b16 %v240
      %v258 = vunpack.c.l.b16 %v241
      %v259 = vunpack.c.h.b16 %v241
      %v260 = vpack.c.b16 %v258, %v256
      %v261 = vpack.c.b16 %v259, %v257
      %vm263 = vcmask 130048
      %v265 = vsel %vm263, %v261, 0
      %267 = vmatprep.subr.bf16.mxu0 0
      %268 = vmatpush1.bf16.msra.mxu0 %v214
      %269 = vmatprep.subr.bf16.mxu0 0
      %270 = vmatpush1.bf16.msra.mxu0 %v217
      %271 = vmatprep.subr.bf16.mxu0 0
      %272 = vmatpush1.bf16.msra.mxu0 %v220
      %273 = vmatprep.subr.bf16.mxu0 0
      %274 = vmatpush1.bf16.msra.mxu0 %v223
      %275 = vmatprep.subr.bf16.mxu0 0
      %276 = vmatpush1.bf16.msra.mxu0 %v226
      %277 = vmatprep.subr.bf16.mxu0 0
      %278 = vmatpush1.bf16.msra.mxu0 %v229
      %279 = vmatprep.subr.bf16.mxu0 0
      %280 = vmatpush1.bf16.msra.mxu0 %v232
      %281 = vmatprep.subr.bf16.mxu0 0
      %282 = vmatpush1.bf16.msra.mxu0 %v235
      %283 = vmatprep.subr.bf16.mxu0 0
      %284 = vmatpush1.bf16.msra.mxu0 %v238
      %285 = vmatprep.subr.bf16.mxu0 0
      %286 = vmatpush1.bf16.msra.mxu0 0
      %287 = vmatprep.subr.bf16.mxu0 0
      %288 = vmatpush1.bf16.msra.mxu0 0
      %289 = vmatprep.subr.bf16.mxu0 0
      %290 = vmatpush1.bf16.msra.mxu0 0
      %291 = vmatprep.subr.bf16.mxu0 0
      %292 = vmatpush1.bf16.msra.mxu0 0
      %293 = vmatprep.subr.bf16.mxu0 0
      %294 = vmatpush1.bf16.msra.mxu0 0
      %295 = vmatprep.subr.bf16.mxu0 0
      %296 = vmatpush1.bf16.msra.mxu0 0
      %297 = vmatprep.subr.bf16.mxu0 0
      %298 = vmatpush1.bf16.msra.mxu0 0
      %299 = vmatprep.mubr.bf16.mxu0 %v265
      %300 = vmatmul.mubr.bf16.gmra.mrb[0].mxu0 %v260
      %v301 = vpop.f32.mrb[0].mxu0
      %v302 = vadd.f32 %v247, %v301
      %v303 = vpop.f32.mrb[0].mxu0
      %v304 = vpop.f32.mrb[0].mxu0
      %v305 = vadd.f32 %v252, %v304
      %v306 = vpop.f32.mrb[0].mxu0
      %307 = vdwg.mxu0
      %v308 = vmax.f32 %v302, 0.0
      %v309 = vmax.f32 %v305, 0.0
      %v310 = vpack.c.bf16 %v309, %v308
      %v312 = vunpack.c.l.b16 %v310
      %v313 = vunpack.c.h.b16 %v310
      %v314 = vpack.c.b16 %v312, %v312
      %v315 = vpack.c.b16 %v313, %v313
      %vm318 = vcmask 125952
      %319 = vst.msk [vmem:[%s206] sm:$0xf] %vm318, %v314
      %320 = vst.msk [vmem:[%s206 + $0x4] sm:$0xf] %vm318, %v315
      %p321 = scmp.lt.s32.totalorder %s18, 1
      %s322 = scalar_select %p321, %s18, 1
      %p323 = scmp.lt.s32.totalorder %s19, 0
      %s324 = scalar_select %p323, %s19, 0
      %s325 = smul.addr %s324, 2
      %s326 = smul.addr %s322, 2
      %s327 = sadd.s32 %s325, %s326
      %s328 = smul.addr %s327, 4
      %s329 = scalar_lea.vmem %s3, %s328
      // Predicated region
      $region33: #{_lambda_.10} parent=31 // pred_check
        %p330 = pneg %p116
      $region34: #{_lambda_.10} parent=31 // pred_check_branch
        %332 = sbr.rel (%p330) target = $region36
      $region35: #{_lambda_.10} parent=31 // pred_region
        _
      $region36: #{_lambda_.10} parent=31 // pred_fallthru
        _
    $region32: #{_lambda_.10} parent=5 // pred_fallthru
      _
    %p333 = scmp.le.s32.totalorder 2, %s9
    // Predicated region
    $region37: #{_lambda_.10} parent=5 // pred_check
      %p334 = pneg %p333
    $region38: #{_lambda_.10} parent=5 // pred_check_branch
      %336 = sbr.rel (%p334) target = $region40
    $region39: #{_lambda_.10} parent=5 // pred_region
      %s337 = ssub.s32 %s9, 2
      // Predicated region
      $region41: #{_lambda_.10} parent=39 // pred_check
        %p338 = pneg %p122
      $region42: #{_lambda_.10} parent=39 // pred_check_branch
        %340 = sbr.rel (%p338) target = $region44
      $region43: #{_lambda_.10} parent=39 // pred_region
        %p341 = scmp.lt.s32.totalorder %s20, 1
        %s342 = scalar_select %p341, %s20, 1
        %p343 = scmp.lt.s32.totalorder %s21, 0
        %s344 = scalar_select %p343, %s21, 0
        %s345 = smul.addr %s344, 2
        %s346 = smul.addr %s342, 2
        %s347 = sadd.s32 %s345, %s346
        %s348 = smul.addr %s347, 4
        %s349 = scalar_lea.vmem %s3, %s348
      $region44: #{_lambda_.10} parent=39 // pred_fallthru
        _
    $region40: #{_lambda_.10} parent=5 // pred_fallthru
      _
  $region6: #{_lambda_.10} parent=0 // loop_footer
    %s13 = sadd.s32 1, %s9
  $region7: #{_lambda_.10} parent=0 // loop_footer_branch
    %8 = sbr.rel target = $region3
  $region8: #{_lambda_.10} parent=0 // loop_exit
    _

// kernel: _lambda_.9
$region0: #{_lambda_.9}
  #allocation0 [shape = 'u32[]', space=smem, size = 0x4, offset = 0x4, fixed_abs, tag = 'smem constant byte address 0x4 - core index']
  #allocation1 [shape = 'u32[144,128]{1,0:T(1,128)}', space=vmem, size = 0x12000, scoped, tag = 'internal scratch']
  #allocation2 [shape = 'f32[16,32]{1,0:T(8,128)}', space=vmem, size = 0x2000, scoped, tag = 'scratch operand']
  %s0 = inlined_call_operand.vmem [shape: bf16[2,1,32,56], index: 0, kind: input, shape index: {}]
  %s1 = inlined_call_operand.vmem [shape: bf16[16,288], index: 1, kind: input, shape index: {}]
  %s2 = inlined_call_operand.vmem [shape: f32[16,1], index: 2, kind: input, shape index: {}]
  %s3 = inlined_call_operand.vmem [shape: bf16[2,1,16,4], index: 3, kind: output, shape index: {}]
  %s4 = sld [smem:[#allocation0]]
  $region45: #{_lambda_.9} parent=0
    _
  %s6 = ssub.s32 1, %s4
  %s7 = scalar_select 0, %s6, %s4
  loop: start=0, step=1, limit=4
  $region2: #{_lambda_.9} parent=0 // loop_pre_header
    _
  $region3: #{_lambda_.9} parent=0 // loop_header
    %s9 = sphi 0, %s13
    %p10 = scmp.ge.s32.totalorder %s9, 4
    %s16 = sphi 0, %s28
    %s17 = sphi 0, %s24
    %s18 = sphi 0, %s16
    %s19 = sphi 0, %s17
    %s20 = sphi 0, %s18
    %s21 = sphi 0, %s19
    %s33 = sphi 0, %s35
    %s36 = sphi 0, %s33
    %s37 = sphi 0, %s36
    %s53 = sphi 0, %s37
    %s57 = sphi 0, %s57
    %s59 = sphi 0, %s57
    %s60 = sphi 0, %s59
    %s74 = sphi 0, %s60
    %s78 = sphi 0, %s78
    %s80 = sphi 0, %s78
    %s81 = sphi 0, %s80
    %s95 = sphi 0, %s81
    %s103 = sphi 0, %s105
    %s106 = sphi 0, %s103
    %s107 = sphi 0, %s106
    %s123 = sphi 0, %s107
  $region4: #{_lambda_.9} parent=0 // loop_header_branch
    %12 = sbr.rel (%p10) target = $region8
  $region5: #{_lambda_.9} parent=0 // loop_body
    %s14 = ssub.s32 %s9, 1
    %s15 = ssub.s32 %s9, 2
    %s22 = sadd.s32 1, %s17
    %p23 = scmp.ge.s32.totalorder %s22, 1
    %s24 = scalar_select %p23, 0, %s22
    %s25 = sadd.s32 1, %s16
    %s26 = scalar_select %p23, %s25, %s16
    %p27 = scmp.ge.s32.totalorder %s26, 2
    %s28 = scalar_select %p27, 0, %s26
    %s29 = ssub.s32 %s16, %s28
    %s30 = ssub.s32 %s17, %s24
    %s31 = sor.u32 %s29, %s30
    %p32 = scmp.eq.s32.totalorder %s31, 0
    %s34 = sadd.s32 %s33, 1
    %s35 = scalar_select %p32, %s33, %s34
    %p38 = pneg %p32
    %p39 = scmp.eq.s32.totalorder %s9, 1
    %p40 = por %p38, %p39
    %p41 = scmp.ne.s32.totalorder %s33, %s36
    %p42 = scmp.eq.s32.totalorder %s9, 0
    %p43 = por %p41, %p42
    %p44 = scmp.ne.s32.totalorder %s33, %s36
    %p45 = scmp.eq.s32.totalorder %s14, 1
    %p46 = por %p44, %p45
    %p47 = scmp.ne.s32.totalorder %s36, %s37
    %p48 = scmp.eq.s32.totalorder %s14, 0
    %p49 = por %p47, %p48
    %p50 = scmp.ne.s32.totalorder %s36, %s37
    %p51 = scmp.eq.s32.totalorder %s15, 1
    %p52 = por %p50, %p51
    %p54 = scmp.ne.s32.totalorder %s37, %s53
    %p55 = scmp.eq.s32.totalorder %s15, 0
    %p56 = por %p54, %p55
    %s58 = sadd.s32 %s57, 1
    %p61 = scmp.eq.s32.totalorder %s9, 1
    %p62 = scmp.ne.s32.totalorder %s57, %s59
    %p63 = scmp.eq.s32.totalorder %s9, 0
    %p64 = por %p62, %p63
    %p65 = scmp.ne.s32.totalorder %s57, %s59
    %p66 = scmp.eq.s32.totalorder %s14, 1
    %p67 = por %p65, %p66
    %p68 = scmp.ne.s32.totalorder %s59, %s60
    %p69 = scmp.eq.s32.totalorder %s14, 0
    %p70 = por %p68, %p69
    %p71 = scmp.ne.s32.totalorder %s59, %s60
    %p72 = scmp.eq.s32.totalorder %s15, 1
    %p73 = por %p71, %p72
    %p75 = scmp.ne.s32.totalorder %s60, %s74
    %p76 = scmp.eq.s32.totalorder %s15, 0
    %p77 = por %p75, %p76
    %s79 = sadd.s32 %s78, 1
    %p82 = scmp.eq.s32.totalorder %s9, 1
    %p83 = scmp.ne.s32.totalorder %s78, %s80
    %p84 = scmp.eq.s32.totalorder %s9, 0
    %p85 = por %p83, %p84
    %p86 = scmp.ne.s32.totalorder %s78, %s80
    %p87 = scmp.eq.s32.totalorder %s14, 1
    %p88 = por %p86, %p87
    %p89 = scmp.ne.s32.totalorder %s80, %s81
    %p90 = scmp.eq.s32.totalorder %s14, 0
    %p91 = por %p89, %p90
    %p92 = scmp.ne.s32.totalorder %s80, %s81
    %p93 = scmp.eq.s32.totalorder %s15, 1
    %p94 = por %p92, %p93
    %p96 = scmp.ne.s32.totalorder %s81, %s95
    %p97 = scmp.eq.s32.totalorder %s15, 0
    %p98 = por %p96, %p97
    %s99 = ssub.s32 %s16, %s28
    %s100 = ssub.s32 %s17, %s24
    %s101 = sor.u32 %s99, %s100
    %p102 = scmp.eq.s32.totalorder %s101, 0
    %s104 = sadd.s32 %s103, 1
    %s105 = scalar_select %p102, %s103, %s104
    %p108 = pneg %p102
    %p109 = scmp.eq.s32.totalorder %s9, 1
    %p110 = por %p108, %p109
    %p111 = scmp.ne.s32.totalorder %s103, %s106
    %p112 = scmp.eq.s32.totalorder %s9, 0
    %p113 = por %p111, %p112
    %p114 = scmp.ne.s32.totalorder %s103, %s106
    %p115 = scmp.eq.s32.totalorder %s14, 1
    %p116 = por %p114, %p115
    %p117 = scmp.ne.s32.totalorder %s106, %s107
    %p118 = scmp.eq.s32.totalorder %s14, 0
    %p119 = por %p117, %p118
    %p120 = scmp.ne.s32.totalorder %s106, %s107
    %p121 = scmp.eq.s32.totalorder %s15, 1
    %p122 = por %p120, %p121
    %p124 = scmp.ne.s32.totalorder %s107, %s123
    %p125 = scmp.eq.s32.totalorder %s15, 0
    %p126 = por %p124, %p125
    %p127 = scmp.le.s32.totalorder 1, %s9
    %p128 = scmp.lt.s32.totalorder %s9, 3
    %p129 = pnand %p127, %p128
    %p130 = pneg %p129
    // Predicated region
    $region9: #{_lambda_.9} parent=5 // pred_check
      _
    $region10: #{_lambda_.9} parent=5 // pred_check_branch
      %132 = sbr.rel (%p129) target = $region12
    $region11: #{_lambda_.9} parent=5 // pred_region
      %s133 = ssub.s32 %s9, 1
      // Predicated region
      $region13: #{_lambda_.9} parent=11 // pred_check
        %p134 = pneg %p70
      $region14: #{_lambda_.9} parent=11 // pred_check_branch
        %136 = sbr.rel (%p134) target = $region16
      $region15: #{_lambda_.9} parent=11 // pred_region
        _
      $region16: #{_lambda_.9} parent=11 // pred_fallthru
        _
      // Predicated region
      $region17: #{_lambda_.9} parent=11 // pred_check
        %p137 = pneg %p91
      $region18: #{_lambda_.9} parent=11 // pred_check_branch
        %139 = sbr.rel (%p137) target = $region20
      $region19: #{_lambda_.9} parent=11 // pred_region
        _
      $region20: #{_lambda_.9} parent=11 // pred_fallthru
        _
    $region12: #{_lambda_.9} parent=5 // pred_fallthru
      _
    %p140 = scmp.lt.s32.totalorder %s9, 2
    // Predicated region
    $region21: #{_lambda_.9} parent=5 // pred_check
      %p141 = pneg %p140
    $region22: #{_lambda_.9} parent=5 // pred_check_branch
      %143 = sbr.rel (%p141) target = $region24
    $region23: #{_lambda_.9} parent=5 // pred_region
      // Predicated region
      $region25: #{_lambda_.9} parent=23 // pred_check
        %p144 = pneg %p43
      $region26: #{_lambda_.9} parent=23 // pred_check_branch
        %146 = sbr.rel (%p144) target = $region28
      $region27: #{_lambda_.9} parent=23 // pred_region
        %p147 = scmp.lt.s32.totalorder %s16, 1
        %s148 = scalar_select %p147, %s16, 1
        %p149 = scmp.lt.s32.totalorder %s17, 0
        %s150 = scalar_select %p149, %s17, 0
        %s151 = smul.addr %s150, 4
        %s152 = smul.addr %s148, 4
        %s153 = sadd.s32 %s151, %s152
        %s154 = smul.addr %s153, 4
        %s155 = scalar_lea.vmem %s0, %s154
      $region28: #{_lambda_.9} parent=23 // pred_fallthru
        _
    $region24: #{_lambda_.9} parent=5 // pred_fallthru
      _
    %p156 = scmp.le.s32.totalorder 1, %s9
    %p157 = scmp.lt.s32.totalorder %s9, 3
    %p158 = pnand %p156, %p157
    %p159 = pneg %p158
    // Predicated region
    $region29: #{_lambda_.9} parent=5 // pred_check
      _
    $region30: #{_lambda_.9} parent=5 // pred_check_branch
      %161 = sbr.rel (%p158) target = $region32
    $region31: #{_lambda_.9} parent=5 // pred_region
      %s162 = ssub.s32 %s9, 1
      %p163 = scmp.lt.s32.totalorder %s18, 1
      %s164 = scalar_select %p163, %s18, 1
      %p165 = scmp.lt.s32.totalorder %s19, 0
      %s166 = scalar_select %p165, %s19, 0
      %s167 = smul.addr %s166, 4
      %s168 = smul.addr %s164, 4
      %s169 = sadd.s32 %s167, %s168
      %s170 = smul.addr %s169, 4
      %s171 = scalar_lea.vmem %s0, %s170
      %p172 = pneg %p49
      %p173 = pneg %p46
      %p174 = pneg %p70
      %p175 = pneg %p67
      %p176 = pneg %p91
      %p177 = pneg %p88
      %p178 = pneg %p119
      %p179 = pneg %p116
      %p180 = scmp.lt.s32.totalorder %s18, 1
      %s181 = scalar_select %p180, %s18, 1
      %p182 = scmp.lt.s32.totalorder %s19, 0
      %s183 = scalar_select %p182, %s19, 0
      %s184 = smul.addr %s183, 2
      %s185 = smul.addr %s181, 2
      %s186 = sadd.s32 %s184, %s185
      %s187 = smul.addr %s186, 4
      %s188 = scalar_lea.vmem %s3, %s187
      %p189 = scmp.lt.s32.totalorder %s18, 1
      %s190 = scalar_select %p189, %s18, 1
      %p191 = scmp.lt.s32.totalorder %s19, 0
      %s192 = scalar_select %p191, %s19, 0
      %s193 = smul.addr %s192, 4
      %s194 = smul.addr %s190, 4
      %s195 = sadd.s32 %s193, %s194
      %s196 = smul.addr %s195, 4
      %s197 = scalar_lea.vmem %s0, %s196
      %p198 = scmp.lt.s32.totalorder %s18, 1
      %s199 = scalar_select %p198, %s18, 1
      %p200 = scmp.lt.s32.totalorder %s19, 0
      %s201 = scalar_select %p200, %s19, 0
      %s202 = smul.addr %s201, 2
      %s203 = smul.addr %s199, 2
      %s204 = sadd.s32 %s202, %s203
      %s205 = smul.addr %s204, 4
      %s206 = scalar_lea.vmem %s3, %s205
      %v208 = vld [vmem:[%s197] sm:$0xf]
      %v209 = vld [vmem:[%s197 + $0x4] sm:$0xf]
      %v210 = vld [vmem:[%s197 + $0x8] sm:$0xf]
      %v211 = vld [vmem:[%s197 + $0xc] sm:$0xf]
      %v216 = vunpack.c.l.b16 %v208
      %v217 = vunpack.c.l.b16 %v209
      %v218 = vunpack.c.l.b16 %v210
      %v219 = vunpack.c.l.b16 %v211
      %v220 = vpack.c.b16 %v217, %v216
      %v221 = vpack.c.b16 %v219, %v218
      %224 = vrot.lane.b32.xlu0 %v220, 124
      %v225 = vpop.permute.xlu0 %224
      %226 = vrot.lane.b32.xlu0 %v221, 124
      %v227 = vpop.permute.xlu0 %226
      %230 = vrot.lane.b32.xlu0 %v220, 127
      %v231 = vpop.permute.xlu0 %230
      %232 = vrot.lane.b32.xlu0 %v221, 127
      %v233 = vpop.permute.xlu0 %232
      %236 = vrot.lane.b32.xlu0 %v220, 120
      %v237 = vpop.permute.xlu0 %236
      %238 = vrot.lane.b32.xlu0 %v221, 120
      %v239 = vpop.permute.xlu0 %238
      %242 = vrot.lane.b32.xlu0 %v220, 116
      %v243 = vpop.permute.xlu0 %242
      %244 = vrot.lane.b32.xlu0 %v221, 116
      %v245 = vpop.permute.xlu0 %244
      %248 = vrot.lane.b32.xlu0 %v220, 119
      %v249 = vpop.permute.xlu0 %248
      %250 = vrot.lane.b32.xlu0 %v221, 119
      %v251 = vpop.permute.xlu0 %250
      %254 = vrot.lane.b32.xlu0 %v220, 112
      %v255 = vpop.permute.xlu0 %254
      %256 = vrot.lane.b32.xlu0 %v221, 112
      %v257 = vpop.permute.xlu0 %256
      %260 = vrot.lane.b32.xlu0 %v220, 108
      %v261 = vpop.permute.xlu0 %260
      %262 = vrot.lane.b32.xlu0 %v221, 108
      %v263 = vpop.permute.xlu0 %262
      %266 = vrot.lane.b32.xlu0 %v220, 111
      %v267 = vpop.permute.xlu0 %266
      %268 = vrot.lane.b32.xlu0 %v221, 111
      %v269 = vpop.permute.xlu0 %268
      %272 = vrot.lane.b32.xlu0 %v220, 3
      %v273 = vpop.permute.xlu0 %272
      %274 = vrot.lane.b32.xlu0 %v221, 3
      %v275 = vpop.permute.xlu0 %274
      %276 = vrot.lane.b32.xlu0 %v220, 123
      %v277 = vpop.permute.xlu0 %276
      %278 = vrot.lane.b32.xlu0 %v221, 123
      %v279 = vpop.permute.xlu0 %278
      %280 = vrot.lane.b32.xlu0 %v220, 115
      %v281 = vpop.permute.xlu0 %280
      %282 = vrot.lane.b32.xlu0 %v221, 115
      %v283 = vpop.permute.xlu0 %282
      %v284 = vld [vmem:[%s1] sm:$0xff]
      %v285 = vld [vmem:[%s1 + $0x8] sm:$0xf]
      %v286 = vld [vmem:[%s1 + $0xc] sm:$0xff]
      %v287 = vld [vmem:[%s1 + $0x14] sm:$0xf]
      %v292 = vunpack.c.l.b16 %v284
      %v293 = vunpack.c.h.b16 %v284
      %v294 = vunpack.c.l.b16 %v285
      %v295 = vunpack.c.l.b16 %v286
      %v296 = vunpack.c.h.b16 %v286
      %v297 = vunpack.c.l.b16 %v287
      %v298 = vpack.c.b16 %v295, %v292
      %v299 = vpack.c.b16 %v296, %v293
      %v300 = vpack.c.b16 %v297, %v294
      %vm303 = vcmask 261120
      %v305 = vsel %vm303, %v300, 0
      %307 = vmatprep.subr.bf16.mxu0 0
      %308 = vmatpush1.bf16.msra.mxu0 %v220
      %309 = vmatprep.subr.bf16.mxu0 0
      %310 = vmatpush1.bf16.msra.mxu0 %v221
      %311 = vmatprep.subr.bf16.mxu0 0
      %312 = vmatpush1.bf16.msra.mxu0 %v225
      %313 = vmatprep.subr.bf16.mxu0 0
      %314 = vmatpush1.bf16.msra.mxu0 %v227
      %315 = vmatprep.subr.bf16.mxu0 0
      %316 = vmatpush1.bf16.msra.mxu0 %v231
      %317 = vmatprep.subr.bf16.mxu0 0
      %318 = vmatpush1.bf16.msra.mxu0 %v233
      %319 = vmatprep.subr.bf16.mxu0 0
      %320 = vmatpush1.bf16.msra.mxu0 %v237
      %321 = vmatprep.subr.bf16.mxu0 0
      %322 = vmatpush1.bf16.msra.mxu0 %v239
      %323 = vmatprep.subr.bf16.mxu0 0
      %324 = vmatpush1.bf16.msra.mxu0 %v243
      %325 = vmatprep.subr.bf16.mxu0 0
      %326 = vmatpush1.bf16.msra.mxu0 %v245
      %327 = vmatprep.subr.bf16.mxu0 0
      %328 = vmatpush1.bf16.msra.mxu0 %v249
      %329 = vmatprep.subr.bf16.mxu0 0
      %330 = vmatpush1.bf16.msra.mxu0 %v251
      %331 = vmatprep.subr.bf16.mxu0 0
      %332 = vmatpush1.bf16.msra.mxu0 %v255
      %333 = vmatprep.subr.bf16.mxu0 0
      %334 = vmatpush1.bf16.msra.mxu0 %v257
      %335 = vmatprep.subr.bf16.mxu0 0
      %336 = vmatpush1.bf16.msra.mxu0 %v261
      %337 = vmatprep.subr.bf16.mxu0 0
      %338 = vmatpush1.bf16.msra.mxu0 %v263
      %339 = vmatprep.mubr.bf16.mxu0 %v299
      %340 = vmatmul.mubr.bf16.gmra.mrb[0].mxu0 %v298
      %v341 = vpop.f32.mrb[0].mxu0
      %v342 = vadd.f32 0.0, %v341
      %v343 = vpop.f32.mrb[0].mxu0
      %v344 = vpop.f32.mrb[0].mxu0
      %v345 = vadd.f32 0.0, %v344
      %v346 = vpop.f32.mrb[0].mxu0
      %347 = vdwg.mxu0
      %348 = vmatprep.subr.bf16.mxu0 0
      %349 = vmatpush1.bf16.msra.mxu0 %v267
      %350 = vmatprep.subr.bf16.mxu0 0
      %351 = vmatpush1.bf16.msra.mxu0 %v269
      %352 = vmatprep.subr.bf16.mxu0 0
      %353 = vmatpush1.bf16.msra.mxu0 0
      %354 = vmatprep.subr.bf16.mxu0 0
      %355 = vmatpush1.bf16.msra.mxu0 0
      %356 = vmatprep.subr.bf16.mxu0 0
      %357 = vmatpush1.bf16.msra.mxu0 0
      %358 = vmatprep.subr.bf16.mxu0 0
      %359 = vmatpush1.bf16.msra.mxu0 0
      %360 = vmatprep.subr.bf16.mxu0 0
      %361 = vmatpush1.bf16.msra.mxu0 0
      %362 = vmatprep.subr.bf16.mxu0 0
      %363 = vmatpush1.bf16.msra.mxu0 0
      %364 = vmatprep.subr.bf16.mxu0 0
      %365 = vmatpush1.bf16.msra.mxu0 0
      %366 = vmatprep.subr.bf16.mxu0 0
      %367 = vmatpush1.bf16.msra.mxu0 0
      %368 = vmatprep.subr.bf16.mxu0 0
      %369 = vmatpush1.bf16.msra.mxu0 0
      %370 = vmatprep.subr.bf16.mxu0 0
      %371 = vmatpush1.bf16.msra.mxu0 0
      %372 = vmatprep.subr.bf16.mxu0 0
      %373 = vmatpush1.bf16.msra.mxu0 0
      %374 = vmatprep.subr.bf16.mxu0 0
      %375 = vmatpush1.bf16.msra.mxu0 0
      %376 = vmatprep.subr.bf16.mxu0 0
      %377 = vmatpush1.bf16.msra.mxu0 0
      %378 = vmatprep.subr.bf16.mxu0 0
      %379 = vmatpush1.bf16.msra.mxu0 0
      %380 = vmatprep.mubr.bf16.mxu0 0
      %381 = vmatmul.mubr.bf16.gmra.mrb[0].mxu0 %v305
      %v382 = vpop.f32.mrb[0].mxu0
      %v383 = vadd.f32 %v342, %v382
      %v384 = vpop.f32.mrb[0].mxu0
      %v385 = vpop.f32.mrb[0].mxu0
      %v386 = vadd.f32 %v345, %v385
      %v387 = vpop.f32.mrb[0].mxu0
      %388 = vdwg.mxu0
      %389 = vrot.lane.b32.xlu0 %v273, 124
      %v390 = vpop.permute.xlu0 %389
      %391 = vrot.lane.b32.xlu0 %v275, 124
      %v392 = vpop.permute.xlu0 %391
      %393 = vrot.lane.b32.xlu0 %v231, 124
      %v394 = vpop.permute.xlu0 %393
      %395 = vrot.lane.b32.xlu0 %v233, 124
      %v396 = vpop.permute.xlu0 %395
      %397 = vrot.lane.b32.xlu0 %v237, 124
      %v398 = vpop.permute.xlu0 %397
      %399 = vrot.lane.b32.xlu0 %v239, 124
      %v400 = vpop.permute.xlu0 %399
      %401 = vrot.lane.b32.xlu0 %v277, 124
      %v402 = vpop.permute.xlu0 %401
      %403 = vrot.lane.b32.xlu0 %v279, 124
      %v404 = vpop.permute.xlu0 %403
      %405 = vrot.lane.b32.xlu0 %v249, 124
      %v406 = vpop.permute.xlu0 %405
      %407 = vrot.lane.b32.xlu0 %v251, 124
      %v408 = vpop.permute.xlu0 %407
      %409 = vrot.lane.b32.xlu0 %v255, 124
      %v410 = vpop.permute.xlu0 %409
      %411 = vrot.lane.b32.xlu0 %v257, 124
      %v412 = vpop.permute.xlu0 %411
      %413 = vrot.lane.b32.xlu0 %v281, 124
      %v414 = vpop.permute.xlu0 %413
      %415 = vrot.lane.b32.xlu0 %v283, 124
      %v416 = vpop.permute.xlu0 %415
      %417 = vrot.lane.b32.xlu0 %v267, 124
      %v418 = vpop.permute.xlu0 %417
      %419 = vrot.lane.b32.xlu0 %v269, 124
      %v420 = vpop.permute.xlu0 %419
      %437 = vmatprep.subr.bf16.mxu0 0
      %438 = vmatpush1.bf16.msra.mxu0 %v225
      %439 = vmatprep.subr.bf16.mxu0 0
      %440 = vmatpush1.bf16.msra.mxu0 %v227
      %441 = vmatprep.subr.bf16.mxu0 0
      %442 = vmatpush1.bf16.msra.mxu0 %v390
      %443 = vmatprep.subr.bf16.mxu0 0
      %444 = vmatpush1.bf16.msra.mxu0 %v392
      %445 = vmatprep.subr.bf16.mxu0 0
      %446 = vmatpush1.bf16.msra.mxu0 %v394
      %447 = vmatprep.subr.bf16.mxu0 0
      %448 = vmatpush1.bf16.msra.mxu0 %v396
      %449 = vmatprep.subr.bf16.mxu0 0
      %450 = vmatpush1.bf16.msra.mxu0 %v398
      %451 = vmatprep.subr.bf16.mxu0 0
      %452 = vmatpush1.bf16.msra.mxu0 %v400
      %453 = vmatprep.subr.bf16.mxu0 0
      %454 = vmatpush1.bf16.msra.mxu0 %v402
      %455 = vmatprep.subr.bf16.mxu0 0
      %456 = vmatpush1.bf16.msra.mxu0 %v404
      %457 = vmatprep.subr.bf16.mxu0 0
      %458 = vmatpush1.bf16.msra.mxu0 %v406
      %459 = vmatprep.subr.bf16.mxu0 0
      %460 = vmatpush1.bf16.msra.mxu0 %v408
      %461 = vmatprep.subr.bf16.mxu0 0
      %462 = vmatpush1.bf16.msra.mxu0 %v410
      %463 = vmatprep.subr.bf16.mxu0 0
      %464 = vmatpush1.bf16.msra.mxu0 %v412
      %465 = vmatprep.subr.bf16.mxu0 0
      %466 = vmatpush1.bf16.msra.mxu0 %v414
      %467 = vmatprep.subr.bf16.mxu0 0
      %468 = vmatpush1.bf16.msra.mxu0 %v416
      %469 = vmatprep.mubr.bf16.mxu0 %v299
      %470 = vmatmul.mubr.bf16.gmra.mrb[0].mxu0 %v298
      %v471 = vpop.f32.mrb[0].mxu0
      %v472 = vadd.f32 0.0, %v471
      %v473 = vpop.f32.mrb[0].mxu0
      %v474 = vpop.f32.mrb[0].mxu0
      %v475 = vadd.f32 0.0, %v474
      %v476 = vpop.f32.mrb[0].mxu0
      %477 = vdwg.mxu0
      %478 = vmatprep.subr.bf16.mxu0 0
      %479 = vmatpush1.bf16.msra.mxu0 %v418
      %480 = vmatprep.subr.bf16.mxu0 0
      %481 = vmatpush1.bf16.msra.mxu0 %v420
      %482 = vmatprep.subr.bf16.mxu0 0
      %483 = vmatpush1.bf16.msra.mxu0 0
      %484 = vmatprep.subr.bf16.mxu0 0
      %485 = vmatpush1.bf16.msra.mxu0 0
      %486 = vmatprep.subr.bf16.mxu0 0
      %487 = vmatpush1.bf16.msra.mxu0 0
      %488 = vmatprep.subr.bf16.mxu0 0
      %489 = vmatpush1.bf16.msra.mxu0 0
      %490 = vmatprep.subr.bf16.mxu0 0
      %491 = vmatpush1.bf16.msra.mxu0 0
      %492 = vmatprep.subr.bf16.mxu0 0
      %493 = vmatpush1.bf16.msra.mxu0 0
      %494 = vmatprep.subr.bf16.mxu0 0
      %495 = vmatpush1.bf16.msra.mxu0 0
      %496 = vmatprep.subr.bf16.mxu0 0
      %497 = vmatpush1.bf16.msra.mxu0 0
      %498 = vmatprep.subr.bf16.mxu0 0
      %499 = vmatpush1.bf16.msra.mxu0 0
      %500 = vmatprep.subr.bf16.mxu0 0
      %501 = vmatpush1.bf16.msra.mxu0 0
      %502 = vmatprep.subr.bf16.mxu0 0
      %503 = vmatpush1.bf16.msra.mxu0 0
      %504 = vmatprep.subr.bf16.mxu0 0
      %505 = vmatpush1.bf16.msra.mxu0 0
      %506 = vmatprep.subr.bf16.mxu0 0
      %507 = vmatpush1.bf16.msra.mxu0 0
      %508 = vmatprep.subr.bf16.mxu0 0
      %509 = vmatpush1.bf16.msra.mxu0 0
      %510 = vmatprep.mubr.bf16.mxu0 0
      %511 = vmatmul.mubr.bf16.gmra.mrb[0].mxu0 %v305
      %v512 = vpop.f32.mrb[0].mxu0
      %v513 = vadd.f32 %v472, %v512
      %v514 = vpop.f32.mrb[0].mxu0
      %v515 = vpop.f32.mrb[0].mxu0
      %v516 = vadd.f32 %v475, %v515
      %v517 = vpop.f32.mrb[0].mxu0
      %518 = vdwg.mxu0
      %v519 = vmax.f32 %v383, %v513
      %v520 = vmax.f32 %v386, %v516
      %521 = vst.msk [vmem:[#allocation2] sm:$0xff] %vm303, %v519
      %522 = vst.msk [vmem:[#allocation2 + $0x8] sm:$0xff] %vm303, %v520
      %v523 = vld [vmem:[#allocation2] sm:$0xff]
      %v524 = vld [vmem:[#allocation2 + $0x8] sm:$0xff]
      %527 = vrot.lane.b32.xlu0 %v523, 120
      %v528 = vpop.permute.xlu0 %527
      %529 = vrot.lane.b32.xlu0 %v524, 120
      %v530 = vpop.permute.xlu0 %529
      %v533 = vmax.f32 %v523, %v528
      %v534 = vmax.f32 %v524, %v530
      %537 = vrot.lane.b32.xlu0 %v533, 114
      %v538 = vpop.permute.xlu0 %537
      %539 = vrot.lane.b32.xlu0 %v534, 114
      %v540 = vpop.permute.xlu0 %539
      %vm543 = vcmask 15360
      %v544 = vsel %vm543, %v533, %v538
      %v545 = vsel %vm543, %v534, %v540
      %v546 = vld [vmem:[%s2] sm:$0xff]
      %v547 = vld [vmem:[%s2 + $0x8] sm:$0xff]
      %549 = vset.pattern.permute.xlu0 0
      %550 = vperm.xlu0 %549, %v546
      %v551 = vpop.permute.xlu0 %550
      %554 = vset.pattern.permute.xlu0 0
      %555 = vperm.xlu0 %554, %v547
      %v556 = vpop.permute.xlu0 %555
      %v558 = vadd.f32 %v544, %v551
      %v559 = vadd.f32 %v545, %v556
      %v560 = vmax.f32 %v558, 0.0
      %v561 = vmax.f32 %v559, 0.0
      %v562 = vpack.c.bf16 %v561, %v560
      %v564 = vunpack.c.l.b16 %v562
      %v565 = vunpack.c.h.b16 %v562
      %v566 = vpack.c.b16 %v564, %v564
      %v567 = vpack.c.b16 %v565, %v565
      %vm570 = vcmask 27648
      %571 = vst.msk [vmem:[%s206] sm:$0xf] %vm570, %v566
      %572 = vst.msk [vmem:[%s206 + $0x4] sm:$0xf] %vm570, %v567
      %p573 = scmp.lt.s32.totalorder %s18, 1
      %s574 = scalar_select %p573, %s18, 1
      %p575 = scmp.lt.s32.totalorder %s19, 0
      %s576 = scalar_select %p575, %s19, 0
      %s577 = smul.addr %s576, 2
      %s578 = smul.addr %s574, 2
      %s579 = sadd.s32 %s577, %s578
      %s580 = smul.addr %s579, 4
      %s581 = scalar_lea.vmem %s3, %s580
      // Predicated region
      $region33: #{_lambda_.9} parent=31 // pred_check
        %p582 = pneg %p116
      $region34: #{_lambda_.9} parent=31 // pred_check_branch
        %584 = sbr.rel (%p582) target = $region36
      $region35: #{_lambda_.9} parent=31 // pred_region
        _
      $region36: #{_lambda_.9} parent=31 // pred_fallthru
        _
    $region32: #{_lambda_.9} parent=5 // pred_fallthru
      _
    %p585 = scmp.le.s32.totalorder 2, %s9
    // Predicated region
    $region37: #{_lambda_.9} parent=5 // pred_check
      %p586 = pneg %p585
    $region38: #{_lambda_.9} parent=5 // pred_check_branch
      %588 = sbr.rel (%p586) target = $region40
    $region39: #{_lambda_.9} parent=5 // pred_region
      %s589 = ssub.s32 %s9, 2
      // Predicated region
      $region41: #{_lambda_.9} parent=39 // pred_check
        %p590 = pneg %p122
      $region42: #{_lambda_.9} parent=39 // pred_check_branch
        %592 = sbr.rel (%p590) target = $region44
      $region43: #{_lambda_.9} parent=39 // pred_region
        %p593 = scmp.lt.s32.totalorder %s20, 1
        %s594 = scalar_select %p593, %s20, 1
        %p595 = scmp.lt.s32.totalorder %s21, 0
        %s596 = scalar_select %p595, %s21, 0
        %s597 = smul.addr %s596, 2
        %s598 = smul.addr %s594, 2
        %s599 = sadd.s32 %s597, %s598
        %s600 = smul.addr %s599, 4
        %s601 = scalar_lea.vmem %s3, %s600
      $region44: #{_lambda_.9} parent=39 // pred_fallthru
        _
    $region40: #{_lambda_.9} parent=5 // pred_fallthru
      _
  $region6: #{_lambda_.9} parent=0 // loop_footer
    %s13 = sadd.s32 1, %s9
  $region7: #{_lambda_.9} parent=0 // loop_footer_branch
    %8 = sbr.rel target = $region3
  $region8: #{_lambda_.9} parent=0 // loop_exit
    _

// kernel: _lambda_.11
$region0: #{_lambda_.11}
  #allocation0 [shape = 'u32[]', space=smem, size = 0x4, offset = 0x4, fixed_abs, tag = 'smem constant byte address 0x4 - core index']
  #allocation1 [shape = 'u32[144,128]{1,0:T(1,128)}', space=vmem, size = 0x12000, scoped, tag = 'internal scratch']
  %s0 = inlined_call_operand.vmem [shape: bf16[2,1,16,56], index: 0, kind: input, shape index: {}]
  %s1 = inlined_call_operand.vmem [shape: bf16[32,144], index: 1, kind: input, shape index: {}]
  %s2 = inlined_call_operand.vmem [shape: f32[32,1], index: 2, kind: input, shape index: {}]
  %s3 = inlined_call_operand.vmem [shape: bf16[2,1,32,32], index: 3, kind: output, shape index: {}]
  %s4 = sld [smem:[#allocation0]]
  $region45: #{_lambda_.11} parent=0
    _
  %s6 = ssub.s32 1, %s4
  %s7 = scalar_select 0, %s6, %s4
  loop: start=0, step=1, limit=4
  $region2: #{_lambda_.11} parent=0 // loop_pre_header
    _
  $region3: #{_lambda_.11} parent=0 // loop_header
    %s9 = sphi 0, %s13
    %p10 = scmp.ge.s32.totalorder %s9, 4
    %s16 = sphi 0, %s28
    %s17 = sphi 0, %s24
    %s18 = sphi 0, %s16
    %s19 = sphi 0, %s17
    %s20 = sphi 0, %s18
    %s21 = sphi 0, %s19
    %s33 = sphi 0, %s35
    %s36 = sphi 0, %s33
    %s37 = sphi 0, %s36
    %s53 = sphi 0, %s37
    %s57 = sphi 0, %s57
    %s59 = sphi 0, %s57
    %s60 = sphi 0, %s59
    %s74 = sphi 0, %s60
    %s78 = sphi 0, %s78
    %s80 = sphi 0, %s78
    %s81 = sphi 0, %s80
    %s95 = sphi 0, %s81
    %s103 = sphi 0, %s105
    %s106 = sphi 0, %s103
    %s107 = sphi 0, %s106
    %s123 = sphi 0, %s107
  $region4: #{_lambda_.11} parent=0 // loop_header_branch
    %12 = sbr.rel (%p10) target = $region8
  $region5: #{_lambda_.11} parent=0 // loop_body
    %s14 = ssub.s32 %s9, 1
    %s15 = ssub.s32 %s9, 2
    %s22 = sadd.s32 1, %s17
    %p23 = scmp.ge.s32.totalorder %s22, 1
    %s24 = scalar_select %p23, 0, %s22
    %s25 = sadd.s32 1, %s16
    %s26 = scalar_select %p23, %s25, %s16
    %p27 = scmp.ge.s32.totalorder %s26, 2
    %s28 = scalar_select %p27, 0, %s26
    %s29 = ssub.s32 %s16, %s28
    %s30 = ssub.s32 %s17, %s24
    %s31 = sor.u32 %s29, %s30
    %p32 = scmp.eq.s32.totalorder %s31, 0
    %s34 = sadd.s32 %s33, 1
    %s35 = scalar_select %p32, %s33, %s34
    %p38 = pneg %p32
    %p39 = scmp.eq.s32.totalorder %s9, 1
    %p40 = por %p38, %p39
    %p41 = scmp.ne.s32.totalorder %s33, %s36
    %p42 = scmp.eq.s32.totalorder %s9, 0
    %p43 = por %p41, %p42
    %p44 = scmp.ne.s32.totalorder %s33, %s36
    %p45 = scmp.eq.s32.totalorder %s14, 1
    %p46 = por %p44, %p45
    %p47 = scmp.ne.s32.totalorder %s36, %s37
    %p48 = scmp.eq.s32.totalorder %s14, 0
    %p49 = por %p47, %p48
    %p50 = scmp.ne.s32.totalorder %s36, %s37
    %p51 = scmp.eq.s32.totalorder %s15, 1
    %p52 = por %p50, %p51
    %p54 = scmp.ne.s32.totalorder %s37, %s53
    %p55 = scmp.eq.s32.totalorder %s15, 0
    %p56 = por %p54, %p55
    %s58 = sadd.s32 %s57, 1
    %p61 = scmp.eq.s32.totalorder %s9, 1
    %p62 = scmp.ne.s32.totalorder %s57, %s59
    %p63 = scmp.eq.s32.totalorder %s9, 0
    %p64 = por %p62, %p63
    %p65 = scmp.ne.s32.totalorder %s57, %s59
    %p66 = scmp.eq.s32.totalorder %s14, 1
    %p67 = por %p65, %p66
    %p68 = scmp.ne.s32.totalorder %s59, %s60
    %p69 = scmp.eq.s32.totalorder %s14, 0
    %p70 = por %p68, %p69
    %p71 = scmp.ne.s32.totalorder %s59, %s60
    %p72 = scmp.eq.s32.totalorder %s15, 1
    %p73 = por %p71, %p72
    %p75 = scmp.ne.s32.totalorder %s60, %s74
    %p76 = scmp.eq.s32.totalorder %s15, 0
    %p77 = por %p75, %p76
    %s79 = sadd.s32 %s78, 1
    %p82 = scmp.eq.s32.totalorder %s9, 1
    %p83 = scmp.ne.s32.totalorder %s78, %s80
    %p84 = scmp.eq.s32.totalorder %s9, 0
    %p85 = por %p83, %p84
    %p86 = scmp.ne.s32.totalorder %s78, %s80
    %p87 = scmp.eq.s32.totalorder %s14, 1
    %p88 = por %p86, %p87
    %p89 = scmp.ne.s32.totalorder %s80, %s81
    %p90 = scmp.eq.s32.totalorder %s14, 0
    %p91 = por %p89, %p90
    %p92 = scmp.ne.s32.totalorder %s80, %s81
    %p93 = scmp.eq.s32.totalorder %s15, 1
    %p94 = por %p92, %p93
    %p96 = scmp.ne.s32.totalorder %s81, %s95
    %p97 = scmp.eq.s32.totalorder %s15, 0
    %p98 = por %p96, %p97
    %s99 = ssub.s32 %s16, %s28
    %s100 = ssub.s32 %s17, %s24
    %s101 = sor.u32 %s99, %s100
    %p102 = scmp.eq.s32.totalorder %s101, 0
    %s104 = sadd.s32 %s103, 1
    %s105 = scalar_select %p102, %s103, %s104
    %p108 = pneg %p102
    %p109 = scmp.eq.s32.totalorder %s9, 1
    %p110 = por %p108, %p109
    %p111 = scmp.ne.s32.totalorder %s103, %s106
    %p112 = scmp.eq.s32.totalorder %s9, 0
    %p113 = por %p111, %p112
    %p114 = scmp.ne.s32.totalorder %s103, %s106
    %p115 = scmp.eq.s32.totalorder %s14, 1
    %p116 = por %p114, %p115
    %p117 = scmp.ne.s32.totalorder %s106, %s107
    %p118 = scmp.eq.s32.totalorder %s14, 0
    %p119 = por %p117, %p118
    %p120 = scmp.ne.s32.totalorder %s106, %s107
    %p121 = scmp.eq.s32.totalorder %s15, 1
    %p122 = por %p120, %p121
    %p124 = scmp.ne.s32.totalorder %s107, %s123
    %p125 = scmp.eq.s32.totalorder %s15, 0
    %p126 = por %p124, %p125
    %p127 = scmp.le.s32.totalorder 1, %s9
    %p128 = scmp.lt.s32.totalorder %s9, 3
    %p129 = pnand %p127, %p128
    %p130 = pneg %p129
    // Predicated region
    $region9: #{_lambda_.11} parent=5 // pred_check
      _
    $region10: #{_lambda_.11} parent=5 // pred_check_branch
      %132 = sbr.rel (%p129) target = $region12
    $region11: #{_lambda_.11} parent=5 // pred_region
      %s133 = ssub.s32 %s9, 1
      // Predicated region
      $region13: #{_lambda_.11} parent=11 // pred_check
        %p134 = pneg %p70
      $region14: #{_lambda_.11} parent=11 // pred_check_branch
        %136 = sbr.rel (%p134) target = $region16
      $region15: #{_lambda_.11} parent=11 // pred_region
        _
      $region16: #{_lambda_.11} parent=11 // pred_fallthru
        _
      // Predicated region
      $region17: #{_lambda_.11} parent=11 // pred_check
        %p137 = pneg %p91
      $region18: #{_lambda_.11} parent=11 // pred_check_branch
        %139 = sbr.rel (%p137) target = $region20
      $region19: #{_lambda_.11} parent=11 // pred_region
        _
      $region20: #{_lambda_.11} parent=11 // pred_fallthru
        _
    $region12: #{_lambda_.11} parent=5 // pred_fallthru
      _
    %p140 = scmp.lt.s32.totalorder %s9, 2
    // Predicated region
    $region21: #{_lambda_.11} parent=5 // pred_check
      %p141 = pneg %p140
    $region22: #{_lambda_.11} parent=5 // pred_check_branch
      %143 = sbr.rel (%p141) target = $region24
    $region23: #{_lambda_.11} parent=5 // pred_region
      // Predicated region
      $region25: #{_lambda_.11} parent=23 // pred_check
        %p144 = pneg %p43
      $region26: #{_lambda_.11} parent=23 // pred_check_branch
        %146 = sbr.rel (%p144) target = $region28
      $region27: #{_lambda_.11} parent=23 // pred_region
        %p147 = scmp.lt.s32.totalorder %s16, 1
        %s148 = scalar_select %p147, %s16, 1
        %p149 = scmp.lt.s32.totalorder %s17, 0
        %s150 = scalar_select %p149, %s17, 0
        %s151 = smul.addr %s150, 2
        %s152 = smul.addr %s148, 2
        %s153 = sadd.s32 %s151, %s152
        %s154 = smul.addr %s153, 4
        %s155 = scalar_lea.vmem %s0, %s154
      $region28: #{_lambda_.11} parent=23 // pred_fallthru
        _
    $region24: #{_lambda_.11} parent=5 // pred_fallthru
      _
    %p156 = scmp.le.s32.totalorder 1, %s9
    %p157 = scmp.lt.s32.totalorder %s9, 3
    %p158 = pnand %p156, %p157
    %p159 = pneg %p158
    // Predicated region
    $region29: #{_lambda_.11} parent=5 // pred_check
      _
    $region30: #{_lambda_.11} parent=5 // pred_check_branch
      %161 = sbr.rel (%p158) target = $region32
    $region31: #{_lambda_.11} parent=5 // pred_region
      %s162 = ssub.s32 %s9, 1
      %p163 = scmp.lt.s32.totalorder %s18, 1
      %s164 = scalar_select %p163, %s18, 1
      %p165 = scmp.lt.s32.totalorder %s19, 0
      %s166 = scalar_select %p165, %s19, 0
      %s167 = smul.addr %s166, 2
      %s168 = smul.addr %s164, 2
      %s169 = sadd.s32 %s167, %s168
      %s170 = smul.addr %s169, 4
      %s171 = scalar_lea.vmem %s0, %s170
      %p172 = pneg %p49
      %p173 = pneg %p46
      %p174 = pneg %p70
      %p175 = pneg %p67
      %p176 = pneg %p91
      %p177 = pneg %p88
      %p178 = pneg %p119
      %p179 = pneg %p116
      %p180 = scmp.lt.s32.totalorder %s18, 1
      %s181 = scalar_select %p180, %s18, 1
      %p182 = scmp.lt.s32.totalorder %s19, 0
      %s183 = scalar_select %p182, %s19, 0
      %s184 = smul.addr %s183, 4
      %s185 = smul.addr %s181, 4
      %s186 = sadd.s32 %s184, %s185
      %s187 = smul.addr %s186, 4
      %s188 = scalar_lea.vmem %s3, %s187
      %p189 = scmp.lt.s32.totalorder %s18, 1
      %s190 = scalar_select %p189, %s18, 1
      %p191 = scmp.lt.s32.totalorder %s19, 0
      %s192 = scalar_select %p191, %s19, 0
      %s193 = smul.addr %s192, 2
      %s194 = smul.addr %s190, 2
      %s195 = sadd.s32 %s193, %s194
      %s196 = smul.addr %s195, 4
      %s197 = scalar_lea.vmem %s0, %s196
      %p198 = scmp.lt.s32.totalorder %s18, 1
      %s199 = scalar_select %p198, %s18, 1
      %p200 = scmp.lt.s32.totalorder %s19, 0
      %s201 = scalar_select %p200, %s19, 0
      %s202 = smul.addr %s201, 4
      %s203 = smul.addr %s199, 4
      %s204 = sadd.s32 %s202, %s203
      %s205 = smul.addr %s204, 4
      %s206 = scalar_lea.vmem %s3, %s205
      %v208 = vld [vmem:[%s197] sm:$0xf]
      %v209 = vld [vmem:[%s197 + $0x4] sm:$0xf]
      %v212 = vunpack.c.l.b16 %v208
      %v213 = vunpack.c.l.b16 %v209
      %v214 = vpack.c.b16 %v213, %v212
      %216 = vrot.lane.b32.xlu0 %v214, 127
      %v217 = vpop.permute.xlu0 %216
      %219 = vrot.lane.b32.xlu0 %v214, 126
      %v220 = vpop.permute.xlu0 %219
      %222 = vrot.lane.b32.xlu0 %v214, 120
      %v223 = vpop.permute.xlu0 %222
      %225 = vrot.lane.b32.xlu0 %v214, 119
      %v226 = vpop.permute.xlu0 %225
      %228 = vrot.lane.b32.xlu0 %v214, 118
      %v229 = vpop.permute.xlu0 %228
      %231 = vrot.lane.b32.xlu0 %v214, 112
      %v232 = vpop.permute.xlu0 %231
      %234 = vrot.lane.b32.xlu0 %v214, 111
      %v235 = vpop.permute.xlu0 %234
      %237 = vrot.lane.b32.xlu0 %v214, 110
      %v238 = vpop.permute.xlu0 %237
      %v240 = vld [vmem:[%s1] sm:$0xff]
      %v241 = vld [vmem:[%s1 + $0x8] sm:$0xff]
      %v242 = vld [vmem:[%s1 + $0x10] sm:$0xff]
      %v243 = vld [vmem:[%s1 + $0x18] sm:$0xff]
      %v244 = vld [vmem:[%s2] sm:$0xff]
      %v245 = vld [vmem:[%s2 + $0x8] sm:$0xff]
      %v246 = vld [vmem:[%s2 + $0x10] sm:$0xff]
      %v247 = vld [vmem:[%s2 + $0x18] sm:$0xff]
      %249 = vset.pattern.permute.xlu0 0
      %250 = vperm.xlu0 %249, %v244
      %v251 = vpop.permute.xlu0 %250
      %254 = vset.pattern.permute.xlu0 0
      %255 = vperm.xlu0 %254, %v245
      %v256 = vpop.permute.xlu0 %255
      %259 = vset.pattern.permute.xlu0 0
      %260 = vperm.xlu0 %259, %v246
      %v261 = vpop.permute.xlu0 %260
      %264 = vset.pattern.permute.xlu0 0
      %265 = vperm.xlu0 %264, %v247
      %v266 = vpop.permute.xlu0 %265
      %v272 = vunpack.c.l.b16 %v240
      %v273 = vunpack.c.h.b16 %v240
      %v274 = vunpack.c.l.b16 %v241
      %v275 = vunpack.c.h.b16 %v241
      %v276 = vunpack.c.l.b16 %v242
      %v277 = vunpack.c.h.b16 %v242
      %v278 = vunpack.c.l.b16 %v243
      %v279 = vunpack.c.h.b16 %v243
      %v280 = vpack.c.b16 %v274, %v272
      %v281 = vpack.c.b16 %v275, %v273
      %v282 = vpack.c.b16 %v278, %v276
      %v283 = vpack.c.b16 %v279, %v277
      %vm286 = vcmask 130048
      %v288 = vsel %vm286, %v281, 0
      %v291 = vsel %vm286, %v283, 0
      %293 = vmatprep.subr.bf16.mxu0 0
      %294 = vmatpush1.bf16.msra.mxu0 %v214
      %295 = vmatprep.subr.bf16.mxu0 0
      %296 = vmatpush1.bf16.msra.mxu0 %v217
      %297 = vmatprep.subr.bf16.mxu0 0
      %298 = vmatpush1.bf16.msra.mxu0 %v220
      %299 = vmatprep.subr.bf16.mxu0 0
      %300 = vmatpush1.bf16.msra.mxu0 %v223
      %301 = vmatprep.subr.bf16.mxu0 0
      %302 = vmatpush1.bf16.msra.mxu0 %v226
      %303 = vmatprep.subr.bf16.mxu0 0
      %304 = vmatpush1.bf16.msra.mxu0 %v229
      %305 = vmatprep.subr.bf16.mxu0 0
      %306 = vmatpush1.bf16.msra.mxu0 %v232
      %307 = vmatprep.subr.bf16.mxu0 0
      %308 = vmatpush1.bf16.msra.mxu0 %v235
      %309 = vmatprep.subr.bf16.mxu0 0
      %310 = vmatpush1.bf16.msra.mxu0 %v238
      %311 = vmatprep.subr.bf16.mxu0 0
      %312 = vmatpush1.bf16.msra.mxu0 0
      %313 = vmatprep.subr.bf16.mxu0 0
      %314 = vmatpush1.bf16.msra.mxu0 0
      %315 = vmatprep.subr.bf16.mxu0 0
      %316 = vmatpush1.bf16.msra.mxu0 0
      %317 = vmatprep.subr.bf16.mxu0 0
      %318 = vmatpush1.bf16.msra.mxu0 0
      %319 = vmatprep.subr.bf16.mxu0 0
      %320 = vmatpush1.bf16.msra.mxu0 0
      %321 = vmatprep.subr.bf16.mxu0 0
      %322 = vmatpush1.bf16.msra.mxu0 0
      %323 = vmatprep.subr.bf16.mxu0 0
      %324 = vmatpush1.bf16.msra.mxu0 0
      %325 = vmatprep.mubr.bf16.mxu0 %v288
      %326 = vmatmul.mubr.bf16.gmra.mrb[0].mxu0 %v280
      %v327 = vpop.f32.mrb[0].mxu0
      %v328 = vadd.f32 %v251, %v327
      %v329 = vpop.f32.mrb[0].mxu0
      %v330 = vpop.f32.mrb[0].mxu0
      %v331 = vadd.f32 %v256, %v330
      %v332 = vpop.f32.mrb[0].mxu0
      %333 = vmatprep.mubr.bf16.mxu0 %v291
      %334 = vmatmul.mubr.bf16.gmra.mrb[0].mxu0 %v282
      %v335 = vpop.f32.mrb[0].mxu0
      %v336 = vadd.f32 %v261, %v335
      %v337 = vpop.f32.mrb[0].mxu0
      %v338 = vpop.f32.mrb[0].mxu0
      %v339 = vadd.f32 %v266, %v338
      %v340 = vpop.f32.mrb[0].mxu0
      %341 = vdwg.mxu0
      %v342 = vmax.f32 %v328, 0.0
      %v343 = vmax.f32 %v331, 0.0
      %v344 = vmax.f32 %v336, 0.0
      %v345 = vmax.f32 %v339, 0.0
      %v346 = vpack.c.bf16 %v343, %v342
      %v347 = vpack.c.bf16 %v345, %v344
      %v350 = vunpack.c.l.b16 %v346
      %v351 = vunpack.c.h.b16 %v346
      %v352 = vunpack.c.l.b16 %v347
      %v353 = vunpack.c.h.b16 %v347
      %v354 = vpack.c.b16 %v350, %v350
      %v355 = vpack.c.b16 %v351, %v351
      %v356 = vpack.c.b16 %v352, %v352
      %v357 = vpack.c.b16 %v353, %v353
      %vm362 = vcmask 257024
      %363 = vst.msk [vmem:[%s206] sm:$0xf] %vm362, %v354
      %364 = vst.msk [vmem:[%s206 + $0x4] sm:$0xf] %vm362, %v355
      %365 = vst.msk [vmem:[%s206 + $0x8] sm:$0xf] %vm362, %v356
      %366 = vst.msk [vmem:[%s206 + $0xc] sm:$0xf] %vm362, %v357
      %p367 = scmp.lt.s32.totalorder %s18, 1
      %s368 = scalar_select %p367, %s18, 1
      %p369 = scmp.lt.s32.totalorder %s19, 0
      %s370 = scalar_select %p369, %s19, 0
      %s371 = smul.addr %s370, 4
      %s372 = smul.addr %s368, 4
      %s373 = sadd.s32 %s371, %s372
      %s374 = smul.addr %s373, 4
      %s375 = scalar_lea.vmem %s3, %s374
      // Predicated region
      $region33: #{_lambda_.11} parent=31 // pred_check
        %p376 = pneg %p116
      $region34: #{_lambda_.11} parent=31 // pred_check_branch
        %378 = sbr.rel (%p376) target = $region36
      $region35: #{_lambda_.11} parent=31 // pred_region
        _
      $region36: #{_lambda_.11} parent=31 // pred_fallthru
        _
    $region32: #{_lambda_.11} parent=5 // pred_fallthru
      _
    %p379 = scmp.le.s32.totalorder 2, %s9
    // Predicated region
    $region37: #{_lambda_.11} parent=5 // pred_check
      %p380 = pneg %p379
    $region38: #{_lambda_.11} parent=5 // pred_check_branch
      %382 = sbr.rel (%p380) target = $region40
    $region39: #{_lambda_.11} parent=5 // pred_region
      %s383 = ssub.s32 %s9, 2
      // Predicated region
      $region41: #{_lambda_.11} parent=39 // pred_check
        %p384 = pneg %p122
      $region42: #{_lambda_.11} parent=39 // pred_check_branch
        %386 = sbr.rel (%p384) target = $region44
      $region43: #{_lambda_.11} parent=39 // pred_region
        %p387 = scmp.lt.s32.totalorder %s20, 1
        %s388 = scalar_select %p387, %s20, 1
        %p389 = scmp.lt.s32.totalorder %s21, 0
        %s390 = scalar_select %p389, %s21, 0
        %s391 = smul.addr %s390, 4
        %s392 = smul.addr %s388, 4
        %s393 = sadd.s32 %s391, %s392
        %s394 = smul.addr %s393, 4
        %s395 = scalar_lea.vmem %s3, %s394
      $region44: #{_lambda_.11} parent=39 // pred_fallthru
        _
    $region40: #{_lambda_.11} parent=5 // pred_fallthru
      _
  $region6: #{_lambda_.11} parent=0 // loop_footer
    %s13 = sadd.s32 1, %s9
  $region7: #{_lambda_.11} parent=0 // loop_footer_branch
    %8 = sbr.rel target = $region3
  $region8: #{_lambda_.11} parent=0 // loop_exit
    _

// kernel: _lambda_.12
$region0: #{_lambda_.12}
  #allocation0 [shape = 'u32[]', space=smem, size = 0x4, offset = 0x4, fixed_abs, tag = 'smem constant byte address 0x4 - core index']
  #allocation1 [shape = 'u32[144,128]{1,0:T(1,128)}', space=vmem, size = 0x12000, scoped, tag = 'internal scratch']
  %s0 = inlined_call_operand.vmem [shape: bf16[2,1,32,176], index: 0, kind: input, shape index: {}]
  %s1 = inlined_call_operand.vmem [shape: bf16[64,288], index: 1, kind: input, shape index: {}]
  %s2 = inlined_call_operand.vmem [shape: f32[64,1], index: 2, kind: input, shape index: {}]
  %s3 = inlined_call_operand.vmem [shape: bf16[2,1,64,128], index: 3, kind: output, shape index: {}]
  %s4 = sld [smem:[#allocation0]]
  $region45: #{_lambda_.12} parent=0
    _
  %s6 = ssub.s32 1, %s4
  %s7 = scalar_select 0, %s6, %s4
  loop: start=0, step=1, limit=4
  $region2: #{_lambda_.12} parent=0 // loop_pre_header
    _
  $region3: #{_lambda_.12} parent=0 // loop_header
    %s9 = sphi 0, %s13
    %p10 = scmp.ge.s32.totalorder %s9, 4
    %s16 = sphi 0, %s28
    %s17 = sphi 0, %s24
    %s18 = sphi 0, %s16
    %s19 = sphi 0, %s17
    %s20 = sphi 0, %s18
    %s21 = sphi 0, %s19
    %s33 = sphi 0, %s35
    %s36 = sphi 0, %s33
    %s37 = sphi 0, %s36
    %s53 = sphi 0, %s37
    %s57 = sphi 0, %s57
    %s59 = sphi 0, %s57
    %s60 = sphi 0, %s59
    %s74 = sphi 0, %s60
    %s78 = sphi 0, %s78
    %s80 = sphi 0, %s78
    %s81 = sphi 0, %s80
    %s95 = sphi 0, %s81
    %s103 = sphi 0, %s105
    %s106 = sphi 0, %s103
    %s107 = sphi 0, %s106
    %s123 = sphi 0, %s107
  $region4: #{_lambda_.12} parent=0 // loop_header_branch
    %12 = sbr.rel (%p10) target = $region8
  $region5: #{_lambda_.12} parent=0 // loop_body
    %s14 = ssub.s32 %s9, 1
    %s15 = ssub.s32 %s9, 2
    %s22 = sadd.s32 1, %s17
    %p23 = scmp.ge.s32.totalorder %s22, 1
    %s24 = scalar_select %p23, 0, %s22
    %s25 = sadd.s32 1, %s16
    %s26 = scalar_select %p23, %s25, %s16
    %p27 = scmp.ge.s32.totalorder %s26, 2
    %s28 = scalar_select %p27, 0, %s26
    %s29 = ssub.s32 %s16, %s28
    %s30 = ssub.s32 %s17, %s24
    %s31 = sor.u32 %s29, %s30
    %p32 = scmp.eq.s32.totalorder %s31, 0
    %s34 = sadd.s32 %s33, 1
    %s35 = scalar_select %p32, %s33, %s34
    %p38 = pneg %p32
    %p39 = scmp.eq.s32.totalorder %s9, 1
    %p40 = por %p38, %p39
    %p41 = scmp.ne.s32.totalorder %s33, %s36
    %p42 = scmp.eq.s32.totalorder %s9, 0
    %p43 = por %p41, %p42
    %p44 = scmp.ne.s32.totalorder %s33, %s36
    %p45 = scmp.eq.s32.totalorder %s14, 1
    %p46 = por %p44, %p45
    %p47 = scmp.ne.s32.totalorder %s36, %s37
    %p48 = scmp.eq.s32.totalorder %s14, 0
    %p49 = por %p47, %p48
    %p50 = scmp.ne.s32.totalorder %s36, %s37
    %p51 = scmp.eq.s32.totalorder %s15, 1
    %p52 = por %p50, %p51
    %p54 = scmp.ne.s32.totalorder %s37, %s53
    %p55 = scmp.eq.s32.totalorder %s15, 0
    %p56 = por %p54, %p55
    %s58 = sadd.s32 %s57, 1
    %p61 = scmp.eq.s32.totalorder %s9, 1
    %p62 = scmp.ne.s32.totalorder %s57, %s59
    %p63 = scmp.eq.s32.totalorder %s9, 0
    %p64 = por %p62, %p63
    %p65 = scmp.ne.s32.totalorder %s57, %s59
    %p66 = scmp.eq.s32.totalorder %s14, 1
    %p67 = por %p65, %p66
    %p68 = scmp.ne.s32.totalorder %s59, %s60
    %p69 = scmp.eq.s32.totalorder %s14, 0
    %p70 = por %p68, %p69
    %p71 = scmp.ne.s32.totalorder %s59, %s60
    %p72 = scmp.eq.s32.totalorder %s15, 1
    %p73 = por %p71, %p72
    %p75 = scmp.ne.s32.totalorder %s60, %s74
    %p76 = scmp.eq.s32.totalorder %s15, 0
    %p77 = por %p75, %p76
    %s79 = sadd.s32 %s78, 1
    %p82 = scmp.eq.s32.totalorder %s9, 1
    %p83 = scmp.ne.s32.totalorder %s78, %s80
    %p84 = scmp.eq.s32.totalorder %s9, 0
    %p85 = por %p83, %p84
    %p86 = scmp.ne.s32.totalorder %s78, %s80
    %p87 = scmp.eq.s32.totalorder %s14, 1
    %p88 = por %p86, %p87
    %p89 = scmp.ne.s32.totalorder %s80, %s81
    %p90 = scmp.eq.s32.totalorder %s14, 0
    %p91 = por %p89, %p90
    %p92 = scmp.ne.s32.totalorder %s80, %s81
    %p93 = scmp.eq.s32.totalorder %s15, 1
    %p94 = por %p92, %p93
    %p96 = scmp.ne.s32.totalorder %s81, %s95
    %p97 = scmp.eq.s32.totalorder %s15, 0
    %p98 = por %p96, %p97
    %s99 = ssub.s32 %s16, %s28
    %s100 = ssub.s32 %s17, %s24
    %s101 = sor.u32 %s99, %s100
    %p102 = scmp.eq.s32.totalorder %s101, 0
    %s104 = sadd.s32 %s103, 1
    %s105 = scalar_select %p102, %s103, %s104
    %p108 = pneg %p102
    %p109 = scmp.eq.s32.totalorder %s9, 1
    %p110 = por %p108, %p109
    %p111 = scmp.ne.s32.totalorder %s103, %s106
    %p112 = scmp.eq.s32.totalorder %s9, 0
    %p113 = por %p111, %p112
    %p114 = scmp.ne.s32.totalorder %s103, %s106
    %p115 = scmp.eq.s32.totalorder %s14, 1
    %p116 = por %p114, %p115
    %p117 = scmp.ne.s32.totalorder %s106, %s107
    %p118 = scmp.eq.s32.totalorder %s14, 0
    %p119 = por %p117, %p118
    %p120 = scmp.ne.s32.totalorder %s106, %s107
    %p121 = scmp.eq.s32.totalorder %s15, 1
    %p122 = por %p120, %p121
    %p124 = scmp.ne.s32.totalorder %s107, %s123
    %p125 = scmp.eq.s32.totalorder %s15, 0
    %p126 = por %p124, %p125
    %p127 = scmp.le.s32.totalorder 1, %s9
    %p128 = scmp.lt.s32.totalorder %s9, 3
    %p129 = pnand %p127, %p128
    %p130 = pneg %p129
    // Predicated region
    $region9: #{_lambda_.12} parent=5 // pred_check
      _
    $region10: #{_lambda_.12} parent=5 // pred_check_branch
      %132 = sbr.rel (%p129) target = $region12
    $region11: #{_lambda_.12} parent=5 // pred_region
      %s133 = ssub.s32 %s9, 1
      // Predicated region
      $region13: #{_lambda_.12} parent=11 // pred_check
        %p134 = pneg %p70
      $region14: #{_lambda_.12} parent=11 // pred_check_branch
        %136 = sbr.rel (%p134) target = $region16
      $region15: #{_lambda_.12} parent=11 // pred_region
        _
      $region16: #{_lambda_.12} parent=11 // pred_fallthru
        _
      // Predicated region
      $region17: #{_lambda_.12} parent=11 // pred_check
        %p137 = pneg %p91
      $region18: #{_lambda_.12} parent=11 // pred_check_branch
        %139 = sbr.rel (%p137) target = $region20
      $region19: #{_lambda_.12} parent=11 // pred_region
        _
      $region20: #{_lambda_.12} parent=11 // pred_fallthru
        _
    $region12: #{_lambda_.12} parent=5 // pred_fallthru
      _
    %p140 = scmp.lt.s32.totalorder %s9, 2
    // Predicated region
    $region21: #{_lambda_.12} parent=5 // pred_check
      %p141 = pneg %p140
    $region22: #{_lambda_.12} parent=5 // pred_check_branch
      %143 = sbr.rel (%p141) target = $region24
    $region23: #{_lambda_.12} parent=5 // pred_region
      // Predicated region
      $region25: #{_lambda_.12} parent=23 // pred_check
        %p144 = pneg %p43
      $region26: #{_lambda_.12} parent=23 // pred_check_branch
        %146 = sbr.rel (%p144) target = $region28
      $region27: #{_lambda_.12} parent=23 // pred_region
        %p147 = scmp.lt.s32.totalorder %s16, 1
        %s148 = scalar_select %p147, %s16, 1
        %p149 = scmp.lt.s32.totalorder %s17, 0
        %s150 = scalar_select %p149, %s17, 0
        %s151 = smul.addr %s150, 8
        %s152 = smul.addr %s148, 8
        %s153 = sadd.s32 %s151, %s152
        %s154 = smul.addr %s153, 4
        %s155 = scalar_lea.vmem %s0, %s154
      $region28: #{_lambda_.12} parent=23 // pred_fallthru
        _
    $region24: #{_lambda_.12} parent=5 // pred_fallthru
      _
    %p156 = scmp.le.s32.totalorder 1, %s9
    %p157 = scmp.lt.s32.totalorder %s9, 3
    %p158 = pnand %p156, %p157
    %p159 = pneg %p158
    // Predicated region
    $region29: #{_lambda_.12} parent=5 // pred_check
      _
    $region30: #{_lambda_.12} parent=5 // pred_check_branch
      %161 = sbr.rel (%p158) target = $region32
    $region31: #{_lambda_.12} parent=5 // pred_region
      %s162 = ssub.s32 %s9, 1
      %p163 = scmp.lt.s32.totalorder %s18, 1
      %s164 = scalar_select %p163, %s18, 1
      %p165 = scmp.lt.s32.totalorder %s19, 0
      %s166 = scalar_select %p165, %s19, 0
      %s167 = smul.addr %s166, 8
      %s168 = smul.addr %s164, 8
      %s169 = sadd.s32 %s167, %s168
      %s170 = smul.addr %s169, 4
      %s171 = scalar_lea.vmem %s0, %s170
      %p172 = pneg %p49
      %p173 = pneg %p46
      %p174 = pneg %p70
      %p175 = pneg %p67
      %p176 = pneg %p91
      %p177 = pneg %p88
      %p178 = pneg %p119
      %p179 = pneg %p116
      %p180 = scmp.lt.s32.totalorder %s18, 1
      %s181 = scalar_select %p180, %s18, 1
      %p182 = scmp.lt.s32.totalorder %s19, 0
      %s183 = scalar_select %p182, %s19, 0
      %s184 = smul.addr %s183, 8
      %s185 = smul.addr %s181, 8
      %s186 = sadd.s32 %s184, %s185
      %s187 = smul.addr %s186, 4
      %s188 = scalar_lea.vmem %s3, %s187
      %p189 = scmp.lt.s32.totalorder %s18, 1
      %s190 = scalar_select %p189, %s18, 1
      %p191 = scmp.lt.s32.totalorder %s19, 0
      %s192 = scalar_select %p191, %s19, 0
      %s193 = smul.addr %s192, 8
      %s194 = smul.addr %s190, 8
      %s195 = sadd.s32 %s193, %s194
      %s196 = smul.addr %s195, 4
      %s197 = scalar_lea.vmem %s0, %s196
      %p198 = scmp.lt.s32.totalorder %s18, 1
      %s199 = scalar_select %p198, %s18, 1
      %p200 = scmp.lt.s32.totalorder %s19, 0
      %s201 = scalar_select %p200, %s19, 0
      %s202 = smul.addr %s201, 8
      %s203 = smul.addr %s199, 8
      %s204 = sadd.s32 %s202, %s203
      %s205 = smul.addr %s204, 4
      %s206 = scalar_lea.vmem %s3, %s205
      %v208 = vld [vmem:[%s197] sm:$0xf]
      %v209 = vld [vmem:[%s197 + $0x8] sm:$0xf]
      %v210 = vld [vmem:[%s197 + $0x10] sm:$0xf]
      %v211 = vld [vmem:[%s197 + $0x18] sm:$0xf]
      %v212 = vld [vmem:[%s197] sm:$0xff]
      %v213 = vld [vmem:[%s197 + $0x8] sm:$0xff]
      %v214 = vld [vmem:[%s197 + $0x10] sm:$0xff]
      %v215 = vld [vmem:[%s197 + $0x18] sm:$0xff]
      %v220 = vunpack.c.l.b16 %v208
      %v221 = vunpack.c.l.b16 %v209
      %v222 = vunpack.c.l.b16 %v210
      %v223 = vunpack.c.l.b16 %v211
      %v224 = vpack.c.b16 %v221, %v220
      %v225 = vpack.c.b16 %v223, %v222
      %v232 = vunpack.c.l.b16 %v212
      %v233 = vunpack.c.h.b16 %v212
      %v234 = vunpack.c.l.b16 %v213
      %v235 = vunpack.c.h.b16 %v213
      %v236 = vunpack.c.l.b16 %v214
      %v237 = vunpack.c.h.b16 %v214
      %v238 = vunpack.c.l.b16 %v215
      %v239 = vunpack.c.h.b16 %v215
      %v240 = vpack.c.b16 %v234, %v232
      %v241 = vpack.c.b16 %v235, %v233
      %v242 = vpack.c.b16 %v238, %v236
      %v243 = vpack.c.b16 %v239, %v237
      %244 = vrot.lane.b32.xlu0 %v240, 127
      %v245 = vpop.permute.xlu0 %244
      %246 = vrot.lane.b32.xlu0 %v241, 127
      %v247 = vpop.permute.xlu0 %246
      %248 = vrot.lane.b32.xlu0 %v242, 127
      %v249 = vpop.permute.xlu0 %248
      %250 = vrot.lane.b32.xlu0 %v243, 127
      %v251 = vpop.permute.xlu0 %250
      %vm252 = vcmask 1039360
      %v253 = vsel %vm252, %v245, %v247
      %v254 = vsel %vm252, %v249, %v251
      %257 = vrot.lane.b32.xlu0 %v240, 126
      %v258 = vpop.permute.xlu0 %257
      %259 = vrot.lane.b32.xlu0 %v241, 126
      %v260 = vpop.permute.xlu0 %259
      %261 = vrot.lane.b32.xlu0 %v242, 126
      %v262 = vpop.permute.xlu0 %261
      %263 = vrot.lane.b32.xlu0 %v243, 126
      %v264 = vpop.permute.xlu0 %263
      %vm265 = vcmask 1031168
      %v266 = vsel %vm265, %v258, %v260
      %v267 = vsel %vm265, %v262, %v264
      %270 = vrot.lane.b32.xlu0 %v240, 112
      %v271 = vpop.permute.xlu0 %270
      %272 = vrot.lane.b32.xlu0 %v241, 112
      %v273 = vpop.permute.xlu0 %272
      %274 = vrot.lane.b32.xlu0 %v242, 112
      %v275 = vpop.permute.xlu0 %274
      %276 = vrot.lane.b32.xlu0 %v243, 112
      %v277 = vpop.permute.xlu0 %276
      %vm278 = vcmask 916480
      %v279 = vsel %vm278, %v271, %v273
      %v280 = vsel %vm278, %v275, %v277
      %283 = vrot.lane.b32.xlu0 %v240, 111
      %v284 = vpop.permute.xlu0 %283
      %285 = vrot.lane.b32.xlu0 %v241, 111
      %v286 = vpop.permute.xlu0 %285
      %287 = vrot.lane.b32.xlu0 %v242, 111
      %v288 = vpop.permute.xlu0 %287
      %289 = vrot.lane.b32.xlu0 %v243, 111
      %v290 = vpop.permute.xlu0 %289
      %vm291 = vcmask 908288
      %v292 = vsel %vm291, %v284, %v286
      %v293 = vsel %vm291, %v288, %v290
      %296 = vrot.lane.b32.xlu0 %v240, 110
      %v297 = vpop.permute.xlu0 %296
      %298 = vrot.lane.b32.xlu0 %v241, 110
      %v299 = vpop.permute.xlu0 %298
      %300 = vrot.lane.b32.xlu0 %v242, 110
      %v301 = vpop.permute.xlu0 %300
      %302 = vrot.lane.b32.xlu0 %v243, 110
      %v303 = vpop.permute.xlu0 %302
      %vm304 = vcmask 900096
      %v305 = vsel %vm304, %v297, %v299
      %v306 = vsel %vm304, %v301, %v303
      %309 = vrot.lane.b32.xlu0 %v240, 96
      %v310 = vpop.permute.xlu0 %309
      %311 = vrot.lane.b32.xlu0 %v241, 96
      %v312 = vpop.permute.xlu0 %311
      %313 = vrot.lane.b32.xlu0 %v242, 96
      %v314 = vpop.permute.xlu0 %313
      %315 = vrot.lane.b32.xlu0 %v243, 96
      %v316 = vpop.permute.xlu0 %315
      %vm317 = vcmask 785408
      %v318 = vsel %vm317, %v310, %v312
      %v319 = vsel %vm317, %v314, %v316
      %322 = vrot.lane.b32.xlu0 %v240, 95
      %v323 = vpop.permute.xlu0 %322
      %324 = vrot.lane.b32.xlu0 %v241, 95
      %v325 = vpop.permute.xlu0 %324
      %326 = vrot.lane.b32.xlu0 %v242, 95
      %v327 = vpop.permute.xlu0 %326
      %328 = vrot.lane.b32.xlu0 %v243, 95
      %v329 = vpop.permute.xlu0 %328
      %vm330 = vcmask 777216
      %v331 = vsel %vm330, %v323, %v325
      %v332 = vsel %vm330, %v327, %v329
      %335 = vrot.lane.b32.xlu0 %v240, 94
      %v336 = vpop.permute.xlu0 %335
      %337 = vrot.lane.b32.xlu0 %v241, 94
      %v338 = vpop.permute.xlu0 %337
      %339 = vrot.lane.b32.xlu0 %v242, 94
      %v340 = vpop.permute.xlu0 %339
      %341 = vrot.lane.b32.xlu0 %v243, 94
      %v342 = vpop.permute.xlu0 %341
      %vm343 = vcmask 769024
      %v344 = vsel %vm343, %v336, %v338
      %v345 = vsel %vm343, %v340, %v342
      %v348 = vld [vmem:[%s1] sm:$0xff]
      %v349 = vld [vmem:[%s1 + $0x8] sm:$0xf]
      %v350 = vld [vmem:[%s1 + $0xc] sm:$0xff]
      %v351 = vld [vmem:[%s1 + $0x14] sm:$0xf]
      %v352 = vld [vmem:[%s1 + $0x18] sm:$0xff]
      %v353 = vld [vmem:[%s1 + $0x20] sm:$0xf]
      %v354 = vld [vmem:[%s1 + $0x24] sm:$0xff]
      %v355 = vld [vmem:[%s1 + $0x2c] sm:$0xf]
      %v356 = vld [vmem:[%s1 + $0x30] sm:$0xff]
      %v357 = vld [vmem:[%s1 + $0x38] sm:$0xf]
      %v358 = vld [vmem:[%s1 + $0x3c] sm:$0xff]
      %v359 = vld [vmem:[%s1 + $0x44] sm:$0xf]
      %v360 = vld [vmem:[%s1 + $0x48] sm:$0xff]
      %v361 = vld [vmem:[%s1 + $0x50] sm:$0xf]
      %v362 = vld [vmem:[%s1 + $0x54] sm:$0xff]
      %v363 = vld [vmem:[%s1 + $0x5c] sm:$0xf]
      %v364 = vld [vmem:[%s2] sm:$0xff]
      %v365 = vld [vmem:[%s2 + $0x8] sm:$0xff]
      %v366 = vld [vmem:[%s2 + $0x10] sm:$0xff]
      %v367 = vld [vmem:[%s2 + $0x18] sm:$0xff]
      %v368 = vld [vmem:[%s2 + $0x20] sm:$0xff]
      %v369 = vld [vmem:[%s2 + $0x28] sm:$0xff]
      %v370 = vld [vmem:[%s2 + $0x30] sm:$0xff]
      %v371 = vld [vmem:[%s2 + $0x38] sm:$0xff]
      %373 = vset.pattern.permute.xlu0 0
      %374 = vperm.xlu0 %373, %v364
      %v375 = vpop.permute.xlu0 %374
      %378 = vset.pattern.permute.xlu0 0
      %379 = vperm.xlu0 %378, %v365
      %v380 = vpop.permute.xlu0 %379
      %383 = vset.pattern.permute.xlu0 0
      %384 = vperm.xlu0 %383, %v366
      %v385 = vpop.permute.xlu0 %384
      %388 = vset.pattern.permute.xlu0 0
      %389 = vperm.xlu0 %388, %v367
      %v390 = vpop.permute.xlu0 %389
      %393 = vset.pattern.permute.xlu0 0
      %394 = vperm.xlu0 %393, %v368
      %v395 = vpop.permute.xlu0 %394
      %398 = vset.pattern.permute.xlu0 0
      %399 = vperm.xlu0 %398, %v369
      %v400 = vpop.permute.xlu0 %399
      %403 = vset.pattern.permute.xlu0 0
      %404 = vperm.xlu0 %403, %v370
      %v405 = vpop.permute.xlu0 %404
      %408 = vset.pattern.permute.xlu0 0
      %409 = vperm.xlu0 %408, %v371
      %v410 = vpop.permute.xlu0 %409
      %v428 = vunpack.c.l.b16 %v348
      %v429 = vunpack.c.h.b16 %v348
      %v430 = vunpack.c.l.b16 %v349
      %v431 = vunpack.c.l.b16 %v350
      %v432 = vunpack.c.h.b16 %v350
      %v433 = vunpack.c.l.b16 %v351
      %v434 = vunpack.c.l.b16 %v352
      %v435 = vunpack.c.h.b16 %v352
      %v436 = vunpack.c.l.b16 %v353
      %v437 = vunpack.c.l.b16 %v354
      %v438 = vunpack.c.h.b16 %v354
      %v439 = vunpack.c.l.b16 %v355
      %v440 = vunpack.c.l.b16 %v356
      %v441 = vunpack.c.h.b16 %v356
      %v442 = vunpack.c.l.b16 %v357
      %v443 = vunpack.c.l.b16 %v358
      %v444 = vunpack.c.h.b16 %v358
      %v445 = vunpack.c.l.b16 %v359
      %v446 = vunpack.c.l.b16 %v360
      %v447 = vunpack.c.h.b16 %v360
      %v448 = vunpack.c.l.b16 %v361
      %v449 = vunpack.c.l.b16 %v362
      %v450 = vunpack.c.h.b16 %v362
      %v451 = vunpack.c.l.b16 %v363
      %v452 = vpack.c.b16 %v431, %v428
      %v453 = vpack.c.b16 %v432, %v429
      %v454 = vpack.c.b16 %v433, %v430
      %v455 = vpack.c.b16 %v437, %v434
      %v456 = vpack.c.b16 %v438, %v435
      %v457 = vpack.c.b16 %v439, %v436
      %v458 = vpack.c.b16 %v443, %v440
      %v459 = vpack.c.b16 %v444, %v441
      %v460 = vpack.c.b16 %v445, %v442
      %v461 = vpack.c.b16 %v449, %v446
      %v462 = vpack.c.b16 %v450, %v447
      %v463 = vpack.c.b16 %v451, %v448
      %vm472 = vcmask 261120
      %v474 = vsel %vm472, %v454, 0
      %v477 = vsel %vm472, %v457, 0
      %v480 = vsel %vm472, %v460, 0
      %v483 = vsel %vm472, %v463, 0
      %485 = vmatprep.subr.bf16.mxu0 0
      %486 = vmatpush1.bf16.msra.mxu0 %v224
      %487 = vmatprep.subr.bf16.mxu0 0
      %488 = vmatpush1.bf16.msra.mxu0 %v225
      %489 = vmatprep.subr.bf16.mxu0 0
      %490 = vmatpush1.bf16.msra.mxu0 %v253
      %491 = vmatprep.subr.bf16.mxu0 0
      %492 = vmatpush1.bf16.msra.mxu0 %v254
      %493 = vmatprep.subr.bf16.mxu0 0
      %494 = vmatpush1.bf16.msra.mxu0 %v266
      %495 = vmatprep.subr.bf16.mxu0 0
      %496 = vmatpush1.bf16.msra.mxu0 %v267
      %497 = vmatprep.subr.bf16.mxu0 0
      %498 = vmatpush1.bf16.msra.mxu0 %v279
      %499 = vmatprep.subr.bf16.mxu0 0
      %500 = vmatpush1.bf16.msra.mxu0 %v280
      %501 = vmatprep.subr.bf16.mxu0 0
      %502 = vmatpush1.bf16.msra.mxu0 %v292
      %503 = vmatprep.subr.bf16.mxu0 0
      %504 = vmatpush1.bf16.msra.mxu0 %v293
      %505 = vmatprep.subr.bf16.mxu0 0
      %506 = vmatpush1.bf16.msra.mxu0 %v305
      %507 = vmatprep.subr.bf16.mxu0 0
      %508 = vmatpush1.bf16.msra.mxu0 %v306
      %509 = vmatprep.subr.bf16.mxu0 0
      %510 = vmatpush1.bf16.msra.mxu0 %v318
      %511 = vmatprep.subr.bf16.mxu0 0
      %512 = vmatpush1.bf16.msra.mxu0 %v319
      %513 = vmatprep.subr.bf16.mxu0 0
      %514 = vmatpush1.bf16.msra.mxu0 %v331
      %515 = vmatprep.subr.bf16.mxu0 0
      %516 = vmatpush1.bf16.msra.mxu0 %v332
      %517 = vmatprep.mubr.bf16.mxu0 %v453
      %518 = vmatmul.mubr.bf16.gmra.mrb[0].mxu0 %v452
      %v519 = vpop.f32.mrb[0].mxu0
      %v520 = vadd.f32 %v375, %v519
      %v521 = vpop.f32.mrb[0].mxu0
      %v522 = vpop.f32.mrb[0].mxu0
      %v523 = vadd.f32 %v380, %v522
      %v524 = vpop.f32.mrb[0].mxu0
      %525 = vmatprep.mubr.bf16.mxu0 %v456
      %526 = vmatmul.mubr.bf16.gmra.mrb[0].mxu0 %v455
      %v527 = vpop.f32.mrb[0].mxu0
      %v528 = vadd.f32 %v385, %v527
      %v529 = vpop.f32.mrb[0].mxu0
      %v530 = vpop.f32.mrb[0].mxu0
      %v531 = vadd.f32 %v390, %v530
      %v532 = vpop.f32.mrb[0].mxu0
      %533 = vmatprep.mubr.bf16.mxu0 %v459
      %534 = vmatmul.mubr.bf16.gmra.mrb[0].mxu0 %v458
      %v535 = vpop.f32.mrb[0].mxu0
      %v536 = vadd.f32 %v395, %v535
      %v537 = vpop.f32.mrb[0].mxu0
      %v538 = vpop.f32.mrb[0].mxu0
      %v539 = vadd.f32 %v400, %v538
      %v540 = vpop.f32.mrb[0].mxu0
      %541 = vmatprep.mubr.bf16.mxu0 %v462
      %542 = vmatmul.mubr.bf16.gmra.mrb[0].mxu0 %v461
      %v543 = vpop.f32.mrb[0].mxu0
      %v544 = vadd.f32 %v405, %v543
      %v545 = vpop.f32.mrb[0].mxu0
      %v546 = vpop.f32.mrb[0].mxu0
      %v547 = vadd.f32 %v410, %v546
      %v548 = vpop.f32.mrb[0].mxu0
      %549 = vdwg.mxu0
      %550 = vmatprep.subr.bf16.mxu0 0
      %551 = vmatpush1.bf16.msra.mxu0 %v344
      %552 = vmatprep.subr.bf16.mxu0 0
      %553 = vmatpush1.bf16.msra.mxu0 %v345
      %554 = vmatprep.subr.bf16.mxu0 0
      %555 = vmatpush1.bf16.msra.mxu0 0
      %556 = vmatprep.subr.bf16.mxu0 0
      %557 = vmatpush1.bf16.msra.mxu0 0
      %558 = vmatprep.subr.bf16.mxu0 0
      %559 = vmatpush1.bf16.msra.mxu0 0
      %560 = vmatprep.subr.bf16.mxu0 0
      %561 = vmatpush1.bf16.msra.mxu0 0
      %562 = vmatprep.subr.bf16.mxu0 0
      %563 = vmatpush1.bf16.msra.mxu0 0
      %564 = vmatprep.subr.bf16.mxu0 0
      %565 = vmatpush1.bf16.msra.mxu0 0
      %566 = vmatprep.subr.bf16.mxu0 0
      %567 = vmatpush1.bf16.msra.mxu0 0
      %568 = vmatprep.subr.bf16.mxu0 0
      %569 = vmatpush1.bf16.msra.mxu0 0
      %570 = vmatprep.subr.bf16.mxu0 0
      %571 = vmatpush1.bf16.msra.mxu0 0
      %572 = vmatprep.subr.bf16.mxu0 0
      %573 = vmatpush1.bf16.msra.mxu0 0
      %574 = vmatprep.subr.bf16.mxu0 0
      %575 = vmatpush1.bf16.msra.mxu0 0
      %576 = vmatprep.subr.bf16.mxu0 0
      %577 = vmatpush1.bf16.msra.mxu0 0
      %578 = vmatprep.subr.bf16.mxu0 0
      %579 = vmatpush1.bf16.msra.mxu0 0
      %580 = vmatprep.subr.bf16.mxu0 0
      %581 = vmatpush1.bf16.msra.mxu0 0
      %582 = vmatprep.mubr.bf16.mxu0 0
      %583 = vmatmul.mubr.bf16.gmra.mrb[0].mxu0 %v474
      %v584 = vpop.f32.mrb[0].mxu0
      %v585 = vadd.f32 %v520, %v584
      %v586 = vpop.f32.mrb[0].mxu0
      %v587 = vpop.f32.mrb[0].mxu0
      %v588 = vadd.f32 %v523, %v587
      %v589 = vpop.f32.mrb[0].mxu0
      %590 = vmatprep.mubr.bf16.mxu0 0
      %591 = vmatmul.mubr.bf16.gmra.mrb[0].mxu0 %v477
      %v592 = vpop.f32.mrb[0].mxu0
      %v593 = vadd.f32 %v528, %v592
      %v594 = vpop.f32.mrb[0].mxu0
      %v595 = vpop.f32.mrb[0].mxu0
      %v596 = vadd.f32 %v531, %v595
      %v597 = vpop.f32.mrb[0].mxu0
      %598 = vmatprep.mubr.bf16.mxu0 0
      %599 = vmatmul.mubr.bf16.gmra.mrb[0].mxu0 %v480
      %v600 = vpop.f32.mrb[0].mxu0
      %v601 = vadd.f32 %v536, %v600
      %v602 = vpop.f32.mrb[0].mxu0
      %v603 = vpop.f32.mrb[0].mxu0
      %v604 = vadd.f32 %v539, %v603
      %v605 = vpop.f32.mrb[0].mxu0
      %606 = vmatprep.mubr.bf16.mxu0 0
      %607 = vmatmul.mubr.bf16.gmra.mrb[0].mxu0 %v483
      %v608 = vpop.f32.mrb[0].mxu0
      %v609 = vadd.f32 %v544, %v608
      %v610 = vpop.f32.mrb[0].mxu0
      %v611 = vpop.f32.mrb[0].mxu0
      %v612 = vadd.f32 %v547, %v611
      %v613 = vpop.f32.mrb[0].mxu0
      %614 = vdwg.mxu0
      %v615 = vmax.f32 %v585, 0.0
      %v616 = vmax.f32 %v588, 0.0
      %v617 = vmax.f32 %v593, 0.0
      %v618 = vmax.f32 %v596, 0.0
      %v619 = vmax.f32 %v601, 0.0
      %v620 = vmax.f32 %v604, 0.0
      %v621 = vmax.f32 %v609, 0.0
      %v622 = vmax.f32 %v612, 0.0
      %v623 = vpack.c.bf16 %v616, %v615
      %v624 = vpack.c.bf16 %v618, %v617
      %v625 = vpack.c.bf16 %v620, %v619
      %v626 = vpack.c.bf16 %v622, %v621
      %v631 = vunpack.c.l.b16 %v623
      %v632 = vunpack.c.h.b16 %v623
      %v633 = vunpack.c.l.b16 %v624
      %v634 = vunpack.c.h.b16 %v624
      %v635 = vunpack.c.l.b16 %v625
      %v636 = vunpack.c.h.b16 %v625
      %v637 = vunpack.c.l.b16 %v626
      %v638 = vunpack.c.h.b16 %v626
      %v639 = vpack.c.b16 %v631, %v631
      %v640 = vpack.c.b16 %v632, %v632
      %v641 = vpack.c.b16 %v633, %v633
      %v642 = vpack.c.b16 %v634, %v634
      %v643 = vpack.c.b16 %v635, %v635
      %v644 = vpack.c.b16 %v636, %v636
      %v645 = vpack.c.b16 %v637, %v637
      %v646 = vpack.c.b16 %v638, %v638
      %655 = vst [vmem:[%s206] sm:$0xf] %v639
      %656 = vst [vmem:[%s206 + $0x4] sm:$0xf] %v640
      %657 = vst [vmem:[%s206 + $0x8] sm:$0xf] %v641
      %658 = vst [vmem:[%s206 + $0xc] sm:$0xf] %v642
      %659 = vst [vmem:[%s206 + $0x10] sm:$0xf] %v643
      %660 = vst [vmem:[%s206 + $0x14] sm:$0xf] %v644
      %661 = vst [vmem:[%s206 + $0x18] sm:$0xf] %v645
      %662 = vst [vmem:[%s206 + $0x1c] sm:$0xf] %v646
      %p663 = scmp.lt.s32.totalorder %s18, 1
      %s664 = scalar_select %p663, %s18, 1
      %p665 = scmp.lt.s32.totalorder %s19, 0
      %s666 = scalar_select %p665, %s19, 0
      %s667 = smul.addr %s666, 8
      %s668 = smul.addr %s664, 8
      %s669 = sadd.s32 %s667, %s668
      %s670 = smul.addr %s669, 4
      %s671 = scalar_lea.vmem %s3, %s670
      // Predicated region
      $region33: #{_lambda_.12} parent=31 // pred_check
        %p672 = pneg %p116
      $region34: #{_lambda_.12} parent=31 // pred_check_branch
        %674 = sbr.rel (%p672) target = $region36
      $region35: #{_lambda_.12} parent=31 // pred_region
        _
      $region36: #{_lambda_.12} parent=31 // pred_fallthru
        _
    $region32: #{_lambda_.12} parent=5 // pred_fallthru
      _
    %p675 = scmp.le.s32.totalorder 2, %s9
    // Predicated region
    $region37: #{_lambda_.12} parent=5 // pred_check
      %p676 = pneg %p675
    $region38: #{_lambda_.12} parent=5 // pred_check_branch
      %678 = sbr.rel (%p676) target = $region40
    $region39: #{_lambda_.12} parent=5 // pred_region
      %s679 = ssub.s32 %s9, 2
      // Predicated region
      $region41: #{_lambda_.12} parent=39 // pred_check
        %p680 = pneg %p122
      $region42: #{_lambda_.12} parent=39 // pred_check_branch
        %682 = sbr.rel (%p680) target = $region44
      $region43: #{_lambda_.12} parent=39 // pred_region
        %p683 = scmp.lt.s32.totalorder %s20, 1
        %s684 = scalar_select %p683, %s20, 1
        %p685 = scmp.lt.s32.totalorder %s21, 0
        %s686 = scalar_select %p685, %s21, 0
        %s687 = smul.addr %s686, 8
        %s688 = smul.addr %s684, 8
        %s689 = sadd.s32 %s687, %s688
        %s690 = smul.addr %s689, 4
        %s691 = scalar_lea.vmem %s3, %s690
      $region44: #{_lambda_.12} parent=39 // pred_fallthru
        _
    $region40: #{_lambda_.12} parent=5 // pred_fallthru
      _
  $region6: #{_lambda_.12} parent=0 // loop_footer
    %s13 = sadd.s32 1, %s9
  $region7: #{_lambda_.12} parent=0 // loop_footer_branch
    %8 = sbr.rel target = $region3
  $region8: #{_lambda_.12} parent=0 // loop_exit
    _

// kernel: _lambda_.13
$region0: #{_lambda_.13}
  #allocation0 [shape = 'u32[]', space=smem, size = 0x4, offset = 0x4, fixed_abs, tag = 'smem constant byte address 0x4 - core index']
  #allocation1 [shape = 'u32[144,128]{1,0:T(1,128)}', space=vmem, size = 0x12000, scoped, tag = 'internal scratch']
  %s0 = inlined_call_operand.vmem [shape: bf16[2,1,64,456], index: 0, kind: input, shape index: {}]
  %s1 = inlined_call_operand.vmem [shape: bf16[8,576], index: 1, kind: input, shape index: {}]
  %s2 = inlined_call_operand.vmem [shape: f32[8,1], index: 2, kind: input, shape index: {}]
  %s3 = inlined_call_operand.vmem [shape: f32[2,1,8,384], index: 3, kind: output, shape index: {}]
  %s4 = sld [smem:[#allocation0]]
  $region45: #{_lambda_.13} parent=0
    _
  %s6 = ssub.s32 1, %s4
  %s7 = scalar_select 0, %s6, %s4
  loop: start=0, step=1, limit=4
  $region2: #{_lambda_.13} parent=0 // loop_pre_header
    _
  $region3: #{_lambda_.13} parent=0 // loop_header
    %s9 = sphi 0, %s13
    %p10 = scmp.ge.s32.totalorder %s9, 4
    %s16 = sphi 0, %s28
    %s17 = sphi 0, %s24
    %s18 = sphi 0, %s16
    %s19 = sphi 0, %s17
    %s20 = sphi 0, %s18
    %s21 = sphi 0, %s19
    %s33 = sphi 0, %s35
    %s36 = sphi 0, %s33
    %s37 = sphi 0, %s36
    %s53 = sphi 0, %s37
    %s57 = sphi 0, %s57
    %s59 = sphi 0, %s57
    %s60 = sphi 0, %s59
    %s74 = sphi 0, %s60
    %s78 = sphi 0, %s78
    %s80 = sphi 0, %s78
    %s81 = sphi 0, %s80
    %s95 = sphi 0, %s81
    %s103 = sphi 0, %s105
    %s106 = sphi 0, %s103
    %s107 = sphi 0, %s106
    %s123 = sphi 0, %s107
  $region4: #{_lambda_.13} parent=0 // loop_header_branch
    %12 = sbr.rel (%p10) target = $region8
  $region5: #{_lambda_.13} parent=0 // loop_body
    %s14 = ssub.s32 %s9, 1
    %s15 = ssub.s32 %s9, 2
    %s22 = sadd.s32 1, %s17
    %p23 = scmp.ge.s32.totalorder %s22, 1
    %s24 = scalar_select %p23, 0, %s22
    %s25 = sadd.s32 1, %s16
    %s26 = scalar_select %p23, %s25, %s16
    %p27 = scmp.ge.s32.totalorder %s26, 2
    %s28 = scalar_select %p27, 0, %s26
    %s29 = ssub.s32 %s16, %s28
    %s30 = ssub.s32 %s17, %s24
    %s31 = sor.u32 %s29, %s30
    %p32 = scmp.eq.s32.totalorder %s31, 0
    %s34 = sadd.s32 %s33, 1
    %s35 = scalar_select %p32, %s33, %s34
    %p38 = pneg %p32
    %p39 = scmp.eq.s32.totalorder %s9, 1
    %p40 = por %p38, %p39
    %p41 = scmp.ne.s32.totalorder %s33, %s36
    %p42 = scmp.eq.s32.totalorder %s9, 0
    %p43 = por %p41, %p42
    %p44 = scmp.ne.s32.totalorder %s33, %s36
    %p45 = scmp.eq.s32.totalorder %s14, 1
    %p46 = por %p44, %p45
    %p47 = scmp.ne.s32.totalorder %s36, %s37
    %p48 = scmp.eq.s32.totalorder %s14, 0
    %p49 = por %p47, %p48
    %p50 = scmp.ne.s32.totalorder %s36, %s37
    %p51 = scmp.eq.s32.totalorder %s15, 1
    %p52 = por %p50, %p51
    %p54 = scmp.ne.s32.totalorder %s37, %s53
    %p55 = scmp.eq.s32.totalorder %s15, 0
    %p56 = por %p54, %p55
    %s58 = sadd.s32 %s57, 1
    %p61 = scmp.eq.s32.totalorder %s9, 1
    %p62 = scmp.ne.s32.totalorder %s57, %s59
    %p63 = scmp.eq.s32.totalorder %s9, 0
    %p64 = por %p62, %p63
    %p65 = scmp.ne.s32.totalorder %s57, %s59
    %p66 = scmp.eq.s32.totalorder %s14, 1
    %p67 = por %p65, %p66
    %p68 = scmp.ne.s32.totalorder %s59, %s60
    %p69 = scmp.eq.s32.totalorder %s14, 0
    %p70 = por %p68, %p69
    %p71 = scmp.ne.s32.totalorder %s59, %s60
    %p72 = scmp.eq.s32.totalorder %s15, 1
    %p73 = por %p71, %p72
    %p75 = scmp.ne.s32.totalorder %s60, %s74
    %p76 = scmp.eq.s32.totalorder %s15, 0
    %p77 = por %p75, %p76
    %s79 = sadd.s32 %s78, 1
    %p82 = scmp.eq.s32.totalorder %s9, 1
    %p83 = scmp.ne.s32.totalorder %s78, %s80
    %p84 = scmp.eq.s32.totalorder %s9, 0
    %p85 = por %p83, %p84
    %p86 = scmp.ne.s32.totalorder %s78, %s80
    %p87 = scmp.eq.s32.totalorder %s14, 1
    %p88 = por %p86, %p87
    %p89 = scmp.ne.s32.totalorder %s80, %s81
    %p90 = scmp.eq.s32.totalorder %s14, 0
    %p91 = por %p89, %p90
    %p92 = scmp.ne.s32.totalorder %s80, %s81
    %p93 = scmp.eq.s32.totalorder %s15, 1
    %p94 = por %p92, %p93
    %p96 = scmp.ne.s32.totalorder %s81, %s95
    %p97 = scmp.eq.s32.totalorder %s15, 0
    %p98 = por %p96, %p97
    %s99 = ssub.s32 %s16, %s28
    %s100 = ssub.s32 %s17, %s24
    %s101 = sor.u32 %s99, %s100
    %p102 = scmp.eq.s32.totalorder %s101, 0
    %s104 = sadd.s32 %s103, 1
    %s105 = scalar_select %p102, %s103, %s104
    %p108 = pneg %p102
    %p109 = scmp.eq.s32.totalorder %s9, 1
    %p110 = por %p108, %p109
    %p111 = scmp.ne.s32.totalorder %s103, %s106
    %p112 = scmp.eq.s32.totalorder %s9, 0
    %p113 = por %p111, %p112
    %p114 = scmp.ne.s32.totalorder %s103, %s106
    %p115 = scmp.eq.s32.totalorder %s14, 1
    %p116 = por %p114, %p115
    %p117 = scmp.ne.s32.totalorder %s106, %s107
    %p118 = scmp.eq.s32.totalorder %s14, 0
    %p119 = por %p117, %p118
    %p120 = scmp.ne.s32.totalorder %s106, %s107
    %p121 = scmp.eq.s32.totalorder %s15, 1
    %p122 = por %p120, %p121
    %p124 = scmp.ne.s32.totalorder %s107, %s123
    %p125 = scmp.eq.s32.totalorder %s15, 0
    %p126 = por %p124, %p125
    %p127 = scmp.le.s32.totalorder 1, %s9
    %p128 = scmp.lt.s32.totalorder %s9, 3
    %p129 = pnand %p127, %p128
    %p130 = pneg %p129
    // Predicated region
    $region9: #{_lambda_.13} parent=5 // pred_check
      _
    $region10: #{_lambda_.13} parent=5 // pred_check_branch
      %132 = sbr.rel (%p129) target = $region12
    $region11: #{_lambda_.13} parent=5 // pred_region
      %s133 = ssub.s32 %s9, 1
      // Predicated region
      $region13: #{_lambda_.13} parent=11 // pred_check
        %p134 = pneg %p70
      $region14: #{_lambda_.13} parent=11 // pred_check_branch
        %136 = sbr.rel (%p134) target = $region16
      $region15: #{_lambda_.13} parent=11 // pred_region
        _
      $region16: #{_lambda_.13} parent=11 // pred_fallthru
        _
      // Predicated region
      $region17: #{_lambda_.13} parent=11 // pred_check
        %p137 = pneg %p91
      $region18: #{_lambda_.13} parent=11 // pred_check_branch
        %139 = sbr.rel (%p137) target = $region20
      $region19: #{_lambda_.13} parent=11 // pred_region
        _
      $region20: #{_lambda_.13} parent=11 // pred_fallthru
        _
    $region12: #{_lambda_.13} parent=5 // pred_fallthru
      _
    %p140 = scmp.lt.s32.totalorder %s9, 2
    // Predicated region
    $region21: #{_lambda_.13} parent=5 // pred_check
      %p141 = pneg %p140
    $region22: #{_lambda_.13} parent=5 // pred_check_branch
      %143 = sbr.rel (%p141) target = $region24
    $region23: #{_lambda_.13} parent=5 // pred_region
      // Predicated region
      $region25: #{_lambda_.13} parent=23 // pred_check
        %p144 = pneg %p43
      $region26: #{_lambda_.13} parent=23 // pred_check_branch
        %146 = sbr.rel (%p144) target = $region28
      $region27: #{_lambda_.13} parent=23 // pred_region
        %p147 = scmp.lt.s32.totalorder %s16, 1
        %s148 = scalar_select %p147, %s16, 1
        %p149 = scmp.lt.s32.totalorder %s17, 0
        %s150 = scalar_select %p149, %s17, 0
        %s151 = smul.addr %s150, 32
        %s152 = smul.addr %s148, 32
        %s153 = sadd.s32 %s151, %s152
        %s154 = smul.addr %s153, 4
        %s155 = scalar_lea.vmem %s0, %s154
      $region28: #{_lambda_.13} parent=23 // pred_fallthru
        _
    $region24: #{_lambda_.13} parent=5 // pred_fallthru
      _
    %p156 = scmp.le.s32.totalorder 1, %s9
    %p157 = scmp.lt.s32.totalorder %s9, 3
    %p158 = pnand %p156, %p157
    %p159 = pneg %p158
    // Predicated region
    $region29: #{_lambda_.13} parent=5 // pred_check
      _
    $region30: #{_lambda_.13} parent=5 // pred_check_branch
      %161 = sbr.rel (%p158) target = $region32
    $region31: #{_lambda_.13} parent=5 // pred_region
      %s162 = ssub.s32 %s9, 1
      %p163 = scmp.lt.s32.totalorder %s18, 1
      %s164 = scalar_select %p163, %s18, 1
      %p165 = scmp.lt.s32.totalorder %s19, 0
      %s166 = scalar_select %p165, %s19, 0
      %s167 = smul.addr %s166, 32
      %s168 = smul.addr %s164, 32
      %s169 = sadd.s32 %s167, %s168
      %s170 = smul.addr %s169, 4
      %s171 = scalar_lea.vmem %s0, %s170
      %p172 = pneg %p49
      %p173 = pneg %p46
      %p174 = pneg %p70
      %p175 = pneg %p67
      %p176 = pneg %p91
      %p177 = pneg %p88
      %p178 = pneg %p119
      %p179 = pneg %p116
      %p180 = scmp.lt.s32.totalorder %s18, 1
      %s181 = scalar_select %p180, %s18, 1
      %p182 = scmp.lt.s32.totalorder %s19, 0
      %s183 = scalar_select %p182, %s19, 0
      %s184 = smul.addr %s183, 3
      %s185 = smul.addr %s181, 3
      %s186 = sadd.s32 %s184, %s185
      %s187 = smul.addr %s186, 8
      %s188 = scalar_lea.vmem %s3, %s187
      %p189 = scmp.lt.s32.totalorder %s18, 1
      %s190 = scalar_select %p189, %s18, 1
      %p191 = scmp.lt.s32.totalorder %s19, 0
      %s192 = scalar_select %p191, %s19, 0
      %s193 = smul.addr %s192, 32
      %s194 = smul.addr %s190, 32
      %s195 = sadd.s32 %s193, %s194
      %s196 = smul.addr %s195, 4
      %s197 = scalar_lea.vmem %s0, %s196
      %p198 = scmp.lt.s32.totalorder %s18, 1
      %s199 = scalar_select %p198, %s18, 1
      %p200 = scmp.lt.s32.totalorder %s19, 0
      %s201 = scalar_select %p200, %s19, 0
      %s202 = smul.addr %s201, 3
      %s203 = smul.addr %s199, 3
      %s204 = sadd.s32 %s202, %s203
      %s205 = smul.addr %s204, 8
      %s206 = scalar_lea.vmem %s3, %s205
      %v208 = vld [vmem:[%s197] sm:$0xff]
      %v209 = vld [vmem:[%s197 + $0x8] sm:$0xf]
      %v210 = vld [vmem:[%s197 + $0x10] sm:$0xff]
      %v211 = vld [vmem:[%s197 + $0x18] sm:$0xf]
      %v212 = vld [vmem:[%s197 + $0x20] sm:$0xff]
      %v213 = vld [vmem:[%s197 + $0x28] sm:$0xf]
      %v214 = vld [vmem:[%s197 + $0x30] sm:$0xff]
      %v215 = vld [vmem:[%s197 + $0x38] sm:$0xf]
      %v216 = vld [vmem:[%s197 + $0x40] sm:$0xff]
      %v217 = vld [vmem:[%s197 + $0x48] sm:$0xf]
      %v218 = vld [vmem:[%s197 + $0x50] sm:$0xff]
      %v219 = vld [vmem:[%s197 + $0x58] sm:$0xf]
      %v220 = vld [vmem:[%s197 + $0x60] sm:$0xff]
      %v221 = vld [vmem:[%s197 + $0x68] sm:$0xf]
      %v222 = vld [vmem:[%s197 + $0x70] sm:$0xff]
      %v223 = vld [vmem:[%s197 + $0x78] sm:$0xf]
      %v224 = vld [vmem:[%s197 + $0x8] sm:$0xff]
      %v225 = vld [vmem:[%s197 + $0x18] sm:$0xff]
      %v226 = vld [vmem:[%s197 + $0x28] sm:$0xff]
      %v227 = vld [vmem:[%s197 + $0x38] sm:$0xff]
      %v228 = vld [vmem:[%s197 + $0x48] sm:$0xff]
      %v229 = vld [vmem:[%s197 + $0x58] sm:$0xff]
      %v230 = vld [vmem:[%s197 + $0x68] sm:$0xff]
      %v231 = vld [vmem:[%s197 + $0x78] sm:$0xff]
      %v248 = vunpack.c.l.b16 %v208
      %v249 = vunpack.c.h.b16 %v208
      %v250 = vunpack.c.l.b16 %v209
      %v251 = vunpack.c.l.b16 %v210
      %v252 = vunpack.c.h.b16 %v210
      %v253 = vunpack.c.l.b16 %v211
      %v254 = vunpack.c.l.b16 %v212
      %v255 = vunpack.c.h.b16 %v212
      %v256 = vunpack.c.l.b16 %v213
      %v257 = vunpack.c.l.b16 %v214
      %v258 = vunpack.c.h.b16 %v214
      %v259 = vunpack.c.l.b16 %v215
      %v260 = vunpack.c.l.b16 %v216
      %v261 = vunpack.c.h.b16 %v216
      %v262 = vunpack.c.l.b16 %v217
      %v263 = vunpack.c.l.b16 %v218
      %v264 = vunpack.c.h.b16 %v218
      %v265 = vunpack.c.l.b16 %v219
      %v266 = vunpack.c.l.b16 %v220
      %v267 = vunpack.c.h.b16 %v220
      %v268 = vunpack.c.l.b16 %v221
      %v269 = vunpack.c.l.b16 %v222
      %v270 = vunpack.c.h.b16 %v222
      %v271 = vunpack.c.l.b16 %v223
      %v272 = vpack.c.b16 %v251, %v248
      %v273 = vpack.c.b16 %v252, %v249
      %v274 = vpack.c.b16 %v253, %v250
      %v275 = vpack.c.b16 %v257, %v254
      %v276 = vpack.c.b16 %v258, %v255
      %v277 = vpack.c.b16 %v259, %v256
      %v278 = vpack.c.b16 %v263, %v260
      %v279 = vpack.c.b16 %v264, %v261
      %v280 = vpack.c.b16 %v265, %v262
      %v281 = vpack.c.b16 %v269, %v266
      %v282 = vpack.c.b16 %v270, %v267
      %v283 = vpack.c.b16 %v271, %v268
      %v304 = vunpack.c.l.b16 %v224
      %v305 = vunpack.c.h.b16 %v224
      %v306 = vunpack.c.l.b16 %v225
      %v307 = vunpack.c.h.b16 %v225
      %v308 = vunpack.c.l.b16 %v226
      %v309 = vunpack.c.h.b16 %v226
      %v310 = vunpack.c.l.b16 %v227
      %v311 = vunpack.c.h.b16 %v227
      %v312 = vunpack.c.l.b16 %v228
      %v313 = vunpack.c.h.b16 %v228
      %v314 = vunpack.c.l.b16 %v229
      %v315 = vunpack.c.h.b16 %v229
      %v316 = vunpack.c.l.b16 %v230
      %v317 = vunpack.c.h.b16 %v230
      %v318 = vunpack.c.l.b16 %v231
      %v319 = vunpack.c.h.b16 %v231
      %v320 = vpack.c.b16 %v306, %v304
      %v321 = vpack.c.b16 %v307, %v305
      %v322 = vpack.c.b16 %v310, %v308
      %v323 = vpack.c.b16 %v311, %v309
      %v324 = vpack.c.b16 %v314, %v312
      %v325 = vpack.c.b16 %v315, %v313
      %v326 = vpack.c.b16 %v318, %v316
      %v327 = vpack.c.b16 %v319, %v317
      %328 = vrot.lane.b32.xlu0 %v272, 127
      %v329 = vpop.permute.xlu0 %328
      %330 = vrot.lane.b32.xlu0 %v273, 127
      %v331 = vpop.permute.xlu0 %330
      %332 = vrot.lane.b32.xlu0 %v320, 127
      %v333 = vpop.permute.xlu0 %332
      %334 = vrot.lane.b32.xlu0 %v321, 127
      %v335 = vpop.permute.xlu0 %334
      %336 = vrot.lane.b32.xlu0 %v275, 127
      %v337 = vpop.permute.xlu0 %336
      %338 = vrot.lane.b32.xlu0 %v276, 127
      %v339 = vpop.permute.xlu0 %338
      %340 = vrot.lane.b32.xlu0 %v322, 127
      %v341 = vpop.permute.xlu0 %340
      %342 = vrot.lane.b32.xlu0 %v323, 127
      %v343 = vpop.permute.xlu0 %342
      %344 = vrot.lane.b32.xlu0 %v278, 127
      %v345 = vpop.permute.xlu0 %344
      %346 = vrot.lane.b32.xlu0 %v279, 127
      %v347 = vpop.permute.xlu0 %346
      %348 = vrot.lane.b32.xlu0 %v324, 127
      %v349 = vpop.permute.xlu0 %348
      %350 = vrot.lane.b32.xlu0 %v325, 127
      %v351 = vpop.permute.xlu0 %350
      %352 = vrot.lane.b32.xlu0 %v281, 127
      %v353 = vpop.permute.xlu0 %352
      %354 = vrot.lane.b32.xlu0 %v282, 127
      %v355 = vpop.permute.xlu0 %354
      %356 = vrot.lane.b32.xlu0 %v326, 127
      %v357 = vpop.permute.xlu0 %356
      %358 = vrot.lane.b32.xlu0 %v327, 127
      %v359 = vpop.permute.xlu0 %358
      %vm360 = vcmask 1039360
      %v361 = vsel %vm360, %v329, %v331
      %v362 = vsel %vm360, %v331, %v333
      %v363 = vsel %vm360, %v333, %v335
      %v364 = vsel %vm360, %v337, %v339
      %v365 = vsel %vm360, %v339, %v341
      %v366 = vsel %vm360, %v341, %v343
      %v367 = vsel %vm360, %v345, %v347
      %v368 = vsel %vm360, %v347, %v349
      %v369 = vsel %vm360, %v349, %v351
      %v370 = vsel %vm360, %v353, %v355
      %v371 = vsel %vm360, %v355, %v357
      %v372 = vsel %vm360, %v357, %v359
      %385 = vrot.lane.b32.xlu0 %v272, 126
      %v386 = vpop.permute.xlu0 %385
      %387 = vrot.lane.b32.xlu0 %v273, 126
      %v388 = vpop.permute.xlu0 %387
      %389 = vrot.lane.b32.xlu0 %v320, 126
      %v390 = vpop.permute.xlu0 %389
      %391 = vrot.lane.b32.xlu0 %v321, 126
      %v392 = vpop.permute.xlu0 %391
      %393 = vrot.lane.b32.xlu0 %v275, 126
      %v394 = vpop.permute.xlu0 %393
      %395 = vrot.lane.b32.xlu0 %v276, 126
      %v396 = vpop.permute.xlu0 %395
      %397 = vrot.lane.b32.xlu0 %v322, 126
      %v398 = vpop.permute.xlu0 %397
      %399 = vrot.lane.b32.xlu0 %v323, 126
      %v400 = vpop.permute.xlu0 %399
      %401 = vrot.lane.b32.xlu0 %v278, 126
      %v402 = vpop.permute.xlu0 %401
      %403 = vrot.lane.b32.xlu0 %v279, 126
      %v404 = vpop.permute.xlu0 %403
      %405 = vrot.lane.b32.xlu0 %v324, 126
      %v406 = vpop.permute.xlu0 %405
      %407 = vrot.lane.b32.xlu0 %v325, 126
      %v408 = vpop.permute.xlu0 %407
      %409 = vrot.lane.b32.xlu0 %v281, 126
      %v410 = vpop.permute.xlu0 %409
      %411 = vrot.lane.b32.xlu0 %v282, 126
      %v412 = vpop.permute.xlu0 %411
      %413 = vrot.lane.b32.xlu0 %v326, 126
      %v414 = vpop.permute.xlu0 %413
      %415 = vrot.lane.b32.xlu0 %v327, 126
      %v416 = vpop.permute.xlu0 %415
      %vm417 = vcmask 1031168
      %v418 = vsel %vm417, %v386, %v388
      %v419 = vsel %vm417, %v388, %v390
      %v420 = vsel %vm417, %v390, %v392
      %v421 = vsel %vm417, %v394, %v396
      %v422 = vsel %vm417, %v396, %v398
      %v423 = vsel %vm417, %v398, %v400
      %v424 = vsel %vm417, %v402, %v404
      %v425 = vsel %vm417, %v404, %v406
      %v426 = vsel %vm417, %v406, %v408
      %v427 = vsel %vm417, %v410, %v412
      %v428 = vsel %vm417, %v412, %v414
      %v429 = vsel %vm417, %v414, %v416
      %442 = vrot.lane.b32.xlu0 %v272, 104
      %v443 = vpop.permute.xlu0 %442
      %444 = vrot.lane.b32.xlu0 %v273, 104
      %v445 = vpop.permute.xlu0 %444
      %446 = vrot.lane.b32.xlu0 %v320, 104
      %v447 = vpop.permute.xlu0 %446
      %448 = vrot.lane.b32.xlu0 %v321, 104
      %v449 = vpop.permute.xlu0 %448
      %450 = vrot.lane.b32.xlu0 %v275, 104
      %v451 = vpop.permute.xlu0 %450
      %452 = vrot.lane.b32.xlu0 %v276, 104
      %v453 = vpop.permute.xlu0 %452
      %454 = vrot.lane.b32.xlu0 %v322, 104
      %v455 = vpop.permute.xlu0 %454
      %456 = vrot.lane.b32.xlu0 %v323, 104
      %v457 = vpop.permute.xlu0 %456
      %458 = vrot.lane.b32.xlu0 %v278, 104
      %v459 = vpop.permute.xlu0 %458
      %460 = vrot.lane.b32.xlu0 %v279, 104
      %v461 = vpop.permute.xlu0 %460
      %462 = vrot.lane.b32.xlu0 %v324, 104
      %v463 = vpop.permute.xlu0 %462
      %464 = vrot.lane.b32.xlu0 %v325, 104
      %v465 = vpop.permute.xlu0 %464
      %466 = vrot.lane.b32.xlu0 %v281, 104
      %v467 = vpop.permute.xlu0 %466
      %468 = vrot.lane.b32.xlu0 %v282, 104
      %v469 = vpop.permute.xlu0 %468
      %470 = vrot.lane.b32.xlu0 %v326, 104
      %v471 = vpop.permute.xlu0 %470
      %472 = vrot.lane.b32.xlu0 %v327, 104
      %v473 = vpop.permute.xlu0 %472
      %vm474 = vcmask 850944
      %v475 = vsel %vm474, %v443, %v445
      %v476 = vsel %vm474, %v445, %v447
      %v477 = vsel %vm474, %v447, %v449
      %v478 = vsel %vm474, %v451, %v453
      %v479 = vsel %vm474, %v453, %v455
      %v480 = vsel %vm474, %v455, %v457
      %v481 = vsel %vm474, %v459, %v461
      %v482 = vsel %vm474, %v461, %v463
      %v483 = vsel %vm474, %v463, %v465
      %v484 = vsel %vm474, %v467, %v469
      %v485 = vsel %vm474, %v469, %v471
      %v486 = vsel %vm474, %v471, %v473
      %499 = vrot.lane.b32.xlu0 %v272, 103
      %v500 = vpop.permute.xlu0 %499
      %501 = vrot.lane.b32.xlu0 %v273, 103
      %v502 = vpop.permute.xlu0 %501
      %503 = vrot.lane.b32.xlu0 %v320, 103
      %v504 = vpop.permute.xlu0 %503
      %505 = vrot.lane.b32.xlu0 %v321, 103
      %v506 = vpop.permute.xlu0 %505
      %507 = vrot.lane.b32.xlu0 %v275, 103
      %v508 = vpop.permute.xlu0 %507
      %509 = vrot.lane.b32.xlu0 %v276, 103
      %v510 = vpop.permute.xlu0 %509
      %511 = vrot.lane.b32.xlu0 %v322, 103
      %v512 = vpop.permute.xlu0 %511
      %513 = vrot.lane.b32.xlu0 %v323, 103
      %v514 = vpop.permute.xlu0 %513
      %515 = vrot.lane.b32.xlu0 %v278, 103
      %v516 = vpop.permute.xlu0 %515
      %517 = vrot.lane.b32.xlu0 %v279, 103
      %v518 = vpop.permute.xlu0 %517
      %519 = vrot.lane.b32.xlu0 %v324, 103
      %v520 = vpop.permute.xlu0 %519
      %521 = vrot.lane.b32.xlu0 %v325, 103
      %v522 = vpop.permute.xlu0 %521
      %523 = vrot.lane.b32.xlu0 %v281, 103
      %v524 = vpop.permute.xlu0 %523
      %525 = vrot.lane.b32.xlu0 %v282, 103
      %v526 = vpop.permute.xlu0 %525
      %527 = vrot.lane.b32.xlu0 %v326, 103
      %v528 = vpop.permute.xlu0 %527
      %529 = vrot.lane.b32.xlu0 %v327, 103
      %v530 = vpop.permute.xlu0 %529
      %vm531 = vcmask 842752
      %v532 = vsel %vm531, %v500, %v502
      %v533 = vsel %vm531, %v502, %v504
      %v534 = vsel %vm531, %v504, %v506
      %v535 = vsel %vm531, %v508, %v510
      %v536 = vsel %vm531, %v510, %v512
      %v537 = vsel %vm531, %v512, %v514
      %v538 = vsel %vm531, %v516, %v518
      %v539 = vsel %vm531, %v518, %v520
      %v540 = vsel %vm531, %v520, %v522
      %v541 = vsel %vm531, %v524, %v526
      %v542 = vsel %vm531, %v526, %v528
      %v543 = vsel %vm531, %v528, %v530
      %556 = vrot.lane.b32.xlu0 %v272, 102
      %v557 = vpop.permute.xlu0 %556
      %558 = vrot.lane.b32.xlu0 %v273, 102
      %v559 = vpop.permute.xlu0 %558
      %560 = vrot.lane.b32.xlu0 %v320, 102
      %v561 = vpop.permute.xlu0 %560
      %562 = vrot.lane.b32.xlu0 %v321, 102
      %v563 = vpop.permute.xlu0 %562
      %564 = vrot.lane.b32.xlu0 %v275, 102
      %v565 = vpop.permute.xlu0 %564
      %566 = vrot.lane.b32.xlu0 %v276, 102
      %v567 = vpop.permute.xlu0 %566
      %568 = vrot.lane.b32.xlu0 %v322, 102
      %v569 = vpop.permute.xlu0 %568
      %570 = vrot.lane.b32.xlu0 %v323, 102
      %v571 = vpop.permute.xlu0 %570
      %572 = vrot.lane.b32.xlu0 %v278, 102
      %v573 = vpop.permute.xlu0 %572
      %574 = vrot.lane.b32.xlu0 %v279, 102
      %v575 = vpop.permute.xlu0 %574
      %576 = vrot.lane.b32.xlu0 %v324, 102
      %v577 = vpop.permute.xlu0 %576
      %578 = vrot.lane.b32.xlu0 %v325, 102
      %v579 = vpop.permute.xlu0 %578
      %580 = vrot.lane.b32.xlu0 %v281, 102
      %v581 = vpop.permute.xlu0 %580
      %582 = vrot.lane.b32.xlu0 %v282, 102
      %v583 = vpop.permute.xlu0 %582
      %584 = vrot.lane.b32.xlu0 %v326, 102
      %v585 = vpop.permute.xlu0 %584
      %586 = vrot.lane.b32.xlu0 %v327, 102
      %v587 = vpop.permute.xlu0 %586
      %vm588 = vcmask 834560
      %v589 = vsel %vm588, %v557, %v559
      %v590 = vsel %vm588, %v559, %v561
      %v591 = vsel %vm588, %v561, %v563
      %v592 = vsel %vm588, %v565, %v567
      %v593 = vsel %vm588, %v567, %v569
      %v594 = vsel %vm588, %v569, %v571
      %v595 = vsel %vm588, %v573, %v575
      %v596 = vsel %vm588, %v575, %v577
      %v597 = vsel %vm588, %v577, %v579
      %v598 = vsel %vm588, %v581, %v583
      %v599 = vsel %vm588, %v583, %v585
      %v600 = vsel %vm588, %v585, %v587
      %613 = vrot.lane.b32.xlu0 %v272, 80
      %v614 = vpop.permute.xlu0 %613
      %615 = vrot.lane.b32.xlu0 %v273, 80
      %v616 = vpop.permute.xlu0 %615
      %617 = vrot.lane.b32.xlu0 %v320, 80
      %v618 = vpop.permute.xlu0 %617
      %619 = vrot.lane.b32.xlu0 %v321, 80
      %v620 = vpop.permute.xlu0 %619
      %621 = vrot.lane.b32.xlu0 %v275, 80
      %v622 = vpop.permute.xlu0 %621
      %623 = vrot.lane.b32.xlu0 %v276, 80
      %v624 = vpop.permute.xlu0 %623
      %625 = vrot.lane.b32.xlu0 %v322, 80
      %v626 = vpop.permute.xlu0 %625
      %627 = vrot.lane.b32.xlu0 %v323, 80
      %v628 = vpop.permute.xlu0 %627
      %629 = vrot.lane.b32.xlu0 %v278, 80
      %v630 = vpop.permute.xlu0 %629
      %631 = vrot.lane.b32.xlu0 %v279, 80
      %v632 = vpop.permute.xlu0 %631
      %633 = vrot.lane.b32.xlu0 %v324, 80
      %v634 = vpop.permute.xlu0 %633
      %635 = vrot.lane.b32.xlu0 %v325, 80
      %v636 = vpop.permute.xlu0 %635
      %637 = vrot.lane.b32.xlu0 %v281, 80
      %v638 = vpop.permute.xlu0 %637
      %639 = vrot.lane.b32.xlu0 %v282, 80
      %v640 = vpop.permute.xlu0 %639
      %641 = vrot.lane.b32.xlu0 %v326, 80
      %v642 = vpop.permute.xlu0 %641
      %643 = vrot.lane.b32.xlu0 %v327, 80
      %v644 = vpop.permute.xlu0 %643
      %vm645 = vcmask 654336
      %v646 = vsel %vm645, %v614, %v616
      %v647 = vsel %vm645, %v616, %v618
      %v648 = vsel %vm645, %v618, %v620
      %v649 = vsel %vm645, %v622, %v624
      %v650 = vsel %vm645, %v624, %v626
      %v651 = vsel %vm645, %v626, %v628
      %v652 = vsel %vm645, %v630, %v632
      %v653 = vsel %vm645, %v632, %v634
      %v654 = vsel %vm645, %v634, %v636
      %v655 = vsel %vm645, %v638, %v640
      %v656 = vsel %vm645, %v640, %v642
      %v657 = vsel %vm645, %v642, %v644
      %670 = vrot.lane.b32.xlu0 %v272, 79
      %v671 = vpop.permute.xlu0 %670
      %672 = vrot.lane.b32.xlu0 %v273, 79
      %v673 = vpop.permute.xlu0 %672
      %674 = vrot.lane.b32.xlu0 %v320, 79
      %v675 = vpop.permute.xlu0 %674
      %676 = vrot.lane.b32.xlu0 %v321, 79
      %v677 = vpop.permute.xlu0 %676
      %678 = vrot.lane.b32.xlu0 %v275, 79
      %v679 = vpop.permute.xlu0 %678
      %680 = vrot.lane.b32.xlu0 %v276, 79
      %v681 = vpop.permute.xlu0 %680
      %682 = vrot.lane.b32.xlu0 %v322, 79
      %v683 = vpop.permute.xlu0 %682
      %684 = vrot.lane.b32.xlu0 %v323, 79
      %v685 = vpop.permute.xlu0 %684
      %686 = vrot.lane.b32.xlu0 %v278, 79
      %v687 = vpop.permute.xlu0 %686
      %688 = vrot.lane.b32.xlu0 %v279, 79
      %v689 = vpop.permute.xlu0 %688
      %690 = vrot.lane.b32.xlu0 %v324, 79
      %v691 = vpop.permute.xlu0 %690
      %692 = vrot.lane.b32.xlu0 %v325, 79
      %v693 = vpop.permute.xlu0 %692
      %694 = vrot.lane.b32.xlu0 %v281, 79
      %v695 = vpop.permute.xlu0 %694
      %696 = vrot.lane.b32.xlu0 %v282, 79
      %v697 = vpop.permute.xlu0 %696
      %698 = vrot.lane.b32.xlu0 %v326, 79
      %v699 = vpop.permute.xlu0 %698
      %700 = vrot.lane.b32.xlu0 %v327, 79
      %v701 = vpop.permute.xlu0 %700
      %vm702 = vcmask 646144
      %v703 = vsel %vm702, %v671, %v673
      %v704 = vsel %vm702, %v673, %v675
      %v705 = vsel %vm702, %v675, %v677
      %v706 = vsel %vm702, %v679, %v681
      %v707 = vsel %vm702, %v681, %v683
      %v708 = vsel %vm702, %v683, %v685
      %v709 = vsel %vm702, %v687, %v689
      %v710 = vsel %vm702, %v689, %v691
      %v711 = vsel %vm702, %v691, %v693
      %v712 = vsel %vm702, %v695, %v697
      %v713 = vsel %vm702, %v697, %v699
      %v714 = vsel %vm702, %v699, %v701
      %727 = vrot.lane.b32.xlu0 %v272, 78
      %v728 = vpop.permute.xlu0 %727
      %729 = vrot.lane.b32.xlu0 %v273, 78
      %v730 = vpop.permute.xlu0 %729
      %731 = vrot.lane.b32.xlu0 %v320, 78
      %v732 = vpop.permute.xlu0 %731
      %733 = vrot.lane.b32.xlu0 %v321, 78
      %v734 = vpop.permute.xlu0 %733
      %735 = vrot.lane.b32.xlu0 %v275, 78
      %v736 = vpop.permute.xlu0 %735
      %737 = vrot.lane.b32.xlu0 %v276, 78
      %v738 = vpop.permute.xlu0 %737
      %739 = vrot.lane.b32.xlu0 %v322, 78
      %v740 = vpop.permute.xlu0 %739
      %741 = vrot.lane.b32.xlu0 %v323, 78
      %v742 = vpop.permute.xlu0 %741
      %743 = vrot.lane.b32.xlu0 %v278, 78
      %v744 = vpop.permute.xlu0 %743
      %745 = vrot.lane.b32.xlu0 %v279, 78
      %v746 = vpop.permute.xlu0 %745
      %747 = vrot.lane.b32.xlu0 %v324, 78
      %v748 = vpop.permute.xlu0 %747
      %749 = vrot.lane.b32.xlu0 %v325, 78
      %v750 = vpop.permute.xlu0 %749
      %751 = vrot.lane.b32.xlu0 %v281, 78
      %v752 = vpop.permute.xlu0 %751
      %753 = vrot.lane.b32.xlu0 %v282, 78
      %v754 = vpop.permute.xlu0 %753
      %755 = vrot.lane.b32.xlu0 %v326, 78
      %v756 = vpop.permute.xlu0 %755
      %757 = vrot.lane.b32.xlu0 %v327, 78
      %v758 = vpop.permute.xlu0 %757
      %vm759 = vcmask 637952
      %v760 = vsel %vm759, %v728, %v730
      %v761 = vsel %vm759, %v730, %v732
      %v762 = vsel %vm759, %v732, %v734
      %v763 = vsel %vm759, %v736, %v738
      %v764 = vsel %vm759, %v738, %v740
      %v765 = vsel %vm759, %v740, %v742
      %v766 = vsel %vm759, %v744, %v746
      %v767 = vsel %vm759, %v746, %v748
      %v768 = vsel %vm759, %v748, %v750
      %v769 = vsel %vm759, %v752, %v754
      %v770 = vsel %vm759, %v754, %v756
      %v771 = vsel %vm759, %v756, %v758
      %v784 = vld [vmem:[%s1] sm:$0xff]
      %v785 = vld [vmem:[%s1 + $0x8] sm:$0xff]
      %v786 = vld [vmem:[%s1 + $0x10] sm:$0xf]
      %v787 = vld [vmem:[%s2] sm:$0xff]
      %789 = vset.pattern.permute.xlu0 0
      %790 = vperm.xlu0 %789, %v787
      %v791 = vpop.permute.xlu0 %790
      %v796 = vunpack.c.l.b16 %v784
      %v797 = vunpack.c.h.b16 %v784
      %v798 = vunpack.c.l.b16 %v785
      %v799 = vunpack.c.h.b16 %v785
      %v800 = vunpack.c.l.b16 %v786
      %v801 = vpack.c.b16 %v796, %v796
      %v802 = vpack.c.b16 %v797, %v797
      %v803 = vpack.c.b16 %v798, %v798
      %v804 = vpack.c.b16 %v799, %v799
      %v805 = vpack.c.b16 %v800, %v800
      %vm810 = vcmask 523264
      %v812 = vsel %vm810, %v805, 0
      %814 = vmatprep.subr.bf16.mxu0 %v273
      %815 = vmatpush1.bf16.msra.mxu0 %v272
      %816 = vmatprep.subr.bf16.mxu0 %v276
      %817 = vmatpush1.bf16.msra.mxu0 %v275
      %818 = vmatprep.subr.bf16.mxu0 %v279
      %819 = vmatpush1.bf16.msra.mxu0 %v278
      %820 = vmatprep.subr.bf16.mxu0 %v282
      %821 = vmatpush1.bf16.msra.mxu0 %v281
      %822 = vmatprep.subr.bf16.mxu0 %v362
      %823 = vmatpush1.bf16.msra.mxu0 %v361
      %824 = vmatprep.subr.bf16.mxu0 %v365
      %825 = vmatpush1.bf16.msra.mxu0 %v364
      %826 = vmatprep.subr.bf16.mxu0 %v368
      %827 = vmatpush1.bf16.msra.mxu0 %v367
      %828 = vmatprep.subr.bf16.mxu0 %v371
      %829 = vmatpush1.bf16.msra.mxu0 %v370
      %830 = vmatprep.subr.bf16.mxu0 %v419
      %831 = vmatpush1.bf16.msra.mxu0 %v418
      %832 = vmatprep.subr.bf16.mxu0 %v422
      %833 = vmatpush1.bf16.msra.mxu0 %v421
      %834 = vmatprep.subr.bf16.mxu0 %v425
      %835 = vmatpush1.bf16.msra.mxu0 %v424
      %836 = vmatprep.subr.bf16.mxu0 %v428
      %837 = vmatpush1.bf16.msra.mxu0 %v427
      %838 = vmatprep.subr.bf16.mxu0 %v476
      %839 = vmatpush1.bf16.msra.mxu0 %v475
      %840 = vmatprep.subr.bf16.mxu0 %v479
      %841 = vmatpush1.bf16.msra.mxu0 %v478
      %842 = vmatprep.subr.bf16.mxu0 %v482
      %843 = vmatpush1.bf16.msra.mxu0 %v481
      %844 = vmatprep.subr.bf16.mxu0 %v485
      %845 = vmatpush1.bf16.msra.mxu0 %v484
      %846 = vmatprep.mubr.bf16.mxu0 %v802
      %847 = vmatmul.mubr.bf16.gmra.mrb[0].mxu0 %v801
      %v848 = vpop.f32.mrb[0].mxu0
      %v849 = vadd.f32 %v791, %v848
      %v850 = vpop.f32.mrb[0].mxu0
      %v851 = vadd.f32 %v791, %v850
      %v852 = vpop.f32.mrb[0].mxu0
      %v853 = vpop.f32.mrb[0].mxu0
      %854 = vdwg.mxu0
      %855 = vmatprep.subr.bf16.mxu0 %v533
      %856 = vmatpush1.bf16.msra.mxu0 %v532
      %857 = vmatprep.subr.bf16.mxu0 %v536
      %858 = vmatpush1.bf16.msra.mxu0 %v535
      %859 = vmatprep.subr.bf16.mxu0 %v539
      %860 = vmatpush1.bf16.msra.mxu0 %v538
      %861 = vmatprep.subr.bf16.mxu0 %v542
      %862 = vmatpush1.bf16.msra.mxu0 %v541
      %863 = vmatprep.subr.bf16.mxu0 %v590
      %864 = vmatpush1.bf16.msra.mxu0 %v589
      %865 = vmatprep.subr.bf16.mxu0 %v593
      %866 = vmatpush1.bf16.msra.mxu0 %v592
      %867 = vmatprep.subr.bf16.mxu0 %v596
      %868 = vmatpush1.bf16.msra.mxu0 %v595
      %869 = vmatprep.subr.bf16.mxu0 %v599
      %870 = vmatpush1.bf16.msra.mxu0 %v598
      %871 = vmatprep.subr.bf16.mxu0 %v647
      %872 = vmatpush1.bf16.msra.mxu0 %v646
      %873 = vmatprep.subr.bf16.mxu0 %v650
      %874 = vmatpush1.bf16.msra.mxu0 %v649
      %875 = vmatprep.subr.bf16.mxu0 %v653
      %876 = vmatpush1.bf16.msra.mxu0 %v652
      %877 = vmatprep.subr.bf16.mxu0 %v656
      %878 = vmatpush1.bf16.msra.mxu0 %v655
      %879 = vmatprep.subr.bf16.mxu0 %v704
      %880 = vmatpush1.bf16.msra.mxu0 %v703
      %881 = vmatprep.subr.bf16.mxu0 %v707
      %882 = vmatpush1.bf16.msra.mxu0 %v706
      %883 = vmatprep.subr.bf16.mxu0 %v710
      %884 = vmatpush1.bf16.msra.mxu0 %v709
      %885 = vmatprep.subr.bf16.mxu0 %v713
      %886 = vmatpush1.bf16.msra.mxu0 %v712
      %887 = vmatprep.mubr.bf16.mxu0 %v804
      %888 = vmatmul.mubr.bf16.gmra.mrb[0].mxu0 %v803
      %v889 = vpop.f32.mrb[0].mxu0
      %v890 = vadd.f32 %v849, %v889
      %v891 = vpop.f32.mrb[0].mxu0
      %v892 = vadd.f32 %v851, %v891
      %v893 = vpop.f32.mrb[0].mxu0
      %v894 = vpop.f32.mrb[0].mxu0
      %895 = vdwg.mxu0
      %896 = vmatprep.subr.bf16.mxu0 %v761
      %897 = vmatpush1.bf16.msra.mxu0 %v760
      %898 = vmatprep.subr.bf16.mxu0 %v764
      %899 = vmatpush1.bf16.msra.mxu0 %v763
      %900 = vmatprep.subr.bf16.mxu0 %v767
      %901 = vmatpush1.bf16.msra.mxu0 %v766
      %902 = vmatprep.subr.bf16.mxu0 %v770
      %903 = vmatpush1.bf16.msra.mxu0 %v769
      %904 = vmatprep.subr.bf16.mxu0 0
      %905 = vmatpush1.bf16.msra.mxu0 0
      %906 = vmatprep.subr.bf16.mxu0 0
      %907 = vmatpush1.bf16.msra.mxu0 0
      %908 = vmatprep.subr.bf16.mxu0 0
      %909 = vmatpush1.bf16.msra.mxu0 0
      %910 = vmatprep.subr.bf16.mxu0 0
      %911 = vmatpush1.bf16.msra.mxu0 0
      %912 = vmatprep.subr.bf16.mxu0 0
      %913 = vmatpush1.bf16.msra.mxu0 0
      %914 = vmatprep.subr.bf16.mxu0 0
      %915 = vmatpush1.bf16.msra.mxu0 0
      %916 = vmatprep.subr.bf16.mxu0 0
      %917 = vmatpush1.bf16.msra.mxu0 0
      %918 = vmatprep.subr.bf16.mxu0 0
      %919 = vmatpush1.bf16.msra.mxu0 0
      %920 = vmatprep.subr.bf16.mxu0 0
      %921 = vmatpush1.bf16.msra.mxu0 0
      %922 = vmatprep.subr.bf16.mxu0 0
      %923 = vmatpush1.bf16.msra.mxu0 0
      %924 = vmatprep.subr.bf16.mxu0 0
      %925 = vmatpush1.bf16.msra.mxu0 0
      %926 = vmatprep.subr.bf16.mxu0 0
      %927 = vmatpush1.bf16.msra.mxu0 0
      %928 = vmatprep.mubr.bf16.mxu0 0
      %929 = vmatmul.mubr.bf16.gmra.mrb[0].mxu0 %v812
      %v930 = vpop.f32.mrb[0].mxu0
      %v931 = vadd.f32 %v890, %v930
      %v932 = vpop.f32.mrb[0].mxu0
      %v933 = vadd.f32 %v892, %v932
      %v934 = vpop.f32.mrb[0].mxu0
      %v935 = vpop.f32.mrb[0].mxu0
      %936 = vdwg.mxu0
      %937 = vmatprep.subr.bf16.mxu0 0
      %938 = vmatpush1.bf16.msra.mxu0 %v274
      %939 = vmatprep.subr.bf16.mxu0 0
      %940 = vmatpush1.bf16.msra.mxu0 %v277
      %941 = vmatprep.subr.bf16.mxu0 0
      %942 = vmatpush1.bf16.msra.mxu0 %v280
      %943 = vmatprep.subr.bf16.mxu0 0
      %944 = vmatpush1.bf16.msra.mxu0 %v283
      %945 = vmatprep.subr.bf16.mxu0 0
      %946 = vmatpush1.bf16.msra.mxu0 %v363
      %947 = vmatprep.subr.bf16.mxu0 0
      %948 = vmatpush1.bf16.msra.mxu0 %v366
      %949 = vmatprep.subr.bf16.mxu0 0
      %950 = vmatpush1.bf16.msra.mxu0 %v369
      %951 = vmatprep.subr.bf16.mxu0 0
      %952 = vmatpush1.bf16.msra.mxu0 %v372
      %953 = vmatprep.subr.bf16.mxu0 0
      %954 = vmatpush1.bf16.msra.mxu0 %v420
      %955 = vmatprep.subr.bf16.mxu0 0
      %956 = vmatpush1.bf16.msra.mxu0 %v423
      %957 = vmatprep.subr.bf16.mxu0 0
      %958 = vmatpush1.bf16.msra.mxu0 %v426
      %959 = vmatprep.subr.bf16.mxu0 0
      %960 = vmatpush1.bf16.msra.mxu0 %v429
      %961 = vmatprep.subr.bf16.mxu0 0
      %962 = vmatpush1.bf16.msra.mxu0 %v477
      %963 = vmatprep.subr.bf16.mxu0 0
      %964 = vmatpush1.bf16.msra.mxu0 %v480
      %965 = vmatprep.subr.bf16.mxu0 0
      %966 = vmatpush1.bf16.msra.mxu0 %v483
      %967 = vmatprep.subr.bf16.mxu0 0
      %968 = vmatpush1.bf16.msra.mxu0 %v486
      %969 = vmatprep.mubr.bf16.mxu0 %v802
      %970 = vmatmul.mubr.bf16.gmra.mrb[0].mxu0 %v801
      %v971 = vpop.f32.mrb[0].mxu0
      %v972 = vadd.f32 %v791, %v971
      %v973 = vpop.f32.mrb[0].mxu0
      %v974 = vpop.f32.mrb[0].mxu0
      %v975 = vpop.f32.mrb[0].mxu0
      %976 = vdwg.mxu0
      %977 = vmatprep.subr.bf16.mxu0 0
      %978 = vmatpush1.bf16.msra.mxu0 %v534
      %979 = vmatprep.subr.bf16.mxu0 0
      %980 = vmatpush1.bf16.msra.mxu0 %v537
      %981 = vmatprep.subr.bf16.mxu0 0
      %982 = vmatpush1.bf16.msra.mxu0 %v540
      %983 = vmatprep.subr.bf16.mxu0 0
      %984 = vmatpush1.bf16.msra.mxu0 %v543
      %985 = vmatprep.subr.bf16.mxu0 0
      %986 = vmatpush1.bf16.msra.mxu0 %v591
      %987 = vmatprep.subr.bf16.mxu0 0
      %988 = vmatpush1.bf16.msra.mxu0 %v594
      %989 = vmatprep.subr.bf16.mxu0 0
      %990 = vmatpush1.bf16.msra.mxu0 %v597
      %991 = vmatprep.subr.bf16.mxu0 0
      %992 = vmatpush1.bf16.msra.mxu0 %v600
      %993 = vmatprep.subr.bf16.mxu0 0
      %994 = vmatpush1.bf16.msra.mxu0 %v648
      %995 = vmatprep.subr.bf16.mxu0 0
      %996 = vmatpush1.bf16.msra.mxu0 %v651
      %997 = vmatprep.subr.bf16.mxu0 0
      %998 = vmatpush1.bf16.msra.mxu0 %v654
      %999 = vmatprep.subr.bf16.mxu0 0
      %1000 = vmatpush1.bf16.msra.mxu0 %v657
      %1001 = vmatprep.subr.bf16.mxu0 0
      %1002 = vmatpush1.bf16.msra.mxu0 %v705
      %1003 = vmatprep.subr.bf16.mxu0 0
      %1004 = vmatpush1.bf16.msra.mxu0 %v708
      %1005 = vmatprep.subr.bf16.mxu0 0
      %1006 = vmatpush1.bf16.msra.mxu0 %v711
      %1007 = vmatprep.subr.bf16.mxu0 0
      %1008 = vmatpush1.bf16.msra.mxu0 %v714
      %1009 = vmatprep.mubr.bf16.mxu0 %v804
      %1010 = vmatmul.mubr.bf16.gmra.mrb[0].mxu0 %v803
      %v1011 = vpop.f32.mrb[0].mxu0
      %v1012 = vadd.f32 %v972, %v1011
      %v1013 = vpop.f32.mrb[0].mxu0
      %v1014 = vpop.f32.mrb[0].mxu0
      %v1015 = vpop.f32.mrb[0].mxu0
      %1016 = vdwg.mxu0
      %1017 = vmatprep.subr.bf16.mxu0 0
      %1018 = vmatpush1.bf16.msra.mxu0 %v762
      %1019 = vmatprep.subr.bf16.mxu0 0
      %1020 = vmatpush1.bf16.msra.mxu0 %v765
      %1021 = vmatprep.subr.bf16.mxu0 0
      %1022 = vmatpush1.bf16.msra.mxu0 %v768
      %1023 = vmatprep.subr.bf16.mxu0 0
      %1024 = vmatpush1.bf16.msra.mxu0 %v771
      %1025 = vmatprep.subr.bf16.mxu0 0
      %1026 = vmatpush1.bf16.msra.mxu0 0
      %1027 = vmatprep.subr.bf16.mxu0 0
      %1028 = vmatpush1.bf16.msra.mxu0 0
      %1029 = vmatprep.subr.bf16.mxu0 0
      %1030 = vmatpush1.bf16.msra.mxu0 0
      %1031 = vmatprep.subr.bf16.mxu0 0
      %1032 = vmatpush1.bf16.msra.mxu0 0
      %1033 = vmatprep.subr.bf16.mxu0 0
      %1034 = vmatpush1.bf16.msra.mxu0 0
      %1035 = vmatprep.subr.bf16.mxu0 0
      %1036 = vmatpush1.bf16.msra.mxu0 0
      %1037 = vmatprep.subr.bf16.mxu0 0
      %1038 = vmatpush1.bf16.msra.mxu0 0
      %1039 = vmatprep.subr.bf16.mxu0 0
      %1040 = vmatpush1.bf16.msra.mxu0 0
      %1041 = vmatprep.subr.bf16.mxu0 0
      %1042 = vmatpush1.bf16.msra.mxu0 0
      %1043 = vmatprep.subr.bf16.mxu0 0
      %1044 = vmatpush1.bf16.msra.mxu0 0
      %1045 = vmatprep.subr.bf16.mxu0 0
      %1046 = vmatpush1.bf16.msra.mxu0 0
      %1047 = vmatprep.subr.bf16.mxu0 0
      %1048 = vmatpush1.bf16.msra.mxu0 0
      %1049 = vmatprep.mubr.bf16.mxu0 0
      %1050 = vmatmul.mubr.bf16.gmra.mrb[0].mxu0 %v812
      %v1051 = vpop.f32.mrb[0].mxu0
      %v1052 = vadd.f32 %v1012, %v1051
      %v1053 = vpop.f32.mrb[0].mxu0
      %v1054 = vpop.f32.mrb[0].mxu0
      %v1055 = vpop.f32.mrb[0].mxu0
      %1056 = vdwg.mxu0
      %v1057 = vmax.f32 %v931, 0.0
      %v1058 = vmax.f32 %v933, 0.0
      %v1059 = vmax.f32 %v1052, 0.0
      %1060 = vst [vmem:[%s206] sm:$0xff] %v1057
      %1061 = vst [vmem:[%s206 + $0x8] sm:$0xff] %v1058
      %1062 = vst [vmem:[%s206 + $0x10] sm:$0xff] %v1059
      %p1063 = scmp.lt.s32.totalorder %s18, 1
      %s1064 = scalar_select %p1063, %s18, 1
      %p1065 = scmp.lt.s32.totalorder %s19, 0
      %s1066 = scalar_select %p1065, %s19, 0
      %s1067 = smul.addr %s1066, 3
      %s1068 = smul.addr %s1064, 3
      %s1069 = sadd.s32 %s1067, %s1068
      %s1070 = smul.addr %s1069, 8
      %s1071 = scalar_lea.vmem %s3, %s1070
      // Predicated region
      $region33: #{_lambda_.13} parent=31 // pred_check
        %p1072 = pneg %p116
      $region34: #{_lambda_.13} parent=31 // pred_check_branch
        %1074 = sbr.rel (%p1072) target = $region36
      $region35: #{_lambda_.13} parent=31 // pred_region
        _
      $region36: #{_lambda_.13} parent=31 // pred_fallthru
        _
    $region32: #{_lambda_.13} parent=5 // pred_fallthru
      _
    %p1075 = scmp.le.s32.totalorder 2, %s9
    // Predicated region
    $region37: #{_lambda_.13} parent=5 // pred_check
      %p1076 = pneg %p1075
    $region38: #{_lambda_.13} parent=5 // pred_check_branch
      %1078 = sbr.rel (%p1076) target = $region40
    $region39: #{_lambda_.13} parent=5 // pred_region
      %s1079 = ssub.s32 %s9, 2
      // Predicated region
      $region41: #{_lambda_.13} parent=39 // pred_check
        %p1080 = pneg %p122
      $region42: #{_lambda_.13} parent=39 // pred_check_branch
        %1082 = sbr.rel (%p1080) target = $region44
      $region43: #{_lambda_.13} parent=39 // pred_region
        %p1083 = scmp.lt.s32.totalorder %s20, 1
        %s1084 = scalar_select %p1083, %s20, 1
        %p1085 = scmp.lt.s32.totalorder %s21, 0
        %s1086 = scalar_select %p1085, %s21, 0
        %s1087 = smul.addr %s1086, 3
        %s1088 = smul.addr %s1084, 3
        %s1089 = sadd.s32 %s1087, %s1088
        %s1090 = smul.addr %s1089, 8
        %s1091 = scalar_lea.vmem %s3, %s1090
      $region44: #{_lambda_.13} parent=39 // pred_fallthru
        _
    $region40: #{_lambda_.13} parent=5 // pred_fallthru
      _
  $region6: #{_lambda_.13} parent=0 // loop_footer
    %s13 = sadd.s32 1, %s9
  $region7: #{_lambda_.13} parent=0 // loop_footer_branch
    %8 = sbr.rel target = $region3
  $region8: #{_lambda_.13} parent=0 // loop_exit
    _

</llo_original>
